<compile_context>
chip_gen: v5e
topology: v5e:2x2
jax: 0.10.0
libtpu: 0.0.40
codegen_flags: <defaults>
</compile_context>

<pallas_src>
import functools

import jax
import jax.numpy as jnp
from jax.experimental import pallas as pl
from jax.experimental.pallas import tpu as pltpu


def _mish(x):
    # x * tanh(softplus(x)) with a single transcendental:
    #   tanh(log(1 + e^x)) = ((1 + e^x)^2 - 1) / ((1 + e^x)^2 + 1)
    # The clamp keeps e^x finite; for x >= 20 the ratio is exactly 1.0 in f32.
    e = jnp.exp(jnp.minimum(x, 20.0))
    t = (1.0 + e) * (1.0 + e)
    return x * (t - 1.0) / (t + 1.0)


def _make_kernel(cin, cout, w, tm):
    del cin, tm  # shapes are carried by the refs

    def conv(w_ref, a3):
        """Pointwise conv: (n_out, n_in) SMEM weights x (n_in, W, TM) activations.

        VPU broadcast-FMA (scalar * lane-dense plane); the MXU would run at <1%
        utilization for K = 4..8 contractions, so it is not used at all.
        """
        n_out, n_in = w_ref.shape
        outs = []
        for o in range(n_out):
            acc = w_ref[o, 0] * a3[0]
            for ci in range(1, n_in):
                acc = acc + w_ref[o, ci] * a3[ci]
            outs.append(acc)
        return jnp.stack(outs, axis=0)                       # (n_out, W, TM)

    def kernel(x_ref, wq_ref, wr1_ref, wb1a_ref, wb1b_ref, wb2a_ref, wb2b_ref,
               beta_ref, out_ref):
        # ---- Mish + pointwise conv chain; channel = outer dim, lane = slices ----
        mx = _mish(x_ref[...].astype(jnp.float32))           # (Cin, W, TM)

        q3 = conv(wq_ref, mx)                                 # query path
        r13 = conv(wr1_ref, mx)                               # Resblock3D(Cin,Cout)
        b13 = conv(wb1b_ref, conv(wb1a_ref, mx))
        y13 = _mish(r13 + b13)
        b23 = conv(wb2b_ref, conv(wb2a_ref, _mish(y13)))      # Resblock3D(Cout,Cout)
        v3 = _mish(y13 + b23)                                 # value, (Cout, W, TM)

        # ---- attention over W per slice; lane axis carries the B*D*H slices ----
        # E_s[j, i] = sum_c Q_s[c, j] Q_s[c, i] is symmetric, so the PyTorch
        #   out[c, j] = sum_i V[c, i] * softmax(E)[i, j]
        # becomes (with exact per-row max m[i] and row sum l[i]):
        #   out[c, j] = sum_i exp(E[j, i] - m[i]) * (V[c, i] / l[i])
        # Every op below is a lane-dense (W, TM)/(Cout, W, TM) elementwise op or
        # a sublane reduction over the W axis.
        beta = beta_ref[0]                                    # SMEM scalar
        acc3 = jnp.zeros_like(v3)
        for i in range(w):
            e_i = jnp.sum(q3 * q3[:, i:i + 1, :], axis=0)     # (W, TM) = E_s[:, i]
            m_i = jnp.max(e_i, axis=0, keepdims=True)         # (1, TM) per-row max
            p_i = jnp.exp(e_i - m_i)                          # (W, TM), lane-dense exp
            inv_l = pl.reciprocal(jnp.sum(p_i, axis=0, keepdims=True), approx=True)
            vn_i = v3[:, i:i + 1, :] * inv_l                  # (Cout, 1, TM)
            acc3 = acc3 + p_i[None, :, :] * vn_i              # (Cout, W, TM)

        out_ref[...] = (beta * acc3 + v3).astype(out_ref.dtype)

    return kernel


def _round_up(a, b):
    return ((a + b - 1) // b) * b


def _cdiv(a, b):
    return (a + b - 1) // b


@functools.partial(jax.jit, static_argnames=("tm",))
def self_attn_forward(x, params, *, tm=512):
    """x: (B, Cin, D, H, W) NCDHW (f32 or bf16), like the PyTorch module."""
    wq, wr1, wb1a, wb1b, wb2a, wb2b, beta = params
    B, Cin, D, H, W = x.shape
    Cout = wq.shape[0]
    M = B * D * H                                    # number of attention slices
    io_dtype = x.dtype

    # Lane-dense tile along the fused slice axis: TM multiple of 128.  Prefer a
    # grid of >= 4 steps when M allows so both v7x TensorCores stay busy.
    TM = _round_up(max(1, min(tm, M)), 128)
    while TM > 128 and _cdiv(M, TM) < 4 and M > 2 * 128:
        TM -= 128
    Mp = _round_up(M, TM)
    grid = (Mp // TM,)

    # NCDHW -> channel-major (Cin, W, M) with the big fused slice axis on lanes;
    # zero-pad the slice axis so every block (and the softmax on padded slices)
    # stays finite.
    x_t = jnp.transpose(x, (1, 4, 0, 2, 3)).reshape(Cin, W, M)
    if Mp != M:
        x_t = jnp.pad(x_t, ((0, 0), (0, 0), (0, Mp - M)))

    f32 = jnp.float32
    weights = [jnp.asarray(wq, f32), jnp.asarray(wr1, f32), jnp.asarray(wb1a, f32),
               jnp.asarray(wb1b, f32), jnp.asarray(wb2a, f32), jnp.asarray(wb2b, f32)]
    beta_arr = jnp.asarray(beta, f32).reshape((1,))

    # VMEM budget from the actual block sizes (+ headroom); safe on all gens.
    itemsize = jnp.dtype(io_dtype).itemsize
    plane_f32 = W * TM * 4
    io_blocks = 2 * (Cin + Cout) * W * TM * itemsize          # double-buffered I/O
    live_est = 40 * plane_f32                                 # live f32 intermediates
    vmem_limit = int(min(100 * 2**20, max(16 * 2**20, 2 * (io_blocks + live_est))))

    smem_spec = pl.BlockSpec(memory_space=pltpu.MemorySpace.SMEM)
    out_t = pl.pallas_call(
        _make_kernel(Cin, Cout, W, TM),
        out_shape=jax.ShapeDtypeStruct((Cout, W, Mp), io_dtype),
        grid_spec=pltpu.PrefetchScalarGridSpec(
            num_scalar_prefetch=0,
            grid=grid,
            in_specs=[pl.BlockSpec((Cin, W, TM), lambda i: (0, 0, i))]
                     + [smem_spec] * 7,                        # 6 weights + beta
            out_specs=pl.BlockSpec((Cout, W, TM), lambda i: (0, 0, i)),
        ),
        compiler_params=pltpu.CompilerParams(
            dimension_semantics=("parallel",),                 # megacore / v7x 2 TCs
            vmem_limit_bytes=vmem_limit,
        ),
    )(x_t, *weights, beta_arr)

    # (Cout, W, Mp) -> (Cout, W, B, D, H) -> NCDHW (B, Cout, D, H, W)
    out = out_t[:, :, :M].reshape(Cout, W, B, D, H)
    return jnp.transpose(out, (2, 0, 3, 4, 1))


def _ref_forward(x, params):
    """Pure-JAX reference mirroring the PyTorch forward (channel-last internally)."""
    wq, wr1, wb1a, wb1b, wb2a, wb2b, beta = params
    mish = lambda t: t * jnp.tanh(jax.nn.softplus(t))
    xc = jnp.transpose(x, (0, 2, 3, 4, 1))                    # (B,D,H,W,Cin)
    mx = mish(xc)
    q = mx @ wq.T                                             # query_conv
    energy = jnp.einsum('bdhwc,bdhuc->bdhwu', q, q)
    attn = jax.nn.softmax(energy, axis=-1)
    res1 = mx @ wr1.T                                         # Resblock3D(Cin,Cout)
    y1 = mish(res1 + (mx @ wb1a.T) @ wb1b.T)
    v = mish(y1 + (mish(y1) @ wb2a.T) @ wb2b.T)               # Resblock3D(Cout,Cout)
    out_x = jnp.einsum('bdhuw,bdhuc->bdhwc', attn, v)
    out = beta * out_x + v
    return jnp.transpose(out, (0, 4, 1, 2, 3))                # NCDHW


if __name__ == "__main__":
    B, Cin, Cout, D, H, W = 2, 4, 8, 4, 8, 16                 # M = B*D*H = 64
    key = jax.random.PRNGKey(0)
    kx, k1, k2, k3, k4, k5, k6 = jax.random.split(key, 7)

    x = jax.random.normal(kx, (B, Cin, D, H, W), dtype=jnp.float32)

    # Conv3d 1x1x1, bias=False -> (out_ch, in_ch) weight matrices.
    wq = 0.2 * jax.random.normal(k1, (Cout, Cin), dtype=jnp.float32)
    wr1 = 0.2 * jax.random.normal(k2, (Cout, Cin), dtype=jnp.float32)
    wb1a = 0.2 * jax.random.normal(k3, (Cout // 2, Cin), dtype=jnp.float32)
    wb1b = 0.2 * jax.random.normal(k4, (Cout, Cout // 2), dtype=jnp.float32)
    wb2a = 0.2 * jax.random.normal(k5, (Cout // 2, Cout), dtype=jnp.float32)
    wb2b = 0.2 * jax.random.normal(k6, (Cout, Cout // 2), dtype=jnp.float32)

    # beta initialises to zero in the module (nn.Parameter(torch.zeros(1))).
    params0 = (wq, wr1, wb1a, wb1b, wb2a, wb2b, jnp.float32(0.0))
    out0 = jax.block_until_ready(self_attn_forward(x, params0))
    ref0 = _ref_forward(x, params0)
    assert out0.shape == (B, Cout, D, H, W)
    assert jnp.allclose(out0, ref0, atol=1e-3, rtol=1e-3), \
        float(jnp.max(jnp.abs(out0 - ref0)))

    # Nonzero beta exercises the attention branch (approx softmax reciprocal).
    params1 = (wq, wr1, wb1a, wb1b, wb2a, wb2b, jnp.float32(0.5))
    out1 = jax.block_until_ready(self_attn_forward(x, params1))
    ref1 = _ref_forward(x, params1)
    assert jnp.allclose(out1, ref1, atol=1e-3, rtol=1e-3), \
        float(jnp.max(jnp.abs(out1 - ref1)))

    # A larger shape that produces a multi-step grid (M = 256, TM = 128 -> 2 steps).
    x2 = jax.random.normal(kx, (2, Cin, 8, 16, W), dtype=jnp.float32)
    out2 = jax.block_until_ready(self_attn_forward(x2, params1, tm=128))
    ref2 = _ref_forward(x2, params1)
    assert jnp.allclose(out2, ref2, atol=1e-3, rtol=1e-3), \
        float(jnp.max(jnp.abs(out2 - ref2)))

    # bf16 I/O halves HBM/DMA traffic; all in-kernel math stays f32.
    out_bf = jax.block_until_ready(self_attn_forward(x.astype(jnp.bfloat16), params1))
    assert jnp.allclose(out_bf.astype(jnp.float32), ref1, atol=1e-1, rtol=1e-1), \
        float(jnp.max(jnp.abs(out_bf.astype(jnp.float32) - ref1)))

    print("KERNEL_OK")
</pallas_src>

<mosaic_0001>
module attributes {stable_mosaic.version = 11 : i64} {
  func.func @kernel(%arg0: i32, %arg1: memref<4x16x128xf32, #tpu.memory_space<vmem>>, %arg2: memref<8x4xf32, #tpu.memory_space<smem>>, %arg3: memref<8x4xf32, #tpu.memory_space<smem>>, %arg4: memref<4x4xf32, #tpu.memory_space<smem>>, %arg5: memref<8x4xf32, #tpu.memory_space<smem>>, %arg6: memref<4x8xf32, #tpu.memory_space<smem>>, %arg7: memref<8x4xf32, #tpu.memory_space<smem>>, %arg8: memref<1xf32, #tpu.memory_space<smem>>, %arg9: memref<8x16x128xf32, #tpu.memory_space<vmem>>) attributes {dimension_semantics = [#tpu.dimension_semantics<parallel>], iteration_bounds = array<i64: 1>, scalar_prefetch = 0 : i64, scratch_operands = 0 : i64, tpu.core_type = #tpu.core_type<tc>, window_params = [{transform_indices = @transform_0, window_bounds = array<i64: 4, 16, 128>}, {transform_indices = @transform_1, window_bounds = array<i64: 8, 4>}, {transform_indices = @transform_2, window_bounds = array<i64: 8, 4>}, {transform_indices = @transform_3, window_bounds = array<i64: 4, 4>}, {transform_indices = @transform_4, window_bounds = array<i64: 8, 4>}, {transform_indices = @transform_5, window_bounds = array<i64: 4, 8>}, {transform_indices = @transform_6, window_bounds = array<i64: 8, 4>}, {transform_indices = @transform_7, window_bounds = array<i64: 1>}, {transform_indices = @transform_8, window_bounds = array<i64: 8, 16, 128>}]} {
    %c0 = arith.constant 0 : index
    %c0_0 = arith.constant 0 : index
    %c0_1 = arith.constant 0 : index
    %0 = vector.load %arg1[%c0, %c0_0, %c0_1] : memref<4x16x128xf32, #tpu.memory_space<vmem>>, vector<4x16x128xf32>
    %cst = arith.constant 2.000000e+01 : f32
    %1 = vector.broadcast %cst : f32 to vector<4x16x128xf32>
    %2 = arith.minimumf %0, %1 : vector<4x16x128xf32>
    %3 = math.exp %2 : vector<4x16x128xf32>
    %cst_2 = arith.constant 1.000000e+00 : f32
    %4 = vector.broadcast %cst_2 : f32 to vector<4x16x128xf32>
    %5 = arith.addf %4, %3 : vector<4x16x128xf32>
    %cst_3 = arith.constant 1.000000e+00 : f32
    %6 = vector.broadcast %cst_3 : f32 to vector<4x16x128xf32>
    %7 = arith.addf %6, %3 : vector<4x16x128xf32>
    %8 = arith.mulf %5, %7 : vector<4x16x128xf32>
    %cst_4 = arith.constant 1.000000e+00 : f32
    %9 = vector.broadcast %cst_4 : f32 to vector<4x16x128xf32>
    %10 = arith.subf %8, %9 : vector<4x16x128xf32>
    %11 = arith.mulf %0, %10 : vector<4x16x128xf32>
    %cst_5 = arith.constant 1.000000e+00 : f32
    %12 = vector.broadcast %cst_5 : f32 to vector<4x16x128xf32>
    %13 = arith.addf %8, %12 : vector<4x16x128xf32>
    %14 = arith.divf %11, %13 : vector<4x16x128xf32>
    %c0_6 = arith.constant 0 : index
    %c0_7 = arith.constant 0 : index
    %15 = memref.load %arg2[%c0_6, %c0_7] : memref<8x4xf32, #tpu.memory_space<smem>>
    %16 = vector.extract_strided_slice %14 {offsets = [0, 0, 0], sizes = [1, 16, 128], strides = [1, 1, 1]} : vector<4x16x128xf32> to vector<1x16x128xf32>
    %17 = vector.shape_cast %16 : vector<1x16x128xf32> to vector<16x128xf32>
    %18 = vector.broadcast %15 : f32 to vector<16x128xf32>
    %19 = arith.mulf %18, %17 : vector<16x128xf32>
    %c0_8 = arith.constant 0 : index
    %c1 = arith.constant 1 : index
    %20 = memref.load %arg2[%c0_8, %c1] : memref<8x4xf32, #tpu.memory_space<smem>>
    %21 = vector.extract_strided_slice %14 {offsets = [1, 0, 0], sizes = [1, 16, 128], strides = [1, 1, 1]} : vector<4x16x128xf32> to vector<1x16x128xf32>
    %22 = vector.shape_cast %21 : vector<1x16x128xf32> to vector<16x128xf32>
    %23 = vector.broadcast %20 : f32 to vector<16x128xf32>
    %24 = arith.mulf %23, %22 : vector<16x128xf32>
    %25 = arith.addf %19, %24 : vector<16x128xf32>
    %c0_9 = arith.constant 0 : index
    %c2 = arith.constant 2 : index
    %26 = memref.load %arg2[%c0_9, %c2] : memref<8x4xf32, #tpu.memory_space<smem>>
    %27 = vector.extract_strided_slice %14 {offsets = [2, 0, 0], sizes = [1, 16, 128], strides = [1, 1, 1]} : vector<4x16x128xf32> to vector<1x16x128xf32>
    %28 = vector.shape_cast %27 : vector<1x16x128xf32> to vector<16x128xf32>
    %29 = vector.broadcast %26 : f32 to vector<16x128xf32>
    %30 = arith.mulf %29, %28 : vector<16x128xf32>
    %31 = arith.addf %25, %30 : vector<16x128xf32>
    %c0_10 = arith.constant 0 : index
    %c3 = arith.constant 3 : index
    %32 = memref.load %arg2[%c0_10, %c3] : memref<8x4xf32, #tpu.memory_space<smem>>
    %33 = vector.extract_strided_slice %14 {offsets = [3, 0, 0], sizes = [1, 16, 128], strides = [1, 1, 1]} : vector<4x16x128xf32> to vector<1x16x128xf32>
    %34 = vector.shape_cast %33 : vector<1x16x128xf32> to vector<16x128xf32>
    %35 = vector.broadcast %32 : f32 to vector<16x128xf32>
    %36 = arith.mulf %35, %34 : vector<16x128xf32>
    %37 = arith.addf %31, %36 : vector<16x128xf32>
    %c1_11 = arith.constant 1 : index
    %c0_12 = arith.constant 0 : index
    %38 = memref.load %arg2[%c1_11, %c0_12] : memref<8x4xf32, #tpu.memory_space<smem>>
    %39 = vector.extract_strided_slice %14 {offsets = [0, 0, 0], sizes = [1, 16, 128], strides = [1, 1, 1]} : vector<4x16x128xf32> to vector<1x16x128xf32>
    %40 = vector.shape_cast %39 : vector<1x16x128xf32> to vector<16x128xf32>
    %41 = vector.broadcast %38 : f32 to vector<16x128xf32>
    %42 = arith.mulf %41, %40 : vector<16x128xf32>
    %c1_13 = arith.constant 1 : index
    %c1_14 = arith.constant 1 : index
    %43 = memref.load %arg2[%c1_13, %c1_14] : memref<8x4xf32, #tpu.memory_space<smem>>
    %44 = vector.extract_strided_slice %14 {offsets = [1, 0, 0], sizes = [1, 16, 128], strides = [1, 1, 1]} : vector<4x16x128xf32> to vector<1x16x128xf32>
    %45 = vector.shape_cast %44 : vector<1x16x128xf32> to vector<16x128xf32>
    %46 = vector.broadcast %43 : f32 to vector<16x128xf32>
    %47 = arith.mulf %46, %45 : vector<16x128xf32>
    %48 = arith.addf %42, %47 : vector<16x128xf32>
    %c1_15 = arith.constant 1 : index
    %c2_16 = arith.constant 2 : index
    %49 = memref.load %arg2[%c1_15, %c2_16] : memref<8x4xf32, #tpu.memory_space<smem>>
    %50 = vector.extract_strided_slice %14 {offsets = [2, 0, 0], sizes = [1, 16, 128], strides = [1, 1, 1]} : vector<4x16x128xf32> to vector<1x16x128xf32>
    %51 = vector.shape_cast %50 : vector<1x16x128xf32> to vector<16x128xf32>
    %52 = vector.broadcast %49 : f32 to vector<16x128xf32>
    %53 = arith.mulf %52, %51 : vector<16x128xf32>
    %54 = arith.addf %48, %53 : vector<16x128xf32>
    %c1_17 = arith.constant 1 : index
    %c3_18 = arith.constant 3 : index
    %55 = memref.load %arg2[%c1_17, %c3_18] : memref<8x4xf32, #tpu.memory_space<smem>>
    %56 = vector.extract_strided_slice %14 {offsets = [3, 0, 0], sizes = [1, 16, 128], strides = [1, 1, 1]} : vector<4x16x128xf32> to vector<1x16x128xf32>
    %57 = vector.shape_cast %56 : vector<1x16x128xf32> to vector<16x128xf32>
    %58 = vector.broadcast %55 : f32 to vector<16x128xf32>
    %59 = arith.mulf %58, %57 : vector<16x128xf32>
    %60 = arith.addf %54, %59 : vector<16x128xf32>
    %c2_19 = arith.constant 2 : index
    %c0_20 = arith.constant 0 : index
    %61 = memref.load %arg2[%c2_19, %c0_20] : memref<8x4xf32, #tpu.memory_space<smem>>
    %62 = vector.extract_strided_slice %14 {offsets = [0, 0, 0], sizes = [1, 16, 128], strides = [1, 1, 1]} : vector<4x16x128xf32> to vector<1x16x128xf32>
    %63 = vector.shape_cast %62 : vector<1x16x128xf32> to vector<16x128xf32>
    %64 = vector.broadcast %61 : f32 to vector<16x128xf32>
    %65 = arith.mulf %64, %63 : vector<16x128xf32>
    %c2_21 = arith.constant 2 : index
    %c1_22 = arith.constant 1 : index
    %66 = memref.load %arg2[%c2_21, %c1_22] : memref<8x4xf32, #tpu.memory_space<smem>>
    %67 = vector.extract_strided_slice %14 {offsets = [1, 0, 0], sizes = [1, 16, 128], strides = [1, 1, 1]} : vector<4x16x128xf32> to vector<1x16x128xf32>
    %68 = vector.shape_cast %67 : vector<1x16x128xf32> to vector<16x128xf32>
    %69 = vector.broadcast %66 : f32 to vector<16x128xf32>
    %70 = arith.mulf %69, %68 : vector<16x128xf32>
    %71 = arith.addf %65, %70 : vector<16x128xf32>
    %c2_23 = arith.constant 2 : index
    %c2_24 = arith.constant 2 : index
    %72 = memref.load %arg2[%c2_23, %c2_24] : memref<8x4xf32, #tpu.memory_space<smem>>
    %73 = vector.extract_strided_slice %14 {offsets = [2, 0, 0], sizes = [1, 16, 128], strides = [1, 1, 1]} : vector<4x16x128xf32> to vector<1x16x128xf32>
    %74 = vector.shape_cast %73 : vector<1x16x128xf32> to vector<16x128xf32>
    %75 = vector.broadcast %72 : f32 to vector<16x128xf32>
    %76 = arith.mulf %75, %74 : vector<16x128xf32>
    %77 = arith.addf %71, %76 : vector<16x128xf32>
    %c2_25 = arith.constant 2 : index
    %c3_26 = arith.constant 3 : index
    %78 = memref.load %arg2[%c2_25, %c3_26] : memref<8x4xf32, #tpu.memory_space<smem>>
    %79 = vector.extract_strided_slice %14 {offsets = [3, 0, 0], sizes = [1, 16, 128], strides = [1, 1, 1]} : vector<4x16x128xf32> to vector<1x16x128xf32>
    %80 = vector.shape_cast %79 : vector<1x16x128xf32> to vector<16x128xf32>
    %81 = vector.broadcast %78 : f32 to vector<16x128xf32>
    %82 = arith.mulf %81, %80 : vector<16x128xf32>
    %83 = arith.addf %77, %82 : vector<16x128xf32>
    %c3_27 = arith.constant 3 : index
    %c0_28 = arith.constant 0 : index
    %84 = memref.load %arg2[%c3_27, %c0_28] : memref<8x4xf32, #tpu.memory_space<smem>>
    %85 = vector.extract_strided_slice %14 {offsets = [0, 0, 0], sizes = [1, 16, 128], strides = [1, 1, 1]} : vector<4x16x128xf32> to vector<1x16x128xf32>
    %86 = vector.shape_cast %85 : vector<1x16x128xf32> to vector<16x128xf32>
    %87 = vector.broadcast %84 : f32 to vector<16x128xf32>
    %88 = arith.mulf %87, %86 : vector<16x128xf32>
    %c3_29 = arith.constant 3 : index
    %c1_30 = arith.constant 1 : index
    %89 = memref.load %arg2[%c3_29, %c1_30] : memref<8x4xf32, #tpu.memory_space<smem>>
    %90 = vector.extract_strided_slice %14 {offsets = [1, 0, 0], sizes = [1, 16, 128], strides = [1, 1, 1]} : vector<4x16x128xf32> to vector<1x16x128xf32>
    %91 = vector.shape_cast %90 : vector<1x16x128xf32> to vector<16x128xf32>
    %92 = vector.broadcast %89 : f32 to vector<16x128xf32>
    %93 = arith.mulf %92, %91 : vector<16x128xf32>
    %94 = arith.addf %88, %93 : vector<16x128xf32>
    %c3_31 = arith.constant 3 : index
    %c2_32 = arith.constant 2 : index
    %95 = memref.load %arg2[%c3_31, %c2_32] : memref<8x4xf32, #tpu.memory_space<smem>>
    %96 = vector.extract_strided_slice %14 {offsets = [2, 0, 0], sizes = [1, 16, 128], strides = [1, 1, 1]} : vector<4x16x128xf32> to vector<1x16x128xf32>
    %97 = vector.shape_cast %96 : vector<1x16x128xf32> to vector<16x128xf32>
    %98 = vector.broadcast %95 : f32 to vector<16x128xf32>
    %99 = arith.mulf %98, %97 : vector<16x128xf32>
    %100 = arith.addf %94, %99 : vector<16x128xf32>
    %c3_33 = arith.constant 3 : index
    %c3_34 = arith.constant 3 : index
    %101 = memref.load %arg2[%c3_33, %c3_34] : memref<8x4xf32, #tpu.memory_space<smem>>
    %102 = vector.extract_strided_slice %14 {offsets = [3, 0, 0], sizes = [1, 16, 128], strides = [1, 1, 1]} : vector<4x16x128xf32> to vector<1x16x128xf32>
    %103 = vector.shape_cast %102 : vector<1x16x128xf32> to vector<16x128xf32>
    %104 = vector.broadcast %101 : f32 to vector<16x128xf32>
    %105 = arith.mulf %104, %103 : vector<16x128xf32>
    %106 = arith.addf %100, %105 : vector<16x128xf32>
    %c4 = arith.constant 4 : index
    %c0_35 = arith.constant 0 : index
    %107 = memref.load %arg2[%c4, %c0_35] : memref<8x4xf32, #tpu.memory_space<smem>>
    %108 = vector.extract_strided_slice %14 {offsets = [0, 0, 0], sizes = [1, 16, 128], strides = [1, 1, 1]} : vector<4x16x128xf32> to vector<1x16x128xf32>
    %109 = vector.shape_cast %108 : vector<1x16x128xf32> to vector<16x128xf32>
    %110 = vector.broadcast %107 : f32 to vector<16x128xf32>
    %111 = arith.mulf %110, %109 : vector<16x128xf32>
    %c4_36 = arith.constant 4 : index
    %c1_37 = arith.constant 1 : index
    %112 = memref.load %arg2[%c4_36, %c1_37] : memref<8x4xf32, #tpu.memory_space<smem>>
    %113 = vector.extract_strided_slice %14 {offsets = [1, 0, 0], sizes = [1, 16, 128], strides = [1, 1, 1]} : vector<4x16x128xf32> to vector<1x16x128xf32>
    %114 = vector.shape_cast %113 : vector<1x16x128xf32> to vector<16x128xf32>
    %115 = vector.broadcast %112 : f32 to vector<16x128xf32>
    %116 = arith.mulf %115, %114 : vector<16x128xf32>
    %117 = arith.addf %111, %116 : vector<16x128xf32>
    %c4_38 = arith.constant 4 : index
    %c2_39 = arith.constant 2 : index
    %118 = memref.load %arg2[%c4_38, %c2_39] : memref<8x4xf32, #tpu.memory_space<smem>>
    %119 = vector.extract_strided_slice %14 {offsets = [2, 0, 0], sizes = [1, 16, 128], strides = [1, 1, 1]} : vector<4x16x128xf32> to vector<1x16x128xf32>
    %120 = vector.shape_cast %119 : vector<1x16x128xf32> to vector<16x128xf32>
    %121 = vector.broadcast %118 : f32 to vector<16x128xf32>
    %122 = arith.mulf %121, %120 : vector<16x128xf32>
    %123 = arith.addf %117, %122 : vector<16x128xf32>
    %c4_40 = arith.constant 4 : index
    %c3_41 = arith.constant 3 : index
    %124 = memref.load %arg2[%c4_40, %c3_41] : memref<8x4xf32, #tpu.memory_space<smem>>
    %125 = vector.extract_strided_slice %14 {offsets = [3, 0, 0], sizes = [1, 16, 128], strides = [1, 1, 1]} : vector<4x16x128xf32> to vector<1x16x128xf32>
    %126 = vector.shape_cast %125 : vector<1x16x128xf32> to vector<16x128xf32>
    %127 = vector.broadcast %124 : f32 to vector<16x128xf32>
    %128 = arith.mulf %127, %126 : vector<16x128xf32>
    %129 = arith.addf %123, %128 : vector<16x128xf32>
    %c5 = arith.constant 5 : index
    %c0_42 = arith.constant 0 : index
    %130 = memref.load %arg2[%c5, %c0_42] : memref<8x4xf32, #tpu.memory_space<smem>>
    %131 = vector.extract_strided_slice %14 {offsets = [0, 0, 0], sizes = [1, 16, 128], strides = [1, 1, 1]} : vector<4x16x128xf32> to vector<1x16x128xf32>
    %132 = vector.shape_cast %131 : vector<1x16x128xf32> to vector<16x128xf32>
    %133 = vector.broadcast %130 : f32 to vector<16x128xf32>
    %134 = arith.mulf %133, %132 : vector<16x128xf32>
    %c5_43 = arith.constant 5 : index
    %c1_44 = arith.constant 1 : index
    %135 = memref.load %arg2[%c5_43, %c1_44] : memref<8x4xf32, #tpu.memory_space<smem>>
    %136 = vector.extract_strided_slice %14 {offsets = [1, 0, 0], sizes = [1, 16, 128], strides = [1, 1, 1]} : vector<4x16x128xf32> to vector<1x16x128xf32>
    %137 = vector.shape_cast %136 : vector<1x16x128xf32> to vector<16x128xf32>
    %138 = vector.broadcast %135 : f32 to vector<16x128xf32>
    %139 = arith.mulf %138, %137 : vector<16x128xf32>
    %140 = arith.addf %134, %139 : vector<16x128xf32>
    %c5_45 = arith.constant 5 : index
    %c2_46 = arith.constant 2 : index
    %141 = memref.load %arg2[%c5_45, %c2_46] : memref<8x4xf32, #tpu.memory_space<smem>>
    %142 = vector.extract_strided_slice %14 {offsets = [2, 0, 0], sizes = [1, 16, 128], strides = [1, 1, 1]} : vector<4x16x128xf32> to vector<1x16x128xf32>
    %143 = vector.shape_cast %142 : vector<1x16x128xf32> to vector<16x128xf32>
    %144 = vector.broadcast %141 : f32 to vector<16x128xf32>
    %145 = arith.mulf %144, %143 : vector<16x128xf32>
    %146 = arith.addf %140, %145 : vector<16x128xf32>
    %c5_47 = arith.constant 5 : index
    %c3_48 = arith.constant 3 : index
    %147 = memref.load %arg2[%c5_47, %c3_48] : memref<8x4xf32, #tpu.memory_space<smem>>
    %148 = vector.extract_strided_slice %14 {offsets = [3, 0, 0], sizes = [1, 16, 128], strides = [1, 1, 1]} : vector<4x16x128xf32> to vector<1x16x128xf32>
    %149 = vector.shape_cast %148 : vector<1x16x128xf32> to vector<16x128xf32>
    %150 = vector.broadcast %147 : f32 to vector<16x128xf32>
    %151 = arith.mulf %150, %149 : vector<16x128xf32>
    %152 = arith.addf %146, %151 : vector<16x128xf32>
    %c6 = arith.constant 6 : index
    %c0_49 = arith.constant 0 : index
    %153 = memref.load %arg2[%c6, %c0_49] : memref<8x4xf32, #tpu.memory_space<smem>>
    %154 = vector.extract_strided_slice %14 {offsets = [0, 0, 0], sizes = [1, 16, 128], strides = [1, 1, 1]} : vector<4x16x128xf32> to vector<1x16x128xf32>
    %155 = vector.shape_cast %154 : vector<1x16x128xf32> to vector<16x128xf32>
    %156 = vector.broadcast %153 : f32 to vector<16x128xf32>
    %157 = arith.mulf %156, %155 : vector<16x128xf32>
    %c6_50 = arith.constant 6 : index
    %c1_51 = arith.constant 1 : index
    %158 = memref.load %arg2[%c6_50, %c1_51] : memref<8x4xf32, #tpu.memory_space<smem>>
    %159 = vector.extract_strided_slice %14 {offsets = [1, 0, 0], sizes = [1, 16, 128], strides = [1, 1, 1]} : vector<4x16x128xf32> to vector<1x16x128xf32>
    %160 = vector.shape_cast %159 : vector<1x16x128xf32> to vector<16x128xf32>
    %161 = vector.broadcast %158 : f32 to vector<16x128xf32>
    %162 = arith.mulf %161, %160 : vector<16x128xf32>
    %163 = arith.addf %157, %162 : vector<16x128xf32>
    %c6_52 = arith.constant 6 : index
    %c2_53 = arith.constant 2 : index
    %164 = memref.load %arg2[%c6_52, %c2_53] : memref<8x4xf32, #tpu.memory_space<smem>>
    %165 = vector.extract_strided_slice %14 {offsets = [2, 0, 0], sizes = [1, 16, 128], strides = [1, 1, 1]} : vector<4x16x128xf32> to vector<1x16x128xf32>
    %166 = vector.shape_cast %165 : vector<1x16x128xf32> to vector<16x128xf32>
    %167 = vector.broadcast %164 : f32 to vector<16x128xf32>
    %168 = arith.mulf %167, %166 : vector<16x128xf32>
    %169 = arith.addf %163, %168 : vector<16x128xf32>
    %c6_54 = arith.constant 6 : index
    %c3_55 = arith.constant 3 : index
    %170 = memref.load %arg2[%c6_54, %c3_55] : memref<8x4xf32, #tpu.memory_space<smem>>
    %171 = vector.extract_strided_slice %14 {offsets = [3, 0, 0], sizes = [1, 16, 128], strides = [1, 1, 1]} : vector<4x16x128xf32> to vector<1x16x128xf32>
    %172 = vector.shape_cast %171 : vector<1x16x128xf32> to vector<16x128xf32>
    %173 = vector.broadcast %170 : f32 to vector<16x128xf32>
    %174 = arith.mulf %173, %172 : vector<16x128xf32>
    %175 = arith.addf %169, %174 : vector<16x128xf32>
    %c7 = arith.constant 7 : index
    %c0_56 = arith.constant 0 : index
    %176 = memref.load %arg2[%c7, %c0_56] : memref<8x4xf32, #tpu.memory_space<smem>>
    %177 = vector.extract_strided_slice %14 {offsets = [0, 0, 0], sizes = [1, 16, 128], strides = [1, 1, 1]} : vector<4x16x128xf32> to vector<1x16x128xf32>
    %178 = vector.shape_cast %177 : vector<1x16x128xf32> to vector<16x128xf32>
    %179 = vector.broadcast %176 : f32 to vector<16x128xf32>
    %180 = arith.mulf %179, %178 : vector<16x128xf32>
    %c7_57 = arith.constant 7 : index
    %c1_58 = arith.constant 1 : index
    %181 = memref.load %arg2[%c7_57, %c1_58] : memref<8x4xf32, #tpu.memory_space<smem>>
    %182 = vector.extract_strided_slice %14 {offsets = [1, 0, 0], sizes = [1, 16, 128], strides = [1, 1, 1]} : vector<4x16x128xf32> to vector<1x16x128xf32>
    %183 = vector.shape_cast %182 : vector<1x16x128xf32> to vector<16x128xf32>
    %184 = vector.broadcast %181 : f32 to vector<16x128xf32>
    %185 = arith.mulf %184, %183 : vector<16x128xf32>
    %186 = arith.addf %180, %185 : vector<16x128xf32>
    %c7_59 = arith.constant 7 : index
    %c2_60 = arith.constant 2 : index
    %187 = memref.load %arg2[%c7_59, %c2_60] : memref<8x4xf32, #tpu.memory_space<smem>>
    %188 = vector.extract_strided_slice %14 {offsets = [2, 0, 0], sizes = [1, 16, 128], strides = [1, 1, 1]} : vector<4x16x128xf32> to vector<1x16x128xf32>
    %189 = vector.shape_cast %188 : vector<1x16x128xf32> to vector<16x128xf32>
    %190 = vector.broadcast %187 : f32 to vector<16x128xf32>
    %191 = arith.mulf %190, %189 : vector<16x128xf32>
    %192 = arith.addf %186, %191 : vector<16x128xf32>
    %c7_61 = arith.constant 7 : index
    %c3_62 = arith.constant 3 : index
    %193 = memref.load %arg2[%c7_61, %c3_62] : memref<8x4xf32, #tpu.memory_space<smem>>
    %194 = vector.extract_strided_slice %14 {offsets = [3, 0, 0], sizes = [1, 16, 128], strides = [1, 1, 1]} : vector<4x16x128xf32> to vector<1x16x128xf32>
    %195 = vector.shape_cast %194 : vector<1x16x128xf32> to vector<16x128xf32>
    %196 = vector.broadcast %193 : f32 to vector<16x128xf32>
    %197 = arith.mulf %196, %195 : vector<16x128xf32>
    %198 = arith.addf %192, %197 : vector<16x128xf32>
    %199 = vector.shape_cast %37 : vector<16x128xf32> to vector<1x16x128xf32>
    %200 = vector.shape_cast %60 : vector<16x128xf32> to vector<1x16x128xf32>
    %201 = vector.shape_cast %83 : vector<16x128xf32> to vector<1x16x128xf32>
    %202 = vector.shape_cast %106 : vector<16x128xf32> to vector<1x16x128xf32>
    %203 = vector.shape_cast %129 : vector<16x128xf32> to vector<1x16x128xf32>
    %204 = vector.shape_cast %152 : vector<16x128xf32> to vector<1x16x128xf32>
    %205 = vector.shape_cast %175 : vector<16x128xf32> to vector<1x16x128xf32>
    %206 = vector.shape_cast %198 : vector<16x128xf32> to vector<1x16x128xf32>
    %207 = tpu.concatenate %199, %200, %201, %202, %203, %204, %205, %206 in 0 : vector<1x16x128xf32>, vector<1x16x128xf32>, vector<1x16x128xf32>, vector<1x16x128xf32>, vector<1x16x128xf32>, vector<1x16x128xf32>, vector<1x16x128xf32>, vector<1x16x128xf32> -> vector<8x16x128xf32>
    %c0_63 = arith.constant 0 : index
    %c0_64 = arith.constant 0 : index
    %208 = memref.load %arg3[%c0_63, %c0_64] : memref<8x4xf32, #tpu.memory_space<smem>>
    %209 = vector.extract_strided_slice %14 {offsets = [0, 0, 0], sizes = [1, 16, 128], strides = [1, 1, 1]} : vector<4x16x128xf32> to vector<1x16x128xf32>
    %210 = vector.shape_cast %209 : vector<1x16x128xf32> to vector<16x128xf32>
    %211 = vector.broadcast %208 : f32 to vector<16x128xf32>
    %212 = arith.mulf %211, %210 : vector<16x128xf32>
    %c0_65 = arith.constant 0 : index
    %c1_66 = arith.constant 1 : index
    %213 = memref.load %arg3[%c0_65, %c1_66] : memref<8x4xf32, #tpu.memory_space<smem>>
    %214 = vector.extract_strided_slice %14 {offsets = [1, 0, 0], sizes = [1, 16, 128], strides = [1, 1, 1]} : vector<4x16x128xf32> to vector<1x16x128xf32>
    %215 = vector.shape_cast %214 : vector<1x16x128xf32> to vector<16x128xf32>
    %216 = vector.broadcast %213 : f32 to vector<16x128xf32>
    %217 = arith.mulf %216, %215 : vector<16x128xf32>
    %218 = arith.addf %212, %217 : vector<16x128xf32>
    %c0_67 = arith.constant 0 : index
    %c2_68 = arith.constant 2 : index
    %219 = memref.load %arg3[%c0_67, %c2_68] : memref<8x4xf32, #tpu.memory_space<smem>>
    %220 = vector.extract_strided_slice %14 {offsets = [2, 0, 0], sizes = [1, 16, 128], strides = [1, 1, 1]} : vector<4x16x128xf32> to vector<1x16x128xf32>
    %221 = vector.shape_cast %220 : vector<1x16x128xf32> to vector<16x128xf32>
    %222 = vector.broadcast %219 : f32 to vector<16x128xf32>
    %223 = arith.mulf %222, %221 : vector<16x128xf32>
    %224 = arith.addf %218, %223 : vector<16x128xf32>
    %c0_69 = arith.constant 0 : index
    %c3_70 = arith.constant 3 : index
    %225 = memref.load %arg3[%c0_69, %c3_70] : memref<8x4xf32, #tpu.memory_space<smem>>
    %226 = vector.extract_strided_slice %14 {offsets = [3, 0, 0], sizes = [1, 16, 128], strides = [1, 1, 1]} : vector<4x16x128xf32> to vector<1x16x128xf32>
    %227 = vector.shape_cast %226 : vector<1x16x128xf32> to vector<16x128xf32>
    %228 = vector.broadcast %225 : f32 to vector<16x128xf32>
    %229 = arith.mulf %228, %227 : vector<16x128xf32>
    %230 = arith.addf %224, %229 : vector<16x128xf32>
    %c1_71 = arith.constant 1 : index
    %c0_72 = arith.constant 0 : index
    %231 = memref.load %arg3[%c1_71, %c0_72] : memref<8x4xf32, #tpu.memory_space<smem>>
    %232 = vector.extract_strided_slice %14 {offsets = [0, 0, 0], sizes = [1, 16, 128], strides = [1, 1, 1]} : vector<4x16x128xf32> to vector<1x16x128xf32>
    %233 = vector.shape_cast %232 : vector<1x16x128xf32> to vector<16x128xf32>
    %234 = vector.broadcast %231 : f32 to vector<16x128xf32>
    %235 = arith.mulf %234, %233 : vector<16x128xf32>
    %c1_73 = arith.constant 1 : index
    %c1_74 = arith.constant 1 : index
    %236 = memref.load %arg3[%c1_73, %c1_74] : memref<8x4xf32, #tpu.memory_space<smem>>
    %237 = vector.extract_strided_slice %14 {offsets = [1, 0, 0], sizes = [1, 16, 128], strides = [1, 1, 1]} : vector<4x16x128xf32> to vector<1x16x128xf32>
    %238 = vector.shape_cast %237 : vector<1x16x128xf32> to vector<16x128xf32>
    %239 = vector.broadcast %236 : f32 to vector<16x128xf32>
    %240 = arith.mulf %239, %238 : vector<16x128xf32>
    %241 = arith.addf %235, %240 : vector<16x128xf32>
    %c1_75 = arith.constant 1 : index
    %c2_76 = arith.constant 2 : index
    %242 = memref.load %arg3[%c1_75, %c2_76] : memref<8x4xf32, #tpu.memory_space<smem>>
    %243 = vector.extract_strided_slice %14 {offsets = [2, 0, 0], sizes = [1, 16, 128], strides = [1, 1, 1]} : vector<4x16x128xf32> to vector<1x16x128xf32>
    %244 = vector.shape_cast %243 : vector<1x16x128xf32> to vector<16x128xf32>
    %245 = vector.broadcast %242 : f32 to vector<16x128xf32>
    %246 = arith.mulf %245, %244 : vector<16x128xf32>
    %247 = arith.addf %241, %246 : vector<16x128xf32>
    %c1_77 = arith.constant 1 : index
    %c3_78 = arith.constant 3 : index
    %248 = memref.load %arg3[%c1_77, %c3_78] : memref<8x4xf32, #tpu.memory_space<smem>>
    %249 = vector.extract_strided_slice %14 {offsets = [3, 0, 0], sizes = [1, 16, 128], strides = [1, 1, 1]} : vector<4x16x128xf32> to vector<1x16x128xf32>
    %250 = vector.shape_cast %249 : vector<1x16x128xf32> to vector<16x128xf32>
    %251 = vector.broadcast %248 : f32 to vector<16x128xf32>
    %252 = arith.mulf %251, %250 : vector<16x128xf32>
    %253 = arith.addf %247, %252 : vector<16x128xf32>
    %c2_79 = arith.constant 2 : index
    %c0_80 = arith.constant 0 : index
    %254 = memref.load %arg3[%c2_79, %c0_80] : memref<8x4xf32, #tpu.memory_space<smem>>
    %255 = vector.extract_strided_slice %14 {offsets = [0, 0, 0], sizes = [1, 16, 128], strides = [1, 1, 1]} : vector<4x16x128xf32> to vector<1x16x128xf32>
    %256 = vector.shape_cast %255 : vector<1x16x128xf32> to vector<16x128xf32>
    %257 = vector.broadcast %254 : f32 to vector<16x128xf32>
    %258 = arith.mulf %257, %256 : vector<16x128xf32>
    %c2_81 = arith.constant 2 : index
    %c1_82 = arith.constant 1 : index
    %259 = memref.load %arg3[%c2_81, %c1_82] : memref<8x4xf32, #tpu.memory_space<smem>>
    %260 = vector.extract_strided_slice %14 {offsets = [1, 0, 0], sizes = [1, 16, 128], strides = [1, 1, 1]} : vector<4x16x128xf32> to vector<1x16x128xf32>
    %261 = vector.shape_cast %260 : vector<1x16x128xf32> to vector<16x128xf32>
    %262 = vector.broadcast %259 : f32 to vector<16x128xf32>
    %263 = arith.mulf %262, %261 : vector<16x128xf32>
    %264 = arith.addf %258, %263 : vector<16x128xf32>
    %c2_83 = arith.constant 2 : index
    %c2_84 = arith.constant 2 : index
    %265 = memref.load %arg3[%c2_83, %c2_84] : memref<8x4xf32, #tpu.memory_space<smem>>
    %266 = vector.extract_strided_slice %14 {offsets = [2, 0, 0], sizes = [1, 16, 128], strides = [1, 1, 1]} : vector<4x16x128xf32> to vector<1x16x128xf32>
    %267 = vector.shape_cast %266 : vector<1x16x128xf32> to vector<16x128xf32>
    %268 = vector.broadcast %265 : f32 to vector<16x128xf32>
    %269 = arith.mulf %268, %267 : vector<16x128xf32>
    %270 = arith.addf %264, %269 : vector<16x128xf32>
    %c2_85 = arith.constant 2 : index
    %c3_86 = arith.constant 3 : index
    %271 = memref.load %arg3[%c2_85, %c3_86] : memref<8x4xf32, #tpu.memory_space<smem>>
    %272 = vector.extract_strided_slice %14 {offsets = [3, 0, 0], sizes = [1, 16, 128], strides = [1, 1, 1]} : vector<4x16x128xf32> to vector<1x16x128xf32>
    %273 = vector.shape_cast %272 : vector<1x16x128xf32> to vector<16x128xf32>
    %274 = vector.broadcast %271 : f32 to vector<16x128xf32>
    %275 = arith.mulf %274, %273 : vector<16x128xf32>
    %276 = arith.addf %270, %275 : vector<16x128xf32>
    %c3_87 = arith.constant 3 : index
    %c0_88 = arith.constant 0 : index
    %277 = memref.load %arg3[%c3_87, %c0_88] : memref<8x4xf32, #tpu.memory_space<smem>>
    %278 = vector.extract_strided_slice %14 {offsets = [0, 0, 0], sizes = [1, 16, 128], strides = [1, 1, 1]} : vector<4x16x128xf32> to vector<1x16x128xf32>
    %279 = vector.shape_cast %278 : vector<1x16x128xf32> to vector<16x128xf32>
    %280 = vector.broadcast %277 : f32 to vector<16x128xf32>
    %281 = arith.mulf %280, %279 : vector<16x128xf32>
    %c3_89 = arith.constant 3 : index
    %c1_90 = arith.constant 1 : index
    %282 = memref.load %arg3[%c3_89, %c1_90] : memref<8x4xf32, #tpu.memory_space<smem>>
    %283 = vector.extract_strided_slice %14 {offsets = [1, 0, 0], sizes = [1, 16, 128], strides = [1, 1, 1]} : vector<4x16x128xf32> to vector<1x16x128xf32>
    %284 = vector.shape_cast %283 : vector<1x16x128xf32> to vector<16x128xf32>
    %285 = vector.broadcast %282 : f32 to vector<16x128xf32>
    %286 = arith.mulf %285, %284 : vector<16x128xf32>
    %287 = arith.addf %281, %286 : vector<16x128xf32>
    %c3_91 = arith.constant 3 : index
    %c2_92 = arith.constant 2 : index
    %288 = memref.load %arg3[%c3_91, %c2_92] : memref<8x4xf32, #tpu.memory_space<smem>>
    %289 = vector.extract_strided_slice %14 {offsets = [2, 0, 0], sizes = [1, 16, 128], strides = [1, 1, 1]} : vector<4x16x128xf32> to vector<1x16x128xf32>
    %290 = vector.shape_cast %289 : vector<1x16x128xf32> to vector<16x128xf32>
    %291 = vector.broadcast %288 : f32 to vector<16x128xf32>
    %292 = arith.mulf %291, %290 : vector<16x128xf32>
    %293 = arith.addf %287, %292 : vector<16x128xf32>
    %c3_93 = arith.constant 3 : index
    %c3_94 = arith.constant 3 : index
    %294 = memref.load %arg3[%c3_93, %c3_94] : memref<8x4xf32, #tpu.memory_space<smem>>
    %295 = vector.extract_strided_slice %14 {offsets = [3, 0, 0], sizes = [1, 16, 128], strides = [1, 1, 1]} : vector<4x16x128xf32> to vector<1x16x128xf32>
    %296 = vector.shape_cast %295 : vector<1x16x128xf32> to vector<16x128xf32>
    %297 = vector.broadcast %294 : f32 to vector<16x128xf32>
    %298 = arith.mulf %297, %296 : vector<16x128xf32>
    %299 = arith.addf %293, %298 : vector<16x128xf32>
    %c4_95 = arith.constant 4 : index
    %c0_96 = arith.constant 0 : index
    %300 = memref.load %arg3[%c4_95, %c0_96] : memref<8x4xf32, #tpu.memory_space<smem>>
    %301 = vector.extract_strided_slice %14 {offsets = [0, 0, 0], sizes = [1, 16, 128], strides = [1, 1, 1]} : vector<4x16x128xf32> to vector<1x16x128xf32>
    %302 = vector.shape_cast %301 : vector<1x16x128xf32> to vector<16x128xf32>
    %303 = vector.broadcast %300 : f32 to vector<16x128xf32>
    %304 = arith.mulf %303, %302 : vector<16x128xf32>
    %c4_97 = arith.constant 4 : index
    %c1_98 = arith.constant 1 : index
    %305 = memref.load %arg3[%c4_97, %c1_98] : memref<8x4xf32, #tpu.memory_space<smem>>
    %306 = vector.extract_strided_slice %14 {offsets = [1, 0, 0], sizes = [1, 16, 128], strides = [1, 1, 1]} : vector<4x16x128xf32> to vector<1x16x128xf32>
    %307 = vector.shape_cast %306 : vector<1x16x128xf32> to vector<16x128xf32>
    %308 = vector.broadcast %305 : f32 to vector<16x128xf32>
    %309 = arith.mulf %308, %307 : vector<16x128xf32>
    %310 = arith.addf %304, %309 : vector<16x128xf32>
    %c4_99 = arith.constant 4 : index
    %c2_100 = arith.constant 2 : index
    %311 = memref.load %arg3[%c4_99, %c2_100] : memref<8x4xf32, #tpu.memory_space<smem>>
    %312 = vector.extract_strided_slice %14 {offsets = [2, 0, 0], sizes = [1, 16, 128], strides = [1, 1, 1]} : vector<4x16x128xf32> to vector<1x16x128xf32>
    %313 = vector.shape_cast %312 : vector<1x16x128xf32> to vector<16x128xf32>
    %314 = vector.broadcast %311 : f32 to vector<16x128xf32>
    %315 = arith.mulf %314, %313 : vector<16x128xf32>
    %316 = arith.addf %310, %315 : vector<16x128xf32>
    %c4_101 = arith.constant 4 : index
    %c3_102 = arith.constant 3 : index
    %317 = memref.load %arg3[%c4_101, %c3_102] : memref<8x4xf32, #tpu.memory_space<smem>>
    %318 = vector.extract_strided_slice %14 {offsets = [3, 0, 0], sizes = [1, 16, 128], strides = [1, 1, 1]} : vector<4x16x128xf32> to vector<1x16x128xf32>
    %319 = vector.shape_cast %318 : vector<1x16x128xf32> to vector<16x128xf32>
    %320 = vector.broadcast %317 : f32 to vector<16x128xf32>
    %321 = arith.mulf %320, %319 : vector<16x128xf32>
    %322 = arith.addf %316, %321 : vector<16x128xf32>
    %c5_103 = arith.constant 5 : index
    %c0_104 = arith.constant 0 : index
    %323 = memref.load %arg3[%c5_103, %c0_104] : memref<8x4xf32, #tpu.memory_space<smem>>
    %324 = vector.extract_strided_slice %14 {offsets = [0, 0, 0], sizes = [1, 16, 128], strides = [1, 1, 1]} : vector<4x16x128xf32> to vector<1x16x128xf32>
    %325 = vector.shape_cast %324 : vector<1x16x128xf32> to vector<16x128xf32>
    %326 = vector.broadcast %323 : f32 to vector<16x128xf32>
    %327 = arith.mulf %326, %325 : vector<16x128xf32>
    %c5_105 = arith.constant 5 : index
    %c1_106 = arith.constant 1 : index
    %328 = memref.load %arg3[%c5_105, %c1_106] : memref<8x4xf32, #tpu.memory_space<smem>>
    %329 = vector.extract_strided_slice %14 {offsets = [1, 0, 0], sizes = [1, 16, 128], strides = [1, 1, 1]} : vector<4x16x128xf32> to vector<1x16x128xf32>
    %330 = vector.shape_cast %329 : vector<1x16x128xf32> to vector<16x128xf32>
    %331 = vector.broadcast %328 : f32 to vector<16x128xf32>
    %332 = arith.mulf %331, %330 : vector<16x128xf32>
    %333 = arith.addf %327, %332 : vector<16x128xf32>
    %c5_107 = arith.constant 5 : index
    %c2_108 = arith.constant 2 : index
    %334 = memref.load %arg3[%c5_107, %c2_108] : memref<8x4xf32, #tpu.memory_space<smem>>
    %335 = vector.extract_strided_slice %14 {offsets = [2, 0, 0], sizes = [1, 16, 128], strides = [1, 1, 1]} : vector<4x16x128xf32> to vector<1x16x128xf32>
    %336 = vector.shape_cast %335 : vector<1x16x128xf32> to vector<16x128xf32>
    %337 = vector.broadcast %334 : f32 to vector<16x128xf32>
    %338 = arith.mulf %337, %336 : vector<16x128xf32>
    %339 = arith.addf %333, %338 : vector<16x128xf32>
    %c5_109 = arith.constant 5 : index
    %c3_110 = arith.constant 3 : index
    %340 = memref.load %arg3[%c5_109, %c3_110] : memref<8x4xf32, #tpu.memory_space<smem>>
    %341 = vector.extract_strided_slice %14 {offsets = [3, 0, 0], sizes = [1, 16, 128], strides = [1, 1, 1]} : vector<4x16x128xf32> to vector<1x16x128xf32>
    %342 = vector.shape_cast %341 : vector<1x16x128xf32> to vector<16x128xf32>
    %343 = vector.broadcast %340 : f32 to vector<16x128xf32>
    %344 = arith.mulf %343, %342 : vector<16x128xf32>
    %345 = arith.addf %339, %344 : vector<16x128xf32>
    %c6_111 = arith.constant 6 : index
    %c0_112 = arith.constant 0 : index
    %346 = memref.load %arg3[%c6_111, %c0_112] : memref<8x4xf32, #tpu.memory_space<smem>>
    %347 = vector.extract_strided_slice %14 {offsets = [0, 0, 0], sizes = [1, 16, 128], strides = [1, 1, 1]} : vector<4x16x128xf32> to vector<1x16x128xf32>
    %348 = vector.shape_cast %347 : vector<1x16x128xf32> to vector<16x128xf32>
    %349 = vector.broadcast %346 : f32 to vector<16x128xf32>
    %350 = arith.mulf %349, %348 : vector<16x128xf32>
    %c6_113 = arith.constant 6 : index
    %c1_114 = arith.constant 1 : index
    %351 = memref.load %arg3[%c6_113, %c1_114] : memref<8x4xf32, #tpu.memory_space<smem>>
    %352 = vector.extract_strided_slice %14 {offsets = [1, 0, 0], sizes = [1, 16, 128], strides = [1, 1, 1]} : vector<4x16x128xf32> to vector<1x16x128xf32>
    %353 = vector.shape_cast %352 : vector<1x16x128xf32> to vector<16x128xf32>
    %354 = vector.broadcast %351 : f32 to vector<16x128xf32>
    %355 = arith.mulf %354, %353 : vector<16x128xf32>
    %356 = arith.addf %350, %355 : vector<16x128xf32>
    %c6_115 = arith.constant 6 : index
    %c2_116 = arith.constant 2 : index
    %357 = memref.load %arg3[%c6_115, %c2_116] : memref<8x4xf32, #tpu.memory_space<smem>>
    %358 = vector.extract_strided_slice %14 {offsets = [2, 0, 0], sizes = [1, 16, 128], strides = [1, 1, 1]} : vector<4x16x128xf32> to vector<1x16x128xf32>
    %359 = vector.shape_cast %358 : vector<1x16x128xf32> to vector<16x128xf32>
    %360 = vector.broadcast %357 : f32 to vector<16x128xf32>
    %361 = arith.mulf %360, %359 : vector<16x128xf32>
    %362 = arith.addf %356, %361 : vector<16x128xf32>
    %c6_117 = arith.constant 6 : index
    %c3_118 = arith.constant 3 : index
    %363 = memref.load %arg3[%c6_117, %c3_118] : memref<8x4xf32, #tpu.memory_space<smem>>
    %364 = vector.extract_strided_slice %14 {offsets = [3, 0, 0], sizes = [1, 16, 128], strides = [1, 1, 1]} : vector<4x16x128xf32> to vector<1x16x128xf32>
    %365 = vector.shape_cast %364 : vector<1x16x128xf32> to vector<16x128xf32>
    %366 = vector.broadcast %363 : f32 to vector<16x128xf32>
    %367 = arith.mulf %366, %365 : vector<16x128xf32>
    %368 = arith.addf %362, %367 : vector<16x128xf32>
    %c7_119 = arith.constant 7 : index
    %c0_120 = arith.constant 0 : index
    %369 = memref.load %arg3[%c7_119, %c0_120] : memref<8x4xf32, #tpu.memory_space<smem>>
    %370 = vector.extract_strided_slice %14 {offsets = [0, 0, 0], sizes = [1, 16, 128], strides = [1, 1, 1]} : vector<4x16x128xf32> to vector<1x16x128xf32>
    %371 = vector.shape_cast %370 : vector<1x16x128xf32> to vector<16x128xf32>
    %372 = vector.broadcast %369 : f32 to vector<16x128xf32>
    %373 = arith.mulf %372, %371 : vector<16x128xf32>
    %c7_121 = arith.constant 7 : index
    %c1_122 = arith.constant 1 : index
    %374 = memref.load %arg3[%c7_121, %c1_122] : memref<8x4xf32, #tpu.memory_space<smem>>
    %375 = vector.extract_strided_slice %14 {offsets = [1, 0, 0], sizes = [1, 16, 128], strides = [1, 1, 1]} : vector<4x16x128xf32> to vector<1x16x128xf32>
    %376 = vector.shape_cast %375 : vector<1x16x128xf32> to vector<16x128xf32>
    %377 = vector.broadcast %374 : f32 to vector<16x128xf32>
    %378 = arith.mulf %377, %376 : vector<16x128xf32>
    %379 = arith.addf %373, %378 : vector<16x128xf32>
    %c7_123 = arith.constant 7 : index
    %c2_124 = arith.constant 2 : index
    %380 = memref.load %arg3[%c7_123, %c2_124] : memref<8x4xf32, #tpu.memory_space<smem>>
    %381 = vector.extract_strided_slice %14 {offsets = [2, 0, 0], sizes = [1, 16, 128], strides = [1, 1, 1]} : vector<4x16x128xf32> to vector<1x16x128xf32>
    %382 = vector.shape_cast %381 : vector<1x16x128xf32> to vector<16x128xf32>
    %383 = vector.broadcast %380 : f32 to vector<16x128xf32>
    %384 = arith.mulf %383, %382 : vector<16x128xf32>
    %385 = arith.addf %379, %384 : vector<16x128xf32>
    %c7_125 = arith.constant 7 : index
    %c3_126 = arith.constant 3 : index
    %386 = memref.load %arg3[%c7_125, %c3_126] : memref<8x4xf32, #tpu.memory_space<smem>>
    %387 = vector.extract_strided_slice %14 {offsets = [3, 0, 0], sizes = [1, 16, 128], strides = [1, 1, 1]} : vector<4x16x128xf32> to vector<1x16x128xf32>
    %388 = vector.shape_cast %387 : vector<1x16x128xf32> to vector<16x128xf32>
    %389 = vector.broadcast %386 : f32 to vector<16x128xf32>
    %390 = arith.mulf %389, %388 : vector<16x128xf32>
    %391 = arith.addf %385, %390 : vector<16x128xf32>
    %392 = vector.shape_cast %230 : vector<16x128xf32> to vector<1x16x128xf32>
    %393 = vector.shape_cast %253 : vector<16x128xf32> to vector<1x16x128xf32>
    %394 = vector.shape_cast %276 : vector<16x128xf32> to vector<1x16x128xf32>
    %395 = vector.shape_cast %299 : vector<16x128xf32> to vector<1x16x128xf32>
    %396 = vector.shape_cast %322 : vector<16x128xf32> to vector<1x16x128xf32>
    %397 = vector.shape_cast %345 : vector<16x128xf32> to vector<1x16x128xf32>
    %398 = vector.shape_cast %368 : vector<16x128xf32> to vector<1x16x128xf32>
    %399 = vector.shape_cast %391 : vector<16x128xf32> to vector<1x16x128xf32>
    %400 = tpu.concatenate %392, %393, %394, %395, %396, %397, %398, %399 in 0 : vector<1x16x128xf32>, vector<1x16x128xf32>, vector<1x16x128xf32>, vector<1x16x128xf32>, vector<1x16x128xf32>, vector<1x16x128xf32>, vector<1x16x128xf32>, vector<1x16x128xf32> -> vector<8x16x128xf32>
    %c0_127 = arith.constant 0 : index
    %c0_128 = arith.constant 0 : index
    %401 = memref.load %arg4[%c0_127, %c0_128] : memref<4x4xf32, #tpu.memory_space<smem>>
    %402 = vector.extract_strided_slice %14 {offsets = [0, 0, 0], sizes = [1, 16, 128], strides = [1, 1, 1]} : vector<4x16x128xf32> to vector<1x16x128xf32>
    %403 = vector.shape_cast %402 : vector<1x16x128xf32> to vector<16x128xf32>
    %404 = vector.broadcast %401 : f32 to vector<16x128xf32>
    %405 = arith.mulf %404, %403 : vector<16x128xf32>
    %c0_129 = arith.constant 0 : index
    %c1_130 = arith.constant 1 : index
    %406 = memref.load %arg4[%c0_129, %c1_130] : memref<4x4xf32, #tpu.memory_space<smem>>
    %407 = vector.extract_strided_slice %14 {offsets = [1, 0, 0], sizes = [1, 16, 128], strides = [1, 1, 1]} : vector<4x16x128xf32> to vector<1x16x128xf32>
    %408 = vector.shape_cast %407 : vector<1x16x128xf32> to vector<16x128xf32>
    %409 = vector.broadcast %406 : f32 to vector<16x128xf32>
    %410 = arith.mulf %409, %408 : vector<16x128xf32>
    %411 = arith.addf %405, %410 : vector<16x128xf32>
    %c0_131 = arith.constant 0 : index
    %c2_132 = arith.constant 2 : index
    %412 = memref.load %arg4[%c0_131, %c2_132] : memref<4x4xf32, #tpu.memory_space<smem>>
    %413 = vector.extract_strided_slice %14 {offsets = [2, 0, 0], sizes = [1, 16, 128], strides = [1, 1, 1]} : vector<4x16x128xf32> to vector<1x16x128xf32>
    %414 = vector.shape_cast %413 : vector<1x16x128xf32> to vector<16x128xf32>
    %415 = vector.broadcast %412 : f32 to vector<16x128xf32>
    %416 = arith.mulf %415, %414 : vector<16x128xf32>
    %417 = arith.addf %411, %416 : vector<16x128xf32>
    %c0_133 = arith.constant 0 : index
    %c3_134 = arith.constant 3 : index
    %418 = memref.load %arg4[%c0_133, %c3_134] : memref<4x4xf32, #tpu.memory_space<smem>>
    %419 = vector.extract_strided_slice %14 {offsets = [3, 0, 0], sizes = [1, 16, 128], strides = [1, 1, 1]} : vector<4x16x128xf32> to vector<1x16x128xf32>
    %420 = vector.shape_cast %419 : vector<1x16x128xf32> to vector<16x128xf32>
    %421 = vector.broadcast %418 : f32 to vector<16x128xf32>
    %422 = arith.mulf %421, %420 : vector<16x128xf32>
    %423 = arith.addf %417, %422 : vector<16x128xf32>
    %c1_135 = arith.constant 1 : index
    %c0_136 = arith.constant 0 : index
    %424 = memref.load %arg4[%c1_135, %c0_136] : memref<4x4xf32, #tpu.memory_space<smem>>
    %425 = vector.extract_strided_slice %14 {offsets = [0, 0, 0], sizes = [1, 16, 128], strides = [1, 1, 1]} : vector<4x16x128xf32> to vector<1x16x128xf32>
    %426 = vector.shape_cast %425 : vector<1x16x128xf32> to vector<16x128xf32>
    %427 = vector.broadcast %424 : f32 to vector<16x128xf32>
    %428 = arith.mulf %427, %426 : vector<16x128xf32>
    %c1_137 = arith.constant 1 : index
    %c1_138 = arith.constant 1 : index
    %429 = memref.load %arg4[%c1_137, %c1_138] : memref<4x4xf32, #tpu.memory_space<smem>>
    %430 = vector.extract_strided_slice %14 {offsets = [1, 0, 0], sizes = [1, 16, 128], strides = [1, 1, 1]} : vector<4x16x128xf32> to vector<1x16x128xf32>
    %431 = vector.shape_cast %430 : vector<1x16x128xf32> to vector<16x128xf32>
    %432 = vector.broadcast %429 : f32 to vector<16x128xf32>
    %433 = arith.mulf %432, %431 : vector<16x128xf32>
    %434 = arith.addf %428, %433 : vector<16x128xf32>
    %c1_139 = arith.constant 1 : index
    %c2_140 = arith.constant 2 : index
    %435 = memref.load %arg4[%c1_139, %c2_140] : memref<4x4xf32, #tpu.memory_space<smem>>
    %436 = vector.extract_strided_slice %14 {offsets = [2, 0, 0], sizes = [1, 16, 128], strides = [1, 1, 1]} : vector<4x16x128xf32> to vector<1x16x128xf32>
    %437 = vector.shape_cast %436 : vector<1x16x128xf32> to vector<16x128xf32>
    %438 = vector.broadcast %435 : f32 to vector<16x128xf32>
    %439 = arith.mulf %438, %437 : vector<16x128xf32>
    %440 = arith.addf %434, %439 : vector<16x128xf32>
    %c1_141 = arith.constant 1 : index
    %c3_142 = arith.constant 3 : index
    %441 = memref.load %arg4[%c1_141, %c3_142] : memref<4x4xf32, #tpu.memory_space<smem>>
    %442 = vector.extract_strided_slice %14 {offsets = [3, 0, 0], sizes = [1, 16, 128], strides = [1, 1, 1]} : vector<4x16x128xf32> to vector<1x16x128xf32>
    %443 = vector.shape_cast %442 : vector<1x16x128xf32> to vector<16x128xf32>
    %444 = vector.broadcast %441 : f32 to vector<16x128xf32>
    %445 = arith.mulf %444, %443 : vector<16x128xf32>
    %446 = arith.addf %440, %445 : vector<16x128xf32>
    %c2_143 = arith.constant 2 : index
    %c0_144 = arith.constant 0 : index
    %447 = memref.load %arg4[%c2_143, %c0_144] : memref<4x4xf32, #tpu.memory_space<smem>>
    %448 = vector.extract_strided_slice %14 {offsets = [0, 0, 0], sizes = [1, 16, 128], strides = [1, 1, 1]} : vector<4x16x128xf32> to vector<1x16x128xf32>
    %449 = vector.shape_cast %448 : vector<1x16x128xf32> to vector<16x128xf32>
    %450 = vector.broadcast %447 : f32 to vector<16x128xf32>
    %451 = arith.mulf %450, %449 : vector<16x128xf32>
    %c2_145 = arith.constant 2 : index
    %c1_146 = arith.constant 1 : index
    %452 = memref.load %arg4[%c2_145, %c1_146] : memref<4x4xf32, #tpu.memory_space<smem>>
    %453 = vector.extract_strided_slice %14 {offsets = [1, 0, 0], sizes = [1, 16, 128], strides = [1, 1, 1]} : vector<4x16x128xf32> to vector<1x16x128xf32>
    %454 = vector.shape_cast %453 : vector<1x16x128xf32> to vector<16x128xf32>
    %455 = vector.broadcast %452 : f32 to vector<16x128xf32>
    %456 = arith.mulf %455, %454 : vector<16x128xf32>
    %457 = arith.addf %451, %456 : vector<16x128xf32>
    %c2_147 = arith.constant 2 : index
    %c2_148 = arith.constant 2 : index
    %458 = memref.load %arg4[%c2_147, %c2_148] : memref<4x4xf32, #tpu.memory_space<smem>>
    %459 = vector.extract_strided_slice %14 {offsets = [2, 0, 0], sizes = [1, 16, 128], strides = [1, 1, 1]} : vector<4x16x128xf32> to vector<1x16x128xf32>
    %460 = vector.shape_cast %459 : vector<1x16x128xf32> to vector<16x128xf32>
    %461 = vector.broadcast %458 : f32 to vector<16x128xf32>
    %462 = arith.mulf %461, %460 : vector<16x128xf32>
    %463 = arith.addf %457, %462 : vector<16x128xf32>
    %c2_149 = arith.constant 2 : index
    %c3_150 = arith.constant 3 : index
    %464 = memref.load %arg4[%c2_149, %c3_150] : memref<4x4xf32, #tpu.memory_space<smem>>
    %465 = vector.extract_strided_slice %14 {offsets = [3, 0, 0], sizes = [1, 16, 128], strides = [1, 1, 1]} : vector<4x16x128xf32> to vector<1x16x128xf32>
    %466 = vector.shape_cast %465 : vector<1x16x128xf32> to vector<16x128xf32>
    %467 = vector.broadcast %464 : f32 to vector<16x128xf32>
    %468 = arith.mulf %467, %466 : vector<16x128xf32>
    %469 = arith.addf %463, %468 : vector<16x128xf32>
    %c3_151 = arith.constant 3 : index
    %c0_152 = arith.constant 0 : index
    %470 = memref.load %arg4[%c3_151, %c0_152] : memref<4x4xf32, #tpu.memory_space<smem>>
    %471 = vector.extract_strided_slice %14 {offsets = [0, 0, 0], sizes = [1, 16, 128], strides = [1, 1, 1]} : vector<4x16x128xf32> to vector<1x16x128xf32>
    %472 = vector.shape_cast %471 : vector<1x16x128xf32> to vector<16x128xf32>
    %473 = vector.broadcast %470 : f32 to vector<16x128xf32>
    %474 = arith.mulf %473, %472 : vector<16x128xf32>
    %c3_153 = arith.constant 3 : index
    %c1_154 = arith.constant 1 : index
    %475 = memref.load %arg4[%c3_153, %c1_154] : memref<4x4xf32, #tpu.memory_space<smem>>
    %476 = vector.extract_strided_slice %14 {offsets = [1, 0, 0], sizes = [1, 16, 128], strides = [1, 1, 1]} : vector<4x16x128xf32> to vector<1x16x128xf32>
    %477 = vector.shape_cast %476 : vector<1x16x128xf32> to vector<16x128xf32>
    %478 = vector.broadcast %475 : f32 to vector<16x128xf32>
    %479 = arith.mulf %478, %477 : vector<16x128xf32>
    %480 = arith.addf %474, %479 : vector<16x128xf32>
    %c3_155 = arith.constant 3 : index
    %c2_156 = arith.constant 2 : index
    %481 = memref.load %arg4[%c3_155, %c2_156] : memref<4x4xf32, #tpu.memory_space<smem>>
    %482 = vector.extract_strided_slice %14 {offsets = [2, 0, 0], sizes = [1, 16, 128], strides = [1, 1, 1]} : vector<4x16x128xf32> to vector<1x16x128xf32>
    %483 = vector.shape_cast %482 : vector<1x16x128xf32> to vector<16x128xf32>
    %484 = vector.broadcast %481 : f32 to vector<16x128xf32>
    %485 = arith.mulf %484, %483 : vector<16x128xf32>
    %486 = arith.addf %480, %485 : vector<16x128xf32>
    %c3_157 = arith.constant 3 : index
    %c3_158 = arith.constant 3 : index
    %487 = memref.load %arg4[%c3_157, %c3_158] : memref<4x4xf32, #tpu.memory_space<smem>>
    %488 = vector.extract_strided_slice %14 {offsets = [3, 0, 0], sizes = [1, 16, 128], strides = [1, 1, 1]} : vector<4x16x128xf32> to vector<1x16x128xf32>
    %489 = vector.shape_cast %488 : vector<1x16x128xf32> to vector<16x128xf32>
    %490 = vector.broadcast %487 : f32 to vector<16x128xf32>
    %491 = arith.mulf %490, %489 : vector<16x128xf32>
    %492 = arith.addf %486, %491 : vector<16x128xf32>
    %493 = vector.shape_cast %423 : vector<16x128xf32> to vector<1x16x128xf32>
    %494 = vector.shape_cast %446 : vector<16x128xf32> to vector<1x16x128xf32>
    %495 = vector.shape_cast %469 : vector<16x128xf32> to vector<1x16x128xf32>
    %496 = vector.shape_cast %492 : vector<16x128xf32> to vector<1x16x128xf32>
    %497 = tpu.concatenate %493, %494, %495, %496 in 0 : vector<1x16x128xf32>, vector<1x16x128xf32>, vector<1x16x128xf32>, vector<1x16x128xf32> -> vector<4x16x128xf32>
    %c0_159 = arith.constant 0 : index
    %c0_160 = arith.constant 0 : index
    %498 = memref.load %arg5[%c0_159, %c0_160] : memref<8x4xf32, #tpu.memory_space<smem>>
    %499 = vector.extract_strided_slice %497 {offsets = [0, 0, 0], sizes = [1, 16, 128], strides = [1, 1, 1]} : vector<4x16x128xf32> to vector<1x16x128xf32>
    %500 = vector.shape_cast %499 : vector<1x16x128xf32> to vector<16x128xf32>
    %501 = vector.broadcast %498 : f32 to vector<16x128xf32>
    %502 = arith.mulf %501, %500 : vector<16x128xf32>
    %c0_161 = arith.constant 0 : index
    %c1_162 = arith.constant 1 : index
    %503 = memref.load %arg5[%c0_161, %c1_162] : memref<8x4xf32, #tpu.memory_space<smem>>
    %504 = vector.extract_strided_slice %497 {offsets = [1, 0, 0], sizes = [1, 16, 128], strides = [1, 1, 1]} : vector<4x16x128xf32> to vector<1x16x128xf32>
    %505 = vector.shape_cast %504 : vector<1x16x128xf32> to vector<16x128xf32>
    %506 = vector.broadcast %503 : f32 to vector<16x128xf32>
    %507 = arith.mulf %506, %505 : vector<16x128xf32>
    %508 = arith.addf %502, %507 : vector<16x128xf32>
    %c0_163 = arith.constant 0 : index
    %c2_164 = arith.constant 2 : index
    %509 = memref.load %arg5[%c0_163, %c2_164] : memref<8x4xf32, #tpu.memory_space<smem>>
    %510 = vector.extract_strided_slice %497 {offsets = [2, 0, 0], sizes = [1, 16, 128], strides = [1, 1, 1]} : vector<4x16x128xf32> to vector<1x16x128xf32>
    %511 = vector.shape_cast %510 : vector<1x16x128xf32> to vector<16x128xf32>
    %512 = vector.broadcast %509 : f32 to vector<16x128xf32>
    %513 = arith.mulf %512, %511 : vector<16x128xf32>
    %514 = arith.addf %508, %513 : vector<16x128xf32>
    %c0_165 = arith.constant 0 : index
    %c3_166 = arith.constant 3 : index
    %515 = memref.load %arg5[%c0_165, %c3_166] : memref<8x4xf32, #tpu.memory_space<smem>>
    %516 = vector.extract_strided_slice %497 {offsets = [3, 0, 0], sizes = [1, 16, 128], strides = [1, 1, 1]} : vector<4x16x128xf32> to vector<1x16x128xf32>
    %517 = vector.shape_cast %516 : vector<1x16x128xf32> to vector<16x128xf32>
    %518 = vector.broadcast %515 : f32 to vector<16x128xf32>
    %519 = arith.mulf %518, %517 : vector<16x128xf32>
    %520 = arith.addf %514, %519 : vector<16x128xf32>
    %c1_167 = arith.constant 1 : index
    %c0_168 = arith.constant 0 : index
    %521 = memref.load %arg5[%c1_167, %c0_168] : memref<8x4xf32, #tpu.memory_space<smem>>
    %522 = vector.extract_strided_slice %497 {offsets = [0, 0, 0], sizes = [1, 16, 128], strides = [1, 1, 1]} : vector<4x16x128xf32> to vector<1x16x128xf32>
    %523 = vector.shape_cast %522 : vector<1x16x128xf32> to vector<16x128xf32>
    %524 = vector.broadcast %521 : f32 to vector<16x128xf32>
    %525 = arith.mulf %524, %523 : vector<16x128xf32>
    %c1_169 = arith.constant 1 : index
    %c1_170 = arith.constant 1 : index
    %526 = memref.load %arg5[%c1_169, %c1_170] : memref<8x4xf32, #tpu.memory_space<smem>>
    %527 = vector.extract_strided_slice %497 {offsets = [1, 0, 0], sizes = [1, 16, 128], strides = [1, 1, 1]} : vector<4x16x128xf32> to vector<1x16x128xf32>
    %528 = vector.shape_cast %527 : vector<1x16x128xf32> to vector<16x128xf32>
    %529 = vector.broadcast %526 : f32 to vector<16x128xf32>
    %530 = arith.mulf %529, %528 : vector<16x128xf32>
    %531 = arith.addf %525, %530 : vector<16x128xf32>
    %c1_171 = arith.constant 1 : index
    %c2_172 = arith.constant 2 : index
    %532 = memref.load %arg5[%c1_171, %c2_172] : memref<8x4xf32, #tpu.memory_space<smem>>
    %533 = vector.extract_strided_slice %497 {offsets = [2, 0, 0], sizes = [1, 16, 128], strides = [1, 1, 1]} : vector<4x16x128xf32> to vector<1x16x128xf32>
    %534 = vector.shape_cast %533 : vector<1x16x128xf32> to vector<16x128xf32>
    %535 = vector.broadcast %532 : f32 to vector<16x128xf32>
    %536 = arith.mulf %535, %534 : vector<16x128xf32>
    %537 = arith.addf %531, %536 : vector<16x128xf32>
    %c1_173 = arith.constant 1 : index
    %c3_174 = arith.constant 3 : index
    %538 = memref.load %arg5[%c1_173, %c3_174] : memref<8x4xf32, #tpu.memory_space<smem>>
    %539 = vector.extract_strided_slice %497 {offsets = [3, 0, 0], sizes = [1, 16, 128], strides = [1, 1, 1]} : vector<4x16x128xf32> to vector<1x16x128xf32>
    %540 = vector.shape_cast %539 : vector<1x16x128xf32> to vector<16x128xf32>
    %541 = vector.broadcast %538 : f32 to vector<16x128xf32>
    %542 = arith.mulf %541, %540 : vector<16x128xf32>
    %543 = arith.addf %537, %542 : vector<16x128xf32>
    %c2_175 = arith.constant 2 : index
    %c0_176 = arith.constant 0 : index
    %544 = memref.load %arg5[%c2_175, %c0_176] : memref<8x4xf32, #tpu.memory_space<smem>>
    %545 = vector.extract_strided_slice %497 {offsets = [0, 0, 0], sizes = [1, 16, 128], strides = [1, 1, 1]} : vector<4x16x128xf32> to vector<1x16x128xf32>
    %546 = vector.shape_cast %545 : vector<1x16x128xf32> to vector<16x128xf32>
    %547 = vector.broadcast %544 : f32 to vector<16x128xf32>
    %548 = arith.mulf %547, %546 : vector<16x128xf32>
    %c2_177 = arith.constant 2 : index
    %c1_178 = arith.constant 1 : index
    %549 = memref.load %arg5[%c2_177, %c1_178] : memref<8x4xf32, #tpu.memory_space<smem>>
    %550 = vector.extract_strided_slice %497 {offsets = [1, 0, 0], sizes = [1, 16, 128], strides = [1, 1, 1]} : vector<4x16x128xf32> to vector<1x16x128xf32>
    %551 = vector.shape_cast %550 : vector<1x16x128xf32> to vector<16x128xf32>
    %552 = vector.broadcast %549 : f32 to vector<16x128xf32>
    %553 = arith.mulf %552, %551 : vector<16x128xf32>
    %554 = arith.addf %548, %553 : vector<16x128xf32>
    %c2_179 = arith.constant 2 : index
    %c2_180 = arith.constant 2 : index
    %555 = memref.load %arg5[%c2_179, %c2_180] : memref<8x4xf32, #tpu.memory_space<smem>>
    %556 = vector.extract_strided_slice %497 {offsets = [2, 0, 0], sizes = [1, 16, 128], strides = [1, 1, 1]} : vector<4x16x128xf32> to vector<1x16x128xf32>
    %557 = vector.shape_cast %556 : vector<1x16x128xf32> to vector<16x128xf32>
    %558 = vector.broadcast %555 : f32 to vector<16x128xf32>
    %559 = arith.mulf %558, %557 : vector<16x128xf32>
    %560 = arith.addf %554, %559 : vector<16x128xf32>
    %c2_181 = arith.constant 2 : index
    %c3_182 = arith.constant 3 : index
    %561 = memref.load %arg5[%c2_181, %c3_182] : memref<8x4xf32, #tpu.memory_space<smem>>
    %562 = vector.extract_strided_slice %497 {offsets = [3, 0, 0], sizes = [1, 16, 128], strides = [1, 1, 1]} : vector<4x16x128xf32> to vector<1x16x128xf32>
    %563 = vector.shape_cast %562 : vector<1x16x128xf32> to vector<16x128xf32>
    %564 = vector.broadcast %561 : f32 to vector<16x128xf32>
    %565 = arith.mulf %564, %563 : vector<16x128xf32>
    %566 = arith.addf %560, %565 : vector<16x128xf32>
    %c3_183 = arith.constant 3 : index
    %c0_184 = arith.constant 0 : index
    %567 = memref.load %arg5[%c3_183, %c0_184] : memref<8x4xf32, #tpu.memory_space<smem>>
    %568 = vector.extract_strided_slice %497 {offsets = [0, 0, 0], sizes = [1, 16, 128], strides = [1, 1, 1]} : vector<4x16x128xf32> to vector<1x16x128xf32>
    %569 = vector.shape_cast %568 : vector<1x16x128xf32> to vector<16x128xf32>
    %570 = vector.broadcast %567 : f32 to vector<16x128xf32>
    %571 = arith.mulf %570, %569 : vector<16x128xf32>
    %c3_185 = arith.constant 3 : index
    %c1_186 = arith.constant 1 : index
    %572 = memref.load %arg5[%c3_185, %c1_186] : memref<8x4xf32, #tpu.memory_space<smem>>
    %573 = vector.extract_strided_slice %497 {offsets = [1, 0, 0], sizes = [1, 16, 128], strides = [1, 1, 1]} : vector<4x16x128xf32> to vector<1x16x128xf32>
    %574 = vector.shape_cast %573 : vector<1x16x128xf32> to vector<16x128xf32>
    %575 = vector.broadcast %572 : f32 to vector<16x128xf32>
    %576 = arith.mulf %575, %574 : vector<16x128xf32>
    %577 = arith.addf %571, %576 : vector<16x128xf32>
    %c3_187 = arith.constant 3 : index
    %c2_188 = arith.constant 2 : index
    %578 = memref.load %arg5[%c3_187, %c2_188] : memref<8x4xf32, #tpu.memory_space<smem>>
    %579 = vector.extract_strided_slice %497 {offsets = [2, 0, 0], sizes = [1, 16, 128], strides = [1, 1, 1]} : vector<4x16x128xf32> to vector<1x16x128xf32>
    %580 = vector.shape_cast %579 : vector<1x16x128xf32> to vector<16x128xf32>
    %581 = vector.broadcast %578 : f32 to vector<16x128xf32>
    %582 = arith.mulf %581, %580 : vector<16x128xf32>
    %583 = arith.addf %577, %582 : vector<16x128xf32>
    %c3_189 = arith.constant 3 : index
    %c3_190 = arith.constant 3 : index
    %584 = memref.load %arg5[%c3_189, %c3_190] : memref<8x4xf32, #tpu.memory_space<smem>>
    %585 = vector.extract_strided_slice %497 {offsets = [3, 0, 0], sizes = [1, 16, 128], strides = [1, 1, 1]} : vector<4x16x128xf32> to vector<1x16x128xf32>
    %586 = vector.shape_cast %585 : vector<1x16x128xf32> to vector<16x128xf32>
    %587 = vector.broadcast %584 : f32 to vector<16x128xf32>
    %588 = arith.mulf %587, %586 : vector<16x128xf32>
    %589 = arith.addf %583, %588 : vector<16x128xf32>
    %c4_191 = arith.constant 4 : index
    %c0_192 = arith.constant 0 : index
    %590 = memref.load %arg5[%c4_191, %c0_192] : memref<8x4xf32, #tpu.memory_space<smem>>
    %591 = vector.extract_strided_slice %497 {offsets = [0, 0, 0], sizes = [1, 16, 128], strides = [1, 1, 1]} : vector<4x16x128xf32> to vector<1x16x128xf32>
    %592 = vector.shape_cast %591 : vector<1x16x128xf32> to vector<16x128xf32>
    %593 = vector.broadcast %590 : f32 to vector<16x128xf32>
    %594 = arith.mulf %593, %592 : vector<16x128xf32>
    %c4_193 = arith.constant 4 : index
    %c1_194 = arith.constant 1 : index
    %595 = memref.load %arg5[%c4_193, %c1_194] : memref<8x4xf32, #tpu.memory_space<smem>>
    %596 = vector.extract_strided_slice %497 {offsets = [1, 0, 0], sizes = [1, 16, 128], strides = [1, 1, 1]} : vector<4x16x128xf32> to vector<1x16x128xf32>
    %597 = vector.shape_cast %596 : vector<1x16x128xf32> to vector<16x128xf32>
    %598 = vector.broadcast %595 : f32 to vector<16x128xf32>
    %599 = arith.mulf %598, %597 : vector<16x128xf32>
    %600 = arith.addf %594, %599 : vector<16x128xf32>
    %c4_195 = arith.constant 4 : index
    %c2_196 = arith.constant 2 : index
    %601 = memref.load %arg5[%c4_195, %c2_196] : memref<8x4xf32, #tpu.memory_space<smem>>
    %602 = vector.extract_strided_slice %497 {offsets = [2, 0, 0], sizes = [1, 16, 128], strides = [1, 1, 1]} : vector<4x16x128xf32> to vector<1x16x128xf32>
    %603 = vector.shape_cast %602 : vector<1x16x128xf32> to vector<16x128xf32>
    %604 = vector.broadcast %601 : f32 to vector<16x128xf32>
    %605 = arith.mulf %604, %603 : vector<16x128xf32>
    %606 = arith.addf %600, %605 : vector<16x128xf32>
    %c4_197 = arith.constant 4 : index
    %c3_198 = arith.constant 3 : index
    %607 = memref.load %arg5[%c4_197, %c3_198] : memref<8x4xf32, #tpu.memory_space<smem>>
    %608 = vector.extract_strided_slice %497 {offsets = [3, 0, 0], sizes = [1, 16, 128], strides = [1, 1, 1]} : vector<4x16x128xf32> to vector<1x16x128xf32>
    %609 = vector.shape_cast %608 : vector<1x16x128xf32> to vector<16x128xf32>
    %610 = vector.broadcast %607 : f32 to vector<16x128xf32>
    %611 = arith.mulf %610, %609 : vector<16x128xf32>
    %612 = arith.addf %606, %611 : vector<16x128xf32>
    %c5_199 = arith.constant 5 : index
    %c0_200 = arith.constant 0 : index
    %613 = memref.load %arg5[%c5_199, %c0_200] : memref<8x4xf32, #tpu.memory_space<smem>>
    %614 = vector.extract_strided_slice %497 {offsets = [0, 0, 0], sizes = [1, 16, 128], strides = [1, 1, 1]} : vector<4x16x128xf32> to vector<1x16x128xf32>
    %615 = vector.shape_cast %614 : vector<1x16x128xf32> to vector<16x128xf32>
    %616 = vector.broadcast %613 : f32 to vector<16x128xf32>
    %617 = arith.mulf %616, %615 : vector<16x128xf32>
    %c5_201 = arith.constant 5 : index
    %c1_202 = arith.constant 1 : index
    %618 = memref.load %arg5[%c5_201, %c1_202] : memref<8x4xf32, #tpu.memory_space<smem>>
    %619 = vector.extract_strided_slice %497 {offsets = [1, 0, 0], sizes = [1, 16, 128], strides = [1, 1, 1]} : vector<4x16x128xf32> to vector<1x16x128xf32>
    %620 = vector.shape_cast %619 : vector<1x16x128xf32> to vector<16x128xf32>
    %621 = vector.broadcast %618 : f32 to vector<16x128xf32>
    %622 = arith.mulf %621, %620 : vector<16x128xf32>
    %623 = arith.addf %617, %622 : vector<16x128xf32>
    %c5_203 = arith.constant 5 : index
    %c2_204 = arith.constant 2 : index
    %624 = memref.load %arg5[%c5_203, %c2_204] : memref<8x4xf32, #tpu.memory_space<smem>>
    %625 = vector.extract_strided_slice %497 {offsets = [2, 0, 0], sizes = [1, 16, 128], strides = [1, 1, 1]} : vector<4x16x128xf32> to vector<1x16x128xf32>
    %626 = vector.shape_cast %625 : vector<1x16x128xf32> to vector<16x128xf32>
    %627 = vector.broadcast %624 : f32 to vector<16x128xf32>
    %628 = arith.mulf %627, %626 : vector<16x128xf32>
    %629 = arith.addf %623, %628 : vector<16x128xf32>
    %c5_205 = arith.constant 5 : index
    %c3_206 = arith.constant 3 : index
    %630 = memref.load %arg5[%c5_205, %c3_206] : memref<8x4xf32, #tpu.memory_space<smem>>
    %631 = vector.extract_strided_slice %497 {offsets = [3, 0, 0], sizes = [1, 16, 128], strides = [1, 1, 1]} : vector<4x16x128xf32> to vector<1x16x128xf32>
    %632 = vector.shape_cast %631 : vector<1x16x128xf32> to vector<16x128xf32>
    %633 = vector.broadcast %630 : f32 to vector<16x128xf32>
    %634 = arith.mulf %633, %632 : vector<16x128xf32>
    %635 = arith.addf %629, %634 : vector<16x128xf32>
    %c6_207 = arith.constant 6 : index
    %c0_208 = arith.constant 0 : index
    %636 = memref.load %arg5[%c6_207, %c0_208] : memref<8x4xf32, #tpu.memory_space<smem>>
    %637 = vector.extract_strided_slice %497 {offsets = [0, 0, 0], sizes = [1, 16, 128], strides = [1, 1, 1]} : vector<4x16x128xf32> to vector<1x16x128xf32>
    %638 = vector.shape_cast %637 : vector<1x16x128xf32> to vector<16x128xf32>
    %639 = vector.broadcast %636 : f32 to vector<16x128xf32>
    %640 = arith.mulf %639, %638 : vector<16x128xf32>
    %c6_209 = arith.constant 6 : index
    %c1_210 = arith.constant 1 : index
    %641 = memref.load %arg5[%c6_209, %c1_210] : memref<8x4xf32, #tpu.memory_space<smem>>
    %642 = vector.extract_strided_slice %497 {offsets = [1, 0, 0], sizes = [1, 16, 128], strides = [1, 1, 1]} : vector<4x16x128xf32> to vector<1x16x128xf32>
    %643 = vector.shape_cast %642 : vector<1x16x128xf32> to vector<16x128xf32>
    %644 = vector.broadcast %641 : f32 to vector<16x128xf32>
    %645 = arith.mulf %644, %643 : vector<16x128xf32>
    %646 = arith.addf %640, %645 : vector<16x128xf32>
    %c6_211 = arith.constant 6 : index
    %c2_212 = arith.constant 2 : index
    %647 = memref.load %arg5[%c6_211, %c2_212] : memref<8x4xf32, #tpu.memory_space<smem>>
    %648 = vector.extract_strided_slice %497 {offsets = [2, 0, 0], sizes = [1, 16, 128], strides = [1, 1, 1]} : vector<4x16x128xf32> to vector<1x16x128xf32>
    %649 = vector.shape_cast %648 : vector<1x16x128xf32> to vector<16x128xf32>
    %650 = vector.broadcast %647 : f32 to vector<16x128xf32>
    %651 = arith.mulf %650, %649 : vector<16x128xf32>
    %652 = arith.addf %646, %651 : vector<16x128xf32>
    %c6_213 = arith.constant 6 : index
    %c3_214 = arith.constant 3 : index
    %653 = memref.load %arg5[%c6_213, %c3_214] : memref<8x4xf32, #tpu.memory_space<smem>>
    %654 = vector.extract_strided_slice %497 {offsets = [3, 0, 0], sizes = [1, 16, 128], strides = [1, 1, 1]} : vector<4x16x128xf32> to vector<1x16x128xf32>
    %655 = vector.shape_cast %654 : vector<1x16x128xf32> to vector<16x128xf32>
    %656 = vector.broadcast %653 : f32 to vector<16x128xf32>
    %657 = arith.mulf %656, %655 : vector<16x128xf32>
    %658 = arith.addf %652, %657 : vector<16x128xf32>
    %c7_215 = arith.constant 7 : index
    %c0_216 = arith.constant 0 : index
    %659 = memref.load %arg5[%c7_215, %c0_216] : memref<8x4xf32, #tpu.memory_space<smem>>
    %660 = vector.extract_strided_slice %497 {offsets = [0, 0, 0], sizes = [1, 16, 128], strides = [1, 1, 1]} : vector<4x16x128xf32> to vector<1x16x128xf32>
    %661 = vector.shape_cast %660 : vector<1x16x128xf32> to vector<16x128xf32>
    %662 = vector.broadcast %659 : f32 to vector<16x128xf32>
    %663 = arith.mulf %662, %661 : vector<16x128xf32>
    %c7_217 = arith.constant 7 : index
    %c1_218 = arith.constant 1 : index
    %664 = memref.load %arg5[%c7_217, %c1_218] : memref<8x4xf32, #tpu.memory_space<smem>>
    %665 = vector.extract_strided_slice %497 {offsets = [1, 0, 0], sizes = [1, 16, 128], strides = [1, 1, 1]} : vector<4x16x128xf32> to vector<1x16x128xf32>
    %666 = vector.shape_cast %665 : vector<1x16x128xf32> to vector<16x128xf32>
    %667 = vector.broadcast %664 : f32 to vector<16x128xf32>
    %668 = arith.mulf %667, %666 : vector<16x128xf32>
    %669 = arith.addf %663, %668 : vector<16x128xf32>
    %c7_219 = arith.constant 7 : index
    %c2_220 = arith.constant 2 : index
    %670 = memref.load %arg5[%c7_219, %c2_220] : memref<8x4xf32, #tpu.memory_space<smem>>
    %671 = vector.extract_strided_slice %497 {offsets = [2, 0, 0], sizes = [1, 16, 128], strides = [1, 1, 1]} : vector<4x16x128xf32> to vector<1x16x128xf32>
    %672 = vector.shape_cast %671 : vector<1x16x128xf32> to vector<16x128xf32>
    %673 = vector.broadcast %670 : f32 to vector<16x128xf32>
    %674 = arith.mulf %673, %672 : vector<16x128xf32>
    %675 = arith.addf %669, %674 : vector<16x128xf32>
    %c7_221 = arith.constant 7 : index
    %c3_222 = arith.constant 3 : index
    %676 = memref.load %arg5[%c7_221, %c3_222] : memref<8x4xf32, #tpu.memory_space<smem>>
    %677 = vector.extract_strided_slice %497 {offsets = [3, 0, 0], sizes = [1, 16, 128], strides = [1, 1, 1]} : vector<4x16x128xf32> to vector<1x16x128xf32>
    %678 = vector.shape_cast %677 : vector<1x16x128xf32> to vector<16x128xf32>
    %679 = vector.broadcast %676 : f32 to vector<16x128xf32>
    %680 = arith.mulf %679, %678 : vector<16x128xf32>
    %681 = arith.addf %675, %680 : vector<16x128xf32>
    %682 = vector.shape_cast %520 : vector<16x128xf32> to vector<1x16x128xf32>
    %683 = vector.shape_cast %543 : vector<16x128xf32> to vector<1x16x128xf32>
    %684 = vector.shape_cast %566 : vector<16x128xf32> to vector<1x16x128xf32>
    %685 = vector.shape_cast %589 : vector<16x128xf32> to vector<1x16x128xf32>
    %686 = vector.shape_cast %612 : vector<16x128xf32> to vector<1x16x128xf32>
    %687 = vector.shape_cast %635 : vector<16x128xf32> to vector<1x16x128xf32>
    %688 = vector.shape_cast %658 : vector<16x128xf32> to vector<1x16x128xf32>
    %689 = vector.shape_cast %681 : vector<16x128xf32> to vector<1x16x128xf32>
    %690 = tpu.concatenate %682, %683, %684, %685, %686, %687, %688, %689 in 0 : vector<1x16x128xf32>, vector<1x16x128xf32>, vector<1x16x128xf32>, vector<1x16x128xf32>, vector<1x16x128xf32>, vector<1x16x128xf32>, vector<1x16x128xf32>, vector<1x16x128xf32> -> vector<8x16x128xf32>
    %691 = arith.addf %400, %690 : vector<8x16x128xf32>
    %cst_223 = arith.constant 2.000000e+01 : f32
    %692 = vector.broadcast %cst_223 : f32 to vector<8x16x128xf32>
    %693 = arith.minimumf %691, %692 : vector<8x16x128xf32>
    %694 = math.exp %693 : vector<8x16x128xf32>
    %cst_224 = arith.constant 1.000000e+00 : f32
    %695 = vector.broadcast %cst_224 : f32 to vector<8x16x128xf32>
    %696 = arith.addf %695, %694 : vector<8x16x128xf32>
    %cst_225 = arith.constant 1.000000e+00 : f32
    %697 = vector.broadcast %cst_225 : f32 to vector<8x16x128xf32>
    %698 = arith.addf %697, %694 : vector<8x16x128xf32>
    %699 = arith.mulf %696, %698 : vector<8x16x128xf32>
    %cst_226 = arith.constant 1.000000e+00 : f32
    %700 = vector.broadcast %cst_226 : f32 to vector<8x16x128xf32>
    %701 = arith.subf %699, %700 : vector<8x16x128xf32>
    %702 = arith.mulf %691, %701 : vector<8x16x128xf32>
    %cst_227 = arith.constant 1.000000e+00 : f32
    %703 = vector.broadcast %cst_227 : f32 to vector<8x16x128xf32>
    %704 = arith.addf %699, %703 : vector<8x16x128xf32>
    %705 = arith.divf %702, %704 : vector<8x16x128xf32>
    %cst_228 = arith.constant 2.000000e+01 : f32
    %706 = vector.broadcast %cst_228 : f32 to vector<8x16x128xf32>
    %707 = arith.minimumf %705, %706 : vector<8x16x128xf32>
    %708 = math.exp %707 : vector<8x16x128xf32>
    %cst_229 = arith.constant 1.000000e+00 : f32
    %709 = vector.broadcast %cst_229 : f32 to vector<8x16x128xf32>
    %710 = arith.addf %709, %708 : vector<8x16x128xf32>
    %cst_230 = arith.constant 1.000000e+00 : f32
    %711 = vector.broadcast %cst_230 : f32 to vector<8x16x128xf32>
    %712 = arith.addf %711, %708 : vector<8x16x128xf32>
    %713 = arith.mulf %710, %712 : vector<8x16x128xf32>
    %cst_231 = arith.constant 1.000000e+00 : f32
    %714 = vector.broadcast %cst_231 : f32 to vector<8x16x128xf32>
    %715 = arith.subf %713, %714 : vector<8x16x128xf32>
    %716 = arith.mulf %705, %715 : vector<8x16x128xf32>
    %cst_232 = arith.constant 1.000000e+00 : f32
    %717 = vector.broadcast %cst_232 : f32 to vector<8x16x128xf32>
    %718 = arith.addf %713, %717 : vector<8x16x128xf32>
    %719 = arith.divf %716, %718 : vector<8x16x128xf32>
    %c0_233 = arith.constant 0 : index
    %c0_234 = arith.constant 0 : index
    %720 = memref.load %arg6[%c0_233, %c0_234] : memref<4x8xf32, #tpu.memory_space<smem>>
    %721 = vector.extract_strided_slice %719 {offsets = [0, 0, 0], sizes = [1, 16, 128], strides = [1, 1, 1]} : vector<8x16x128xf32> to vector<1x16x128xf32>
    %722 = vector.shape_cast %721 : vector<1x16x128xf32> to vector<16x128xf32>
    %723 = vector.broadcast %720 : f32 to vector<16x128xf32>
    %724 = arith.mulf %723, %722 : vector<16x128xf32>
    %c0_235 = arith.constant 0 : index
    %c1_236 = arith.constant 1 : index
    %725 = memref.load %arg6[%c0_235, %c1_236] : memref<4x8xf32, #tpu.memory_space<smem>>
    %726 = vector.extract_strided_slice %719 {offsets = [1, 0, 0], sizes = [1, 16, 128], strides = [1, 1, 1]} : vector<8x16x128xf32> to vector<1x16x128xf32>
    %727 = vector.shape_cast %726 : vector<1x16x128xf32> to vector<16x128xf32>
    %728 = vector.broadcast %725 : f32 to vector<16x128xf32>
    %729 = arith.mulf %728, %727 : vector<16x128xf32>
    %730 = arith.addf %724, %729 : vector<16x128xf32>
    %c0_237 = arith.constant 0 : index
    %c2_238 = arith.constant 2 : index
    %731 = memref.load %arg6[%c0_237, %c2_238] : memref<4x8xf32, #tpu.memory_space<smem>>
    %732 = vector.extract_strided_slice %719 {offsets = [2, 0, 0], sizes = [1, 16, 128], strides = [1, 1, 1]} : vector<8x16x128xf32> to vector<1x16x128xf32>
    %733 = vector.shape_cast %732 : vector<1x16x128xf32> to vector<16x128xf32>
    %734 = vector.broadcast %731 : f32 to vector<16x128xf32>
    %735 = arith.mulf %734, %733 : vector<16x128xf32>
    %736 = arith.addf %730, %735 : vector<16x128xf32>
    %c0_239 = arith.constant 0 : index
    %c3_240 = arith.constant 3 : index
    %737 = memref.load %arg6[%c0_239, %c3_240] : memref<4x8xf32, #tpu.memory_space<smem>>
    %738 = vector.extract_strided_slice %719 {offsets = [3, 0, 0], sizes = [1, 16, 128], strides = [1, 1, 1]} : vector<8x16x128xf32> to vector<1x16x128xf32>
    %739 = vector.shape_cast %738 : vector<1x16x128xf32> to vector<16x128xf32>
    %740 = vector.broadcast %737 : f32 to vector<16x128xf32>
    %741 = arith.mulf %740, %739 : vector<16x128xf32>
    %742 = arith.addf %736, %741 : vector<16x128xf32>
    %c0_241 = arith.constant 0 : index
    %c4_242 = arith.constant 4 : index
    %743 = memref.load %arg6[%c0_241, %c4_242] : memref<4x8xf32, #tpu.memory_space<smem>>
    %744 = vector.extract_strided_slice %719 {offsets = [4, 0, 0], sizes = [1, 16, 128], strides = [1, 1, 1]} : vector<8x16x128xf32> to vector<1x16x128xf32>
    %745 = vector.shape_cast %744 : vector<1x16x128xf32> to vector<16x128xf32>
    %746 = vector.broadcast %743 : f32 to vector<16x128xf32>
    %747 = arith.mulf %746, %745 : vector<16x128xf32>
    %748 = arith.addf %742, %747 : vector<16x128xf32>
    %c0_243 = arith.constant 0 : index
    %c5_244 = arith.constant 5 : index
    %749 = memref.load %arg6[%c0_243, %c5_244] : memref<4x8xf32, #tpu.memory_space<smem>>
    %750 = vector.extract_strided_slice %719 {offsets = [5, 0, 0], sizes = [1, 16, 128], strides = [1, 1, 1]} : vector<8x16x128xf32> to vector<1x16x128xf32>
    %751 = vector.shape_cast %750 : vector<1x16x128xf32> to vector<16x128xf32>
    %752 = vector.broadcast %749 : f32 to vector<16x128xf32>
    %753 = arith.mulf %752, %751 : vector<16x128xf32>
    %754 = arith.addf %748, %753 : vector<16x128xf32>
    %c0_245 = arith.constant 0 : index
    %c6_246 = arith.constant 6 : index
    %755 = memref.load %arg6[%c0_245, %c6_246] : memref<4x8xf32, #tpu.memory_space<smem>>
    %756 = vector.extract_strided_slice %719 {offsets = [6, 0, 0], sizes = [1, 16, 128], strides = [1, 1, 1]} : vector<8x16x128xf32> to vector<1x16x128xf32>
    %757 = vector.shape_cast %756 : vector<1x16x128xf32> to vector<16x128xf32>
    %758 = vector.broadcast %755 : f32 to vector<16x128xf32>
    %759 = arith.mulf %758, %757 : vector<16x128xf32>
    %760 = arith.addf %754, %759 : vector<16x128xf32>
    %c0_247 = arith.constant 0 : index
    %c7_248 = arith.constant 7 : index
    %761 = memref.load %arg6[%c0_247, %c7_248] : memref<4x8xf32, #tpu.memory_space<smem>>
    %762 = vector.extract_strided_slice %719 {offsets = [7, 0, 0], sizes = [1, 16, 128], strides = [1, 1, 1]} : vector<8x16x128xf32> to vector<1x16x128xf32>
    %763 = vector.shape_cast %762 : vector<1x16x128xf32> to vector<16x128xf32>
    %764 = vector.broadcast %761 : f32 to vector<16x128xf32>
    %765 = arith.mulf %764, %763 : vector<16x128xf32>
    %766 = arith.addf %760, %765 : vector<16x128xf32>
    %c1_249 = arith.constant 1 : index
    %c0_250 = arith.constant 0 : index
    %767 = memref.load %arg6[%c1_249, %c0_250] : memref<4x8xf32, #tpu.memory_space<smem>>
    %768 = vector.extract_strided_slice %719 {offsets = [0, 0, 0], sizes = [1, 16, 128], strides = [1, 1, 1]} : vector<8x16x128xf32> to vector<1x16x128xf32>
    %769 = vector.shape_cast %768 : vector<1x16x128xf32> to vector<16x128xf32>
    %770 = vector.broadcast %767 : f32 to vector<16x128xf32>
    %771 = arith.mulf %770, %769 : vector<16x128xf32>
    %c1_251 = arith.constant 1 : index
    %c1_252 = arith.constant 1 : index
    %772 = memref.load %arg6[%c1_251, %c1_252] : memref<4x8xf32, #tpu.memory_space<smem>>
    %773 = vector.extract_strided_slice %719 {offsets = [1, 0, 0], sizes = [1, 16, 128], strides = [1, 1, 1]} : vector<8x16x128xf32> to vector<1x16x128xf32>
    %774 = vector.shape_cast %773 : vector<1x16x128xf32> to vector<16x128xf32>
    %775 = vector.broadcast %772 : f32 to vector<16x128xf32>
    %776 = arith.mulf %775, %774 : vector<16x128xf32>
    %777 = arith.addf %771, %776 : vector<16x128xf32>
    %c1_253 = arith.constant 1 : index
    %c2_254 = arith.constant 2 : index
    %778 = memref.load %arg6[%c1_253, %c2_254] : memref<4x8xf32, #tpu.memory_space<smem>>
    %779 = vector.extract_strided_slice %719 {offsets = [2, 0, 0], sizes = [1, 16, 128], strides = [1, 1, 1]} : vector<8x16x128xf32> to vector<1x16x128xf32>
    %780 = vector.shape_cast %779 : vector<1x16x128xf32> to vector<16x128xf32>
    %781 = vector.broadcast %778 : f32 to vector<16x128xf32>
    %782 = arith.mulf %781, %780 : vector<16x128xf32>
    %783 = arith.addf %777, %782 : vector<16x128xf32>
    %c1_255 = arith.constant 1 : index
    %c3_256 = arith.constant 3 : index
    %784 = memref.load %arg6[%c1_255, %c3_256] : memref<4x8xf32, #tpu.memory_space<smem>>
    %785 = vector.extract_strided_slice %719 {offsets = [3, 0, 0], sizes = [1, 16, 128], strides = [1, 1, 1]} : vector<8x16x128xf32> to vector<1x16x128xf32>
    %786 = vector.shape_cast %785 : vector<1x16x128xf32> to vector<16x128xf32>
    %787 = vector.broadcast %784 : f32 to vector<16x128xf32>
    %788 = arith.mulf %787, %786 : vector<16x128xf32>
    %789 = arith.addf %783, %788 : vector<16x128xf32>
    %c1_257 = arith.constant 1 : index
    %c4_258 = arith.constant 4 : index
    %790 = memref.load %arg6[%c1_257, %c4_258] : memref<4x8xf32, #tpu.memory_space<smem>>
    %791 = vector.extract_strided_slice %719 {offsets = [4, 0, 0], sizes = [1, 16, 128], strides = [1, 1, 1]} : vector<8x16x128xf32> to vector<1x16x128xf32>
    %792 = vector.shape_cast %791 : vector<1x16x128xf32> to vector<16x128xf32>
    %793 = vector.broadcast %790 : f32 to vector<16x128xf32>
    %794 = arith.mulf %793, %792 : vector<16x128xf32>
    %795 = arith.addf %789, %794 : vector<16x128xf32>
    %c1_259 = arith.constant 1 : index
    %c5_260 = arith.constant 5 : index
    %796 = memref.load %arg6[%c1_259, %c5_260] : memref<4x8xf32, #tpu.memory_space<smem>>
    %797 = vector.extract_strided_slice %719 {offsets = [5, 0, 0], sizes = [1, 16, 128], strides = [1, 1, 1]} : vector<8x16x128xf32> to vector<1x16x128xf32>
    %798 = vector.shape_cast %797 : vector<1x16x128xf32> to vector<16x128xf32>
    %799 = vector.broadcast %796 : f32 to vector<16x128xf32>
    %800 = arith.mulf %799, %798 : vector<16x128xf32>
    %801 = arith.addf %795, %800 : vector<16x128xf32>
    %c1_261 = arith.constant 1 : index
    %c6_262 = arith.constant 6 : index
    %802 = memref.load %arg6[%c1_261, %c6_262] : memref<4x8xf32, #tpu.memory_space<smem>>
    %803 = vector.extract_strided_slice %719 {offsets = [6, 0, 0], sizes = [1, 16, 128], strides = [1, 1, 1]} : vector<8x16x128xf32> to vector<1x16x128xf32>
    %804 = vector.shape_cast %803 : vector<1x16x128xf32> to vector<16x128xf32>
    %805 = vector.broadcast %802 : f32 to vector<16x128xf32>
    %806 = arith.mulf %805, %804 : vector<16x128xf32>
    %807 = arith.addf %801, %806 : vector<16x128xf32>
    %c1_263 = arith.constant 1 : index
    %c7_264 = arith.constant 7 : index
    %808 = memref.load %arg6[%c1_263, %c7_264] : memref<4x8xf32, #tpu.memory_space<smem>>
    %809 = vector.extract_strided_slice %719 {offsets = [7, 0, 0], sizes = [1, 16, 128], strides = [1, 1, 1]} : vector<8x16x128xf32> to vector<1x16x128xf32>
    %810 = vector.shape_cast %809 : vector<1x16x128xf32> to vector<16x128xf32>
    %811 = vector.broadcast %808 : f32 to vector<16x128xf32>
    %812 = arith.mulf %811, %810 : vector<16x128xf32>
    %813 = arith.addf %807, %812 : vector<16x128xf32>
    %c2_265 = arith.constant 2 : index
    %c0_266 = arith.constant 0 : index
    %814 = memref.load %arg6[%c2_265, %c0_266] : memref<4x8xf32, #tpu.memory_space<smem>>
    %815 = vector.extract_strided_slice %719 {offsets = [0, 0, 0], sizes = [1, 16, 128], strides = [1, 1, 1]} : vector<8x16x128xf32> to vector<1x16x128xf32>
    %816 = vector.shape_cast %815 : vector<1x16x128xf32> to vector<16x128xf32>
    %817 = vector.broadcast %814 : f32 to vector<16x128xf32>
    %818 = arith.mulf %817, %816 : vector<16x128xf32>
    %c2_267 = arith.constant 2 : index
    %c1_268 = arith.constant 1 : index
    %819 = memref.load %arg6[%c2_267, %c1_268] : memref<4x8xf32, #tpu.memory_space<smem>>
    %820 = vector.extract_strided_slice %719 {offsets = [1, 0, 0], sizes = [1, 16, 128], strides = [1, 1, 1]} : vector<8x16x128xf32> to vector<1x16x128xf32>
    %821 = vector.shape_cast %820 : vector<1x16x128xf32> to vector<16x128xf32>
    %822 = vector.broadcast %819 : f32 to vector<16x128xf32>
    %823 = arith.mulf %822, %821 : vector<16x128xf32>
    %824 = arith.addf %818, %823 : vector<16x128xf32>
    %c2_269 = arith.constant 2 : index
    %c2_270 = arith.constant 2 : index
    %825 = memref.load %arg6[%c2_269, %c2_270] : memref<4x8xf32, #tpu.memory_space<smem>>
    %826 = vector.extract_strided_slice %719 {offsets = [2, 0, 0], sizes = [1, 16, 128], strides = [1, 1, 1]} : vector<8x16x128xf32> to vector<1x16x128xf32>
    %827 = vector.shape_cast %826 : vector<1x16x128xf32> to vector<16x128xf32>
    %828 = vector.broadcast %825 : f32 to vector<16x128xf32>
    %829 = arith.mulf %828, %827 : vector<16x128xf32>
    %830 = arith.addf %824, %829 : vector<16x128xf32>
    %c2_271 = arith.constant 2 : index
    %c3_272 = arith.constant 3 : index
    %831 = memref.load %arg6[%c2_271, %c3_272] : memref<4x8xf32, #tpu.memory_space<smem>>
    %832 = vector.extract_strided_slice %719 {offsets = [3, 0, 0], sizes = [1, 16, 128], strides = [1, 1, 1]} : vector<8x16x128xf32> to vector<1x16x128xf32>
    %833 = vector.shape_cast %832 : vector<1x16x128xf32> to vector<16x128xf32>
    %834 = vector.broadcast %831 : f32 to vector<16x128xf32>
    %835 = arith.mulf %834, %833 : vector<16x128xf32>
    %836 = arith.addf %830, %835 : vector<16x128xf32>
    %c2_273 = arith.constant 2 : index
    %c4_274 = arith.constant 4 : index
    %837 = memref.load %arg6[%c2_273, %c4_274] : memref<4x8xf32, #tpu.memory_space<smem>>
    %838 = vector.extract_strided_slice %719 {offsets = [4, 0, 0], sizes = [1, 16, 128], strides = [1, 1, 1]} : vector<8x16x128xf32> to vector<1x16x128xf32>
    %839 = vector.shape_cast %838 : vector<1x16x128xf32> to vector<16x128xf32>
    %840 = vector.broadcast %837 : f32 to vector<16x128xf32>
    %841 = arith.mulf %840, %839 : vector<16x128xf32>
    %842 = arith.addf %836, %841 : vector<16x128xf32>
    %c2_275 = arith.constant 2 : index
    %c5_276 = arith.constant 5 : index
    %843 = memref.load %arg6[%c2_275, %c5_276] : memref<4x8xf32, #tpu.memory_space<smem>>
    %844 = vector.extract_strided_slice %719 {offsets = [5, 0, 0], sizes = [1, 16, 128], strides = [1, 1, 1]} : vector<8x16x128xf32> to vector<1x16x128xf32>
    %845 = vector.shape_cast %844 : vector<1x16x128xf32> to vector<16x128xf32>
    %846 = vector.broadcast %843 : f32 to vector<16x128xf32>
    %847 = arith.mulf %846, %845 : vector<16x128xf32>
    %848 = arith.addf %842, %847 : vector<16x128xf32>
    %c2_277 = arith.constant 2 : index
    %c6_278 = arith.constant 6 : index
    %849 = memref.load %arg6[%c2_277, %c6_278] : memref<4x8xf32, #tpu.memory_space<smem>>
    %850 = vector.extract_strided_slice %719 {offsets = [6, 0, 0], sizes = [1, 16, 128], strides = [1, 1, 1]} : vector<8x16x128xf32> to vector<1x16x128xf32>
    %851 = vector.shape_cast %850 : vector<1x16x128xf32> to vector<16x128xf32>
    %852 = vector.broadcast %849 : f32 to vector<16x128xf32>
    %853 = arith.mulf %852, %851 : vector<16x128xf32>
    %854 = arith.addf %848, %853 : vector<16x128xf32>
    %c2_279 = arith.constant 2 : index
    %c7_280 = arith.constant 7 : index
    %855 = memref.load %arg6[%c2_279, %c7_280] : memref<4x8xf32, #tpu.memory_space<smem>>
    %856 = vector.extract_strided_slice %719 {offsets = [7, 0, 0], sizes = [1, 16, 128], strides = [1, 1, 1]} : vector<8x16x128xf32> to vector<1x16x128xf32>
    %857 = vector.shape_cast %856 : vector<1x16x128xf32> to vector<16x128xf32>
    %858 = vector.broadcast %855 : f32 to vector<16x128xf32>
    %859 = arith.mulf %858, %857 : vector<16x128xf32>
    %860 = arith.addf %854, %859 : vector<16x128xf32>
    %c3_281 = arith.constant 3 : index
    %c0_282 = arith.constant 0 : index
    %861 = memref.load %arg6[%c3_281, %c0_282] : memref<4x8xf32, #tpu.memory_space<smem>>
    %862 = vector.extract_strided_slice %719 {offsets = [0, 0, 0], sizes = [1, 16, 128], strides = [1, 1, 1]} : vector<8x16x128xf32> to vector<1x16x128xf32>
    %863 = vector.shape_cast %862 : vector<1x16x128xf32> to vector<16x128xf32>
    %864 = vector.broadcast %861 : f32 to vector<16x128xf32>
    %865 = arith.mulf %864, %863 : vector<16x128xf32>
    %c3_283 = arith.constant 3 : index
    %c1_284 = arith.constant 1 : index
    %866 = memref.load %arg6[%c3_283, %c1_284] : memref<4x8xf32, #tpu.memory_space<smem>>
    %867 = vector.extract_strided_slice %719 {offsets = [1, 0, 0], sizes = [1, 16, 128], strides = [1, 1, 1]} : vector<8x16x128xf32> to vector<1x16x128xf32>
    %868 = vector.shape_cast %867 : vector<1x16x128xf32> to vector<16x128xf32>
    %869 = vector.broadcast %866 : f32 to vector<16x128xf32>
    %870 = arith.mulf %869, %868 : vector<16x128xf32>
    %871 = arith.addf %865, %870 : vector<16x128xf32>
    %c3_285 = arith.constant 3 : index
    %c2_286 = arith.constant 2 : index
    %872 = memref.load %arg6[%c3_285, %c2_286] : memref<4x8xf32, #tpu.memory_space<smem>>
    %873 = vector.extract_strided_slice %719 {offsets = [2, 0, 0], sizes = [1, 16, 128], strides = [1, 1, 1]} : vector<8x16x128xf32> to vector<1x16x128xf32>
    %874 = vector.shape_cast %873 : vector<1x16x128xf32> to vector<16x128xf32>
    %875 = vector.broadcast %872 : f32 to vector<16x128xf32>
    %876 = arith.mulf %875, %874 : vector<16x128xf32>
    %877 = arith.addf %871, %876 : vector<16x128xf32>
    %c3_287 = arith.constant 3 : index
    %c3_288 = arith.constant 3 : index
    %878 = memref.load %arg6[%c3_287, %c3_288] : memref<4x8xf32, #tpu.memory_space<smem>>
    %879 = vector.extract_strided_slice %719 {offsets = [3, 0, 0], sizes = [1, 16, 128], strides = [1, 1, 1]} : vector<8x16x128xf32> to vector<1x16x128xf32>
    %880 = vector.shape_cast %879 : vector<1x16x128xf32> to vector<16x128xf32>
    %881 = vector.broadcast %878 : f32 to vector<16x128xf32>
    %882 = arith.mulf %881, %880 : vector<16x128xf32>
    %883 = arith.addf %877, %882 : vector<16x128xf32>
    %c3_289 = arith.constant 3 : index
    %c4_290 = arith.constant 4 : index
    %884 = memref.load %arg6[%c3_289, %c4_290] : memref<4x8xf32, #tpu.memory_space<smem>>
    %885 = vector.extract_strided_slice %719 {offsets = [4, 0, 0], sizes = [1, 16, 128], strides = [1, 1, 1]} : vector<8x16x128xf32> to vector<1x16x128xf32>
    %886 = vector.shape_cast %885 : vector<1x16x128xf32> to vector<16x128xf32>
    %887 = vector.broadcast %884 : f32 to vector<16x128xf32>
    %888 = arith.mulf %887, %886 : vector<16x128xf32>
    %889 = arith.addf %883, %888 : vector<16x128xf32>
    %c3_291 = arith.constant 3 : index
    %c5_292 = arith.constant 5 : index
    %890 = memref.load %arg6[%c3_291, %c5_292] : memref<4x8xf32, #tpu.memory_space<smem>>
    %891 = vector.extract_strided_slice %719 {offsets = [5, 0, 0], sizes = [1, 16, 128], strides = [1, 1, 1]} : vector<8x16x128xf32> to vector<1x16x128xf32>
    %892 = vector.shape_cast %891 : vector<1x16x128xf32> to vector<16x128xf32>
    %893 = vector.broadcast %890 : f32 to vector<16x128xf32>
    %894 = arith.mulf %893, %892 : vector<16x128xf32>
    %895 = arith.addf %889, %894 : vector<16x128xf32>
    %c3_293 = arith.constant 3 : index
    %c6_294 = arith.constant 6 : index
    %896 = memref.load %arg6[%c3_293, %c6_294] : memref<4x8xf32, #tpu.memory_space<smem>>
    %897 = vector.extract_strided_slice %719 {offsets = [6, 0, 0], sizes = [1, 16, 128], strides = [1, 1, 1]} : vector<8x16x128xf32> to vector<1x16x128xf32>
    %898 = vector.shape_cast %897 : vector<1x16x128xf32> to vector<16x128xf32>
    %899 = vector.broadcast %896 : f32 to vector<16x128xf32>
    %900 = arith.mulf %899, %898 : vector<16x128xf32>
    %901 = arith.addf %895, %900 : vector<16x128xf32>
    %c3_295 = arith.constant 3 : index
    %c7_296 = arith.constant 7 : index
    %902 = memref.load %arg6[%c3_295, %c7_296] : memref<4x8xf32, #tpu.memory_space<smem>>
    %903 = vector.extract_strided_slice %719 {offsets = [7, 0, 0], sizes = [1, 16, 128], strides = [1, 1, 1]} : vector<8x16x128xf32> to vector<1x16x128xf32>
    %904 = vector.shape_cast %903 : vector<1x16x128xf32> to vector<16x128xf32>
    %905 = vector.broadcast %902 : f32 to vector<16x128xf32>
    %906 = arith.mulf %905, %904 : vector<16x128xf32>
    %907 = arith.addf %901, %906 : vector<16x128xf32>
    %908 = vector.shape_cast %766 : vector<16x128xf32> to vector<1x16x128xf32>
    %909 = vector.shape_cast %813 : vector<16x128xf32> to vector<1x16x128xf32>
    %910 = vector.shape_cast %860 : vector<16x128xf32> to vector<1x16x128xf32>
    %911 = vector.shape_cast %907 : vector<16x128xf32> to vector<1x16x128xf32>
    %912 = tpu.concatenate %908, %909, %910, %911 in 0 : vector<1x16x128xf32>, vector<1x16x128xf32>, vector<1x16x128xf32>, vector<1x16x128xf32> -> vector<4x16x128xf32>
    %c0_297 = arith.constant 0 : index
    %c0_298 = arith.constant 0 : index
    %913 = memref.load %arg7[%c0_297, %c0_298] : memref<8x4xf32, #tpu.memory_space<smem>>
    %914 = vector.extract_strided_slice %912 {offsets = [0, 0, 0], sizes = [1, 16, 128], strides = [1, 1, 1]} : vector<4x16x128xf32> to vector<1x16x128xf32>
    %915 = vector.shape_cast %914 : vector<1x16x128xf32> to vector<16x128xf32>
    %916 = vector.broadcast %913 : f32 to vector<16x128xf32>
    %917 = arith.mulf %916, %915 : vector<16x128xf32>
    %c0_299 = arith.constant 0 : index
    %c1_300 = arith.constant 1 : index
    %918 = memref.load %arg7[%c0_299, %c1_300] : memref<8x4xf32, #tpu.memory_space<smem>>
    %919 = vector.extract_strided_slice %912 {offsets = [1, 0, 0], sizes = [1, 16, 128], strides = [1, 1, 1]} : vector<4x16x128xf32> to vector<1x16x128xf32>
    %920 = vector.shape_cast %919 : vector<1x16x128xf32> to vector<16x128xf32>
    %921 = vector.broadcast %918 : f32 to vector<16x128xf32>
    %922 = arith.mulf %921, %920 : vector<16x128xf32>
    %923 = arith.addf %917, %922 : vector<16x128xf32>
    %c0_301 = arith.constant 0 : index
    %c2_302 = arith.constant 2 : index
    %924 = memref.load %arg7[%c0_301, %c2_302] : memref<8x4xf32, #tpu.memory_space<smem>>
    %925 = vector.extract_strided_slice %912 {offsets = [2, 0, 0], sizes = [1, 16, 128], strides = [1, 1, 1]} : vector<4x16x128xf32> to vector<1x16x128xf32>
    %926 = vector.shape_cast %925 : vector<1x16x128xf32> to vector<16x128xf32>
    %927 = vector.broadcast %924 : f32 to vector<16x128xf32>
    %928 = arith.mulf %927, %926 : vector<16x128xf32>
    %929 = arith.addf %923, %928 : vector<16x128xf32>
    %c0_303 = arith.constant 0 : index
    %c3_304 = arith.constant 3 : index
    %930 = memref.load %arg7[%c0_303, %c3_304] : memref<8x4xf32, #tpu.memory_space<smem>>
    %931 = vector.extract_strided_slice %912 {offsets = [3, 0, 0], sizes = [1, 16, 128], strides = [1, 1, 1]} : vector<4x16x128xf32> to vector<1x16x128xf32>
    %932 = vector.shape_cast %931 : vector<1x16x128xf32> to vector<16x128xf32>
    %933 = vector.broadcast %930 : f32 to vector<16x128xf32>
    %934 = arith.mulf %933, %932 : vector<16x128xf32>
    %935 = arith.addf %929, %934 : vector<16x128xf32>
    %c1_305 = arith.constant 1 : index
    %c0_306 = arith.constant 0 : index
    %936 = memref.load %arg7[%c1_305, %c0_306] : memref<8x4xf32, #tpu.memory_space<smem>>
    %937 = vector.extract_strided_slice %912 {offsets = [0, 0, 0], sizes = [1, 16, 128], strides = [1, 1, 1]} : vector<4x16x128xf32> to vector<1x16x128xf32>
    %938 = vector.shape_cast %937 : vector<1x16x128xf32> to vector<16x128xf32>
    %939 = vector.broadcast %936 : f32 to vector<16x128xf32>
    %940 = arith.mulf %939, %938 : vector<16x128xf32>
    %c1_307 = arith.constant 1 : index
    %c1_308 = arith.constant 1 : index
    %941 = memref.load %arg7[%c1_307, %c1_308] : memref<8x4xf32, #tpu.memory_space<smem>>
    %942 = vector.extract_strided_slice %912 {offsets = [1, 0, 0], sizes = [1, 16, 128], strides = [1, 1, 1]} : vector<4x16x128xf32> to vector<1x16x128xf32>
    %943 = vector.shape_cast %942 : vector<1x16x128xf32> to vector<16x128xf32>
    %944 = vector.broadcast %941 : f32 to vector<16x128xf32>
    %945 = arith.mulf %944, %943 : vector<16x128xf32>
    %946 = arith.addf %940, %945 : vector<16x128xf32>
    %c1_309 = arith.constant 1 : index
    %c2_310 = arith.constant 2 : index
    %947 = memref.load %arg7[%c1_309, %c2_310] : memref<8x4xf32, #tpu.memory_space<smem>>
    %948 = vector.extract_strided_slice %912 {offsets = [2, 0, 0], sizes = [1, 16, 128], strides = [1, 1, 1]} : vector<4x16x128xf32> to vector<1x16x128xf32>
    %949 = vector.shape_cast %948 : vector<1x16x128xf32> to vector<16x128xf32>
    %950 = vector.broadcast %947 : f32 to vector<16x128xf32>
    %951 = arith.mulf %950, %949 : vector<16x128xf32>
    %952 = arith.addf %946, %951 : vector<16x128xf32>
    %c1_311 = arith.constant 1 : index
    %c3_312 = arith.constant 3 : index
    %953 = memref.load %arg7[%c1_311, %c3_312] : memref<8x4xf32, #tpu.memory_space<smem>>
    %954 = vector.extract_strided_slice %912 {offsets = [3, 0, 0], sizes = [1, 16, 128], strides = [1, 1, 1]} : vector<4x16x128xf32> to vector<1x16x128xf32>
    %955 = vector.shape_cast %954 : vector<1x16x128xf32> to vector<16x128xf32>
    %956 = vector.broadcast %953 : f32 to vector<16x128xf32>
    %957 = arith.mulf %956, %955 : vector<16x128xf32>
    %958 = arith.addf %952, %957 : vector<16x128xf32>
    %c2_313 = arith.constant 2 : index
    %c0_314 = arith.constant 0 : index
    %959 = memref.load %arg7[%c2_313, %c0_314] : memref<8x4xf32, #tpu.memory_space<smem>>
    %960 = vector.extract_strided_slice %912 {offsets = [0, 0, 0], sizes = [1, 16, 128], strides = [1, 1, 1]} : vector<4x16x128xf32> to vector<1x16x128xf32>
    %961 = vector.shape_cast %960 : vector<1x16x128xf32> to vector<16x128xf32>
    %962 = vector.broadcast %959 : f32 to vector<16x128xf32>
    %963 = arith.mulf %962, %961 : vector<16x128xf32>
    %c2_315 = arith.constant 2 : index
    %c1_316 = arith.constant 1 : index
    %964 = memref.load %arg7[%c2_315, %c1_316] : memref<8x4xf32, #tpu.memory_space<smem>>
    %965 = vector.extract_strided_slice %912 {offsets = [1, 0, 0], sizes = [1, 16, 128], strides = [1, 1, 1]} : vector<4x16x128xf32> to vector<1x16x128xf32>
    %966 = vector.shape_cast %965 : vector<1x16x128xf32> to vector<16x128xf32>
    %967 = vector.broadcast %964 : f32 to vector<16x128xf32>
    %968 = arith.mulf %967, %966 : vector<16x128xf32>
    %969 = arith.addf %963, %968 : vector<16x128xf32>
    %c2_317 = arith.constant 2 : index
    %c2_318 = arith.constant 2 : index
    %970 = memref.load %arg7[%c2_317, %c2_318] : memref<8x4xf32, #tpu.memory_space<smem>>
    %971 = vector.extract_strided_slice %912 {offsets = [2, 0, 0], sizes = [1, 16, 128], strides = [1, 1, 1]} : vector<4x16x128xf32> to vector<1x16x128xf32>
    %972 = vector.shape_cast %971 : vector<1x16x128xf32> to vector<16x128xf32>
    %973 = vector.broadcast %970 : f32 to vector<16x128xf32>
    %974 = arith.mulf %973, %972 : vector<16x128xf32>
    %975 = arith.addf %969, %974 : vector<16x128xf32>
    %c2_319 = arith.constant 2 : index
    %c3_320 = arith.constant 3 : index
    %976 = memref.load %arg7[%c2_319, %c3_320] : memref<8x4xf32, #tpu.memory_space<smem>>
    %977 = vector.extract_strided_slice %912 {offsets = [3, 0, 0], sizes = [1, 16, 128], strides = [1, 1, 1]} : vector<4x16x128xf32> to vector<1x16x128xf32>
    %978 = vector.shape_cast %977 : vector<1x16x128xf32> to vector<16x128xf32>
    %979 = vector.broadcast %976 : f32 to vector<16x128xf32>
    %980 = arith.mulf %979, %978 : vector<16x128xf32>
    %981 = arith.addf %975, %980 : vector<16x128xf32>
    %c3_321 = arith.constant 3 : index
    %c0_322 = arith.constant 0 : index
    %982 = memref.load %arg7[%c3_321, %c0_322] : memref<8x4xf32, #tpu.memory_space<smem>>
    %983 = vector.extract_strided_slice %912 {offsets = [0, 0, 0], sizes = [1, 16, 128], strides = [1, 1, 1]} : vector<4x16x128xf32> to vector<1x16x128xf32>
    %984 = vector.shape_cast %983 : vector<1x16x128xf32> to vector<16x128xf32>
    %985 = vector.broadcast %982 : f32 to vector<16x128xf32>
    %986 = arith.mulf %985, %984 : vector<16x128xf32>
    %c3_323 = arith.constant 3 : index
    %c1_324 = arith.constant 1 : index
    %987 = memref.load %arg7[%c3_323, %c1_324] : memref<8x4xf32, #tpu.memory_space<smem>>
    %988 = vector.extract_strided_slice %912 {offsets = [1, 0, 0], sizes = [1, 16, 128], strides = [1, 1, 1]} : vector<4x16x128xf32> to vector<1x16x128xf32>
    %989 = vector.shape_cast %988 : vector<1x16x128xf32> to vector<16x128xf32>
    %990 = vector.broadcast %987 : f32 to vector<16x128xf32>
    %991 = arith.mulf %990, %989 : vector<16x128xf32>
    %992 = arith.addf %986, %991 : vector<16x128xf32>
    %c3_325 = arith.constant 3 : index
    %c2_326 = arith.constant 2 : index
    %993 = memref.load %arg7[%c3_325, %c2_326] : memref<8x4xf32, #tpu.memory_space<smem>>
    %994 = vector.extract_strided_slice %912 {offsets = [2, 0, 0], sizes = [1, 16, 128], strides = [1, 1, 1]} : vector<4x16x128xf32> to vector<1x16x128xf32>
    %995 = vector.shape_cast %994 : vector<1x16x128xf32> to vector<16x128xf32>
    %996 = vector.broadcast %993 : f32 to vector<16x128xf32>
    %997 = arith.mulf %996, %995 : vector<16x128xf32>
    %998 = arith.addf %992, %997 : vector<16x128xf32>
    %c3_327 = arith.constant 3 : index
    %c3_328 = arith.constant 3 : index
    %999 = memref.load %arg7[%c3_327, %c3_328] : memref<8x4xf32, #tpu.memory_space<smem>>
    %1000 = vector.extract_strided_slice %912 {offsets = [3, 0, 0], sizes = [1, 16, 128], strides = [1, 1, 1]} : vector<4x16x128xf32> to vector<1x16x128xf32>
    %1001 = vector.shape_cast %1000 : vector<1x16x128xf32> to vector<16x128xf32>
    %1002 = vector.broadcast %999 : f32 to vector<16x128xf32>
    %1003 = arith.mulf %1002, %1001 : vector<16x128xf32>
    %1004 = arith.addf %998, %1003 : vector<16x128xf32>
    %c4_329 = arith.constant 4 : index
    %c0_330 = arith.constant 0 : index
    %1005 = memref.load %arg7[%c4_329, %c0_330] : memref<8x4xf32, #tpu.memory_space<smem>>
    %1006 = vector.extract_strided_slice %912 {offsets = [0, 0, 0], sizes = [1, 16, 128], strides = [1, 1, 1]} : vector<4x16x128xf32> to vector<1x16x128xf32>
    %1007 = vector.shape_cast %1006 : vector<1x16x128xf32> to vector<16x128xf32>
    %1008 = vector.broadcast %1005 : f32 to vector<16x128xf32>
    %1009 = arith.mulf %1008, %1007 : vector<16x128xf32>
    %c4_331 = arith.constant 4 : index
    %c1_332 = arith.constant 1 : index
    %1010 = memref.load %arg7[%c4_331, %c1_332] : memref<8x4xf32, #tpu.memory_space<smem>>
    %1011 = vector.extract_strided_slice %912 {offsets = [1, 0, 0], sizes = [1, 16, 128], strides = [1, 1, 1]} : vector<4x16x128xf32> to vector<1x16x128xf32>
    %1012 = vector.shape_cast %1011 : vector<1x16x128xf32> to vector<16x128xf32>
    %1013 = vector.broadcast %1010 : f32 to vector<16x128xf32>
    %1014 = arith.mulf %1013, %1012 : vector<16x128xf32>
    %1015 = arith.addf %1009, %1014 : vector<16x128xf32>
    %c4_333 = arith.constant 4 : index
    %c2_334 = arith.constant 2 : index
    %1016 = memref.load %arg7[%c4_333, %c2_334] : memref<8x4xf32, #tpu.memory_space<smem>>
    %1017 = vector.extract_strided_slice %912 {offsets = [2, 0, 0], sizes = [1, 16, 128], strides = [1, 1, 1]} : vector<4x16x128xf32> to vector<1x16x128xf32>
    %1018 = vector.shape_cast %1017 : vector<1x16x128xf32> to vector<16x128xf32>
    %1019 = vector.broadcast %1016 : f32 to vector<16x128xf32>
    %1020 = arith.mulf %1019, %1018 : vector<16x128xf32>
    %1021 = arith.addf %1015, %1020 : vector<16x128xf32>
    %c4_335 = arith.constant 4 : index
    %c3_336 = arith.constant 3 : index
    %1022 = memref.load %arg7[%c4_335, %c3_336] : memref<8x4xf32, #tpu.memory_space<smem>>
    %1023 = vector.extract_strided_slice %912 {offsets = [3, 0, 0], sizes = [1, 16, 128], strides = [1, 1, 1]} : vector<4x16x128xf32> to vector<1x16x128xf32>
    %1024 = vector.shape_cast %1023 : vector<1x16x128xf32> to vector<16x128xf32>
    %1025 = vector.broadcast %1022 : f32 to vector<16x128xf32>
    %1026 = arith.mulf %1025, %1024 : vector<16x128xf32>
    %1027 = arith.addf %1021, %1026 : vector<16x128xf32>
    %c5_337 = arith.constant 5 : index
    %c0_338 = arith.constant 0 : index
    %1028 = memref.load %arg7[%c5_337, %c0_338] : memref<8x4xf32, #tpu.memory_space<smem>>
    %1029 = vector.extract_strided_slice %912 {offsets = [0, 0, 0], sizes = [1, 16, 128], strides = [1, 1, 1]} : vector<4x16x128xf32> to vector<1x16x128xf32>
    %1030 = vector.shape_cast %1029 : vector<1x16x128xf32> to vector<16x128xf32>
    %1031 = vector.broadcast %1028 : f32 to vector<16x128xf32>
    %1032 = arith.mulf %1031, %1030 : vector<16x128xf32>
    %c5_339 = arith.constant 5 : index
    %c1_340 = arith.constant 1 : index
    %1033 = memref.load %arg7[%c5_339, %c1_340] : memref<8x4xf32, #tpu.memory_space<smem>>
    %1034 = vector.extract_strided_slice %912 {offsets = [1, 0, 0], sizes = [1, 16, 128], strides = [1, 1, 1]} : vector<4x16x128xf32> to vector<1x16x128xf32>
    %1035 = vector.shape_cast %1034 : vector<1x16x128xf32> to vector<16x128xf32>
    %1036 = vector.broadcast %1033 : f32 to vector<16x128xf32>
    %1037 = arith.mulf %1036, %1035 : vector<16x128xf32>
    %1038 = arith.addf %1032, %1037 : vector<16x128xf32>
    %c5_341 = arith.constant 5 : index
    %c2_342 = arith.constant 2 : index
    %1039 = memref.load %arg7[%c5_341, %c2_342] : memref<8x4xf32, #tpu.memory_space<smem>>
    %1040 = vector.extract_strided_slice %912 {offsets = [2, 0, 0], sizes = [1, 16, 128], strides = [1, 1, 1]} : vector<4x16x128xf32> to vector<1x16x128xf32>
    %1041 = vector.shape_cast %1040 : vector<1x16x128xf32> to vector<16x128xf32>
    %1042 = vector.broadcast %1039 : f32 to vector<16x128xf32>
    %1043 = arith.mulf %1042, %1041 : vector<16x128xf32>
    %1044 = arith.addf %1038, %1043 : vector<16x128xf32>
    %c5_343 = arith.constant 5 : index
    %c3_344 = arith.constant 3 : index
    %1045 = memref.load %arg7[%c5_343, %c3_344] : memref<8x4xf32, #tpu.memory_space<smem>>
    %1046 = vector.extract_strided_slice %912 {offsets = [3, 0, 0], sizes = [1, 16, 128], strides = [1, 1, 1]} : vector<4x16x128xf32> to vector<1x16x128xf32>
    %1047 = vector.shape_cast %1046 : vector<1x16x128xf32> to vector<16x128xf32>
    %1048 = vector.broadcast %1045 : f32 to vector<16x128xf32>
    %1049 = arith.mulf %1048, %1047 : vector<16x128xf32>
    %1050 = arith.addf %1044, %1049 : vector<16x128xf32>
    %c6_345 = arith.constant 6 : index
    %c0_346 = arith.constant 0 : index
    %1051 = memref.load %arg7[%c6_345, %c0_346] : memref<8x4xf32, #tpu.memory_space<smem>>
    %1052 = vector.extract_strided_slice %912 {offsets = [0, 0, 0], sizes = [1, 16, 128], strides = [1, 1, 1]} : vector<4x16x128xf32> to vector<1x16x128xf32>
    %1053 = vector.shape_cast %1052 : vector<1x16x128xf32> to vector<16x128xf32>
    %1054 = vector.broadcast %1051 : f32 to vector<16x128xf32>
    %1055 = arith.mulf %1054, %1053 : vector<16x128xf32>
    %c6_347 = arith.constant 6 : index
    %c1_348 = arith.constant 1 : index
    %1056 = memref.load %arg7[%c6_347, %c1_348] : memref<8x4xf32, #tpu.memory_space<smem>>
    %1057 = vector.extract_strided_slice %912 {offsets = [1, 0, 0], sizes = [1, 16, 128], strides = [1, 1, 1]} : vector<4x16x128xf32> to vector<1x16x128xf32>
    %1058 = vector.shape_cast %1057 : vector<1x16x128xf32> to vector<16x128xf32>
    %1059 = vector.broadcast %1056 : f32 to vector<16x128xf32>
    %1060 = arith.mulf %1059, %1058 : vector<16x128xf32>
    %1061 = arith.addf %1055, %1060 : vector<16x128xf32>
    %c6_349 = arith.constant 6 : index
    %c2_350 = arith.constant 2 : index
    %1062 = memref.load %arg7[%c6_349, %c2_350] : memref<8x4xf32, #tpu.memory_space<smem>>
    %1063 = vector.extract_strided_slice %912 {offsets = [2, 0, 0], sizes = [1, 16, 128], strides = [1, 1, 1]} : vector<4x16x128xf32> to vector<1x16x128xf32>
    %1064 = vector.shape_cast %1063 : vector<1x16x128xf32> to vector<16x128xf32>
    %1065 = vector.broadcast %1062 : f32 to vector<16x128xf32>
    %1066 = arith.mulf %1065, %1064 : vector<16x128xf32>
    %1067 = arith.addf %1061, %1066 : vector<16x128xf32>
    %c6_351 = arith.constant 6 : index
    %c3_352 = arith.constant 3 : index
    %1068 = memref.load %arg7[%c6_351, %c3_352] : memref<8x4xf32, #tpu.memory_space<smem>>
    %1069 = vector.extract_strided_slice %912 {offsets = [3, 0, 0], sizes = [1, 16, 128], strides = [1, 1, 1]} : vector<4x16x128xf32> to vector<1x16x128xf32>
    %1070 = vector.shape_cast %1069 : vector<1x16x128xf32> to vector<16x128xf32>
    %1071 = vector.broadcast %1068 : f32 to vector<16x128xf32>
    %1072 = arith.mulf %1071, %1070 : vector<16x128xf32>
    %1073 = arith.addf %1067, %1072 : vector<16x128xf32>
    %c7_353 = arith.constant 7 : index
    %c0_354 = arith.constant 0 : index
    %1074 = memref.load %arg7[%c7_353, %c0_354] : memref<8x4xf32, #tpu.memory_space<smem>>
    %1075 = vector.extract_strided_slice %912 {offsets = [0, 0, 0], sizes = [1, 16, 128], strides = [1, 1, 1]} : vector<4x16x128xf32> to vector<1x16x128xf32>
    %1076 = vector.shape_cast %1075 : vector<1x16x128xf32> to vector<16x128xf32>
    %1077 = vector.broadcast %1074 : f32 to vector<16x128xf32>
    %1078 = arith.mulf %1077, %1076 : vector<16x128xf32>
    %c7_355 = arith.constant 7 : index
    %c1_356 = arith.constant 1 : index
    %1079 = memref.load %arg7[%c7_355, %c1_356] : memref<8x4xf32, #tpu.memory_space<smem>>
    %1080 = vector.extract_strided_slice %912 {offsets = [1, 0, 0], sizes = [1, 16, 128], strides = [1, 1, 1]} : vector<4x16x128xf32> to vector<1x16x128xf32>
    %1081 = vector.shape_cast %1080 : vector<1x16x128xf32> to vector<16x128xf32>
    %1082 = vector.broadcast %1079 : f32 to vector<16x128xf32>
    %1083 = arith.mulf %1082, %1081 : vector<16x128xf32>
    %1084 = arith.addf %1078, %1083 : vector<16x128xf32>
    %c7_357 = arith.constant 7 : index
    %c2_358 = arith.constant 2 : index
    %1085 = memref.load %arg7[%c7_357, %c2_358] : memref<8x4xf32, #tpu.memory_space<smem>>
    %1086 = vector.extract_strided_slice %912 {offsets = [2, 0, 0], sizes = [1, 16, 128], strides = [1, 1, 1]} : vector<4x16x128xf32> to vector<1x16x128xf32>
    %1087 = vector.shape_cast %1086 : vector<1x16x128xf32> to vector<16x128xf32>
    %1088 = vector.broadcast %1085 : f32 to vector<16x128xf32>
    %1089 = arith.mulf %1088, %1087 : vector<16x128xf32>
    %1090 = arith.addf %1084, %1089 : vector<16x128xf32>
    %c7_359 = arith.constant 7 : index
    %c3_360 = arith.constant 3 : index
    %1091 = memref.load %arg7[%c7_359, %c3_360] : memref<8x4xf32, #tpu.memory_space<smem>>
    %1092 = vector.extract_strided_slice %912 {offsets = [3, 0, 0], sizes = [1, 16, 128], strides = [1, 1, 1]} : vector<4x16x128xf32> to vector<1x16x128xf32>
    %1093 = vector.shape_cast %1092 : vector<1x16x128xf32> to vector<16x128xf32>
    %1094 = vector.broadcast %1091 : f32 to vector<16x128xf32>
    %1095 = arith.mulf %1094, %1093 : vector<16x128xf32>
    %1096 = arith.addf %1090, %1095 : vector<16x128xf32>
    %1097 = vector.shape_cast %935 : vector<16x128xf32> to vector<1x16x128xf32>
    %1098 = vector.shape_cast %958 : vector<16x128xf32> to vector<1x16x128xf32>
    %1099 = vector.shape_cast %981 : vector<16x128xf32> to vector<1x16x128xf32>
    %1100 = vector.shape_cast %1004 : vector<16x128xf32> to vector<1x16x128xf32>
    %1101 = vector.shape_cast %1027 : vector<16x128xf32> to vector<1x16x128xf32>
    %1102 = vector.shape_cast %1050 : vector<16x128xf32> to vector<1x16x128xf32>
    %1103 = vector.shape_cast %1073 : vector<16x128xf32> to vector<1x16x128xf32>
    %1104 = vector.shape_cast %1096 : vector<16x128xf32> to vector<1x16x128xf32>
    %1105 = tpu.concatenate %1097, %1098, %1099, %1100, %1101, %1102, %1103, %1104 in 0 : vector<1x16x128xf32>, vector<1x16x128xf32>, vector<1x16x128xf32>, vector<1x16x128xf32>, vector<1x16x128xf32>, vector<1x16x128xf32>, vector<1x16x128xf32>, vector<1x16x128xf32> -> vector<8x16x128xf32>
    %1106 = arith.addf %705, %1105 : vector<8x16x128xf32>
    %cst_361 = arith.constant 2.000000e+01 : f32
    %1107 = vector.broadcast %cst_361 : f32 to vector<8x16x128xf32>
    %1108 = arith.minimumf %1106, %1107 : vector<8x16x128xf32>
    %1109 = math.exp %1108 : vector<8x16x128xf32>
    %cst_362 = arith.constant 1.000000e+00 : f32
    %1110 = vector.broadcast %cst_362 : f32 to vector<8x16x128xf32>
    %1111 = arith.addf %1110, %1109 : vector<8x16x128xf32>
    %cst_363 = arith.constant 1.000000e+00 : f32
    %1112 = vector.broadcast %cst_363 : f32 to vector<8x16x128xf32>
    %1113 = arith.addf %1112, %1109 : vector<8x16x128xf32>
    %1114 = arith.mulf %1111, %1113 : vector<8x16x128xf32>
    %cst_364 = arith.constant 1.000000e+00 : f32
    %1115 = vector.broadcast %cst_364 : f32 to vector<8x16x128xf32>
    %1116 = arith.subf %1114, %1115 : vector<8x16x128xf32>
    %1117 = arith.mulf %1106, %1116 : vector<8x16x128xf32>
    %cst_365 = arith.constant 1.000000e+00 : f32
    %1118 = vector.broadcast %cst_365 : f32 to vector<8x16x128xf32>
    %1119 = arith.addf %1114, %1118 : vector<8x16x128xf32>
    %1120 = arith.divf %1117, %1119 : vector<8x16x128xf32>
    %c0_366 = arith.constant 0 : index
    %1121 = memref.load %arg8[%c0_366] : memref<1xf32, #tpu.memory_space<smem>>
    %cst_367 = arith.constant 0.000000e+00 : f32
    %1122 = vector.broadcast %cst_367 : f32 to vector<8x16x128xf32>
    %1123 = vector.extract_strided_slice %207 {offsets = [0, 0, 0], sizes = [8, 1, 128], strides = [1, 1, 1]} : vector<8x16x128xf32> to vector<8x1x128xf32>
    %1124 = vector.broadcast %1123 : vector<8x1x128xf32> to vector<8x16x128xf32>
    %1125 = arith.mulf %207, %1124 : vector<8x16x128xf32>
    %cst_368 = arith.constant dense<0.000000e+00> : vector<16x128xf32>
    %1126 = vector.multi_reduction <add>, %1125, %cst_368 [0] : vector<8x16x128xf32> to vector<16x128xf32>
    %cst_369 = arith.constant dense<0xFF800000> : vector<128xf32>
    %1127 = vector.multi_reduction <maximumf>, %1126, %cst_369 [0] : vector<16x128xf32> to vector<128xf32>
    %1128 = vector.shape_cast %1127 : vector<128xf32> to vector<1x128xf32>
    %1129 = vector.broadcast %1128 : vector<1x128xf32> to vector<16x128xf32>
    %1130 = arith.subf %1126, %1129 : vector<16x128xf32>
    %1131 = math.exp %1130 : vector<16x128xf32>
    %cst_370 = arith.constant dense<0.000000e+00> : vector<128xf32>
    %1132 = vector.multi_reduction <add>, %1131, %cst_370 [0] : vector<16x128xf32> to vector<128xf32>
    %1133 = vector.shape_cast %1132 : vector<128xf32> to vector<1x128xf32>
    %1134 = tpu.reciprocal %1133 {approx = true} : vector<1x128xf32> -> vector<1x128xf32>
    %1135 = vector.extract_strided_slice %1120 {offsets = [0, 0, 0], sizes = [8, 1, 128], strides = [1, 1, 1]} : vector<8x16x128xf32> to vector<8x1x128xf32>
    %1136 = vector.shape_cast %1134 : vector<1x128xf32> to vector<1x1x128xf32>
    %1137 = vector.broadcast %1136 : vector<1x1x128xf32> to vector<8x1x128xf32>
    %1138 = arith.mulf %1135, %1137 : vector<8x1x128xf32>
    %1139 = vector.shape_cast %1131 : vector<16x128xf32> to vector<1x16x128xf32>
    %1140 = vector.broadcast %1139 : vector<1x16x128xf32> to vector<8x16x128xf32>
    %1141 = vector.broadcast %1138 : vector<8x1x128xf32> to vector<8x16x128xf32>
    %1142 = arith.mulf %1140, %1141 : vector<8x16x128xf32>
    %1143 = arith.addf %1122, %1142 : vector<8x16x128xf32>
    %1144 = vector.extract_strided_slice %207 {offsets = [0, 1, 0], sizes = [8, 1, 128], strides = [1, 1, 1]} : vector<8x16x128xf32> to vector<8x1x128xf32>
    %1145 = vector.broadcast %1144 : vector<8x1x128xf32> to vector<8x16x128xf32>
    %1146 = arith.mulf %207, %1145 : vector<8x16x128xf32>
    %cst_371 = arith.constant dense<0.000000e+00> : vector<16x128xf32>
    %1147 = vector.multi_reduction <add>, %1146, %cst_371 [0] : vector<8x16x128xf32> to vector<16x128xf32>
    %cst_372 = arith.constant dense<0xFF800000> : vector<128xf32>
    %1148 = vector.multi_reduction <maximumf>, %1147, %cst_372 [0] : vector<16x128xf32> to vector<128xf32>
    %1149 = vector.shape_cast %1148 : vector<128xf32> to vector<1x128xf32>
    %1150 = vector.broadcast %1149 : vector<1x128xf32> to vector<16x128xf32>
    %1151 = arith.subf %1147, %1150 : vector<16x128xf32>
    %1152 = math.exp %1151 : vector<16x128xf32>
    %cst_373 = arith.constant dense<0.000000e+00> : vector<128xf32>
    %1153 = vector.multi_reduction <add>, %1152, %cst_373 [0] : vector<16x128xf32> to vector<128xf32>
    %1154 = vector.shape_cast %1153 : vector<128xf32> to vector<1x128xf32>
    %1155 = tpu.reciprocal %1154 {approx = true} : vector<1x128xf32> -> vector<1x128xf32>
    %1156 = vector.extract_strided_slice %1120 {offsets = [0, 1, 0], sizes = [8, 1, 128], strides = [1, 1, 1]} : vector<8x16x128xf32> to vector<8x1x128xf32>
    %1157 = vector.shape_cast %1155 : vector<1x128xf32> to vector<1x1x128xf32>
    %1158 = vector.broadcast %1157 : vector<1x1x128xf32> to vector<8x1x128xf32>
    %1159 = arith.mulf %1156, %1158 : vector<8x1x128xf32>
    %1160 = vector.shape_cast %1152 : vector<16x128xf32> to vector<1x16x128xf32>
    %1161 = vector.broadcast %1160 : vector<1x16x128xf32> to vector<8x16x128xf32>
    %1162 = vector.broadcast %1159 : vector<8x1x128xf32> to vector<8x16x128xf32>
    %1163 = arith.mulf %1161, %1162 : vector<8x16x128xf32>
    %1164 = arith.addf %1143, %1163 : vector<8x16x128xf32>
    %1165 = vector.extract_strided_slice %207 {offsets = [0, 2, 0], sizes = [8, 1, 128], strides = [1, 1, 1]} : vector<8x16x128xf32> to vector<8x1x128xf32>
    %1166 = vector.broadcast %1165 : vector<8x1x128xf32> to vector<8x16x128xf32>
    %1167 = arith.mulf %207, %1166 : vector<8x16x128xf32>
    %cst_374 = arith.constant dense<0.000000e+00> : vector<16x128xf32>
    %1168 = vector.multi_reduction <add>, %1167, %cst_374 [0] : vector<8x16x128xf32> to vector<16x128xf32>
    %cst_375 = arith.constant dense<0xFF800000> : vector<128xf32>
    %1169 = vector.multi_reduction <maximumf>, %1168, %cst_375 [0] : vector<16x128xf32> to vector<128xf32>
    %1170 = vector.shape_cast %1169 : vector<128xf32> to vector<1x128xf32>
    %1171 = vector.broadcast %1170 : vector<1x128xf32> to vector<16x128xf32>
    %1172 = arith.subf %1168, %1171 : vector<16x128xf32>
    %1173 = math.exp %1172 : vector<16x128xf32>
    %cst_376 = arith.constant dense<0.000000e+00> : vector<128xf32>
    %1174 = vector.multi_reduction <add>, %1173, %cst_376 [0] : vector<16x128xf32> to vector<128xf32>
    %1175 = vector.shape_cast %1174 : vector<128xf32> to vector<1x128xf32>
    %1176 = tpu.reciprocal %1175 {approx = true} : vector<1x128xf32> -> vector<1x128xf32>
    %1177 = vector.extract_strided_slice %1120 {offsets = [0, 2, 0], sizes = [8, 1, 128], strides = [1, 1, 1]} : vector<8x16x128xf32> to vector<8x1x128xf32>
    %1178 = vector.shape_cast %1176 : vector<1x128xf32> to vector<1x1x128xf32>
    %1179 = vector.broadcast %1178 : vector<1x1x128xf32> to vector<8x1x128xf32>
    %1180 = arith.mulf %1177, %1179 : vector<8x1x128xf32>
    %1181 = vector.shape_cast %1173 : vector<16x128xf32> to vector<1x16x128xf32>
    %1182 = vector.broadcast %1181 : vector<1x16x128xf32> to vector<8x16x128xf32>
    %1183 = vector.broadcast %1180 : vector<8x1x128xf32> to vector<8x16x128xf32>
    %1184 = arith.mulf %1182, %1183 : vector<8x16x128xf32>
    %1185 = arith.addf %1164, %1184 : vector<8x16x128xf32>
    %1186 = vector.extract_strided_slice %207 {offsets = [0, 3, 0], sizes = [8, 1, 128], strides = [1, 1, 1]} : vector<8x16x128xf32> to vector<8x1x128xf32>
    %1187 = vector.broadcast %1186 : vector<8x1x128xf32> to vector<8x16x128xf32>
    %1188 = arith.mulf %207, %1187 : vector<8x16x128xf32>
    %cst_377 = arith.constant dense<0.000000e+00> : vector<16x128xf32>
    %1189 = vector.multi_reduction <add>, %1188, %cst_377 [0] : vector<8x16x128xf32> to vector<16x128xf32>
    %cst_378 = arith.constant dense<0xFF800000> : vector<128xf32>
    %1190 = vector.multi_reduction <maximumf>, %1189, %cst_378 [0] : vector<16x128xf32> to vector<128xf32>
    %1191 = vector.shape_cast %1190 : vector<128xf32> to vector<1x128xf32>
    %1192 = vector.broadcast %1191 : vector<1x128xf32> to vector<16x128xf32>
    %1193 = arith.subf %1189, %1192 : vector<16x128xf32>
    %1194 = math.exp %1193 : vector<16x128xf32>
    %cst_379 = arith.constant dense<0.000000e+00> : vector<128xf32>
    %1195 = vector.multi_reduction <add>, %1194, %cst_379 [0] : vector<16x128xf32> to vector<128xf32>
    %1196 = vector.shape_cast %1195 : vector<128xf32> to vector<1x128xf32>
    %1197 = tpu.reciprocal %1196 {approx = true} : vector<1x128xf32> -> vector<1x128xf32>
    %1198 = vector.extract_strided_slice %1120 {offsets = [0, 3, 0], sizes = [8, 1, 128], strides = [1, 1, 1]} : vector<8x16x128xf32> to vector<8x1x128xf32>
    %1199 = vector.shape_cast %1197 : vector<1x128xf32> to vector<1x1x128xf32>
    %1200 = vector.broadcast %1199 : vector<1x1x128xf32> to vector<8x1x128xf32>
    %1201 = arith.mulf %1198, %1200 : vector<8x1x128xf32>
    %1202 = vector.shape_cast %1194 : vector<16x128xf32> to vector<1x16x128xf32>
    %1203 = vector.broadcast %1202 : vector<1x16x128xf32> to vector<8x16x128xf32>
    %1204 = vector.broadcast %1201 : vector<8x1x128xf32> to vector<8x16x128xf32>
    %1205 = arith.mulf %1203, %1204 : vector<8x16x128xf32>
    %1206 = arith.addf %1185, %1205 : vector<8x16x128xf32>
    %1207 = vector.extract_strided_slice %207 {offsets = [0, 4, 0], sizes = [8, 1, 128], strides = [1, 1, 1]} : vector<8x16x128xf32> to vector<8x1x128xf32>
    %1208 = vector.broadcast %1207 : vector<8x1x128xf32> to vector<8x16x128xf32>
    %1209 = arith.mulf %207, %1208 : vector<8x16x128xf32>
    %cst_380 = arith.constant dense<0.000000e+00> : vector<16x128xf32>
    %1210 = vector.multi_reduction <add>, %1209, %cst_380 [0] : vector<8x16x128xf32> to vector<16x128xf32>
    %cst_381 = arith.constant dense<0xFF800000> : vector<128xf32>
    %1211 = vector.multi_reduction <maximumf>, %1210, %cst_381 [0] : vector<16x128xf32> to vector<128xf32>
    %1212 = vector.shape_cast %1211 : vector<128xf32> to vector<1x128xf32>
    %1213 = vector.broadcast %1212 : vector<1x128xf32> to vector<16x128xf32>
    %1214 = arith.subf %1210, %1213 : vector<16x128xf32>
    %1215 = math.exp %1214 : vector<16x128xf32>
    %cst_382 = arith.constant dense<0.000000e+00> : vector<128xf32>
    %1216 = vector.multi_reduction <add>, %1215, %cst_382 [0] : vector<16x128xf32> to vector<128xf32>
    %1217 = vector.shape_cast %1216 : vector<128xf32> to vector<1x128xf32>
    %1218 = tpu.reciprocal %1217 {approx = true} : vector<1x128xf32> -> vector<1x128xf32>
    %1219 = vector.extract_strided_slice %1120 {offsets = [0, 4, 0], sizes = [8, 1, 128], strides = [1, 1, 1]} : vector<8x16x128xf32> to vector<8x1x128xf32>
    %1220 = vector.shape_cast %1218 : vector<1x128xf32> to vector<1x1x128xf32>
    %1221 = vector.broadcast %1220 : vector<1x1x128xf32> to vector<8x1x128xf32>
    %1222 = arith.mulf %1219, %1221 : vector<8x1x128xf32>
    %1223 = vector.shape_cast %1215 : vector<16x128xf32> to vector<1x16x128xf32>
    %1224 = vector.broadcast %1223 : vector<1x16x128xf32> to vector<8x16x128xf32>
    %1225 = vector.broadcast %1222 : vector<8x1x128xf32> to vector<8x16x128xf32>
    %1226 = arith.mulf %1224, %1225 : vector<8x16x128xf32>
    %1227 = arith.addf %1206, %1226 : vector<8x16x128xf32>
    %1228 = vector.extract_strided_slice %207 {offsets = [0, 5, 0], sizes = [8, 1, 128], strides = [1, 1, 1]} : vector<8x16x128xf32> to vector<8x1x128xf32>
    %1229 = vector.broadcast %1228 : vector<8x1x128xf32> to vector<8x16x128xf32>
    %1230 = arith.mulf %207, %1229 : vector<8x16x128xf32>
    %cst_383 = arith.constant dense<0.000000e+00> : vector<16x128xf32>
    %1231 = vector.multi_reduction <add>, %1230, %cst_383 [0] : vector<8x16x128xf32> to vector<16x128xf32>
    %cst_384 = arith.constant dense<0xFF800000> : vector<128xf32>
    %1232 = vector.multi_reduction <maximumf>, %1231, %cst_384 [0] : vector<16x128xf32> to vector<128xf32>
    %1233 = vector.shape_cast %1232 : vector<128xf32> to vector<1x128xf32>
    %1234 = vector.broadcast %1233 : vector<1x128xf32> to vector<16x128xf32>
    %1235 = arith.subf %1231, %1234 : vector<16x128xf32>
    %1236 = math.exp %1235 : vector<16x128xf32>
    %cst_385 = arith.constant dense<0.000000e+00> : vector<128xf32>
    %1237 = vector.multi_reduction <add>, %1236, %cst_385 [0] : vector<16x128xf32> to vector<128xf32>
    %1238 = vector.shape_cast %1237 : vector<128xf32> to vector<1x128xf32>
    %1239 = tpu.reciprocal %1238 {approx = true} : vector<1x128xf32> -> vector<1x128xf32>
    %1240 = vector.extract_strided_slice %1120 {offsets = [0, 5, 0], sizes = [8, 1, 128], strides = [1, 1, 1]} : vector<8x16x128xf32> to vector<8x1x128xf32>
    %1241 = vector.shape_cast %1239 : vector<1x128xf32> to vector<1x1x128xf32>
    %1242 = vector.broadcast %1241 : vector<1x1x128xf32> to vector<8x1x128xf32>
    %1243 = arith.mulf %1240, %1242 : vector<8x1x128xf32>
    %1244 = vector.shape_cast %1236 : vector<16x128xf32> to vector<1x16x128xf32>
    %1245 = vector.broadcast %1244 : vector<1x16x128xf32> to vector<8x16x128xf32>
    %1246 = vector.broadcast %1243 : vector<8x1x128xf32> to vector<8x16x128xf32>
    %1247 = arith.mulf %1245, %1246 : vector<8x16x128xf32>
    %1248 = arith.addf %1227, %1247 : vector<8x16x128xf32>
    %1249 = vector.extract_strided_slice %207 {offsets = [0, 6, 0], sizes = [8, 1, 128], strides = [1, 1, 1]} : vector<8x16x128xf32> to vector<8x1x128xf32>
    %1250 = vector.broadcast %1249 : vector<8x1x128xf32> to vector<8x16x128xf32>
    %1251 = arith.mulf %207, %1250 : vector<8x16x128xf32>
    %cst_386 = arith.constant dense<0.000000e+00> : vector<16x128xf32>
    %1252 = vector.multi_reduction <add>, %1251, %cst_386 [0] : vector<8x16x128xf32> to vector<16x128xf32>
    %cst_387 = arith.constant dense<0xFF800000> : vector<128xf32>
    %1253 = vector.multi_reduction <maximumf>, %1252, %cst_387 [0] : vector<16x128xf32> to vector<128xf32>
    %1254 = vector.shape_cast %1253 : vector<128xf32> to vector<1x128xf32>
    %1255 = vector.broadcast %1254 : vector<1x128xf32> to vector<16x128xf32>
    %1256 = arith.subf %1252, %1255 : vector<16x128xf32>
    %1257 = math.exp %1256 : vector<16x128xf32>
    %cst_388 = arith.constant dense<0.000000e+00> : vector<128xf32>
    %1258 = vector.multi_reduction <add>, %1257, %cst_388 [0] : vector<16x128xf32> to vector<128xf32>
    %1259 = vector.shape_cast %1258 : vector<128xf32> to vector<1x128xf32>
    %1260 = tpu.reciprocal %1259 {approx = true} : vector<1x128xf32> -> vector<1x128xf32>
    %1261 = vector.extract_strided_slice %1120 {offsets = [0, 6, 0], sizes = [8, 1, 128], strides = [1, 1, 1]} : vector<8x16x128xf32> to vector<8x1x128xf32>
    %1262 = vector.shape_cast %1260 : vector<1x128xf32> to vector<1x1x128xf32>
    %1263 = vector.broadcast %1262 : vector<1x1x128xf32> to vector<8x1x128xf32>
    %1264 = arith.mulf %1261, %1263 : vector<8x1x128xf32>
    %1265 = vector.shape_cast %1257 : vector<16x128xf32> to vector<1x16x128xf32>
    %1266 = vector.broadcast %1265 : vector<1x16x128xf32> to vector<8x16x128xf32>
    %1267 = vector.broadcast %1264 : vector<8x1x128xf32> to vector<8x16x128xf32>
    %1268 = arith.mulf %1266, %1267 : vector<8x16x128xf32>
    %1269 = arith.addf %1248, %1268 : vector<8x16x128xf32>
    %1270 = vector.extract_strided_slice %207 {offsets = [0, 7, 0], sizes = [8, 1, 128], strides = [1, 1, 1]} : vector<8x16x128xf32> to vector<8x1x128xf32>
    %1271 = vector.broadcast %1270 : vector<8x1x128xf32> to vector<8x16x128xf32>
    %1272 = arith.mulf %207, %1271 : vector<8x16x128xf32>
    %cst_389 = arith.constant dense<0.000000e+00> : vector<16x128xf32>
    %1273 = vector.multi_reduction <add>, %1272, %cst_389 [0] : vector<8x16x128xf32> to vector<16x128xf32>
    %cst_390 = arith.constant dense<0xFF800000> : vector<128xf32>
    %1274 = vector.multi_reduction <maximumf>, %1273, %cst_390 [0] : vector<16x128xf32> to vector<128xf32>
    %1275 = vector.shape_cast %1274 : vector<128xf32> to vector<1x128xf32>
    %1276 = vector.broadcast %1275 : vector<1x128xf32> to vector<16x128xf32>
    %1277 = arith.subf %1273, %1276 : vector<16x128xf32>
    %1278 = math.exp %1277 : vector<16x128xf32>
    %cst_391 = arith.constant dense<0.000000e+00> : vector<128xf32>
    %1279 = vector.multi_reduction <add>, %1278, %cst_391 [0] : vector<16x128xf32> to vector<128xf32>
    %1280 = vector.shape_cast %1279 : vector<128xf32> to vector<1x128xf32>
    %1281 = tpu.reciprocal %1280 {approx = true} : vector<1x128xf32> -> vector<1x128xf32>
    %1282 = vector.extract_strided_slice %1120 {offsets = [0, 7, 0], sizes = [8, 1, 128], strides = [1, 1, 1]} : vector<8x16x128xf32> to vector<8x1x128xf32>
    %1283 = vector.shape_cast %1281 : vector<1x128xf32> to vector<1x1x128xf32>
    %1284 = vector.broadcast %1283 : vector<1x1x128xf32> to vector<8x1x128xf32>
    %1285 = arith.mulf %1282, %1284 : vector<8x1x128xf32>
    %1286 = vector.shape_cast %1278 : vector<16x128xf32> to vector<1x16x128xf32>
    %1287 = vector.broadcast %1286 : vector<1x16x128xf32> to vector<8x16x128xf32>
    %1288 = vector.broadcast %1285 : vector<8x1x128xf32> to vector<8x16x128xf32>
    %1289 = arith.mulf %1287, %1288 : vector<8x16x128xf32>
    %1290 = arith.addf %1269, %1289 : vector<8x16x128xf32>
    %1291 = vector.extract_strided_slice %207 {offsets = [0, 8, 0], sizes = [8, 1, 128], strides = [1, 1, 1]} : vector<8x16x128xf32> to vector<8x1x128xf32>
    %1292 = vector.broadcast %1291 : vector<8x1x128xf32> to vector<8x16x128xf32>
    %1293 = arith.mulf %207, %1292 : vector<8x16x128xf32>
    %cst_392 = arith.constant dense<0.000000e+00> : vector<16x128xf32>
    %1294 = vector.multi_reduction <add>, %1293, %cst_392 [0] : vector<8x16x128xf32> to vector<16x128xf32>
    %cst_393 = arith.constant dense<0xFF800000> : vector<128xf32>
    %1295 = vector.multi_reduction <maximumf>, %1294, %cst_393 [0] : vector<16x128xf32> to vector<128xf32>
    %1296 = vector.shape_cast %1295 : vector<128xf32> to vector<1x128xf32>
    %1297 = vector.broadcast %1296 : vector<1x128xf32> to vector<16x128xf32>
    %1298 = arith.subf %1294, %1297 : vector<16x128xf32>
    %1299 = math.exp %1298 : vector<16x128xf32>
    %cst_394 = arith.constant dense<0.000000e+00> : vector<128xf32>
    %1300 = vector.multi_reduction <add>, %1299, %cst_394 [0] : vector<16x128xf32> to vector<128xf32>
    %1301 = vector.shape_cast %1300 : vector<128xf32> to vector<1x128xf32>
    %1302 = tpu.reciprocal %1301 {approx = true} : vector<1x128xf32> -> vector<1x128xf32>
    %1303 = vector.extract_strided_slice %1120 {offsets = [0, 8, 0], sizes = [8, 1, 128], strides = [1, 1, 1]} : vector<8x16x128xf32> to vector<8x1x128xf32>
    %1304 = vector.shape_cast %1302 : vector<1x128xf32> to vector<1x1x128xf32>
    %1305 = vector.broadcast %1304 : vector<1x1x128xf32> to vector<8x1x128xf32>
    %1306 = arith.mulf %1303, %1305 : vector<8x1x128xf32>
    %1307 = vector.shape_cast %1299 : vector<16x128xf32> to vector<1x16x128xf32>
    %1308 = vector.broadcast %1307 : vector<1x16x128xf32> to vector<8x16x128xf32>
    %1309 = vector.broadcast %1306 : vector<8x1x128xf32> to vector<8x16x128xf32>
    %1310 = arith.mulf %1308, %1309 : vector<8x16x128xf32>
    %1311 = arith.addf %1290, %1310 : vector<8x16x128xf32>
    %1312 = vector.extract_strided_slice %207 {offsets = [0, 9, 0], sizes = [8, 1, 128], strides = [1, 1, 1]} : vector<8x16x128xf32> to vector<8x1x128xf32>
    %1313 = vector.broadcast %1312 : vector<8x1x128xf32> to vector<8x16x128xf32>
    %1314 = arith.mulf %207, %1313 : vector<8x16x128xf32>
    %cst_395 = arith.constant dense<0.000000e+00> : vector<16x128xf32>
    %1315 = vector.multi_reduction <add>, %1314, %cst_395 [0] : vector<8x16x128xf32> to vector<16x128xf32>
    %cst_396 = arith.constant dense<0xFF800000> : vector<128xf32>
    %1316 = vector.multi_reduction <maximumf>, %1315, %cst_396 [0] : vector<16x128xf32> to vector<128xf32>
    %1317 = vector.shape_cast %1316 : vector<128xf32> to vector<1x128xf32>
    %1318 = vector.broadcast %1317 : vector<1x128xf32> to vector<16x128xf32>
    %1319 = arith.subf %1315, %1318 : vector<16x128xf32>
    %1320 = math.exp %1319 : vector<16x128xf32>
    %cst_397 = arith.constant dense<0.000000e+00> : vector<128xf32>
    %1321 = vector.multi_reduction <add>, %1320, %cst_397 [0] : vector<16x128xf32> to vector<128xf32>
    %1322 = vector.shape_cast %1321 : vector<128xf32> to vector<1x128xf32>
    %1323 = tpu.reciprocal %1322 {approx = true} : vector<1x128xf32> -> vector<1x128xf32>
    %1324 = vector.extract_strided_slice %1120 {offsets = [0, 9, 0], sizes = [8, 1, 128], strides = [1, 1, 1]} : vector<8x16x128xf32> to vector<8x1x128xf32>
    %1325 = vector.shape_cast %1323 : vector<1x128xf32> to vector<1x1x128xf32>
    %1326 = vector.broadcast %1325 : vector<1x1x128xf32> to vector<8x1x128xf32>
    %1327 = arith.mulf %1324, %1326 : vector<8x1x128xf32>
    %1328 = vector.shape_cast %1320 : vector<16x128xf32> to vector<1x16x128xf32>
    %1329 = vector.broadcast %1328 : vector<1x16x128xf32> to vector<8x16x128xf32>
    %1330 = vector.broadcast %1327 : vector<8x1x128xf32> to vector<8x16x128xf32>
    %1331 = arith.mulf %1329, %1330 : vector<8x16x128xf32>
    %1332 = arith.addf %1311, %1331 : vector<8x16x128xf32>
    %1333 = vector.extract_strided_slice %207 {offsets = [0, 10, 0], sizes = [8, 1, 128], strides = [1, 1, 1]} : vector<8x16x128xf32> to vector<8x1x128xf32>
    %1334 = vector.broadcast %1333 : vector<8x1x128xf32> to vector<8x16x128xf32>
    %1335 = arith.mulf %207, %1334 : vector<8x16x128xf32>
    %cst_398 = arith.constant dense<0.000000e+00> : vector<16x128xf32>
    %1336 = vector.multi_reduction <add>, %1335, %cst_398 [0] : vector<8x16x128xf32> to vector<16x128xf32>
    %cst_399 = arith.constant dense<0xFF800000> : vector<128xf32>
    %1337 = vector.multi_reduction <maximumf>, %1336, %cst_399 [0] : vector<16x128xf32> to vector<128xf32>
    %1338 = vector.shape_cast %1337 : vector<128xf32> to vector<1x128xf32>
    %1339 = vector.broadcast %1338 : vector<1x128xf32> to vector<16x128xf32>
    %1340 = arith.subf %1336, %1339 : vector<16x128xf32>
    %1341 = math.exp %1340 : vector<16x128xf32>
    %cst_400 = arith.constant dense<0.000000e+00> : vector<128xf32>
    %1342 = vector.multi_reduction <add>, %1341, %cst_400 [0] : vector<16x128xf32> to vector<128xf32>
    %1343 = vector.shape_cast %1342 : vector<128xf32> to vector<1x128xf32>
    %1344 = tpu.reciprocal %1343 {approx = true} : vector<1x128xf32> -> vector<1x128xf32>
    %1345 = vector.extract_strided_slice %1120 {offsets = [0, 10, 0], sizes = [8, 1, 128], strides = [1, 1, 1]} : vector<8x16x128xf32> to vector<8x1x128xf32>
    %1346 = vector.shape_cast %1344 : vector<1x128xf32> to vector<1x1x128xf32>
    %1347 = vector.broadcast %1346 : vector<1x1x128xf32> to vector<8x1x128xf32>
    %1348 = arith.mulf %1345, %1347 : vector<8x1x128xf32>
    %1349 = vector.shape_cast %1341 : vector<16x128xf32> to vector<1x16x128xf32>
    %1350 = vector.broadcast %1349 : vector<1x16x128xf32> to vector<8x16x128xf32>
    %1351 = vector.broadcast %1348 : vector<8x1x128xf32> to vector<8x16x128xf32>
    %1352 = arith.mulf %1350, %1351 : vector<8x16x128xf32>
    %1353 = arith.addf %1332, %1352 : vector<8x16x128xf32>
    %1354 = vector.extract_strided_slice %207 {offsets = [0, 11, 0], sizes = [8, 1, 128], strides = [1, 1, 1]} : vector<8x16x128xf32> to vector<8x1x128xf32>
    %1355 = vector.broadcast %1354 : vector<8x1x128xf32> to vector<8x16x128xf32>
    %1356 = arith.mulf %207, %1355 : vector<8x16x128xf32>
    %cst_401 = arith.constant dense<0.000000e+00> : vector<16x128xf32>
    %1357 = vector.multi_reduction <add>, %1356, %cst_401 [0] : vector<8x16x128xf32> to vector<16x128xf32>
    %cst_402 = arith.constant dense<0xFF800000> : vector<128xf32>
    %1358 = vector.multi_reduction <maximumf>, %1357, %cst_402 [0] : vector<16x128xf32> to vector<128xf32>
    %1359 = vector.shape_cast %1358 : vector<128xf32> to vector<1x128xf32>
    %1360 = vector.broadcast %1359 : vector<1x128xf32> to vector<16x128xf32>
    %1361 = arith.subf %1357, %1360 : vector<16x128xf32>
    %1362 = math.exp %1361 : vector<16x128xf32>
    %cst_403 = arith.constant dense<0.000000e+00> : vector<128xf32>
    %1363 = vector.multi_reduction <add>, %1362, %cst_403 [0] : vector<16x128xf32> to vector<128xf32>
    %1364 = vector.shape_cast %1363 : vector<128xf32> to vector<1x128xf32>
    %1365 = tpu.reciprocal %1364 {approx = true} : vector<1x128xf32> -> vector<1x128xf32>
    %1366 = vector.extract_strided_slice %1120 {offsets = [0, 11, 0], sizes = [8, 1, 128], strides = [1, 1, 1]} : vector<8x16x128xf32> to vector<8x1x128xf32>
    %1367 = vector.shape_cast %1365 : vector<1x128xf32> to vector<1x1x128xf32>
    %1368 = vector.broadcast %1367 : vector<1x1x128xf32> to vector<8x1x128xf32>
    %1369 = arith.mulf %1366, %1368 : vector<8x1x128xf32>
    %1370 = vector.shape_cast %1362 : vector<16x128xf32> to vector<1x16x128xf32>
    %1371 = vector.broadcast %1370 : vector<1x16x128xf32> to vector<8x16x128xf32>
    %1372 = vector.broadcast %1369 : vector<8x1x128xf32> to vector<8x16x128xf32>
    %1373 = arith.mulf %1371, %1372 : vector<8x16x128xf32>
    %1374 = arith.addf %1353, %1373 : vector<8x16x128xf32>
    %1375 = vector.extract_strided_slice %207 {offsets = [0, 12, 0], sizes = [8, 1, 128], strides = [1, 1, 1]} : vector<8x16x128xf32> to vector<8x1x128xf32>
    %1376 = vector.broadcast %1375 : vector<8x1x128xf32> to vector<8x16x128xf32>
    %1377 = arith.mulf %207, %1376 : vector<8x16x128xf32>
    %cst_404 = arith.constant dense<0.000000e+00> : vector<16x128xf32>
    %1378 = vector.multi_reduction <add>, %1377, %cst_404 [0] : vector<8x16x128xf32> to vector<16x128xf32>
    %cst_405 = arith.constant dense<0xFF800000> : vector<128xf32>
    %1379 = vector.multi_reduction <maximumf>, %1378, %cst_405 [0] : vector<16x128xf32> to vector<128xf32>
    %1380 = vector.shape_cast %1379 : vector<128xf32> to vector<1x128xf32>
    %1381 = vector.broadcast %1380 : vector<1x128xf32> to vector<16x128xf32>
    %1382 = arith.subf %1378, %1381 : vector<16x128xf32>
    %1383 = math.exp %1382 : vector<16x128xf32>
    %cst_406 = arith.constant dense<0.000000e+00> : vector<128xf32>
    %1384 = vector.multi_reduction <add>, %1383, %cst_406 [0] : vector<16x128xf32> to vector<128xf32>
    %1385 = vector.shape_cast %1384 : vector<128xf32> to vector<1x128xf32>
    %1386 = tpu.reciprocal %1385 {approx = true} : vector<1x128xf32> -> vector<1x128xf32>
    %1387 = vector.extract_strided_slice %1120 {offsets = [0, 12, 0], sizes = [8, 1, 128], strides = [1, 1, 1]} : vector<8x16x128xf32> to vector<8x1x128xf32>
    %1388 = vector.shape_cast %1386 : vector<1x128xf32> to vector<1x1x128xf32>
    %1389 = vector.broadcast %1388 : vector<1x1x128xf32> to vector<8x1x128xf32>
    %1390 = arith.mulf %1387, %1389 : vector<8x1x128xf32>
    %1391 = vector.shape_cast %1383 : vector<16x128xf32> to vector<1x16x128xf32>
    %1392 = vector.broadcast %1391 : vector<1x16x128xf32> to vector<8x16x128xf32>
    %1393 = vector.broadcast %1390 : vector<8x1x128xf32> to vector<8x16x128xf32>
    %1394 = arith.mulf %1392, %1393 : vector<8x16x128xf32>
    %1395 = arith.addf %1374, %1394 : vector<8x16x128xf32>
    %1396 = vector.extract_strided_slice %207 {offsets = [0, 13, 0], sizes = [8, 1, 128], strides = [1, 1, 1]} : vector<8x16x128xf32> to vector<8x1x128xf32>
    %1397 = vector.broadcast %1396 : vector<8x1x128xf32> to vector<8x16x128xf32>
    %1398 = arith.mulf %207, %1397 : vector<8x16x128xf32>
    %cst_407 = arith.constant dense<0.000000e+00> : vector<16x128xf32>
    %1399 = vector.multi_reduction <add>, %1398, %cst_407 [0] : vector<8x16x128xf32> to vector<16x128xf32>
    %cst_408 = arith.constant dense<0xFF800000> : vector<128xf32>
    %1400 = vector.multi_reduction <maximumf>, %1399, %cst_408 [0] : vector<16x128xf32> to vector<128xf32>
    %1401 = vector.shape_cast %1400 : vector<128xf32> to vector<1x128xf32>
    %1402 = vector.broadcast %1401 : vector<1x128xf32> to vector<16x128xf32>
    %1403 = arith.subf %1399, %1402 : vector<16x128xf32>
    %1404 = math.exp %1403 : vector<16x128xf32>
    %cst_409 = arith.constant dense<0.000000e+00> : vector<128xf32>
    %1405 = vector.multi_reduction <add>, %1404, %cst_409 [0] : vector<16x128xf32> to vector<128xf32>
    %1406 = vector.shape_cast %1405 : vector<128xf32> to vector<1x128xf32>
    %1407 = tpu.reciprocal %1406 {approx = true} : vector<1x128xf32> -> vector<1x128xf32>
    %1408 = vector.extract_strided_slice %1120 {offsets = [0, 13, 0], sizes = [8, 1, 128], strides = [1, 1, 1]} : vector<8x16x128xf32> to vector<8x1x128xf32>
    %1409 = vector.shape_cast %1407 : vector<1x128xf32> to vector<1x1x128xf32>
    %1410 = vector.broadcast %1409 : vector<1x1x128xf32> to vector<8x1x128xf32>
    %1411 = arith.mulf %1408, %1410 : vector<8x1x128xf32>
    %1412 = vector.shape_cast %1404 : vector<16x128xf32> to vector<1x16x128xf32>
    %1413 = vector.broadcast %1412 : vector<1x16x128xf32> to vector<8x16x128xf32>
    %1414 = vector.broadcast %1411 : vector<8x1x128xf32> to vector<8x16x128xf32>
    %1415 = arith.mulf %1413, %1414 : vector<8x16x128xf32>
    %1416 = arith.addf %1395, %1415 : vector<8x16x128xf32>
    %1417 = vector.extract_strided_slice %207 {offsets = [0, 14, 0], sizes = [8, 1, 128], strides = [1, 1, 1]} : vector<8x16x128xf32> to vector<8x1x128xf32>
    %1418 = vector.broadcast %1417 : vector<8x1x128xf32> to vector<8x16x128xf32>
    %1419 = arith.mulf %207, %1418 : vector<8x16x128xf32>
    %cst_410 = arith.constant dense<0.000000e+00> : vector<16x128xf32>
    %1420 = vector.multi_reduction <add>, %1419, %cst_410 [0] : vector<8x16x128xf32> to vector<16x128xf32>
    %cst_411 = arith.constant dense<0xFF800000> : vector<128xf32>
    %1421 = vector.multi_reduction <maximumf>, %1420, %cst_411 [0] : vector<16x128xf32> to vector<128xf32>
    %1422 = vector.shape_cast %1421 : vector<128xf32> to vector<1x128xf32>
    %1423 = vector.broadcast %1422 : vector<1x128xf32> to vector<16x128xf32>
    %1424 = arith.subf %1420, %1423 : vector<16x128xf32>
    %1425 = math.exp %1424 : vector<16x128xf32>
    %cst_412 = arith.constant dense<0.000000e+00> : vector<128xf32>
    %1426 = vector.multi_reduction <add>, %1425, %cst_412 [0] : vector<16x128xf32> to vector<128xf32>
    %1427 = vector.shape_cast %1426 : vector<128xf32> to vector<1x128xf32>
    %1428 = tpu.reciprocal %1427 {approx = true} : vector<1x128xf32> -> vector<1x128xf32>
    %1429 = vector.extract_strided_slice %1120 {offsets = [0, 14, 0], sizes = [8, 1, 128], strides = [1, 1, 1]} : vector<8x16x128xf32> to vector<8x1x128xf32>
    %1430 = vector.shape_cast %1428 : vector<1x128xf32> to vector<1x1x128xf32>
    %1431 = vector.broadcast %1430 : vector<1x1x128xf32> to vector<8x1x128xf32>
    %1432 = arith.mulf %1429, %1431 : vector<8x1x128xf32>
    %1433 = vector.shape_cast %1425 : vector<16x128xf32> to vector<1x16x128xf32>
    %1434 = vector.broadcast %1433 : vector<1x16x128xf32> to vector<8x16x128xf32>
    %1435 = vector.broadcast %1432 : vector<8x1x128xf32> to vector<8x16x128xf32>
    %1436 = arith.mulf %1434, %1435 : vector<8x16x128xf32>
    %1437 = arith.addf %1416, %1436 : vector<8x16x128xf32>
    %1438 = vector.extract_strided_slice %207 {offsets = [0, 15, 0], sizes = [8, 1, 128], strides = [1, 1, 1]} : vector<8x16x128xf32> to vector<8x1x128xf32>
    %1439 = vector.broadcast %1438 : vector<8x1x128xf32> to vector<8x16x128xf32>
    %1440 = arith.mulf %207, %1439 : vector<8x16x128xf32>
    %cst_413 = arith.constant dense<0.000000e+00> : vector<16x128xf32>
    %1441 = vector.multi_reduction <add>, %1440, %cst_413 [0] : vector<8x16x128xf32> to vector<16x128xf32>
    %cst_414 = arith.constant dense<0xFF800000> : vector<128xf32>
    %1442 = vector.multi_reduction <maximumf>, %1441, %cst_414 [0] : vector<16x128xf32> to vector<128xf32>
    %1443 = vector.shape_cast %1442 : vector<128xf32> to vector<1x128xf32>
    %1444 = vector.broadcast %1443 : vector<1x128xf32> to vector<16x128xf32>
    %1445 = arith.subf %1441, %1444 : vector<16x128xf32>
    %1446 = math.exp %1445 : vector<16x128xf32>
    %cst_415 = arith.constant dense<0.000000e+00> : vector<128xf32>
    %1447 = vector.multi_reduction <add>, %1446, %cst_415 [0] : vector<16x128xf32> to vector<128xf32>
    %1448 = vector.shape_cast %1447 : vector<128xf32> to vector<1x128xf32>
    %1449 = tpu.reciprocal %1448 {approx = true} : vector<1x128xf32> -> vector<1x128xf32>
    %1450 = vector.extract_strided_slice %1120 {offsets = [0, 15, 0], sizes = [8, 1, 128], strides = [1, 1, 1]} : vector<8x16x128xf32> to vector<8x1x128xf32>
    %1451 = vector.shape_cast %1449 : vector<1x128xf32> to vector<1x1x128xf32>
    %1452 = vector.broadcast %1451 : vector<1x1x128xf32> to vector<8x1x128xf32>
    %1453 = arith.mulf %1450, %1452 : vector<8x1x128xf32>
    %1454 = vector.shape_cast %1446 : vector<16x128xf32> to vector<1x16x128xf32>
    %1455 = vector.broadcast %1454 : vector<1x16x128xf32> to vector<8x16x128xf32>
    %1456 = vector.broadcast %1453 : vector<8x1x128xf32> to vector<8x16x128xf32>
    %1457 = arith.mulf %1455, %1456 : vector<8x16x128xf32>
    %1458 = arith.addf %1437, %1457 : vector<8x16x128xf32>
    %1459 = vector.broadcast %1121 : f32 to vector<8x16x128xf32>
    %1460 = arith.mulf %1459, %1458 : vector<8x16x128xf32>
    %1461 = arith.addf %1460, %1120 : vector<8x16x128xf32>
    %c0_416 = arith.constant 0 : index
    %c0_417 = arith.constant 0 : index
    %c0_418 = arith.constant 0 : index
    %1462 = vector.load %arg9[%c0_416, %c0_417, %c0_418] : memref<8x16x128xf32, #tpu.memory_space<vmem>>, vector<8x16x128xf32>
    tpu.vector_store %arg9[%c0_416, %c0_417, %c0_418], %1461 {strides = array<i32>} : memref<8x16x128xf32, #tpu.memory_space<vmem>>, vector<8x16x128xf32>,
    return
  }
  func.func @transform_0(%arg0: i32) -> (i32, i32, i32) {
    %c0_i32 = arith.constant 0 : i32
    %c0_i32_0 = arith.constant 0 : i32
    %c0_i32_1 = arith.constant 0 : i32
    return %c0_i32, %c0_i32_0, %arg0 : i32, i32, i32
  }
  func.func @transform_1(%arg0: i32) -> (i32, i32) {
    %c0_i32 = arith.constant 0 : i32
    %c0_i32_0 = arith.constant 0 : i32
    %c0_i32_1 = arith.constant 0 : i32
    return %c0_i32, %c0_i32_0 : i32, i32
  }
  func.func @transform_2(%arg0: i32) -> (i32, i32) {
    %c0_i32 = arith.constant 0 : i32
    %c0_i32_0 = arith.constant 0 : i32
    %c0_i32_1 = arith.constant 0 : i32
    return %c0_i32, %c0_i32_0 : i32, i32
  }
  func.func @transform_3(%arg0: i32) -> (i32, i32) {
    %c0_i32 = arith.constant 0 : i32
    %c0_i32_0 = arith.constant 0 : i32
    %c0_i32_1 = arith.constant 0 : i32
    return %c0_i32, %c0_i32_0 : i32, i32
  }
  func.func @transform_4(%arg0: i32) -> (i32, i32) {
    %c0_i32 = arith.constant 0 : i32
    %c0_i32_0 = arith.constant 0 : i32
    %c0_i32_1 = arith.constant 0 : i32
    return %c0_i32, %c0_i32_0 : i32, i32
  }
  func.func @transform_5(%arg0: i32) -> (i32, i32) {
    %c0_i32 = arith.constant 0 : i32
    %c0_i32_0 = arith.constant 0 : i32
    %c0_i32_1 = arith.constant 0 : i32
    return %c0_i32, %c0_i32_0 : i32, i32
  }
  func.func @transform_6(%arg0: i32) -> (i32, i32) {
    %c0_i32 = arith.constant 0 : i32
    %c0_i32_0 = arith.constant 0 : i32
    %c0_i32_1 = arith.constant 0 : i32
    return %c0_i32, %c0_i32_0 : i32, i32
  }
  func.func @transform_7(%arg0: i32) -> i32 {
    %c0_i32 = arith.constant 0 : i32
    %c0_i32_0 = arith.constant 0 : i32
    return %c0_i32 : i32
  }
  func.func @transform_8(%arg0: i32) -> (i32, i32, i32) {
    %c0_i32 = arith.constant 0 : i32
    %c0_i32_0 = arith.constant 0 : i32
    %c0_i32_1 = arith.constant 0 : i32
    return %c0_i32, %c0_i32_0, %arg0 : i32, i32, i32
  }
}

</mosaic_0001>

<llo_original>
// kernel: self_attn_forward.1
$region0: #{self_attn_forward.1}
  #allocation0 [shape = 'u32[]', space=smem, size = 0x4, offset = 0x4, fixed_abs, tag = 'smem constant byte address 0x4 - core index']
  #allocation1 [shape = 'u32[72,128]{1,0:T(1,128)}', space=vmem, size = 0x9000, scoped, tag = 'internal scratch']
  #allocation2 [shape = 'f32[1]{0:T(128)S(6)}', space=smem, size = 0x200, scoped, tag = 'scoped memory for self_attn_forward.1']
  %s0 = inlined_call_operand.vmem [shape: f32[4,16,128], index: 0, kind: input, shape index: {}]
  %s1 = inlined_call_operand.vmem [shape: f32[8,4], index: 1, kind: input, shape index: {}]
  %s2 = inlined_call_operand.vmem [shape: f32[8,4], index: 2, kind: input, shape index: {}]
  %s3 = inlined_call_operand.vmem [shape: f32[4,4], index: 3, kind: input, shape index: {}]
  %s4 = inlined_call_operand.vmem [shape: f32[8,4], index: 4, kind: input, shape index: {}]
  %s5 = inlined_call_operand.vmem [shape: f32[4,8], index: 5, kind: input, shape index: {}]
  %s6 = inlined_call_operand.vmem [shape: f32[8,4], index: 6, kind: input, shape index: {}]
  %s7 = inlined_call_operand.<no memory space> [shape: f32[1], index: 7, kind: input, shape index: {}]
  %s8 = inlined_call_operand.vmem [shape: f32[8,16,128], index: 8, kind: output, shape index: {}]
  %s9 = sld [smem:[#allocation0]]
  $region66: #{self_attn_forward.1} parent=0
    _
  %s11 = ssub.s32 1, %s9
  %s12 = scalar_select 0, %s11, %s9
  %13 = sst [smem:[#allocation2]] %s7
  $region1: #{self_attn_forward.1} parent=0
    #allocation3 [shape = 'u8[4096]{0}', space=smem, size = 0x1000, scoped, tag = 'input window, operand 1, single buffered']
    #allocation4 [shape = 's32[1]{0}', space=sflag, size = 0x4, scoped, tag = 'scoped memory for self_attn_forward.1']
    #allocation5 [shape = 'u8[4096]{0}', space=smem, size = 0x1000, scoped, tag = 'input window, operand 2, single buffered']
    #allocation6 [shape = 's32[1]{0}', space=sflag, size = 0x4, scoped, tag = 'scoped memory for self_attn_forward.1']
    #allocation7 [shape = 'u8[2048]{0}', space=smem, size = 0x800, scoped, tag = 'input window, operand 3, single buffered']
    #allocation8 [shape = 'u8[4096]{0}', space=smem, size = 0x1000, scoped, tag = 'input window, operand 4, single buffered']
    #allocation9 [shape = 's32[1]{0}', space=sflag, size = 0x4, scoped, tag = 'scoped memory for self_attn_forward.1']
    #allocation10 [shape = 'u8[2048]{0}', space=smem, size = 0x800, scoped, tag = 'input window, operand 5, single buffered']
    #allocation11 [shape = 'u8[4096]{0}', space=smem, size = 0x1000, scoped, tag = 'input window, operand 6, single buffered']
    #allocation12 [shape = 's32[1]{0}', space=sflag, size = 0x4, scoped, tag = 'scoped memory for self_attn_forward.1']
    %14 = vsyncpa [#allocation4], 0
    %15 = vsyncpa [#allocation6], 0
    %16 = vsyncpa [#allocation9], 0
    %17 = vsyncpa [#allocation12], 0
    // Predicated region
    $region2: #{self_attn_forward.1} parent=1 // pred_check
      _
    $region3: #{self_attn_forward.1} parent=1 // pred_check_branch
      %19 = sbr.rel (0) target = $region5
    $region4: #{self_attn_forward.1} parent=1 // pred_region
      _
    $region5: #{self_attn_forward.1} parent=1 // pred_fallthru
      _
    // Predicated region
    $region6: #{self_attn_forward.1} parent=1 // pred_check
      _
    $region7: #{self_attn_forward.1} parent=1 // pred_check_branch
      %21 = sbr.rel (0) target = $region9
    $region8: #{self_attn_forward.1} parent=1 // pred_region
      %23 = vsyncadd [#allocation4], 0
      %s25 = sshll.u32 %s1, 4
      %s26 = int_to_ptr.vmem [resolvable:$true] %s25
      %28 = dma.vmem_to_smem %s26, 128, [#allocation3], [#allocation4]
    $region9: #{self_attn_forward.1} parent=1 // pred_fallthru
      _
    // Predicated region
    $region10: #{self_attn_forward.1} parent=1 // pred_check
      _
    $region11: #{self_attn_forward.1} parent=1 // pred_check_branch
      %30 = sbr.rel (0) target = $region13
    $region12: #{self_attn_forward.1} parent=1 // pred_region
      %32 = vsyncadd [#allocation6], 0
      %s34 = sshll.u32 %s2, 4
      %s35 = int_to_ptr.vmem [resolvable:$true] %s34
      %37 = dma.vmem_to_smem %s35, 128, [#allocation5], [#allocation6]
    $region13: #{self_attn_forward.1} parent=1 // pred_fallthru
      _
    // Predicated region
    $region14: #{self_attn_forward.1} parent=1 // pred_check
      _
    $region15: #{self_attn_forward.1} parent=1 // pred_check_branch
      %39 = sbr.rel (0) target = $region17
    $region16: #{self_attn_forward.1} parent=1 // pred_region
      %41 = vsyncadd [#allocation6], 0
      %s43 = sshll.u32 %s3, 4
      %s44 = int_to_ptr.vmem [resolvable:$true] %s43
      %46 = dma.vmem_to_smem %s44, 64, [#allocation7], [#allocation6]
    $region17: #{self_attn_forward.1} parent=1 // pred_fallthru
      _
    // Predicated region
    $region18: #{self_attn_forward.1} parent=1 // pred_check
      _
    $region19: #{self_attn_forward.1} parent=1 // pred_check_branch
      %48 = sbr.rel (0) target = $region21
    $region20: #{self_attn_forward.1} parent=1 // pred_region
      %50 = vsyncadd [#allocation9], 0
      %s52 = sshll.u32 %s4, 4
      %s53 = int_to_ptr.vmem [resolvable:$true] %s52
      %55 = dma.vmem_to_smem %s53, 128, [#allocation8], [#allocation9]
    $region21: #{self_attn_forward.1} parent=1 // pred_fallthru
      _
    // Predicated region
    $region22: #{self_attn_forward.1} parent=1 // pred_check
      _
    $region23: #{self_attn_forward.1} parent=1 // pred_check_branch
      %57 = sbr.rel (0) target = $region25
    $region24: #{self_attn_forward.1} parent=1 // pred_region
      %59 = vsyncadd [#allocation9], 0
      %s61 = sshll.u32 %s5, 4
      %s62 = int_to_ptr.vmem [resolvable:$true] %s61
      %64 = dma.vmem_to_smem %s62, 64, [#allocation10], [#allocation9]
    $region25: #{self_attn_forward.1} parent=1 // pred_fallthru
      _
    // Predicated region
    $region26: #{self_attn_forward.1} parent=1 // pred_check
      _
    $region27: #{self_attn_forward.1} parent=1 // pred_check_branch
      %66 = sbr.rel (0) target = $region29
    $region28: #{self_attn_forward.1} parent=1 // pred_region
      %68 = vsyncadd [#allocation12], 0
      %s70 = sshll.u32 %s6, 4
      %s71 = int_to_ptr.vmem [resolvable:$true] %s70
      %73 = dma.vmem_to_smem %s71, 128, [#allocation11], [#allocation12]
    $region29: #{self_attn_forward.1} parent=1 // pred_fallthru
      _
    // Predicated region
    $region30: #{self_attn_forward.1} parent=1 // pred_check
      _
    $region31: #{self_attn_forward.1} parent=1 // pred_check_branch
      %75 = sbr.rel (0) target = $region33
    $region32: #{self_attn_forward.1} parent=1 // pred_region
      _
    $region33: #{self_attn_forward.1} parent=1 // pred_fallthru
      _
    // Predicated region
    $region34: #{self_attn_forward.1} parent=1 // pred_check
      _
    $region35: #{self_attn_forward.1} parent=1 // pred_check_branch
      %77 = sbr.rel (0) target = $region37
    $region36: #{self_attn_forward.1} parent=1 // pred_region
      %79 = dma.done [#allocation4], 128
    $region37: #{self_attn_forward.1} parent=1 // pred_fallthru
      _
    // Predicated region
    $region38: #{self_attn_forward.1} parent=1 // pred_check
      _
    $region39: #{self_attn_forward.1} parent=1 // pred_check_branch
      %81 = sbr.rel (0) target = $region41
    $region40: #{self_attn_forward.1} parent=1 // pred_region
      %83 = dma.done [#allocation6], 128
    $region41: #{self_attn_forward.1} parent=1 // pred_fallthru
      _
    // Predicated region
    $region42: #{self_attn_forward.1} parent=1 // pred_check
      _
    $region43: #{self_attn_forward.1} parent=1 // pred_check_branch
      %85 = sbr.rel (0) target = $region45
    $region44: #{self_attn_forward.1} parent=1 // pred_region
      %87 = dma.done [#allocation6], 64
    $region45: #{self_attn_forward.1} parent=1 // pred_fallthru
      _
    // Predicated region
    $region46: #{self_attn_forward.1} parent=1 // pred_check
      _
    $region47: #{self_attn_forward.1} parent=1 // pred_check_branch
      %89 = sbr.rel (0) target = $region49
    $region48: #{self_attn_forward.1} parent=1 // pred_region
      %91 = dma.done [#allocation9], 128
    $region49: #{self_attn_forward.1} parent=1 // pred_fallthru
      _
    // Predicated region
    $region50: #{self_attn_forward.1} parent=1 // pred_check
      _
    $region51: #{self_attn_forward.1} parent=1 // pred_check_branch
      %93 = sbr.rel (0) target = $region53
    $region52: #{self_attn_forward.1} parent=1 // pred_region
      %95 = dma.done [#allocation9], 64
    $region53: #{self_attn_forward.1} parent=1 // pred_fallthru
      _
    // Predicated region
    $region54: #{self_attn_forward.1} parent=1 // pred_check
      _
    $region55: #{self_attn_forward.1} parent=1 // pred_check_branch
      %97 = sbr.rel (0) target = $region57
    $region56: #{self_attn_forward.1} parent=1 // pred_region
      %99 = dma.done [#allocation12], 128
    $region57: #{self_attn_forward.1} parent=1 // pred_fallthru
      _
    %100 = sfence
    %v101 = vld [vmem:[%s0] sm:$0xff]
    %v102 = vld [vmem:[%s0 + $0x8] sm:$0xff]
    %v103 = vld [vmem:[%s0 + $0x10] sm:$0xff]
    %v104 = vld [vmem:[%s0 + $0x18] sm:$0xff]
    %v105 = vld [vmem:[%s0 + $0x20] sm:$0xff]
    %v106 = vld [vmem:[%s0 + $0x28] sm:$0xff]
    %v107 = vld [vmem:[%s0 + $0x30] sm:$0xff]
    %v108 = vld [vmem:[%s0 + $0x38] sm:$0xff]
    %v109 = vmin.f32 %v101, 20.0
    %v110 = vmin.f32 %v102, 20.0
    %v111 = vmin.f32 %v103, 20.0
    %v112 = vmin.f32 %v104, 20.0
    %v113 = vmin.f32 %v105, 20.0
    %v114 = vmin.f32 %v106, 20.0
    %v115 = vmin.f32 %v107, 20.0
    %v116 = vmin.f32 %v108, 20.0
    %v117 = vmul.f32 %v109, 1.442695
    %v118 = vpow.pop %v117
    %v119 = vmul.f32 %v110, 1.442695
    %v120 = vpow.pop %v119
    %v121 = vmul.f32 %v111, 1.442695
    %v122 = vpow.pop %v121
    %v123 = vmul.f32 %v112, 1.442695
    %v124 = vpow.pop %v123
    %v125 = vmul.f32 %v113, 1.442695
    %v126 = vpow.pop %v125
    %v127 = vmul.f32 %v114, 1.442695
    %v128 = vpow.pop %v127
    %v129 = vmul.f32 %v115, 1.442695
    %v130 = vpow.pop %v129
    %v131 = vmul.f32 %v116, 1.442695
    %v132 = vpow.pop %v131
    %v133 = vadd.f32 %v118, 1.0
    %v134 = vadd.f32 %v120, 1.0
    %v135 = vadd.f32 %v122, 1.0
    %v136 = vadd.f32 %v124, 1.0
    %v137 = vadd.f32 %v126, 1.0
    %v138 = vadd.f32 %v128, 1.0
    %v139 = vadd.f32 %v130, 1.0
    %v140 = vadd.f32 %v132, 1.0
    %v141 = vmul.f32 %v133, %v133
    %v142 = vmul.f32 %v134, %v134
    %v143 = vmul.f32 %v135, %v135
    %v144 = vmul.f32 %v136, %v136
    %v145 = vmul.f32 %v137, %v137
    %v146 = vmul.f32 %v138, %v138
    %v147 = vmul.f32 %v139, %v139
    %v148 = vmul.f32 %v140, %v140
    %v149 = vsub.f32 %v141, 1.0
    %v150 = vsub.f32 %v142, 1.0
    %v151 = vsub.f32 %v143, 1.0
    %v152 = vsub.f32 %v144, 1.0
    %v153 = vsub.f32 %v145, 1.0
    %v154 = vsub.f32 %v146, 1.0
    %v155 = vsub.f32 %v147, 1.0
    %v156 = vsub.f32 %v148, 1.0
    %v157 = vmul.f32 %v101, %v149
    %v158 = vmul.f32 %v102, %v150
    %v159 = vmul.f32 %v103, %v151
    %v160 = vmul.f32 %v104, %v152
    %v161 = vmul.f32 %v105, %v153
    %v162 = vmul.f32 %v106, %v154
    %v163 = vmul.f32 %v107, %v155
    %v164 = vmul.f32 %v108, %v156
    %v165 = vadd.f32 %v141, 1.0
    %v166 = vadd.f32 %v142, 1.0
    %v167 = vadd.f32 %v143, 1.0
    %v168 = vadd.f32 %v144, 1.0
    %v169 = vadd.f32 %v145, 1.0
    %v170 = vadd.f32 %v146, 1.0
    %v171 = vadd.f32 %v147, 1.0
    %v172 = vadd.f32 %v148, 1.0
    %v173 = vrcp.pop %v165
    %v174 = vmul.f32 %v165, %v173
    %v175 = vsub.f32 1.0, %v174
    %v176 = vmul.f32 %v173, %v175
    %v177 = vadd.f32 %v173, %v176
    %vm178 = vweird.f32 %v165
    %vm179 = vweird.f32 %v173
    %vm180 = vmor %vm178, %vm179
    %v181 = vsel %vm180, %v173, %v177
    %v182 = vand.u32 2147483647, %v165
    %vm183 = vcmp.eq.f32.partialorder %v182, 8.507059e+37
    %v184 = vand.u32 %v165, 2147483648
    %v185 = vor.u32 1.1754944e-38, %v184
    %v186 = vsel %vm183, %v185, %v181
    %v187 = vmul.f32 %v157, %v186
    %v188 = vrcp.pop %v166
    %v189 = vmul.f32 %v166, %v188
    %v190 = vsub.f32 1.0, %v189
    %v191 = vmul.f32 %v188, %v190
    %v192 = vadd.f32 %v188, %v191
    %vm193 = vweird.f32 %v166
    %vm194 = vweird.f32 %v188
    %vm195 = vmor %vm193, %vm194
    %v196 = vsel %vm195, %v188, %v192
    %v197 = vand.u32 2147483647, %v166
    %vm198 = vcmp.eq.f32.partialorder %v197, 8.507059e+37
    %v199 = vand.u32 %v166, 2147483648
    %v200 = vor.u32 1.1754944e-38, %v199
    %v201 = vsel %vm198, %v200, %v196
    %v202 = vmul.f32 %v158, %v201
    %v203 = vrcp.pop %v167
    %v204 = vmul.f32 %v167, %v203
    %v205 = vsub.f32 1.0, %v204
    %v206 = vmul.f32 %v203, %v205
    %v207 = vadd.f32 %v203, %v206
    %vm208 = vweird.f32 %v167
    %vm209 = vweird.f32 %v203
    %vm210 = vmor %vm208, %vm209
    %v211 = vsel %vm210, %v203, %v207
    %v212 = vand.u32 2147483647, %v167
    %vm213 = vcmp.eq.f32.partialorder %v212, 8.507059e+37
    %v214 = vand.u32 %v167, 2147483648
    %v215 = vor.u32 1.1754944e-38, %v214
    %v216 = vsel %vm213, %v215, %v211
    %v217 = vmul.f32 %v159, %v216
    %v218 = vrcp.pop %v168
    %v219 = vmul.f32 %v168, %v218
    %v220 = vsub.f32 1.0, %v219
    %v221 = vmul.f32 %v218, %v220
    %v222 = vadd.f32 %v218, %v221
    %vm223 = vweird.f32 %v168
    %vm224 = vweird.f32 %v218
    %vm225 = vmor %vm223, %vm224
    %v226 = vsel %vm225, %v218, %v222
    %v227 = vand.u32 2147483647, %v168
    %vm228 = vcmp.eq.f32.partialorder %v227, 8.507059e+37
    %v229 = vand.u32 %v168, 2147483648
    %v230 = vor.u32 1.1754944e-38, %v229
    %v231 = vsel %vm228, %v230, %v226
    %v232 = vmul.f32 %v160, %v231
    %v233 = vrcp.pop %v169
    %v234 = vmul.f32 %v169, %v233
    %v235 = vsub.f32 1.0, %v234
    %v236 = vmul.f32 %v233, %v235
    %v237 = vadd.f32 %v233, %v236
    %vm238 = vweird.f32 %v169
    %vm239 = vweird.f32 %v233
    %vm240 = vmor %vm238, %vm239
    %v241 = vsel %vm240, %v233, %v237
    %v242 = vand.u32 2147483647, %v169
    %vm243 = vcmp.eq.f32.partialorder %v242, 8.507059e+37
    %v244 = vand.u32 %v169, 2147483648
    %v245 = vor.u32 1.1754944e-38, %v244
    %v246 = vsel %vm243, %v245, %v241
    %v247 = vmul.f32 %v161, %v246
    %v248 = vrcp.pop %v170
    %v249 = vmul.f32 %v170, %v248
    %v250 = vsub.f32 1.0, %v249
    %v251 = vmul.f32 %v248, %v250
    %v252 = vadd.f32 %v248, %v251
    %vm253 = vweird.f32 %v170
    %vm254 = vweird.f32 %v248
    %vm255 = vmor %vm253, %vm254
    %v256 = vsel %vm255, %v248, %v252
    %v257 = vand.u32 2147483647, %v170
    %vm258 = vcmp.eq.f32.partialorder %v257, 8.507059e+37
    %v259 = vand.u32 %v170, 2147483648
    %v260 = vor.u32 1.1754944e-38, %v259
    %v261 = vsel %vm258, %v260, %v256
    %v262 = vmul.f32 %v162, %v261
    %v263 = vrcp.pop %v171
    %v264 = vmul.f32 %v171, %v263
    %v265 = vsub.f32 1.0, %v264
    %v266 = vmul.f32 %v263, %v265
    %v267 = vadd.f32 %v263, %v266
    %vm268 = vweird.f32 %v171
    %vm269 = vweird.f32 %v263
    %vm270 = vmor %vm268, %vm269
    %v271 = vsel %vm270, %v263, %v267
    %v272 = vand.u32 2147483647, %v171
    %vm273 = vcmp.eq.f32.partialorder %v272, 8.507059e+37
    %v274 = vand.u32 %v171, 2147483648
    %v275 = vor.u32 1.1754944e-38, %v274
    %v276 = vsel %vm273, %v275, %v271
    %v277 = vmul.f32 %v163, %v276
    %v278 = vrcp.pop %v172
    %v279 = vmul.f32 %v172, %v278
    %v280 = vsub.f32 1.0, %v279
    %v281 = vmul.f32 %v278, %v280
    %v282 = vadd.f32 %v278, %v281
    %vm283 = vweird.f32 %v172
    %vm284 = vweird.f32 %v278
    %vm285 = vmor %vm283, %vm284
    %v286 = vsel %vm285, %v278, %v282
    %v287 = vand.u32 2147483647, %v172
    %vm288 = vcmp.eq.f32.partialorder %v287, 8.507059e+37
    %v289 = vand.u32 %v172, 2147483648
    %v290 = vor.u32 1.1754944e-38, %v289
    %v291 = vsel %vm288, %v290, %v286
    %v292 = vmul.f32 %v164, %v291
    %s293 = sld [smem:[#allocation3]]
    %v294 = vstv %s293
    %v295 = vmul.f32 %v294, %v187
    %v296 = vmul.f32 %v294, %v202
    %s297 = sld [smem:[#allocation3 + $0x1]]
    %v298 = vstv %s297
    %v299 = vmul.f32 %v298, %v217
    %v300 = vmul.f32 %v298, %v232
    %v301 = vadd.f32 %v295, %v299
    %v302 = vadd.f32 %v296, %v300
    %s303 = sld [smem:[#allocation3 + $0x2]]
    %v304 = vstv %s303
    %v305 = vmul.f32 %v304, %v247
    %v306 = vmul.f32 %v304, %v262
    %v307 = vadd.f32 %v301, %v305
    %v308 = vadd.f32 %v302, %v306
    %s309 = sld [smem:[#allocation3 + $0x3]]
    %v310 = vstv %s309
    %v311 = vmul.f32 %v310, %v277
    %v312 = vmul.f32 %v310, %v292
    %v313 = vadd.f32 %v307, %v311
    %v314 = vadd.f32 %v308, %v312
    %s315 = sld [smem:[#allocation3 + $0x80]]
    %v316 = vstv %s315
    %v317 = vmul.f32 %v316, %v187
    %v318 = vmul.f32 %v316, %v202
    %s319 = sld [smem:[#allocation3 + $0x81]]
    %v320 = vstv %s319
    %v321 = vmul.f32 %v320, %v217
    %v322 = vmul.f32 %v320, %v232
    %v323 = vadd.f32 %v317, %v321
    %v324 = vadd.f32 %v318, %v322
    %s325 = sld [smem:[#allocation3 + $0x82]]
    %v326 = vstv %s325
    %v327 = vmul.f32 %v326, %v247
    %v328 = vmul.f32 %v326, %v262
    %v329 = vadd.f32 %v323, %v327
    %v330 = vadd.f32 %v324, %v328
    %s331 = sld [smem:[#allocation3 + $0x83]]
    %v332 = vstv %s331
    %v333 = vmul.f32 %v332, %v277
    %v334 = vmul.f32 %v332, %v292
    %v335 = vadd.f32 %v329, %v333
    %v336 = vadd.f32 %v330, %v334
    %s337 = sld [smem:[#allocation3 + $0x100]]
    %v338 = vstv %s337
    %v339 = vmul.f32 %v338, %v187
    %v340 = vmul.f32 %v338, %v202
    %s341 = sld [smem:[#allocation3 + $0x101]]
    %v342 = vstv %s341
    %v343 = vmul.f32 %v342, %v217
    %v344 = vmul.f32 %v342, %v232
    %v345 = vadd.f32 %v339, %v343
    %v346 = vadd.f32 %v340, %v344
    %s347 = sld [smem:[#allocation3 + $0x102]]
    %v348 = vstv %s347
    %v349 = vmul.f32 %v348, %v247
    %v350 = vmul.f32 %v348, %v262
    %v351 = vadd.f32 %v345, %v349
    %v352 = vadd.f32 %v346, %v350
    %s353 = sld [smem:[#allocation3 + $0x103]]
    %v354 = vstv %s353
    %v355 = vmul.f32 %v354, %v277
    %v356 = vmul.f32 %v354, %v292
    %v357 = vadd.f32 %v351, %v355
    %v358 = vadd.f32 %v352, %v356
    %s359 = sld [smem:[#allocation3 + $0x180]]
    %v360 = vstv %s359
    %v361 = vmul.f32 %v360, %v187
    %v362 = vmul.f32 %v360, %v202
    %s363 = sld [smem:[#allocation3 + $0x181]]
    %v364 = vstv %s363
    %v365 = vmul.f32 %v364, %v217
    %v366 = vmul.f32 %v364, %v232
    %v367 = vadd.f32 %v361, %v365
    %v368 = vadd.f32 %v362, %v366
    %s369 = sld [smem:[#allocation3 + $0x182]]
    %v370 = vstv %s369
    %v371 = vmul.f32 %v370, %v247
    %v372 = vmul.f32 %v370, %v262
    %v373 = vadd.f32 %v367, %v371
    %v374 = vadd.f32 %v368, %v372
    %s375 = sld [smem:[#allocation3 + $0x183]]
    %v376 = vstv %s375
    %v377 = vmul.f32 %v376, %v277
    %v378 = vmul.f32 %v376, %v292
    %v379 = vadd.f32 %v373, %v377
    %v380 = vadd.f32 %v374, %v378
    %s381 = sld [smem:[#allocation3 + $0x200]]
    %v382 = vstv %s381
    %v383 = vmul.f32 %v382, %v187
    %v384 = vmul.f32 %v382, %v202
    %s385 = sld [smem:[#allocation3 + $0x201]]
    %v386 = vstv %s385
    %v387 = vmul.f32 %v386, %v217
    %v388 = vmul.f32 %v386, %v232
    %v389 = vadd.f32 %v383, %v387
    %v390 = vadd.f32 %v384, %v388
    %s391 = sld [smem:[#allocation3 + $0x202]]
    %v392 = vstv %s391
    %v393 = vmul.f32 %v392, %v247
    %v394 = vmul.f32 %v392, %v262
    %v395 = vadd.f32 %v389, %v393
    %v396 = vadd.f32 %v390, %v394
    %s397 = sld [smem:[#allocation3 + $0x203]]
    %v398 = vstv %s397
    %v399 = vmul.f32 %v398, %v277
    %v400 = vmul.f32 %v398, %v292
    %v401 = vadd.f32 %v395, %v399
    %v402 = vadd.f32 %v396, %v400
    %s403 = sld [smem:[#allocation3 + $0x280]]
    %v404 = vstv %s403
    %v405 = vmul.f32 %v404, %v187
    %v406 = vmul.f32 %v404, %v202
    %s407 = sld [smem:[#allocation3 + $0x281]]
    %v408 = vstv %s407
    %v409 = vmul.f32 %v408, %v217
    %v410 = vmul.f32 %v408, %v232
    %v411 = vadd.f32 %v405, %v409
    %v412 = vadd.f32 %v406, %v410
    %s413 = sld [smem:[#allocation3 + $0x282]]
    %v414 = vstv %s413
    %v415 = vmul.f32 %v414, %v247
    %v416 = vmul.f32 %v414, %v262
    %v417 = vadd.f32 %v411, %v415
    %v418 = vadd.f32 %v412, %v416
    %s419 = sld [smem:[#allocation3 + $0x283]]
    %v420 = vstv %s419
    %v421 = vmul.f32 %v420, %v277
    %v422 = vmul.f32 %v420, %v292
    %v423 = vadd.f32 %v417, %v421
    %v424 = vadd.f32 %v418, %v422
    %s425 = sld [smem:[#allocation3 + $0x300]]
    %v426 = vstv %s425
    %v427 = vmul.f32 %v426, %v187
    %v428 = vmul.f32 %v426, %v202
    %s429 = sld [smem:[#allocation3 + $0x301]]
    %v430 = vstv %s429
    %v431 = vmul.f32 %v430, %v217
    %v432 = vmul.f32 %v430, %v232
    %v433 = vadd.f32 %v427, %v431
    %v434 = vadd.f32 %v428, %v432
    %s435 = sld [smem:[#allocation3 + $0x302]]
    %v436 = vstv %s435
    %v437 = vmul.f32 %v436, %v247
    %v438 = vmul.f32 %v436, %v262
    %v439 = vadd.f32 %v433, %v437
    %v440 = vadd.f32 %v434, %v438
    %s441 = sld [smem:[#allocation3 + $0x303]]
    %v442 = vstv %s441
    %v443 = vmul.f32 %v442, %v277
    %v444 = vmul.f32 %v442, %v292
    %v445 = vadd.f32 %v439, %v443
    %v446 = vadd.f32 %v440, %v444
    %s447 = sld [smem:[#allocation3 + $0x380]]
    %v448 = vstv %s447
    %v449 = vmul.f32 %v448, %v187
    %v450 = vmul.f32 %v448, %v202
    %s451 = sld [smem:[#allocation3 + $0x381]]
    %v452 = vstv %s451
    %v453 = vmul.f32 %v452, %v217
    %v454 = vmul.f32 %v452, %v232
    %v455 = vadd.f32 %v449, %v453
    %v456 = vadd.f32 %v450, %v454
    %s457 = sld [smem:[#allocation3 + $0x382]]
    %v458 = vstv %s457
    %v459 = vmul.f32 %v458, %v247
    %v460 = vmul.f32 %v458, %v262
    %v461 = vadd.f32 %v455, %v459
    %v462 = vadd.f32 %v456, %v460
    %s463 = sld [smem:[#allocation3 + $0x383]]
    %v464 = vstv %s463
    %v465 = vmul.f32 %v464, %v277
    %v466 = vmul.f32 %v464, %v292
    %v467 = vadd.f32 %v461, %v465
    %v468 = vadd.f32 %v462, %v466
    %s469 = sld [smem:[#allocation5]]
    %v470 = vstv %s469
    %v471 = vmul.f32 %v470, %v187
    %v472 = vmul.f32 %v470, %v202
    %s473 = sld [smem:[#allocation5 + $0x1]]
    %v474 = vstv %s473
    %v475 = vmul.f32 %v474, %v217
    %v476 = vmul.f32 %v474, %v232
    %v477 = vadd.f32 %v471, %v475
    %v478 = vadd.f32 %v472, %v476
    %s479 = sld [smem:[#allocation5 + $0x2]]
    %v480 = vstv %s479
    %v481 = vmul.f32 %v480, %v247
    %v482 = vmul.f32 %v480, %v262
    %v483 = vadd.f32 %v477, %v481
    %v484 = vadd.f32 %v478, %v482
    %s485 = sld [smem:[#allocation5 + $0x3]]
    %v486 = vstv %s485
    %v487 = vmul.f32 %v486, %v277
    %v488 = vmul.f32 %v486, %v292
    %v489 = vadd.f32 %v483, %v487
    %v490 = vadd.f32 %v484, %v488
    %s491 = sld [smem:[#allocation5 + $0x80]]
    %v492 = vstv %s491
    %v493 = vmul.f32 %v492, %v187
    %v494 = vmul.f32 %v492, %v202
    %s495 = sld [smem:[#allocation5 + $0x81]]
    %v496 = vstv %s495
    %v497 = vmul.f32 %v496, %v217
    %v498 = vmul.f32 %v496, %v232
    %v499 = vadd.f32 %v493, %v497
    %v500 = vadd.f32 %v494, %v498
    %s501 = sld [smem:[#allocation5 + $0x82]]
    %v502 = vstv %s501
    %v503 = vmul.f32 %v502, %v247
    %v504 = vmul.f32 %v502, %v262
    %v505 = vadd.f32 %v499, %v503
    %v506 = vadd.f32 %v500, %v504
    %s507 = sld [smem:[#allocation5 + $0x83]]
    %v508 = vstv %s507
    %v509 = vmul.f32 %v508, %v277
    %v510 = vmul.f32 %v508, %v292
    %v511 = vadd.f32 %v505, %v509
    %v512 = vadd.f32 %v506, %v510
    %s513 = sld [smem:[#allocation5 + $0x100]]
    %v514 = vstv %s513
    %v515 = vmul.f32 %v514, %v187
    %v516 = vmul.f32 %v514, %v202
    %s517 = sld [smem:[#allocation5 + $0x101]]
    %v518 = vstv %s517
    %v519 = vmul.f32 %v518, %v217
    %v520 = vmul.f32 %v518, %v232
    %v521 = vadd.f32 %v515, %v519
    %v522 = vadd.f32 %v516, %v520
    %s523 = sld [smem:[#allocation5 + $0x102]]
    %v524 = vstv %s523
    %v525 = vmul.f32 %v524, %v247
    %v526 = vmul.f32 %v524, %v262
    %v527 = vadd.f32 %v521, %v525
    %v528 = vadd.f32 %v522, %v526
    %s529 = sld [smem:[#allocation5 + $0x103]]
    %v530 = vstv %s529
    %v531 = vmul.f32 %v530, %v277
    %v532 = vmul.f32 %v530, %v292
    %v533 = vadd.f32 %v527, %v531
    %v534 = vadd.f32 %v528, %v532
    %s535 = sld [smem:[#allocation5 + $0x180]]
    %v536 = vstv %s535
    %v537 = vmul.f32 %v536, %v187
    %v538 = vmul.f32 %v536, %v202
    %s539 = sld [smem:[#allocation5 + $0x181]]
    %v540 = vstv %s539
    %v541 = vmul.f32 %v540, %v217
    %v542 = vmul.f32 %v540, %v232
    %v543 = vadd.f32 %v537, %v541
    %v544 = vadd.f32 %v538, %v542
    %s545 = sld [smem:[#allocation5 + $0x182]]
    %v546 = vstv %s545
    %v547 = vmul.f32 %v546, %v247
    %v548 = vmul.f32 %v546, %v262
    %v549 = vadd.f32 %v543, %v547
    %v550 = vadd.f32 %v544, %v548
    %s551 = sld [smem:[#allocation5 + $0x183]]
    %v552 = vstv %s551
    %v553 = vmul.f32 %v552, %v277
    %v554 = vmul.f32 %v552, %v292
    %v555 = vadd.f32 %v549, %v553
    %v556 = vadd.f32 %v550, %v554
    %s557 = sld [smem:[#allocation5 + $0x200]]
    %v558 = vstv %s557
    %v559 = vmul.f32 %v558, %v187
    %v560 = vmul.f32 %v558, %v202
    %s561 = sld [smem:[#allocation5 + $0x201]]
    %v562 = vstv %s561
    %v563 = vmul.f32 %v562, %v217
    %v564 = vmul.f32 %v562, %v232
    %v565 = vadd.f32 %v559, %v563
    %v566 = vadd.f32 %v560, %v564
    %s567 = sld [smem:[#allocation5 + $0x202]]
    %v568 = vstv %s567
    %v569 = vmul.f32 %v568, %v247
    %v570 = vmul.f32 %v568, %v262
    %v571 = vadd.f32 %v565, %v569
    %v572 = vadd.f32 %v566, %v570
    %s573 = sld [smem:[#allocation5 + $0x203]]
    %v574 = vstv %s573
    %v575 = vmul.f32 %v574, %v277
    %v576 = vmul.f32 %v574, %v292
    %v577 = vadd.f32 %v571, %v575
    %v578 = vadd.f32 %v572, %v576
    %s579 = sld [smem:[#allocation5 + $0x280]]
    %v580 = vstv %s579
    %v581 = vmul.f32 %v580, %v187
    %v582 = vmul.f32 %v580, %v202
    %s583 = sld [smem:[#allocation5 + $0x281]]
    %v584 = vstv %s583
    %v585 = vmul.f32 %v584, %v217
    %v586 = vmul.f32 %v584, %v232
    %v587 = vadd.f32 %v581, %v585
    %v588 = vadd.f32 %v582, %v586
    %s589 = sld [smem:[#allocation5 + $0x282]]
    %v590 = vstv %s589
    %v591 = vmul.f32 %v590, %v247
    %v592 = vmul.f32 %v590, %v262
    %v593 = vadd.f32 %v587, %v591
    %v594 = vadd.f32 %v588, %v592
    %s595 = sld [smem:[#allocation5 + $0x283]]
    %v596 = vstv %s595
    %v597 = vmul.f32 %v596, %v277
    %v598 = vmul.f32 %v596, %v292
    %v599 = vadd.f32 %v593, %v597
    %v600 = vadd.f32 %v594, %v598
    %s601 = sld [smem:[#allocation5 + $0x300]]
    %v602 = vstv %s601
    %v603 = vmul.f32 %v602, %v187
    %v604 = vmul.f32 %v602, %v202
    %s605 = sld [smem:[#allocation5 + $0x301]]
    %v606 = vstv %s605
    %v607 = vmul.f32 %v606, %v217
    %v608 = vmul.f32 %v606, %v232
    %v609 = vadd.f32 %v603, %v607
    %v610 = vadd.f32 %v604, %v608
    %s611 = sld [smem:[#allocation5 + $0x302]]
    %v612 = vstv %s611
    %v613 = vmul.f32 %v612, %v247
    %v614 = vmul.f32 %v612, %v262
    %v615 = vadd.f32 %v609, %v613
    %v616 = vadd.f32 %v610, %v614
    %s617 = sld [smem:[#allocation5 + $0x303]]
    %v618 = vstv %s617
    %v619 = vmul.f32 %v618, %v277
    %v620 = vmul.f32 %v618, %v292
    %v621 = vadd.f32 %v615, %v619
    %v622 = vadd.f32 %v616, %v620
    %s623 = sld [smem:[#allocation5 + $0x380]]
    %v624 = vstv %s623
    %v625 = vmul.f32 %v624, %v187
    %v626 = vmul.f32 %v624, %v202
    %s627 = sld [smem:[#allocation5 + $0x381]]
    %v628 = vstv %s627
    %v629 = vmul.f32 %v628, %v217
    %v630 = vmul.f32 %v628, %v232
    %v631 = vadd.f32 %v625, %v629
    %v632 = vadd.f32 %v626, %v630
    %s633 = sld [smem:[#allocation5 + $0x382]]
    %v634 = vstv %s633
    %v635 = vmul.f32 %v634, %v247
    %v636 = vmul.f32 %v634, %v262
    %v637 = vadd.f32 %v631, %v635
    %v638 = vadd.f32 %v632, %v636
    %s639 = sld [smem:[#allocation5 + $0x383]]
    %v640 = vstv %s639
    %v641 = vmul.f32 %v640, %v277
    %v642 = vmul.f32 %v640, %v292
    %v643 = vadd.f32 %v637, %v641
    %v644 = vadd.f32 %v638, %v642
    %s645 = sld [smem:[#allocation7]]
    %v646 = vstv %s645
    %v647 = vmul.f32 %v646, %v187
    %v648 = vmul.f32 %v646, %v202
    %s649 = sld [smem:[#allocation7 + $0x1]]
    %v650 = vstv %s649
    %v651 = vmul.f32 %v650, %v217
    %v652 = vmul.f32 %v650, %v232
    %v653 = vadd.f32 %v647, %v651
    %v654 = vadd.f32 %v648, %v652
    %s655 = sld [smem:[#allocation7 + $0x2]]
    %v656 = vstv %s655
    %v657 = vmul.f32 %v656, %v247
    %v658 = vmul.f32 %v656, %v262
    %v659 = vadd.f32 %v653, %v657
    %v660 = vadd.f32 %v654, %v658
    %s661 = sld [smem:[#allocation7 + $0x3]]
    %v662 = vstv %s661
    %v663 = vmul.f32 %v662, %v277
    %v664 = vmul.f32 %v662, %v292
    %v665 = vadd.f32 %v659, %v663
    %v666 = vadd.f32 %v660, %v664
    %s667 = sld [smem:[#allocation7 + $0x80]]
    %v668 = vstv %s667
    %v669 = vmul.f32 %v668, %v187
    %v670 = vmul.f32 %v668, %v202
    %s671 = sld [smem:[#allocation7 + $0x81]]
    %v672 = vstv %s671
    %v673 = vmul.f32 %v672, %v217
    %v674 = vmul.f32 %v672, %v232
    %v675 = vadd.f32 %v669, %v673
    %v676 = vadd.f32 %v670, %v674
    %s677 = sld [smem:[#allocation7 + $0x82]]
    %v678 = vstv %s677
    %v679 = vmul.f32 %v678, %v247
    %v680 = vmul.f32 %v678, %v262
    %v681 = vadd.f32 %v675, %v679
    %v682 = vadd.f32 %v676, %v680
    %s683 = sld [smem:[#allocation7 + $0x83]]
    %v684 = vstv %s683
    %v685 = vmul.f32 %v684, %v277
    %v686 = vmul.f32 %v684, %v292
    %v687 = vadd.f32 %v681, %v685
    %v688 = vadd.f32 %v682, %v686
    %s689 = sld [smem:[#allocation7 + $0x100]]
    %v690 = vstv %s689
    %v691 = vmul.f32 %v690, %v187
    %v692 = vmul.f32 %v690, %v202
    %s693 = sld [smem:[#allocation7 + $0x101]]
    %v694 = vstv %s693
    %v695 = vmul.f32 %v694, %v217
    %v696 = vmul.f32 %v694, %v232
    %v697 = vadd.f32 %v691, %v695
    %v698 = vadd.f32 %v692, %v696
    %s699 = sld [smem:[#allocation7 + $0x102]]
    %v700 = vstv %s699
    %v701 = vmul.f32 %v700, %v247
    %v702 = vmul.f32 %v700, %v262
    %v703 = vadd.f32 %v697, %v701
    %v704 = vadd.f32 %v698, %v702
    %s705 = sld [smem:[#allocation7 + $0x103]]
    %v706 = vstv %s705
    %v707 = vmul.f32 %v706, %v277
    %v708 = vmul.f32 %v706, %v292
    %v709 = vadd.f32 %v703, %v707
    %v710 = vadd.f32 %v704, %v708
    %s711 = sld [smem:[#allocation7 + $0x180]]
    %v712 = vstv %s711
    %v713 = vmul.f32 %v712, %v187
    %v714 = vmul.f32 %v712, %v202
    %s715 = sld [smem:[#allocation7 + $0x181]]
    %v716 = vstv %s715
    %v717 = vmul.f32 %v716, %v217
    %v718 = vmul.f32 %v716, %v232
    %v719 = vadd.f32 %v713, %v717
    %v720 = vadd.f32 %v714, %v718
    %s721 = sld [smem:[#allocation7 + $0x182]]
    %v722 = vstv %s721
    %v723 = vmul.f32 %v722, %v247
    %v724 = vmul.f32 %v722, %v262
    %v725 = vadd.f32 %v719, %v723
    %v726 = vadd.f32 %v720, %v724
    %s727 = sld [smem:[#allocation7 + $0x183]]
    %v728 = vstv %s727
    %v729 = vmul.f32 %v728, %v277
    %v730 = vmul.f32 %v728, %v292
    %v731 = vadd.f32 %v725, %v729
    %v732 = vadd.f32 %v726, %v730
    %s733 = sld [smem:[#allocation8]]
    %v734 = vstv %s733
    %v735 = vmul.f32 %v734, %v665
    %v736 = vmul.f32 %v734, %v666
    %s737 = sld [smem:[#allocation8 + $0x1]]
    %v738 = vstv %s737
    %v739 = vmul.f32 %v738, %v687
    %v740 = vmul.f32 %v738, %v688
    %v741 = vadd.f32 %v735, %v739
    %v742 = vadd.f32 %v736, %v740
    %s743 = sld [smem:[#allocation8 + $0x2]]
    %v744 = vstv %s743
    %v745 = vmul.f32 %v744, %v709
    %v746 = vmul.f32 %v744, %v710
    %v747 = vadd.f32 %v741, %v745
    %v748 = vadd.f32 %v742, %v746
    %s749 = sld [smem:[#allocation8 + $0x3]]
    %v750 = vstv %s749
    %v751 = vmul.f32 %v750, %v731
    %v752 = vmul.f32 %v750, %v732
    %v753 = vadd.f32 %v747, %v751
    %v754 = vadd.f32 %v748, %v752
    %s755 = sld [smem:[#allocation8 + $0x80]]
    %v756 = vstv %s755
    %v757 = vmul.f32 %v756, %v665
    %v758 = vmul.f32 %v756, %v666
    %s759 = sld [smem:[#allocation8 + $0x81]]
    %v760 = vstv %s759
    %v761 = vmul.f32 %v760, %v687
    %v762 = vmul.f32 %v760, %v688
    %v763 = vadd.f32 %v757, %v761
    %v764 = vadd.f32 %v758, %v762
    %s765 = sld [smem:[#allocation8 + $0x82]]
    %v766 = vstv %s765
    %v767 = vmul.f32 %v766, %v709
    %v768 = vmul.f32 %v766, %v710
    %v769 = vadd.f32 %v763, %v767
    %v770 = vadd.f32 %v764, %v768
    %s771 = sld [smem:[#allocation8 + $0x83]]
    %v772 = vstv %s771
    %v773 = vmul.f32 %v772, %v731
    %v774 = vmul.f32 %v772, %v732
    %v775 = vadd.f32 %v769, %v773
    %v776 = vadd.f32 %v770, %v774
    %s777 = sld [smem:[#allocation8 + $0x100]]
    %v778 = vstv %s777
    %v779 = vmul.f32 %v778, %v665
    %v780 = vmul.f32 %v778, %v666
    %s781 = sld [smem:[#allocation8 + $0x101]]
    %v782 = vstv %s781
    %v783 = vmul.f32 %v782, %v687
    %v784 = vmul.f32 %v782, %v688
    %v785 = vadd.f32 %v779, %v783
    %v786 = vadd.f32 %v780, %v784
    %s787 = sld [smem:[#allocation8 + $0x102]]
    %v788 = vstv %s787
    %v789 = vmul.f32 %v788, %v709
    %v790 = vmul.f32 %v788, %v710
    %v791 = vadd.f32 %v785, %v789
    %v792 = vadd.f32 %v786, %v790
    %s793 = sld [smem:[#allocation8 + $0x103]]
    %v794 = vstv %s793
    %v795 = vmul.f32 %v794, %v731
    %v796 = vmul.f32 %v794, %v732
    %v797 = vadd.f32 %v791, %v795
    %v798 = vadd.f32 %v792, %v796
    %s799 = sld [smem:[#allocation8 + $0x180]]
    %v800 = vstv %s799
    %v801 = vmul.f32 %v800, %v665
    %v802 = vmul.f32 %v800, %v666
    %s803 = sld [smem:[#allocation8 + $0x181]]
    %v804 = vstv %s803
    %v805 = vmul.f32 %v804, %v687
    %v806 = vmul.f32 %v804, %v688
    %v807 = vadd.f32 %v801, %v805
    %v808 = vadd.f32 %v802, %v806
    %s809 = sld [smem:[#allocation8 + $0x182]]
    %v810 = vstv %s809
    %v811 = vmul.f32 %v810, %v709
    %v812 = vmul.f32 %v810, %v710
    %v813 = vadd.f32 %v807, %v811
    %v814 = vadd.f32 %v808, %v812
    %s815 = sld [smem:[#allocation8 + $0x183]]
    %v816 = vstv %s815
    %v817 = vmul.f32 %v816, %v731
    %v818 = vmul.f32 %v816, %v732
    %v819 = vadd.f32 %v813, %v817
    %v820 = vadd.f32 %v814, %v818
    %s821 = sld [smem:[#allocation8 + $0x200]]
    %v822 = vstv %s821
    %v823 = vmul.f32 %v822, %v665
    %v824 = vmul.f32 %v822, %v666
    %s825 = sld [smem:[#allocation8 + $0x201]]
    %v826 = vstv %s825
    %v827 = vmul.f32 %v826, %v687
    %v828 = vmul.f32 %v826, %v688
    %v829 = vadd.f32 %v823, %v827
    %v830 = vadd.f32 %v824, %v828
    %s831 = sld [smem:[#allocation8 + $0x202]]
    %v832 = vstv %s831
    %v833 = vmul.f32 %v832, %v709
    %v834 = vmul.f32 %v832, %v710
    %v835 = vadd.f32 %v829, %v833
    %v836 = vadd.f32 %v830, %v834
    %s837 = sld [smem:[#allocation8 + $0x203]]
    %v838 = vstv %s837
    %v839 = vmul.f32 %v838, %v731
    %v840 = vmul.f32 %v838, %v732
    %v841 = vadd.f32 %v835, %v839
    %v842 = vadd.f32 %v836, %v840
    %s843 = sld [smem:[#allocation8 + $0x280]]
    %v844 = vstv %s843
    %v845 = vmul.f32 %v844, %v665
    %v846 = vmul.f32 %v844, %v666
    %s847 = sld [smem:[#allocation8 + $0x281]]
    %v848 = vstv %s847
    %v849 = vmul.f32 %v848, %v687
    %v850 = vmul.f32 %v848, %v688
    %v851 = vadd.f32 %v845, %v849
    %v852 = vadd.f32 %v846, %v850
    %s853 = sld [smem:[#allocation8 + $0x282]]
    %v854 = vstv %s853
    %v855 = vmul.f32 %v854, %v709
    %v856 = vmul.f32 %v854, %v710
    %v857 = vadd.f32 %v851, %v855
    %v858 = vadd.f32 %v852, %v856
    %s859 = sld [smem:[#allocation8 + $0x283]]
    %v860 = vstv %s859
    %v861 = vmul.f32 %v860, %v731
    %v862 = vmul.f32 %v860, %v732
    %v863 = vadd.f32 %v857, %v861
    %v864 = vadd.f32 %v858, %v862
    %s865 = sld [smem:[#allocation8 + $0x300]]
    %v866 = vstv %s865
    %v867 = vmul.f32 %v866, %v665
    %v868 = vmul.f32 %v866, %v666
    %s869 = sld [smem:[#allocation8 + $0x301]]
    %v870 = vstv %s869
    %v871 = vmul.f32 %v870, %v687
    %v872 = vmul.f32 %v870, %v688
    %v873 = vadd.f32 %v867, %v871
    %v874 = vadd.f32 %v868, %v872
    %s875 = sld [smem:[#allocation8 + $0x302]]
    %v876 = vstv %s875
    %v877 = vmul.f32 %v876, %v709
    %v878 = vmul.f32 %v876, %v710
    %v879 = vadd.f32 %v873, %v877
    %v880 = vadd.f32 %v874, %v878
    %s881 = sld [smem:[#allocation8 + $0x303]]
    %v882 = vstv %s881
    %v883 = vmul.f32 %v882, %v731
    %v884 = vmul.f32 %v882, %v732
    %v885 = vadd.f32 %v879, %v883
    %v886 = vadd.f32 %v880, %v884
    %s887 = sld [smem:[#allocation8 + $0x380]]
    %v888 = vstv %s887
    %v889 = vmul.f32 %v888, %v665
    %v890 = vmul.f32 %v888, %v666
    %s891 = sld [smem:[#allocation8 + $0x381]]
    %v892 = vstv %s891
    %v893 = vmul.f32 %v892, %v687
    %v894 = vmul.f32 %v892, %v688
    %v895 = vadd.f32 %v889, %v893
    %v896 = vadd.f32 %v890, %v894
    %s897 = sld [smem:[#allocation8 + $0x382]]
    %v898 = vstv %s897
    %v899 = vmul.f32 %v898, %v709
    %v900 = vmul.f32 %v898, %v710
    %v901 = vadd.f32 %v895, %v899
    %v902 = vadd.f32 %v896, %v900
    %s903 = sld [smem:[#allocation8 + $0x383]]
    %v904 = vstv %s903
    %v905 = vmul.f32 %v904, %v731
    %v906 = vmul.f32 %v904, %v732
    %v907 = vadd.f32 %v901, %v905
    %v908 = vadd.f32 %v902, %v906
    %v909 = vadd.f32 %v489, %v753
    %v910 = vadd.f32 %v490, %v754
    %v911 = vadd.f32 %v511, %v775
    %v912 = vadd.f32 %v512, %v776
    %v913 = vadd.f32 %v533, %v797
    %v914 = vadd.f32 %v534, %v798
    %v915 = vadd.f32 %v555, %v819
    %v916 = vadd.f32 %v556, %v820
    %v917 = vadd.f32 %v577, %v841
    %v918 = vadd.f32 %v578, %v842
    %v919 = vadd.f32 %v599, %v863
    %v920 = vadd.f32 %v600, %v864
    %v921 = vadd.f32 %v621, %v885
    %v922 = vadd.f32 %v622, %v886
    %v923 = vadd.f32 %v643, %v907
    %v924 = vadd.f32 %v644, %v908
    %v925 = vmin.f32 %v909, 20.0
    %v926 = vmin.f32 %v910, 20.0
    %v927 = vmin.f32 %v911, 20.0
    %v928 = vmin.f32 %v912, 20.0
    %v929 = vmin.f32 %v913, 20.0
    %v930 = vmin.f32 %v914, 20.0
    %v931 = vmin.f32 %v915, 20.0
    %v932 = vmin.f32 %v916, 20.0
    %v933 = vmin.f32 %v917, 20.0
    %v934 = vmin.f32 %v918, 20.0
    %v935 = vmin.f32 %v919, 20.0
    %v936 = vmin.f32 %v920, 20.0
    %v937 = vmin.f32 %v921, 20.0
    %v938 = vmin.f32 %v922, 20.0
    %v939 = vmin.f32 %v923, 20.0
    %v940 = vmin.f32 %v924, 20.0
    %v941 = vmul.f32 %v925, 1.442695
    %v942 = vpow.pop %v941
    %v943 = vmul.f32 %v926, 1.442695
    %v944 = vpow.pop %v943
    %v945 = vmul.f32 %v927, 1.442695
    %v946 = vpow.pop %v945
    %v947 = vmul.f32 %v928, 1.442695
    %v948 = vpow.pop %v947
    %v949 = vmul.f32 %v929, 1.442695
    %v950 = vpow.pop %v949
    %v951 = vmul.f32 %v930, 1.442695
    %v952 = vpow.pop %v951
    %v953 = vmul.f32 %v931, 1.442695
    %v954 = vpow.pop %v953
    %v955 = vmul.f32 %v932, 1.442695
    %v956 = vpow.pop %v955
    %v957 = vmul.f32 %v933, 1.442695
    %v958 = vpow.pop %v957
    %v959 = vmul.f32 %v934, 1.442695
    %v960 = vpow.pop %v959
    %v961 = vmul.f32 %v935, 1.442695
    %v962 = vpow.pop %v961
    %v963 = vmul.f32 %v936, 1.442695
    %v964 = vpow.pop %v963
    %v965 = vmul.f32 %v937, 1.442695
    %v966 = vpow.pop %v965
    %v967 = vmul.f32 %v938, 1.442695
    %v968 = vpow.pop %v967
    %v969 = vmul.f32 %v939, 1.442695
    %v970 = vpow.pop %v969
    %v971 = vmul.f32 %v940, 1.442695
    %v972 = vpow.pop %v971
    %v973 = vadd.f32 %v942, 1.0
    %v974 = vadd.f32 %v944, 1.0
    %v975 = vadd.f32 %v946, 1.0
    %v976 = vadd.f32 %v948, 1.0
    %v977 = vadd.f32 %v950, 1.0
    %v978 = vadd.f32 %v952, 1.0
    %v979 = vadd.f32 %v954, 1.0
    %v980 = vadd.f32 %v956, 1.0
    %v981 = vadd.f32 %v958, 1.0
    %v982 = vadd.f32 %v960, 1.0
    %v983 = vadd.f32 %v962, 1.0
    %v984 = vadd.f32 %v964, 1.0
    %v985 = vadd.f32 %v966, 1.0
    %v986 = vadd.f32 %v968, 1.0
    %v987 = vadd.f32 %v970, 1.0
    %v988 = vadd.f32 %v972, 1.0
    %v989 = vmul.f32 %v973, %v973
    %v990 = vmul.f32 %v974, %v974
    %v991 = vmul.f32 %v975, %v975
    %v992 = vmul.f32 %v976, %v976
    %v993 = vmul.f32 %v977, %v977
    %v994 = vmul.f32 %v978, %v978
    %v995 = vmul.f32 %v979, %v979
    %v996 = vmul.f32 %v980, %v980
    %v997 = vmul.f32 %v981, %v981
    %v998 = vmul.f32 %v982, %v982
    %v999 = vmul.f32 %v983, %v983
    %v1000 = vmul.f32 %v984, %v984
    %v1001 = vmul.f32 %v985, %v985
    %v1002 = vmul.f32 %v986, %v986
    %v1003 = vmul.f32 %v987, %v987
    %v1004 = vmul.f32 %v988, %v988
    %v1005 = vsub.f32 %v989, 1.0
    %v1006 = vsub.f32 %v990, 1.0
    %v1007 = vsub.f32 %v991, 1.0
    %v1008 = vsub.f32 %v992, 1.0
    %v1009 = vsub.f32 %v993, 1.0
    %v1010 = vsub.f32 %v994, 1.0
    %v1011 = vsub.f32 %v995, 1.0
    %v1012 = vsub.f32 %v996, 1.0
    %v1013 = vsub.f32 %v997, 1.0
    %v1014 = vsub.f32 %v998, 1.0
    %v1015 = vsub.f32 %v999, 1.0
    %v1016 = vsub.f32 %v1000, 1.0
    %v1017 = vsub.f32 %v1001, 1.0
    %v1018 = vsub.f32 %v1002, 1.0
    %v1019 = vsub.f32 %v1003, 1.0
    %v1020 = vsub.f32 %v1004, 1.0
    %v1021 = vmul.f32 %v909, %v1005
    %v1022 = vmul.f32 %v910, %v1006
    %v1023 = vmul.f32 %v911, %v1007
    %v1024 = vmul.f32 %v912, %v1008
    %v1025 = vmul.f32 %v913, %v1009
    %v1026 = vmul.f32 %v914, %v1010
    %v1027 = vmul.f32 %v915, %v1011
    %v1028 = vmul.f32 %v916, %v1012
    %v1029 = vmul.f32 %v917, %v1013
    %v1030 = vmul.f32 %v918, %v1014
    %v1031 = vmul.f32 %v919, %v1015
    %v1032 = vmul.f32 %v920, %v1016
    %v1033 = vmul.f32 %v921, %v1017
    %v1034 = vmul.f32 %v922, %v1018
    %v1035 = vmul.f32 %v923, %v1019
    %v1036 = vmul.f32 %v924, %v1020
    %v1037 = vadd.f32 %v989, 1.0
    %v1038 = vadd.f32 %v990, 1.0
    %v1039 = vadd.f32 %v991, 1.0
    %v1040 = vadd.f32 %v992, 1.0
    %v1041 = vadd.f32 %v993, 1.0
    %v1042 = vadd.f32 %v994, 1.0
    %v1043 = vadd.f32 %v995, 1.0
    %v1044 = vadd.f32 %v996, 1.0
    %v1045 = vadd.f32 %v997, 1.0
    %v1046 = vadd.f32 %v998, 1.0
    %v1047 = vadd.f32 %v999, 1.0
    %v1048 = vadd.f32 %v1000, 1.0
    %v1049 = vadd.f32 %v1001, 1.0
    %v1050 = vadd.f32 %v1002, 1.0
    %v1051 = vadd.f32 %v1003, 1.0
    %v1052 = vadd.f32 %v1004, 1.0
    %v1053 = vrcp.pop %v1037
    %v1054 = vmul.f32 %v1037, %v1053
    %v1055 = vsub.f32 1.0, %v1054
    %v1056 = vmul.f32 %v1053, %v1055
    %v1057 = vadd.f32 %v1053, %v1056
    %vm1058 = vweird.f32 %v1037
    %vm1059 = vweird.f32 %v1053
    %vm1060 = vmor %vm1058, %vm1059
    %v1061 = vsel %vm1060, %v1053, %v1057
    %v1062 = vand.u32 2147483647, %v1037
    %vm1063 = vcmp.eq.f32.partialorder %v1062, 8.507059e+37
    %v1064 = vand.u32 %v1037, 2147483648
    %v1065 = vor.u32 1.1754944e-38, %v1064
    %v1066 = vsel %vm1063, %v1065, %v1061
    %v1067 = vmul.f32 %v1021, %v1066
    %v1068 = vrcp.pop %v1038
    %v1069 = vmul.f32 %v1038, %v1068
    %v1070 = vsub.f32 1.0, %v1069
    %v1071 = vmul.f32 %v1068, %v1070
    %v1072 = vadd.f32 %v1068, %v1071
    %vm1073 = vweird.f32 %v1038
    %vm1074 = vweird.f32 %v1068
    %vm1075 = vmor %vm1073, %vm1074
    %v1076 = vsel %vm1075, %v1068, %v1072
    %v1077 = vand.u32 2147483647, %v1038
    %vm1078 = vcmp.eq.f32.partialorder %v1077, 8.507059e+37
    %v1079 = vand.u32 %v1038, 2147483648
    %v1080 = vor.u32 1.1754944e-38, %v1079
    %v1081 = vsel %vm1078, %v1080, %v1076
    %v1082 = vmul.f32 %v1022, %v1081
    %v1083 = vrcp.pop %v1039
    %v1084 = vmul.f32 %v1039, %v1083
    %v1085 = vsub.f32 1.0, %v1084
    %v1086 = vmul.f32 %v1083, %v1085
    %v1087 = vadd.f32 %v1083, %v1086
    %vm1088 = vweird.f32 %v1039
    %vm1089 = vweird.f32 %v1083
    %vm1090 = vmor %vm1088, %vm1089
    %v1091 = vsel %vm1090, %v1083, %v1087
    %v1092 = vand.u32 2147483647, %v1039
    %vm1093 = vcmp.eq.f32.partialorder %v1092, 8.507059e+37
    %v1094 = vand.u32 %v1039, 2147483648
    %v1095 = vor.u32 1.1754944e-38, %v1094
    %v1096 = vsel %vm1093, %v1095, %v1091
    %v1097 = vmul.f32 %v1023, %v1096
    %v1098 = vrcp.pop %v1040
    %v1099 = vmul.f32 %v1040, %v1098
    %v1100 = vsub.f32 1.0, %v1099
    %v1101 = vmul.f32 %v1098, %v1100
    %v1102 = vadd.f32 %v1098, %v1101
    %vm1103 = vweird.f32 %v1040
    %vm1104 = vweird.f32 %v1098
    %vm1105 = vmor %vm1103, %vm1104
    %v1106 = vsel %vm1105, %v1098, %v1102
    %v1107 = vand.u32 2147483647, %v1040
    %vm1108 = vcmp.eq.f32.partialorder %v1107, 8.507059e+37
    %v1109 = vand.u32 %v1040, 2147483648
    %v1110 = vor.u32 1.1754944e-38, %v1109
    %v1111 = vsel %vm1108, %v1110, %v1106
    %v1112 = vmul.f32 %v1024, %v1111
    %v1113 = vrcp.pop %v1041
    %v1114 = vmul.f32 %v1041, %v1113
    %v1115 = vsub.f32 1.0, %v1114
    %v1116 = vmul.f32 %v1113, %v1115
    %v1117 = vadd.f32 %v1113, %v1116
    %vm1118 = vweird.f32 %v1041
    %vm1119 = vweird.f32 %v1113
    %vm1120 = vmor %vm1118, %vm1119
    %v1121 = vsel %vm1120, %v1113, %v1117
    %v1122 = vand.u32 2147483647, %v1041
    %vm1123 = vcmp.eq.f32.partialorder %v1122, 8.507059e+37
    %v1124 = vand.u32 %v1041, 2147483648
    %v1125 = vor.u32 1.1754944e-38, %v1124
    %v1126 = vsel %vm1123, %v1125, %v1121
    %v1127 = vmul.f32 %v1025, %v1126
    %v1128 = vrcp.pop %v1042
    %v1129 = vmul.f32 %v1042, %v1128
    %v1130 = vsub.f32 1.0, %v1129
    %v1131 = vmul.f32 %v1128, %v1130
    %v1132 = vadd.f32 %v1128, %v1131
    %vm1133 = vweird.f32 %v1042
    %vm1134 = vweird.f32 %v1128
    %vm1135 = vmor %vm1133, %vm1134
    %v1136 = vsel %vm1135, %v1128, %v1132
    %v1137 = vand.u32 2147483647, %v1042
    %vm1138 = vcmp.eq.f32.partialorder %v1137, 8.507059e+37
    %v1139 = vand.u32 %v1042, 2147483648
    %v1140 = vor.u32 1.1754944e-38, %v1139
    %v1141 = vsel %vm1138, %v1140, %v1136
    %v1142 = vmul.f32 %v1026, %v1141
    %v1143 = vrcp.pop %v1043
    %v1144 = vmul.f32 %v1043, %v1143
    %v1145 = vsub.f32 1.0, %v1144
    %v1146 = vmul.f32 %v1143, %v1145
    %v1147 = vadd.f32 %v1143, %v1146
    %vm1148 = vweird.f32 %v1043
    %vm1149 = vweird.f32 %v1143
    %vm1150 = vmor %vm1148, %vm1149
    %v1151 = vsel %vm1150, %v1143, %v1147
    %v1152 = vand.u32 2147483647, %v1043
    %vm1153 = vcmp.eq.f32.partialorder %v1152, 8.507059e+37
    %v1154 = vand.u32 %v1043, 2147483648
    %v1155 = vor.u32 1.1754944e-38, %v1154
    %v1156 = vsel %vm1153, %v1155, %v1151
    %v1157 = vmul.f32 %v1027, %v1156
    %v1158 = vrcp.pop %v1044
    %v1159 = vmul.f32 %v1044, %v1158
    %v1160 = vsub.f32 1.0, %v1159
    %v1161 = vmul.f32 %v1158, %v1160
    %v1162 = vadd.f32 %v1158, %v1161
    %vm1163 = vweird.f32 %v1044
    %vm1164 = vweird.f32 %v1158
    %vm1165 = vmor %vm1163, %vm1164
    %v1166 = vsel %vm1165, %v1158, %v1162
    %v1167 = vand.u32 2147483647, %v1044
    %vm1168 = vcmp.eq.f32.partialorder %v1167, 8.507059e+37
    %v1169 = vand.u32 %v1044, 2147483648
    %v1170 = vor.u32 1.1754944e-38, %v1169
    %v1171 = vsel %vm1168, %v1170, %v1166
    %v1172 = vmul.f32 %v1028, %v1171
    %v1173 = vrcp.pop %v1045
    %v1174 = vmul.f32 %v1045, %v1173
    %v1175 = vsub.f32 1.0, %v1174
    %v1176 = vmul.f32 %v1173, %v1175
    %v1177 = vadd.f32 %v1173, %v1176
    %vm1178 = vweird.f32 %v1045
    %vm1179 = vweird.f32 %v1173
    %vm1180 = vmor %vm1178, %vm1179
    %v1181 = vsel %vm1180, %v1173, %v1177
    %v1182 = vand.u32 2147483647, %v1045
    %vm1183 = vcmp.eq.f32.partialorder %v1182, 8.507059e+37
    %v1184 = vand.u32 %v1045, 2147483648
    %v1185 = vor.u32 1.1754944e-38, %v1184
    %v1186 = vsel %vm1183, %v1185, %v1181
    %v1187 = vmul.f32 %v1029, %v1186
    %v1188 = vrcp.pop %v1046
    %v1189 = vmul.f32 %v1046, %v1188
    %v1190 = vsub.f32 1.0, %v1189
    %v1191 = vmul.f32 %v1188, %v1190
    %v1192 = vadd.f32 %v1188, %v1191
    %vm1193 = vweird.f32 %v1046
    %vm1194 = vweird.f32 %v1188
    %vm1195 = vmor %vm1193, %vm1194
    %v1196 = vsel %vm1195, %v1188, %v1192
    %v1197 = vand.u32 2147483647, %v1046
    %vm1198 = vcmp.eq.f32.partialorder %v1197, 8.507059e+37
    %v1199 = vand.u32 %v1046, 2147483648
    %v1200 = vor.u32 1.1754944e-38, %v1199
    %v1201 = vsel %vm1198, %v1200, %v1196
    %v1202 = vmul.f32 %v1030, %v1201
    %v1203 = vrcp.pop %v1047
    %v1204 = vmul.f32 %v1047, %v1203
    %v1205 = vsub.f32 1.0, %v1204
    %v1206 = vmul.f32 %v1203, %v1205
    %v1207 = vadd.f32 %v1203, %v1206
    %vm1208 = vweird.f32 %v1047
    %vm1209 = vweird.f32 %v1203
    %vm1210 = vmor %vm1208, %vm1209
    %v1211 = vsel %vm1210, %v1203, %v1207
    %v1212 = vand.u32 2147483647, %v1047
    %vm1213 = vcmp.eq.f32.partialorder %v1212, 8.507059e+37
    %v1214 = vand.u32 %v1047, 2147483648
    %v1215 = vor.u32 1.1754944e-38, %v1214
    %v1216 = vsel %vm1213, %v1215, %v1211
    %v1217 = vmul.f32 %v1031, %v1216
    %v1218 = vrcp.pop %v1048
    %v1219 = vmul.f32 %v1048, %v1218
    %v1220 = vsub.f32 1.0, %v1219
    %v1221 = vmul.f32 %v1218, %v1220
    %v1222 = vadd.f32 %v1218, %v1221
    %vm1223 = vweird.f32 %v1048
    %vm1224 = vweird.f32 %v1218
    %vm1225 = vmor %vm1223, %vm1224
    %v1226 = vsel %vm1225, %v1218, %v1222
    %v1227 = vand.u32 2147483647, %v1048
    %vm1228 = vcmp.eq.f32.partialorder %v1227, 8.507059e+37
    %v1229 = vand.u32 %v1048, 2147483648
    %v1230 = vor.u32 1.1754944e-38, %v1229
    %v1231 = vsel %vm1228, %v1230, %v1226
    %v1232 = vmul.f32 %v1032, %v1231
    %v1233 = vrcp.pop %v1049
    %v1234 = vmul.f32 %v1049, %v1233
    %v1235 = vsub.f32 1.0, %v1234
    %v1236 = vmul.f32 %v1233, %v1235
    %v1237 = vadd.f32 %v1233, %v1236
    %vm1238 = vweird.f32 %v1049
    %vm1239 = vweird.f32 %v1233
    %vm1240 = vmor %vm1238, %vm1239
    %v1241 = vsel %vm1240, %v1233, %v1237
    %v1242 = vand.u32 2147483647, %v1049
    %vm1243 = vcmp.eq.f32.partialorder %v1242, 8.507059e+37
    %v1244 = vand.u32 %v1049, 2147483648
    %v1245 = vor.u32 1.1754944e-38, %v1244
    %v1246 = vsel %vm1243, %v1245, %v1241
    %v1247 = vmul.f32 %v1033, %v1246
    %v1248 = vrcp.pop %v1050
    %v1249 = vmul.f32 %v1050, %v1248
    %v1250 = vsub.f32 1.0, %v1249
    %v1251 = vmul.f32 %v1248, %v1250
    %v1252 = vadd.f32 %v1248, %v1251
    %vm1253 = vweird.f32 %v1050
    %vm1254 = vweird.f32 %v1248
    %vm1255 = vmor %vm1253, %vm1254
    %v1256 = vsel %vm1255, %v1248, %v1252
    %v1257 = vand.u32 2147483647, %v1050
    %vm1258 = vcmp.eq.f32.partialorder %v1257, 8.507059e+37
    %v1259 = vand.u32 %v1050, 2147483648
    %v1260 = vor.u32 1.1754944e-38, %v1259
    %v1261 = vsel %vm1258, %v1260, %v1256
    %v1262 = vmul.f32 %v1034, %v1261
    %v1263 = vrcp.pop %v1051
    %v1264 = vmul.f32 %v1051, %v1263
    %v1265 = vsub.f32 1.0, %v1264
    %v1266 = vmul.f32 %v1263, %v1265
    %v1267 = vadd.f32 %v1263, %v1266
    %vm1268 = vweird.f32 %v1051
    %vm1269 = vweird.f32 %v1263
    %vm1270 = vmor %vm1268, %vm1269
    %v1271 = vsel %vm1270, %v1263, %v1267
    %v1272 = vand.u32 2147483647, %v1051
    %vm1273 = vcmp.eq.f32.partialorder %v1272, 8.507059e+37
    %v1274 = vand.u32 %v1051, 2147483648
    %v1275 = vor.u32 1.1754944e-38, %v1274
    %v1276 = vsel %vm1273, %v1275, %v1271
    %v1277 = vmul.f32 %v1035, %v1276
    %v1278 = vrcp.pop %v1052
    %v1279 = vmul.f32 %v1052, %v1278
    %v1280 = vsub.f32 1.0, %v1279
    %v1281 = vmul.f32 %v1278, %v1280
    %v1282 = vadd.f32 %v1278, %v1281
    %vm1283 = vweird.f32 %v1052
    %vm1284 = vweird.f32 %v1278
    %vm1285 = vmor %vm1283, %vm1284
    %v1286 = vsel %vm1285, %v1278, %v1282
    %v1287 = vand.u32 2147483647, %v1052
    %vm1288 = vcmp.eq.f32.partialorder %v1287, 8.507059e+37
    %v1289 = vand.u32 %v1052, 2147483648
    %v1290 = vor.u32 1.1754944e-38, %v1289
    %v1291 = vsel %vm1288, %v1290, %v1286
    %v1292 = vmul.f32 %v1036, %v1291
    %v1293 = vmin.f32 %v1067, 20.0
    %v1294 = vmin.f32 %v1082, 20.0
    %v1295 = vmin.f32 %v1097, 20.0
    %v1296 = vmin.f32 %v1112, 20.0
    %v1297 = vmin.f32 %v1127, 20.0
    %v1298 = vmin.f32 %v1142, 20.0
    %v1299 = vmin.f32 %v1157, 20.0
    %v1300 = vmin.f32 %v1172, 20.0
    %v1301 = vmin.f32 %v1187, 20.0
    %v1302 = vmin.f32 %v1202, 20.0
    %v1303 = vmin.f32 %v1217, 20.0
    %v1304 = vmin.f32 %v1232, 20.0
    %v1305 = vmin.f32 %v1247, 20.0
    %v1306 = vmin.f32 %v1262, 20.0
    %v1307 = vmin.f32 %v1277, 20.0
    %v1308 = vmin.f32 %v1292, 20.0
    %v1309 = vmul.f32 %v1293, 1.442695
    %v1310 = vpow.pop %v1309
    %v1311 = vmul.f32 %v1294, 1.442695
    %v1312 = vpow.pop %v1311
    %v1313 = vmul.f32 %v1295, 1.442695
    %v1314 = vpow.pop %v1313
    %v1315 = vmul.f32 %v1296, 1.442695
    %v1316 = vpow.pop %v1315
    %v1317 = vmul.f32 %v1297, 1.442695
    %v1318 = vpow.pop %v1317
    %v1319 = vmul.f32 %v1298, 1.442695
    %v1320 = vpow.pop %v1319
    %v1321 = vmul.f32 %v1299, 1.442695
    %v1322 = vpow.pop %v1321
    %v1323 = vmul.f32 %v1300, 1.442695
    %v1324 = vpow.pop %v1323
    %v1325 = vmul.f32 %v1301, 1.442695
    %v1326 = vpow.pop %v1325
    %v1327 = vmul.f32 %v1302, 1.442695
    %v1328 = vpow.pop %v1327
    %v1329 = vmul.f32 %v1303, 1.442695
    %v1330 = vpow.pop %v1329
    %v1331 = vmul.f32 %v1304, 1.442695
    %v1332 = vpow.pop %v1331
    %v1333 = vmul.f32 %v1305, 1.442695
    %v1334 = vpow.pop %v1333
    %v1335 = vmul.f32 %v1306, 1.442695
    %v1336 = vpow.pop %v1335
    %v1337 = vmul.f32 %v1307, 1.442695
    %v1338 = vpow.pop %v1337
    %v1339 = vmul.f32 %v1308, 1.442695
    %v1340 = vpow.pop %v1339
    %v1341 = vadd.f32 %v1310, 1.0
    %v1342 = vadd.f32 %v1312, 1.0
    %v1343 = vadd.f32 %v1314, 1.0
    %v1344 = vadd.f32 %v1316, 1.0
    %v1345 = vadd.f32 %v1318, 1.0
    %v1346 = vadd.f32 %v1320, 1.0
    %v1347 = vadd.f32 %v1322, 1.0
    %v1348 = vadd.f32 %v1324, 1.0
    %v1349 = vadd.f32 %v1326, 1.0
    %v1350 = vadd.f32 %v1328, 1.0
    %v1351 = vadd.f32 %v1330, 1.0
    %v1352 = vadd.f32 %v1332, 1.0
    %v1353 = vadd.f32 %v1334, 1.0
    %v1354 = vadd.f32 %v1336, 1.0
    %v1355 = vadd.f32 %v1338, 1.0
    %v1356 = vadd.f32 %v1340, 1.0
    %v1357 = vmul.f32 %v1341, %v1341
    %v1358 = vmul.f32 %v1342, %v1342
    %v1359 = vmul.f32 %v1343, %v1343
    %v1360 = vmul.f32 %v1344, %v1344
    %v1361 = vmul.f32 %v1345, %v1345
    %v1362 = vmul.f32 %v1346, %v1346
    %v1363 = vmul.f32 %v1347, %v1347
    %v1364 = vmul.f32 %v1348, %v1348
    %v1365 = vmul.f32 %v1349, %v1349
    %v1366 = vmul.f32 %v1350, %v1350
    %v1367 = vmul.f32 %v1351, %v1351
    %v1368 = vmul.f32 %v1352, %v1352
    %v1369 = vmul.f32 %v1353, %v1353
    %v1370 = vmul.f32 %v1354, %v1354
    %v1371 = vmul.f32 %v1355, %v1355
    %v1372 = vmul.f32 %v1356, %v1356
    %v1373 = vsub.f32 %v1357, 1.0
    %v1374 = vsub.f32 %v1358, 1.0
    %v1375 = vsub.f32 %v1359, 1.0
    %v1376 = vsub.f32 %v1360, 1.0
    %v1377 = vsub.f32 %v1361, 1.0
    %v1378 = vsub.f32 %v1362, 1.0
    %v1379 = vsub.f32 %v1363, 1.0
    %v1380 = vsub.f32 %v1364, 1.0
    %v1381 = vsub.f32 %v1365, 1.0
    %v1382 = vsub.f32 %v1366, 1.0
    %v1383 = vsub.f32 %v1367, 1.0
    %v1384 = vsub.f32 %v1368, 1.0
    %v1385 = vsub.f32 %v1369, 1.0
    %v1386 = vsub.f32 %v1370, 1.0
    %v1387 = vsub.f32 %v1371, 1.0
    %v1388 = vsub.f32 %v1372, 1.0
    %v1389 = vmul.f32 %v1067, %v1373
    %v1390 = vmul.f32 %v1082, %v1374
    %v1391 = vmul.f32 %v1097, %v1375
    %v1392 = vmul.f32 %v1112, %v1376
    %v1393 = vmul.f32 %v1127, %v1377
    %v1394 = vmul.f32 %v1142, %v1378
    %v1395 = vmul.f32 %v1157, %v1379
    %v1396 = vmul.f32 %v1172, %v1380
    %v1397 = vmul.f32 %v1187, %v1381
    %v1398 = vmul.f32 %v1202, %v1382
    %v1399 = vmul.f32 %v1217, %v1383
    %v1400 = vmul.f32 %v1232, %v1384
    %v1401 = vmul.f32 %v1247, %v1385
    %v1402 = vmul.f32 %v1262, %v1386
    %v1403 = vmul.f32 %v1277, %v1387
    %v1404 = vmul.f32 %v1292, %v1388
    %v1405 = vadd.f32 %v1357, 1.0
    %v1406 = vadd.f32 %v1358, 1.0
    %v1407 = vadd.f32 %v1359, 1.0
    %v1408 = vadd.f32 %v1360, 1.0
    %v1409 = vadd.f32 %v1361, 1.0
    %v1410 = vadd.f32 %v1362, 1.0
    %v1411 = vadd.f32 %v1363, 1.0
    %v1412 = vadd.f32 %v1364, 1.0
    %v1413 = vadd.f32 %v1365, 1.0
    %v1414 = vadd.f32 %v1366, 1.0
    %v1415 = vadd.f32 %v1367, 1.0
    %v1416 = vadd.f32 %v1368, 1.0
    %v1417 = vadd.f32 %v1369, 1.0
    %v1418 = vadd.f32 %v1370, 1.0
    %v1419 = vadd.f32 %v1371, 1.0
    %v1420 = vadd.f32 %v1372, 1.0
    %v1421 = vrcp.pop %v1405
    %v1422 = vmul.f32 %v1405, %v1421
    %v1423 = vsub.f32 1.0, %v1422
    %v1424 = vmul.f32 %v1421, %v1423
    %v1425 = vadd.f32 %v1421, %v1424
    %vm1426 = vweird.f32 %v1405
    %vm1427 = vweird.f32 %v1421
    %vm1428 = vmor %vm1426, %vm1427
    %v1429 = vsel %vm1428, %v1421, %v1425
    %v1430 = vand.u32 2147483647, %v1405
    %vm1431 = vcmp.eq.f32.partialorder %v1430, 8.507059e+37
    %v1432 = vand.u32 %v1405, 2147483648
    %v1433 = vor.u32 1.1754944e-38, %v1432
    %v1434 = vsel %vm1431, %v1433, %v1429
    %v1435 = vmul.f32 %v1389, %v1434
    %v1436 = vrcp.pop %v1406
    %v1437 = vmul.f32 %v1406, %v1436
    %v1438 = vsub.f32 1.0, %v1437
    %v1439 = vmul.f32 %v1436, %v1438
    %v1440 = vadd.f32 %v1436, %v1439
    %vm1441 = vweird.f32 %v1406
    %vm1442 = vweird.f32 %v1436
    %vm1443 = vmor %vm1441, %vm1442
    %v1444 = vsel %vm1443, %v1436, %v1440
    %v1445 = vand.u32 2147483647, %v1406
    %vm1446 = vcmp.eq.f32.partialorder %v1445, 8.507059e+37
    %v1447 = vand.u32 %v1406, 2147483648
    %v1448 = vor.u32 1.1754944e-38, %v1447
    %v1449 = vsel %vm1446, %v1448, %v1444
    %v1450 = vmul.f32 %v1390, %v1449
    %v1451 = vrcp.pop %v1407
    %v1452 = vmul.f32 %v1407, %v1451
    %v1453 = vsub.f32 1.0, %v1452
    %v1454 = vmul.f32 %v1451, %v1453
    %v1455 = vadd.f32 %v1451, %v1454
    %vm1456 = vweird.f32 %v1407
    %vm1457 = vweird.f32 %v1451
    %vm1458 = vmor %vm1456, %vm1457
    %v1459 = vsel %vm1458, %v1451, %v1455
    %v1460 = vand.u32 2147483647, %v1407
    %vm1461 = vcmp.eq.f32.partialorder %v1460, 8.507059e+37
    %v1462 = vand.u32 %v1407, 2147483648
    %v1463 = vor.u32 1.1754944e-38, %v1462
    %v1464 = vsel %vm1461, %v1463, %v1459
    %v1465 = vmul.f32 %v1391, %v1464
    %v1466 = vrcp.pop %v1408
    %v1467 = vmul.f32 %v1408, %v1466
    %v1468 = vsub.f32 1.0, %v1467
    %v1469 = vmul.f32 %v1466, %v1468
    %v1470 = vadd.f32 %v1466, %v1469
    %vm1471 = vweird.f32 %v1408
    %vm1472 = vweird.f32 %v1466
    %vm1473 = vmor %vm1471, %vm1472
    %v1474 = vsel %vm1473, %v1466, %v1470
    %v1475 = vand.u32 2147483647, %v1408
    %vm1476 = vcmp.eq.f32.partialorder %v1475, 8.507059e+37
    %v1477 = vand.u32 %v1408, 2147483648
    %v1478 = vor.u32 1.1754944e-38, %v1477
    %v1479 = vsel %vm1476, %v1478, %v1474
    %v1480 = vmul.f32 %v1392, %v1479
    %v1481 = vrcp.pop %v1409
    %v1482 = vmul.f32 %v1409, %v1481
    %v1483 = vsub.f32 1.0, %v1482
    %v1484 = vmul.f32 %v1481, %v1483
    %v1485 = vadd.f32 %v1481, %v1484
    %vm1486 = vweird.f32 %v1409
    %vm1487 = vweird.f32 %v1481
    %vm1488 = vmor %vm1486, %vm1487
    %v1489 = vsel %vm1488, %v1481, %v1485
    %v1490 = vand.u32 2147483647, %v1409
    %vm1491 = vcmp.eq.f32.partialorder %v1490, 8.507059e+37
    %v1492 = vand.u32 %v1409, 2147483648
    %v1493 = vor.u32 1.1754944e-38, %v1492
    %v1494 = vsel %vm1491, %v1493, %v1489
    %v1495 = vmul.f32 %v1393, %v1494
    %v1496 = vrcp.pop %v1410
    %v1497 = vmul.f32 %v1410, %v1496
    %v1498 = vsub.f32 1.0, %v1497
    %v1499 = vmul.f32 %v1496, %v1498
    %v1500 = vadd.f32 %v1496, %v1499
    %vm1501 = vweird.f32 %v1410
    %vm1502 = vweird.f32 %v1496
    %vm1503 = vmor %vm1501, %vm1502
    %v1504 = vsel %vm1503, %v1496, %v1500
    %v1505 = vand.u32 2147483647, %v1410
    %vm1506 = vcmp.eq.f32.partialorder %v1505, 8.507059e+37
    %v1507 = vand.u32 %v1410, 2147483648
    %v1508 = vor.u32 1.1754944e-38, %v1507
    %v1509 = vsel %vm1506, %v1508, %v1504
    %v1510 = vmul.f32 %v1394, %v1509
    %v1511 = vrcp.pop %v1411
    %v1512 = vmul.f32 %v1411, %v1511
    %v1513 = vsub.f32 1.0, %v1512
    %v1514 = vmul.f32 %v1511, %v1513
    %v1515 = vadd.f32 %v1511, %v1514
    %vm1516 = vweird.f32 %v1411
    %vm1517 = vweird.f32 %v1511
    %vm1518 = vmor %vm1516, %vm1517
    %v1519 = vsel %vm1518, %v1511, %v1515
    %v1520 = vand.u32 2147483647, %v1411
    %vm1521 = vcmp.eq.f32.partialorder %v1520, 8.507059e+37
    %v1522 = vand.u32 %v1411, 2147483648
    %v1523 = vor.u32 1.1754944e-38, %v1522
    %v1524 = vsel %vm1521, %v1523, %v1519
    %v1525 = vmul.f32 %v1395, %v1524
    %v1526 = vrcp.pop %v1412
    %v1527 = vmul.f32 %v1412, %v1526
    %v1528 = vsub.f32 1.0, %v1527
    %v1529 = vmul.f32 %v1526, %v1528
    %v1530 = vadd.f32 %v1526, %v1529
    %vm1531 = vweird.f32 %v1412
    %vm1532 = vweird.f32 %v1526
    %vm1533 = vmor %vm1531, %vm1532
    %v1534 = vsel %vm1533, %v1526, %v1530
    %v1535 = vand.u32 2147483647, %v1412
    %vm1536 = vcmp.eq.f32.partialorder %v1535, 8.507059e+37
    %v1537 = vand.u32 %v1412, 2147483648
    %v1538 = vor.u32 1.1754944e-38, %v1537
    %v1539 = vsel %vm1536, %v1538, %v1534
    %v1540 = vmul.f32 %v1396, %v1539
    %v1541 = vrcp.pop %v1413
    %v1542 = vmul.f32 %v1413, %v1541
    %v1543 = vsub.f32 1.0, %v1542
    %v1544 = vmul.f32 %v1541, %v1543
    %v1545 = vadd.f32 %v1541, %v1544
    %vm1546 = vweird.f32 %v1413
    %vm1547 = vweird.f32 %v1541
    %vm1548 = vmor %vm1546, %vm1547
    %v1549 = vsel %vm1548, %v1541, %v1545
    %v1550 = vand.u32 2147483647, %v1413
    %vm1551 = vcmp.eq.f32.partialorder %v1550, 8.507059e+37
    %v1552 = vand.u32 %v1413, 2147483648
    %v1553 = vor.u32 1.1754944e-38, %v1552
    %v1554 = vsel %vm1551, %v1553, %v1549
    %v1555 = vmul.f32 %v1397, %v1554
    %v1556 = vrcp.pop %v1414
    %v1557 = vmul.f32 %v1414, %v1556
    %v1558 = vsub.f32 1.0, %v1557
    %v1559 = vmul.f32 %v1556, %v1558
    %v1560 = vadd.f32 %v1556, %v1559
    %vm1561 = vweird.f32 %v1414
    %vm1562 = vweird.f32 %v1556
    %vm1563 = vmor %vm1561, %vm1562
    %v1564 = vsel %vm1563, %v1556, %v1560
    %v1565 = vand.u32 2147483647, %v1414
    %vm1566 = vcmp.eq.f32.partialorder %v1565, 8.507059e+37
    %v1567 = vand.u32 %v1414, 2147483648
    %v1568 = vor.u32 1.1754944e-38, %v1567
    %v1569 = vsel %vm1566, %v1568, %v1564
    %v1570 = vmul.f32 %v1398, %v1569
    %v1571 = vrcp.pop %v1415
    %v1572 = vmul.f32 %v1415, %v1571
    %v1573 = vsub.f32 1.0, %v1572
    %v1574 = vmul.f32 %v1571, %v1573
    %v1575 = vadd.f32 %v1571, %v1574
    %vm1576 = vweird.f32 %v1415
    %vm1577 = vweird.f32 %v1571
    %vm1578 = vmor %vm1576, %vm1577
    %v1579 = vsel %vm1578, %v1571, %v1575
    %v1580 = vand.u32 2147483647, %v1415
    %vm1581 = vcmp.eq.f32.partialorder %v1580, 8.507059e+37
    %v1582 = vand.u32 %v1415, 2147483648
    %v1583 = vor.u32 1.1754944e-38, %v1582
    %v1584 = vsel %vm1581, %v1583, %v1579
    %v1585 = vmul.f32 %v1399, %v1584
    %v1586 = vrcp.pop %v1416
    %v1587 = vmul.f32 %v1416, %v1586
    %v1588 = vsub.f32 1.0, %v1587
    %v1589 = vmul.f32 %v1586, %v1588
    %v1590 = vadd.f32 %v1586, %v1589
    %vm1591 = vweird.f32 %v1416
    %vm1592 = vweird.f32 %v1586
    %vm1593 = vmor %vm1591, %vm1592
    %v1594 = vsel %vm1593, %v1586, %v1590
    %v1595 = vand.u32 2147483647, %v1416
    %vm1596 = vcmp.eq.f32.partialorder %v1595, 8.507059e+37
    %v1597 = vand.u32 %v1416, 2147483648
    %v1598 = vor.u32 1.1754944e-38, %v1597
    %v1599 = vsel %vm1596, %v1598, %v1594
    %v1600 = vmul.f32 %v1400, %v1599
    %v1601 = vrcp.pop %v1417
    %v1602 = vmul.f32 %v1417, %v1601
    %v1603 = vsub.f32 1.0, %v1602
    %v1604 = vmul.f32 %v1601, %v1603
    %v1605 = vadd.f32 %v1601, %v1604
    %vm1606 = vweird.f32 %v1417
    %vm1607 = vweird.f32 %v1601
    %vm1608 = vmor %vm1606, %vm1607
    %v1609 = vsel %vm1608, %v1601, %v1605
    %v1610 = vand.u32 2147483647, %v1417
    %vm1611 = vcmp.eq.f32.partialorder %v1610, 8.507059e+37
    %v1612 = vand.u32 %v1417, 2147483648
    %v1613 = vor.u32 1.1754944e-38, %v1612
    %v1614 = vsel %vm1611, %v1613, %v1609
    %v1615 = vmul.f32 %v1401, %v1614
    %v1616 = vrcp.pop %v1418
    %v1617 = vmul.f32 %v1418, %v1616
    %v1618 = vsub.f32 1.0, %v1617
    %v1619 = vmul.f32 %v1616, %v1618
    %v1620 = vadd.f32 %v1616, %v1619
    %vm1621 = vweird.f32 %v1418
    %vm1622 = vweird.f32 %v1616
    %vm1623 = vmor %vm1621, %vm1622
    %v1624 = vsel %vm1623, %v1616, %v1620
    %v1625 = vand.u32 2147483647, %v1418
    %vm1626 = vcmp.eq.f32.partialorder %v1625, 8.507059e+37
    %v1627 = vand.u32 %v1418, 2147483648
    %v1628 = vor.u32 1.1754944e-38, %v1627
    %v1629 = vsel %vm1626, %v1628, %v1624
    %v1630 = vmul.f32 %v1402, %v1629
    %v1631 = vrcp.pop %v1419
    %v1632 = vmul.f32 %v1419, %v1631
    %v1633 = vsub.f32 1.0, %v1632
    %v1634 = vmul.f32 %v1631, %v1633
    %v1635 = vadd.f32 %v1631, %v1634
    %vm1636 = vweird.f32 %v1419
    %vm1637 = vweird.f32 %v1631
    %vm1638 = vmor %vm1636, %vm1637
    %v1639 = vsel %vm1638, %v1631, %v1635
    %v1640 = vand.u32 2147483647, %v1419
    %vm1641 = vcmp.eq.f32.partialorder %v1640, 8.507059e+37
    %v1642 = vand.u32 %v1419, 2147483648
    %v1643 = vor.u32 1.1754944e-38, %v1642
    %v1644 = vsel %vm1641, %v1643, %v1639
    %v1645 = vmul.f32 %v1403, %v1644
    %v1646 = vrcp.pop %v1420
    %v1647 = vmul.f32 %v1420, %v1646
    %v1648 = vsub.f32 1.0, %v1647
    %v1649 = vmul.f32 %v1646, %v1648
    %v1650 = vadd.f32 %v1646, %v1649
    %vm1651 = vweird.f32 %v1420
    %vm1652 = vweird.f32 %v1646
    %vm1653 = vmor %vm1651, %vm1652
    %v1654 = vsel %vm1653, %v1646, %v1650
    %v1655 = vand.u32 2147483647, %v1420
    %vm1656 = vcmp.eq.f32.partialorder %v1655, 8.507059e+37
    %v1657 = vand.u32 %v1420, 2147483648
    %v1658 = vor.u32 1.1754944e-38, %v1657
    %v1659 = vsel %vm1656, %v1658, %v1654
    %v1660 = vmul.f32 %v1404, %v1659
    %s1661 = sld [smem:[#allocation10]]
    %v1662 = vstv %s1661
    %v1663 = vmul.f32 %v1662, %v1435
    %v1664 = vmul.f32 %v1662, %v1450
    %s1665 = sld [smem:[#allocation10 + $0x1]]
    %v1666 = vstv %s1665
    %v1667 = vmul.f32 %v1666, %v1465
    %v1668 = vmul.f32 %v1666, %v1480
    %v1669 = vadd.f32 %v1663, %v1667
    %v1670 = vadd.f32 %v1664, %v1668
    %s1671 = sld [smem:[#allocation10 + $0x2]]
    %v1672 = vstv %s1671
    %v1673 = vmul.f32 %v1672, %v1495
    %v1674 = vmul.f32 %v1672, %v1510
    %v1675 = vadd.f32 %v1669, %v1673
    %v1676 = vadd.f32 %v1670, %v1674
    %s1677 = sld [smem:[#allocation10 + $0x3]]
    %v1678 = vstv %s1677
    %v1679 = vmul.f32 %v1678, %v1525
    %v1680 = vmul.f32 %v1678, %v1540
    %v1681 = vadd.f32 %v1675, %v1679
    %v1682 = vadd.f32 %v1676, %v1680
    %s1683 = sld [smem:[#allocation10 + $0x4]]
    %v1684 = vstv %s1683
    %v1685 = vmul.f32 %v1684, %v1555
    %v1686 = vmul.f32 %v1684, %v1570
    %v1687 = vadd.f32 %v1681, %v1685
    %v1688 = vadd.f32 %v1682, %v1686
    %s1689 = sld [smem:[#allocation10 + $0x5]]
    %v1690 = vstv %s1689
    %v1691 = vmul.f32 %v1690, %v1585
    %v1692 = vmul.f32 %v1690, %v1600
    %v1693 = vadd.f32 %v1687, %v1691
    %v1694 = vadd.f32 %v1688, %v1692
    %s1695 = sld [smem:[#allocation10 + $0x6]]
    %v1696 = vstv %s1695
    %v1697 = vmul.f32 %v1696, %v1615
    %v1698 = vmul.f32 %v1696, %v1630
    %v1699 = vadd.f32 %v1693, %v1697
    %v1700 = vadd.f32 %v1694, %v1698
    %s1701 = sld [smem:[#allocation10 + $0x7]]
    %v1702 = vstv %s1701
    %v1703 = vmul.f32 %v1702, %v1645
    %v1704 = vmul.f32 %v1702, %v1660
    %v1705 = vadd.f32 %v1699, %v1703
    %v1706 = vadd.f32 %v1700, %v1704
    %s1707 = sld [smem:[#allocation10 + $0x80]]
    %v1708 = vstv %s1707
    %v1709 = vmul.f32 %v1708, %v1435
    %v1710 = vmul.f32 %v1708, %v1450
    %s1711 = sld [smem:[#allocation10 + $0x81]]
    %v1712 = vstv %s1711
    %v1713 = vmul.f32 %v1712, %v1465
    %v1714 = vmul.f32 %v1712, %v1480
    %v1715 = vadd.f32 %v1709, %v1713
    %v1716 = vadd.f32 %v1710, %v1714
    %s1717 = sld [smem:[#allocation10 + $0x82]]
    %v1718 = vstv %s1717
    %v1719 = vmul.f32 %v1718, %v1495
    %v1720 = vmul.f32 %v1718, %v1510
    %v1721 = vadd.f32 %v1715, %v1719
    %v1722 = vadd.f32 %v1716, %v1720
    %s1723 = sld [smem:[#allocation10 + $0x83]]
    %v1724 = vstv %s1723
    %v1725 = vmul.f32 %v1724, %v1525
    %v1726 = vmul.f32 %v1724, %v1540
    %v1727 = vadd.f32 %v1721, %v1725
    %v1728 = vadd.f32 %v1722, %v1726
    %s1729 = sld [smem:[#allocation10 + $0x84]]
    %v1730 = vstv %s1729
    %v1731 = vmul.f32 %v1730, %v1555
    %v1732 = vmul.f32 %v1730, %v1570
    %v1733 = vadd.f32 %v1727, %v1731
    %v1734 = vadd.f32 %v1728, %v1732
    %s1735 = sld [smem:[#allocation10 + $0x85]]
    %v1736 = vstv %s1735
    %v1737 = vmul.f32 %v1736, %v1585
    %v1738 = vmul.f32 %v1736, %v1600
    %v1739 = vadd.f32 %v1733, %v1737
    %v1740 = vadd.f32 %v1734, %v1738
    %s1741 = sld [smem:[#allocation10 + $0x86]]
    %v1742 = vstv %s1741
    %v1743 = vmul.f32 %v1742, %v1615
    %v1744 = vmul.f32 %v1742, %v1630
    %v1745 = vadd.f32 %v1739, %v1743
    %v1746 = vadd.f32 %v1740, %v1744
    %s1747 = sld [smem:[#allocation10 + $0x87]]
    %v1748 = vstv %s1747
    %v1749 = vmul.f32 %v1748, %v1645
    %v1750 = vmul.f32 %v1748, %v1660
    %v1751 = vadd.f32 %v1745, %v1749
    %v1752 = vadd.f32 %v1746, %v1750
    %s1753 = sld [smem:[#allocation10 + $0x100]]
    %v1754 = vstv %s1753
    %v1755 = vmul.f32 %v1754, %v1435
    %v1756 = vmul.f32 %v1754, %v1450
    %s1757 = sld [smem:[#allocation10 + $0x101]]
    %v1758 = vstv %s1757
    %v1759 = vmul.f32 %v1758, %v1465
    %v1760 = vmul.f32 %v1758, %v1480
    %v1761 = vadd.f32 %v1755, %v1759
    %v1762 = vadd.f32 %v1756, %v1760
    %s1763 = sld [smem:[#allocation10 + $0x102]]
    %v1764 = vstv %s1763
    %v1765 = vmul.f32 %v1764, %v1495
    %v1766 = vmul.f32 %v1764, %v1510
    %v1767 = vadd.f32 %v1761, %v1765
    %v1768 = vadd.f32 %v1762, %v1766
    %s1769 = sld [smem:[#allocation10 + $0x103]]
    %v1770 = vstv %s1769
    %v1771 = vmul.f32 %v1770, %v1525
    %v1772 = vmul.f32 %v1770, %v1540
    %v1773 = vadd.f32 %v1767, %v1771
    %v1774 = vadd.f32 %v1768, %v1772
    %s1775 = sld [smem:[#allocation10 + $0x104]]
    %v1776 = vstv %s1775
    %v1777 = vmul.f32 %v1776, %v1555
    %v1778 = vmul.f32 %v1776, %v1570
    %v1779 = vadd.f32 %v1773, %v1777
    %v1780 = vadd.f32 %v1774, %v1778
    %s1781 = sld [smem:[#allocation10 + $0x105]]
    %v1782 = vstv %s1781
    %v1783 = vmul.f32 %v1782, %v1585
    %v1784 = vmul.f32 %v1782, %v1600
    %v1785 = vadd.f32 %v1779, %v1783
    %v1786 = vadd.f32 %v1780, %v1784
    %s1787 = sld [smem:[#allocation10 + $0x106]]
    %v1788 = vstv %s1787
    %v1789 = vmul.f32 %v1788, %v1615
    %v1790 = vmul.f32 %v1788, %v1630
    %v1791 = vadd.f32 %v1785, %v1789
    %v1792 = vadd.f32 %v1786, %v1790
    %s1793 = sld [smem:[#allocation10 + $0x107]]
    %v1794 = vstv %s1793
    %v1795 = vmul.f32 %v1794, %v1645
    %v1796 = vmul.f32 %v1794, %v1660
    %v1797 = vadd.f32 %v1791, %v1795
    %v1798 = vadd.f32 %v1792, %v1796
    %s1799 = sld [smem:[#allocation10 + $0x180]]
    %v1800 = vstv %s1799
    %v1801 = vmul.f32 %v1800, %v1435
    %v1802 = vmul.f32 %v1800, %v1450
    %s1803 = sld [smem:[#allocation10 + $0x181]]
    %v1804 = vstv %s1803
    %v1805 = vmul.f32 %v1804, %v1465
    %v1806 = vmul.f32 %v1804, %v1480
    %v1807 = vadd.f32 %v1801, %v1805
    %v1808 = vadd.f32 %v1802, %v1806
    %s1809 = sld [smem:[#allocation10 + $0x182]]
    %v1810 = vstv %s1809
    %v1811 = vmul.f32 %v1810, %v1495
    %v1812 = vmul.f32 %v1810, %v1510
    %v1813 = vadd.f32 %v1807, %v1811
    %v1814 = vadd.f32 %v1808, %v1812
    %s1815 = sld [smem:[#allocation10 + $0x183]]
    %v1816 = vstv %s1815
    %v1817 = vmul.f32 %v1816, %v1525
    %v1818 = vmul.f32 %v1816, %v1540
    %v1819 = vadd.f32 %v1813, %v1817
    %v1820 = vadd.f32 %v1814, %v1818
    %s1821 = sld [smem:[#allocation10 + $0x184]]
    %v1822 = vstv %s1821
    %v1823 = vmul.f32 %v1822, %v1555
    %v1824 = vmul.f32 %v1822, %v1570
    %v1825 = vadd.f32 %v1819, %v1823
    %v1826 = vadd.f32 %v1820, %v1824
    %s1827 = sld [smem:[#allocation10 + $0x185]]
    %v1828 = vstv %s1827
    %v1829 = vmul.f32 %v1828, %v1585
    %v1830 = vmul.f32 %v1828, %v1600
    %v1831 = vadd.f32 %v1825, %v1829
    %v1832 = vadd.f32 %v1826, %v1830
    %s1833 = sld [smem:[#allocation10 + $0x186]]
    %v1834 = vstv %s1833
    %v1835 = vmul.f32 %v1834, %v1615
    %v1836 = vmul.f32 %v1834, %v1630
    %v1837 = vadd.f32 %v1831, %v1835
    %v1838 = vadd.f32 %v1832, %v1836
    %s1839 = sld [smem:[#allocation10 + $0x187]]
    %v1840 = vstv %s1839
    %v1841 = vmul.f32 %v1840, %v1645
    %v1842 = vmul.f32 %v1840, %v1660
    %v1843 = vadd.f32 %v1837, %v1841
    %v1844 = vadd.f32 %v1838, %v1842
    %s1845 = sld [smem:[#allocation11]]
    %v1846 = vstv %s1845
    %v1847 = vmul.f32 %v1846, %v1705
    %v1848 = vmul.f32 %v1846, %v1706
    %s1849 = sld [smem:[#allocation11 + $0x1]]
    %v1850 = vstv %s1849
    %v1851 = vmul.f32 %v1850, %v1751
    %v1852 = vmul.f32 %v1850, %v1752
    %v1853 = vadd.f32 %v1847, %v1851
    %v1854 = vadd.f32 %v1848, %v1852
    %s1855 = sld [smem:[#allocation11 + $0x2]]
    %v1856 = vstv %s1855
    %v1857 = vmul.f32 %v1856, %v1797
    %v1858 = vmul.f32 %v1856, %v1798
    %v1859 = vadd.f32 %v1853, %v1857
    %v1860 = vadd.f32 %v1854, %v1858
    %s1861 = sld [smem:[#allocation11 + $0x3]]
    %v1862 = vstv %s1861
    %v1863 = vmul.f32 %v1862, %v1843
    %v1864 = vmul.f32 %v1862, %v1844
    %v1865 = vadd.f32 %v1859, %v1863
    %v1866 = vadd.f32 %v1860, %v1864
    %s1867 = sld [smem:[#allocation11 + $0x80]]
    %v1868 = vstv %s1867
    %v1869 = vmul.f32 %v1868, %v1705
    %v1870 = vmul.f32 %v1868, %v1706
    %s1871 = sld [smem:[#allocation11 + $0x81]]
    %v1872 = vstv %s1871
    %v1873 = vmul.f32 %v1872, %v1751
    %v1874 = vmul.f32 %v1872, %v1752
    %v1875 = vadd.f32 %v1869, %v1873
    %v1876 = vadd.f32 %v1870, %v1874
    %s1877 = sld [smem:[#allocation11 + $0x82]]
    %v1878 = vstv %s1877
    %v1879 = vmul.f32 %v1878, %v1797
    %v1880 = vmul.f32 %v1878, %v1798
    %v1881 = vadd.f32 %v1875, %v1879
    %v1882 = vadd.f32 %v1876, %v1880
    %s1883 = sld [smem:[#allocation11 + $0x83]]
    %v1884 = vstv %s1883
    %v1885 = vmul.f32 %v1884, %v1843
    %v1886 = vmul.f32 %v1884, %v1844
    %v1887 = vadd.f32 %v1881, %v1885
    %v1888 = vadd.f32 %v1882, %v1886
    %s1889 = sld [smem:[#allocation11 + $0x100]]
    %v1890 = vstv %s1889
    %v1891 = vmul.f32 %v1890, %v1705
    %v1892 = vmul.f32 %v1890, %v1706
    %s1893 = sld [smem:[#allocation11 + $0x101]]
    %v1894 = vstv %s1893
    %v1895 = vmul.f32 %v1894, %v1751
    %v1896 = vmul.f32 %v1894, %v1752
    %v1897 = vadd.f32 %v1891, %v1895
    %v1898 = vadd.f32 %v1892, %v1896
    %s1899 = sld [smem:[#allocation11 + $0x102]]
    %v1900 = vstv %s1899
    %v1901 = vmul.f32 %v1900, %v1797
    %v1902 = vmul.f32 %v1900, %v1798
    %v1903 = vadd.f32 %v1897, %v1901
    %v1904 = vadd.f32 %v1898, %v1902
    %s1905 = sld [smem:[#allocation11 + $0x103]]
    %v1906 = vstv %s1905
    %v1907 = vmul.f32 %v1906, %v1843
    %v1908 = vmul.f32 %v1906, %v1844
    %v1909 = vadd.f32 %v1903, %v1907
    %v1910 = vadd.f32 %v1904, %v1908
    %s1911 = sld [smem:[#allocation11 + $0x180]]
    %v1912 = vstv %s1911
    %v1913 = vmul.f32 %v1912, %v1705
    %v1914 = vmul.f32 %v1912, %v1706
    %s1915 = sld [smem:[#allocation11 + $0x181]]
    %v1916 = vstv %s1915
    %v1917 = vmul.f32 %v1916, %v1751
    %v1918 = vmul.f32 %v1916, %v1752
    %v1919 = vadd.f32 %v1913, %v1917
    %v1920 = vadd.f32 %v1914, %v1918
    %s1921 = sld [smem:[#allocation11 + $0x182]]
    %v1922 = vstv %s1921
    %v1923 = vmul.f32 %v1922, %v1797
    %v1924 = vmul.f32 %v1922, %v1798
    %v1925 = vadd.f32 %v1919, %v1923
    %v1926 = vadd.f32 %v1920, %v1924
    %s1927 = sld [smem:[#allocation11 + $0x183]]
    %v1928 = vstv %s1927
    %v1929 = vmul.f32 %v1928, %v1843
    %v1930 = vmul.f32 %v1928, %v1844
    %v1931 = vadd.f32 %v1925, %v1929
    %v1932 = vadd.f32 %v1926, %v1930
    %s1933 = sld [smem:[#allocation11 + $0x200]]
    %v1934 = vstv %s1933
    %v1935 = vmul.f32 %v1934, %v1705
    %v1936 = vmul.f32 %v1934, %v1706
    %s1937 = sld [smem:[#allocation11 + $0x201]]
    %v1938 = vstv %s1937
    %v1939 = vmul.f32 %v1938, %v1751
    %v1940 = vmul.f32 %v1938, %v1752
    %v1941 = vadd.f32 %v1935, %v1939
    %v1942 = vadd.f32 %v1936, %v1940
    %s1943 = sld [smem:[#allocation11 + $0x202]]
    %v1944 = vstv %s1943
    %v1945 = vmul.f32 %v1944, %v1797
    %v1946 = vmul.f32 %v1944, %v1798
    %v1947 = vadd.f32 %v1941, %v1945
    %v1948 = vadd.f32 %v1942, %v1946
    %s1949 = sld [smem:[#allocation11 + $0x203]]
    %v1950 = vstv %s1949
    %v1951 = vmul.f32 %v1950, %v1843
    %v1952 = vmul.f32 %v1950, %v1844
    %v1953 = vadd.f32 %v1947, %v1951
    %v1954 = vadd.f32 %v1948, %v1952
    %s1955 = sld [smem:[#allocation11 + $0x280]]
    %v1956 = vstv %s1955
    %v1957 = vmul.f32 %v1956, %v1705
    %v1958 = vmul.f32 %v1956, %v1706
    %s1959 = sld [smem:[#allocation11 + $0x281]]
    %v1960 = vstv %s1959
    %v1961 = vmul.f32 %v1960, %v1751
    %v1962 = vmul.f32 %v1960, %v1752
    %v1963 = vadd.f32 %v1957, %v1961
    %v1964 = vadd.f32 %v1958, %v1962
    %s1965 = sld [smem:[#allocation11 + $0x282]]
    %v1966 = vstv %s1965
    %v1967 = vmul.f32 %v1966, %v1797
    %v1968 = vmul.f32 %v1966, %v1798
    %v1969 = vadd.f32 %v1963, %v1967
    %v1970 = vadd.f32 %v1964, %v1968
    %s1971 = sld [smem:[#allocation11 + $0x283]]
    %v1972 = vstv %s1971
    %v1973 = vmul.f32 %v1972, %v1843
    %v1974 = vmul.f32 %v1972, %v1844
    %v1975 = vadd.f32 %v1969, %v1973
    %v1976 = vadd.f32 %v1970, %v1974
    %s1977 = sld [smem:[#allocation11 + $0x300]]
    %v1978 = vstv %s1977
    %v1979 = vmul.f32 %v1978, %v1705
    %v1980 = vmul.f32 %v1978, %v1706
    %s1981 = sld [smem:[#allocation11 + $0x301]]
    %v1982 = vstv %s1981
    %v1983 = vmul.f32 %v1982, %v1751
    %v1984 = vmul.f32 %v1982, %v1752
    %v1985 = vadd.f32 %v1979, %v1983
    %v1986 = vadd.f32 %v1980, %v1984
    %s1987 = sld [smem:[#allocation11 + $0x302]]
    %v1988 = vstv %s1987
    %v1989 = vmul.f32 %v1988, %v1797
    %v1990 = vmul.f32 %v1988, %v1798
    %v1991 = vadd.f32 %v1985, %v1989
    %v1992 = vadd.f32 %v1986, %v1990
    %s1993 = sld [smem:[#allocation11 + $0x303]]
    %v1994 = vstv %s1993
    %v1995 = vmul.f32 %v1994, %v1843
    %v1996 = vmul.f32 %v1994, %v1844
    %v1997 = vadd.f32 %v1991, %v1995
    %v1998 = vadd.f32 %v1992, %v1996
    %s1999 = sld [smem:[#allocation11 + $0x380]]
    %v2000 = vstv %s1999
    %v2001 = vmul.f32 %v2000, %v1705
    %v2002 = vmul.f32 %v2000, %v1706
    %s2003 = sld [smem:[#allocation11 + $0x381]]
    %v2004 = vstv %s2003
    %v2005 = vmul.f32 %v2004, %v1751
    %v2006 = vmul.f32 %v2004, %v1752
    %v2007 = vadd.f32 %v2001, %v2005
    %v2008 = vadd.f32 %v2002, %v2006
    %s2009 = sld [smem:[#allocation11 + $0x382]]
    %v2010 = vstv %s2009
    %v2011 = vmul.f32 %v2010, %v1797
    %v2012 = vmul.f32 %v2010, %v1798
    %v2013 = vadd.f32 %v2007, %v2011
    %v2014 = vadd.f32 %v2008, %v2012
    %s2015 = sld [smem:[#allocation11 + $0x383]]
    %v2016 = vstv %s2015
    %v2017 = vmul.f32 %v2016, %v1843
    %v2018 = vmul.f32 %v2016, %v1844
    %v2019 = vadd.f32 %v2013, %v2017
    %v2020 = vadd.f32 %v2014, %v2018
    %v2021 = vadd.f32 %v1067, %v1865
    %v2022 = vadd.f32 %v1082, %v1866
    %v2023 = vadd.f32 %v1097, %v1887
    %v2024 = vadd.f32 %v1112, %v1888
    %v2025 = vadd.f32 %v1127, %v1909
    %v2026 = vadd.f32 %v1142, %v1910
    %v2027 = vadd.f32 %v1157, %v1931
    %v2028 = vadd.f32 %v1172, %v1932
    %v2029 = vadd.f32 %v1187, %v1953
    %v2030 = vadd.f32 %v1202, %v1954
    %v2031 = vadd.f32 %v1217, %v1975
    %v2032 = vadd.f32 %v1232, %v1976
    %v2033 = vadd.f32 %v1247, %v1997
    %v2034 = vadd.f32 %v1262, %v1998
    %v2035 = vadd.f32 %v1277, %v2019
    %v2036 = vadd.f32 %v1292, %v2020
    %v2037 = vmin.f32 %v2021, 20.0
    %v2038 = vmin.f32 %v2022, 20.0
    %v2039 = vmin.f32 %v2023, 20.0
    %v2040 = vmin.f32 %v2024, 20.0
    %v2041 = vmin.f32 %v2025, 20.0
    %v2042 = vmin.f32 %v2026, 20.0
    %v2043 = vmin.f32 %v2027, 20.0
    %v2044 = vmin.f32 %v2028, 20.0
    %v2045 = vmin.f32 %v2029, 20.0
    %v2046 = vmin.f32 %v2030, 20.0
    %v2047 = vmin.f32 %v2031, 20.0
    %v2048 = vmin.f32 %v2032, 20.0
    %v2049 = vmin.f32 %v2033, 20.0
    %v2050 = vmin.f32 %v2034, 20.0
    %v2051 = vmin.f32 %v2035, 20.0
    %v2052 = vmin.f32 %v2036, 20.0
    %v2053 = vmul.f32 %v2037, 1.442695
    %v2054 = vpow.pop %v2053
    %v2055 = vmul.f32 %v2038, 1.442695
    %v2056 = vpow.pop %v2055
    %v2057 = vmul.f32 %v2039, 1.442695
    %v2058 = vpow.pop %v2057
    %v2059 = vmul.f32 %v2040, 1.442695
    %v2060 = vpow.pop %v2059
    %v2061 = vmul.f32 %v2041, 1.442695
    %v2062 = vpow.pop %v2061
    %v2063 = vmul.f32 %v2042, 1.442695
    %v2064 = vpow.pop %v2063
    %v2065 = vmul.f32 %v2043, 1.442695
    %v2066 = vpow.pop %v2065
    %v2067 = vmul.f32 %v2044, 1.442695
    %v2068 = vpow.pop %v2067
    %v2069 = vmul.f32 %v2045, 1.442695
    %v2070 = vpow.pop %v2069
    %v2071 = vmul.f32 %v2046, 1.442695
    %v2072 = vpow.pop %v2071
    %v2073 = vmul.f32 %v2047, 1.442695
    %v2074 = vpow.pop %v2073
    %v2075 = vmul.f32 %v2048, 1.442695
    %v2076 = vpow.pop %v2075
    %v2077 = vmul.f32 %v2049, 1.442695
    %v2078 = vpow.pop %v2077
    %v2079 = vmul.f32 %v2050, 1.442695
    %v2080 = vpow.pop %v2079
    %v2081 = vmul.f32 %v2051, 1.442695
    %v2082 = vpow.pop %v2081
    %v2083 = vmul.f32 %v2052, 1.442695
    %v2084 = vpow.pop %v2083
    %v2085 = vadd.f32 %v2054, 1.0
    %v2086 = vadd.f32 %v2056, 1.0
    %v2087 = vadd.f32 %v2058, 1.0
    %v2088 = vadd.f32 %v2060, 1.0
    %v2089 = vadd.f32 %v2062, 1.0
    %v2090 = vadd.f32 %v2064, 1.0
    %v2091 = vadd.f32 %v2066, 1.0
    %v2092 = vadd.f32 %v2068, 1.0
    %v2093 = vadd.f32 %v2070, 1.0
    %v2094 = vadd.f32 %v2072, 1.0
    %v2095 = vadd.f32 %v2074, 1.0
    %v2096 = vadd.f32 %v2076, 1.0
    %v2097 = vadd.f32 %v2078, 1.0
    %v2098 = vadd.f32 %v2080, 1.0
    %v2099 = vadd.f32 %v2082, 1.0
    %v2100 = vadd.f32 %v2084, 1.0
    %v2101 = vmul.f32 %v2085, %v2085
    %v2102 = vmul.f32 %v2086, %v2086
    %v2103 = vmul.f32 %v2087, %v2087
    %v2104 = vmul.f32 %v2088, %v2088
    %v2105 = vmul.f32 %v2089, %v2089
    %v2106 = vmul.f32 %v2090, %v2090
    %v2107 = vmul.f32 %v2091, %v2091
    %v2108 = vmul.f32 %v2092, %v2092
    %v2109 = vmul.f32 %v2093, %v2093
    %v2110 = vmul.f32 %v2094, %v2094
    %v2111 = vmul.f32 %v2095, %v2095
    %v2112 = vmul.f32 %v2096, %v2096
    %v2113 = vmul.f32 %v2097, %v2097
    %v2114 = vmul.f32 %v2098, %v2098
    %v2115 = vmul.f32 %v2099, %v2099
    %v2116 = vmul.f32 %v2100, %v2100
    %v2117 = vsub.f32 %v2101, 1.0
    %v2118 = vsub.f32 %v2102, 1.0
    %v2119 = vsub.f32 %v2103, 1.0
    %v2120 = vsub.f32 %v2104, 1.0
    %v2121 = vsub.f32 %v2105, 1.0
    %v2122 = vsub.f32 %v2106, 1.0
    %v2123 = vsub.f32 %v2107, 1.0
    %v2124 = vsub.f32 %v2108, 1.0
    %v2125 = vsub.f32 %v2109, 1.0
    %v2126 = vsub.f32 %v2110, 1.0
    %v2127 = vsub.f32 %v2111, 1.0
    %v2128 = vsub.f32 %v2112, 1.0
    %v2129 = vsub.f32 %v2113, 1.0
    %v2130 = vsub.f32 %v2114, 1.0
    %v2131 = vsub.f32 %v2115, 1.0
    %v2132 = vsub.f32 %v2116, 1.0
    %v2133 = vmul.f32 %v2021, %v2117
    %v2134 = vmul.f32 %v2022, %v2118
    %v2135 = vmul.f32 %v2023, %v2119
    %v2136 = vmul.f32 %v2024, %v2120
    %v2137 = vmul.f32 %v2025, %v2121
    %v2138 = vmul.f32 %v2026, %v2122
    %v2139 = vmul.f32 %v2027, %v2123
    %v2140 = vmul.f32 %v2028, %v2124
    %v2141 = vmul.f32 %v2029, %v2125
    %v2142 = vmul.f32 %v2030, %v2126
    %v2143 = vmul.f32 %v2031, %v2127
    %v2144 = vmul.f32 %v2032, %v2128
    %v2145 = vmul.f32 %v2033, %v2129
    %v2146 = vmul.f32 %v2034, %v2130
    %v2147 = vmul.f32 %v2035, %v2131
    %v2148 = vmul.f32 %v2036, %v2132
    %v2149 = vadd.f32 %v2101, 1.0
    %v2150 = vadd.f32 %v2102, 1.0
    %v2151 = vadd.f32 %v2103, 1.0
    %v2152 = vadd.f32 %v2104, 1.0
    %v2153 = vadd.f32 %v2105, 1.0
    %v2154 = vadd.f32 %v2106, 1.0
    %v2155 = vadd.f32 %v2107, 1.0
    %v2156 = vadd.f32 %v2108, 1.0
    %v2157 = vadd.f32 %v2109, 1.0
    %v2158 = vadd.f32 %v2110, 1.0
    %v2159 = vadd.f32 %v2111, 1.0
    %v2160 = vadd.f32 %v2112, 1.0
    %v2161 = vadd.f32 %v2113, 1.0
    %v2162 = vadd.f32 %v2114, 1.0
    %v2163 = vadd.f32 %v2115, 1.0
    %v2164 = vadd.f32 %v2116, 1.0
    %v2165 = vrcp.pop %v2149
    %v2166 = vmul.f32 %v2149, %v2165
    %v2167 = vsub.f32 1.0, %v2166
    %v2168 = vmul.f32 %v2165, %v2167
    %v2169 = vadd.f32 %v2165, %v2168
    %vm2170 = vweird.f32 %v2149
    %vm2171 = vweird.f32 %v2165
    %vm2172 = vmor %vm2170, %vm2171
    %v2173 = vsel %vm2172, %v2165, %v2169
    %v2174 = vand.u32 2147483647, %v2149
    %vm2175 = vcmp.eq.f32.partialorder %v2174, 8.507059e+37
    %v2176 = vand.u32 %v2149, 2147483648
    %v2177 = vor.u32 1.1754944e-38, %v2176
    %v2178 = vsel %vm2175, %v2177, %v2173
    %v2179 = vmul.f32 %v2133, %v2178
    %v2180 = vrcp.pop %v2150
    %v2181 = vmul.f32 %v2150, %v2180
    %v2182 = vsub.f32 1.0, %v2181
    %v2183 = vmul.f32 %v2180, %v2182
    %v2184 = vadd.f32 %v2180, %v2183
    %vm2185 = vweird.f32 %v2150
    %vm2186 = vweird.f32 %v2180
    %vm2187 = vmor %vm2185, %vm2186
    %v2188 = vsel %vm2187, %v2180, %v2184
    %v2189 = vand.u32 2147483647, %v2150
    %vm2190 = vcmp.eq.f32.partialorder %v2189, 8.507059e+37
    %v2191 = vand.u32 %v2150, 2147483648
    %v2192 = vor.u32 1.1754944e-38, %v2191
    %v2193 = vsel %vm2190, %v2192, %v2188
    %v2194 = vmul.f32 %v2134, %v2193
    %v2195 = vrcp.pop %v2151
    %v2196 = vmul.f32 %v2151, %v2195
    %v2197 = vsub.f32 1.0, %v2196
    %v2198 = vmul.f32 %v2195, %v2197
    %v2199 = vadd.f32 %v2195, %v2198
    %vm2200 = vweird.f32 %v2151
    %vm2201 = vweird.f32 %v2195
    %vm2202 = vmor %vm2200, %vm2201
    %v2203 = vsel %vm2202, %v2195, %v2199
    %v2204 = vand.u32 2147483647, %v2151
    %vm2205 = vcmp.eq.f32.partialorder %v2204, 8.507059e+37
    %v2206 = vand.u32 %v2151, 2147483648
    %v2207 = vor.u32 1.1754944e-38, %v2206
    %v2208 = vsel %vm2205, %v2207, %v2203
    %v2209 = vmul.f32 %v2135, %v2208
    %v2210 = vrcp.pop %v2152
    %v2211 = vmul.f32 %v2152, %v2210
    %v2212 = vsub.f32 1.0, %v2211
    %v2213 = vmul.f32 %v2210, %v2212
    %v2214 = vadd.f32 %v2210, %v2213
    %vm2215 = vweird.f32 %v2152
    %vm2216 = vweird.f32 %v2210
    %vm2217 = vmor %vm2215, %vm2216
    %v2218 = vsel %vm2217, %v2210, %v2214
    %v2219 = vand.u32 2147483647, %v2152
    %vm2220 = vcmp.eq.f32.partialorder %v2219, 8.507059e+37
    %v2221 = vand.u32 %v2152, 2147483648
    %v2222 = vor.u32 1.1754944e-38, %v2221
    %v2223 = vsel %vm2220, %v2222, %v2218
    %v2224 = vmul.f32 %v2136, %v2223
    %v2225 = vrcp.pop %v2153
    %v2226 = vmul.f32 %v2153, %v2225
    %v2227 = vsub.f32 1.0, %v2226
    %v2228 = vmul.f32 %v2225, %v2227
    %v2229 = vadd.f32 %v2225, %v2228
    %vm2230 = vweird.f32 %v2153
    %vm2231 = vweird.f32 %v2225
    %vm2232 = vmor %vm2230, %vm2231
    %v2233 = vsel %vm2232, %v2225, %v2229
    %v2234 = vand.u32 2147483647, %v2153
    %vm2235 = vcmp.eq.f32.partialorder %v2234, 8.507059e+37
    %v2236 = vand.u32 %v2153, 2147483648
    %v2237 = vor.u32 1.1754944e-38, %v2236
    %v2238 = vsel %vm2235, %v2237, %v2233
    %v2239 = vmul.f32 %v2137, %v2238
    %v2240 = vrcp.pop %v2154
    %v2241 = vmul.f32 %v2154, %v2240
    %v2242 = vsub.f32 1.0, %v2241
    %v2243 = vmul.f32 %v2240, %v2242
    %v2244 = vadd.f32 %v2240, %v2243
    %vm2245 = vweird.f32 %v2154
    %vm2246 = vweird.f32 %v2240
    %vm2247 = vmor %vm2245, %vm2246
    %v2248 = vsel %vm2247, %v2240, %v2244
    %v2249 = vand.u32 2147483647, %v2154
    %vm2250 = vcmp.eq.f32.partialorder %v2249, 8.507059e+37
    %v2251 = vand.u32 %v2154, 2147483648
    %v2252 = vor.u32 1.1754944e-38, %v2251
    %v2253 = vsel %vm2250, %v2252, %v2248
    %v2254 = vmul.f32 %v2138, %v2253
    %v2255 = vrcp.pop %v2155
    %v2256 = vmul.f32 %v2155, %v2255
    %v2257 = vsub.f32 1.0, %v2256
    %v2258 = vmul.f32 %v2255, %v2257
    %v2259 = vadd.f32 %v2255, %v2258
    %vm2260 = vweird.f32 %v2155
    %vm2261 = vweird.f32 %v2255
    %vm2262 = vmor %vm2260, %vm2261
    %v2263 = vsel %vm2262, %v2255, %v2259
    %v2264 = vand.u32 2147483647, %v2155
    %vm2265 = vcmp.eq.f32.partialorder %v2264, 8.507059e+37
    %v2266 = vand.u32 %v2155, 2147483648
    %v2267 = vor.u32 1.1754944e-38, %v2266
    %v2268 = vsel %vm2265, %v2267, %v2263
    %v2269 = vmul.f32 %v2139, %v2268
    %v2270 = vrcp.pop %v2156
    %v2271 = vmul.f32 %v2156, %v2270
    %v2272 = vsub.f32 1.0, %v2271
    %v2273 = vmul.f32 %v2270, %v2272
    %v2274 = vadd.f32 %v2270, %v2273
    %vm2275 = vweird.f32 %v2156
    %vm2276 = vweird.f32 %v2270
    %vm2277 = vmor %vm2275, %vm2276
    %v2278 = vsel %vm2277, %v2270, %v2274
    %v2279 = vand.u32 2147483647, %v2156
    %vm2280 = vcmp.eq.f32.partialorder %v2279, 8.507059e+37
    %v2281 = vand.u32 %v2156, 2147483648
    %v2282 = vor.u32 1.1754944e-38, %v2281
    %v2283 = vsel %vm2280, %v2282, %v2278
    %v2284 = vmul.f32 %v2140, %v2283
    %v2285 = vrcp.pop %v2157
    %v2286 = vmul.f32 %v2157, %v2285
    %v2287 = vsub.f32 1.0, %v2286
    %v2288 = vmul.f32 %v2285, %v2287
    %v2289 = vadd.f32 %v2285, %v2288
    %vm2290 = vweird.f32 %v2157
    %vm2291 = vweird.f32 %v2285
    %vm2292 = vmor %vm2290, %vm2291
    %v2293 = vsel %vm2292, %v2285, %v2289
    %v2294 = vand.u32 2147483647, %v2157
    %vm2295 = vcmp.eq.f32.partialorder %v2294, 8.507059e+37
    %v2296 = vand.u32 %v2157, 2147483648
    %v2297 = vor.u32 1.1754944e-38, %v2296
    %v2298 = vsel %vm2295, %v2297, %v2293
    %v2299 = vmul.f32 %v2141, %v2298
    %v2300 = vrcp.pop %v2158
    %v2301 = vmul.f32 %v2158, %v2300
    %v2302 = vsub.f32 1.0, %v2301
    %v2303 = vmul.f32 %v2300, %v2302
    %v2304 = vadd.f32 %v2300, %v2303
    %vm2305 = vweird.f32 %v2158
    %vm2306 = vweird.f32 %v2300
    %vm2307 = vmor %vm2305, %vm2306
    %v2308 = vsel %vm2307, %v2300, %v2304
    %v2309 = vand.u32 2147483647, %v2158
    %vm2310 = vcmp.eq.f32.partialorder %v2309, 8.507059e+37
    %v2311 = vand.u32 %v2158, 2147483648
    %v2312 = vor.u32 1.1754944e-38, %v2311
    %v2313 = vsel %vm2310, %v2312, %v2308
    %v2314 = vmul.f32 %v2142, %v2313
    %v2315 = vrcp.pop %v2159
    %v2316 = vmul.f32 %v2159, %v2315
    %v2317 = vsub.f32 1.0, %v2316
    %v2318 = vmul.f32 %v2315, %v2317
    %v2319 = vadd.f32 %v2315, %v2318
    %vm2320 = vweird.f32 %v2159
    %vm2321 = vweird.f32 %v2315
    %vm2322 = vmor %vm2320, %vm2321
    %v2323 = vsel %vm2322, %v2315, %v2319
    %v2324 = vand.u32 2147483647, %v2159
    %vm2325 = vcmp.eq.f32.partialorder %v2324, 8.507059e+37
    %v2326 = vand.u32 %v2159, 2147483648
    %v2327 = vor.u32 1.1754944e-38, %v2326
    %v2328 = vsel %vm2325, %v2327, %v2323
    %v2329 = vmul.f32 %v2143, %v2328
    %v2330 = vrcp.pop %v2160
    %v2331 = vmul.f32 %v2160, %v2330
    %v2332 = vsub.f32 1.0, %v2331
    %v2333 = vmul.f32 %v2330, %v2332
    %v2334 = vadd.f32 %v2330, %v2333
    %vm2335 = vweird.f32 %v2160
    %vm2336 = vweird.f32 %v2330
    %vm2337 = vmor %vm2335, %vm2336
    %v2338 = vsel %vm2337, %v2330, %v2334
    %v2339 = vand.u32 2147483647, %v2160
    %vm2340 = vcmp.eq.f32.partialorder %v2339, 8.507059e+37
    %v2341 = vand.u32 %v2160, 2147483648
    %v2342 = vor.u32 1.1754944e-38, %v2341
    %v2343 = vsel %vm2340, %v2342, %v2338
    %v2344 = vmul.f32 %v2144, %v2343
    %v2345 = vrcp.pop %v2161
    %v2346 = vmul.f32 %v2161, %v2345
    %v2347 = vsub.f32 1.0, %v2346
    %v2348 = vmul.f32 %v2345, %v2347
    %v2349 = vadd.f32 %v2345, %v2348
    %vm2350 = vweird.f32 %v2161
    %vm2351 = vweird.f32 %v2345
    %vm2352 = vmor %vm2350, %vm2351
    %v2353 = vsel %vm2352, %v2345, %v2349
    %v2354 = vand.u32 2147483647, %v2161
    %vm2355 = vcmp.eq.f32.partialorder %v2354, 8.507059e+37
    %v2356 = vand.u32 %v2161, 2147483648
    %v2357 = vor.u32 1.1754944e-38, %v2356
    %v2358 = vsel %vm2355, %v2357, %v2353
    %v2359 = vmul.f32 %v2145, %v2358
    %v2360 = vrcp.pop %v2162
    %v2361 = vmul.f32 %v2162, %v2360
    %v2362 = vsub.f32 1.0, %v2361
    %v2363 = vmul.f32 %v2360, %v2362
    %v2364 = vadd.f32 %v2360, %v2363
    %vm2365 = vweird.f32 %v2162
    %vm2366 = vweird.f32 %v2360
    %vm2367 = vmor %vm2365, %vm2366
    %v2368 = vsel %vm2367, %v2360, %v2364
    %v2369 = vand.u32 2147483647, %v2162
    %vm2370 = vcmp.eq.f32.partialorder %v2369, 8.507059e+37
    %v2371 = vand.u32 %v2162, 2147483648
    %v2372 = vor.u32 1.1754944e-38, %v2371
    %v2373 = vsel %vm2370, %v2372, %v2368
    %v2374 = vmul.f32 %v2146, %v2373
    %v2375 = vrcp.pop %v2163
    %v2376 = vmul.f32 %v2163, %v2375
    %v2377 = vsub.f32 1.0, %v2376
    %v2378 = vmul.f32 %v2375, %v2377
    %v2379 = vadd.f32 %v2375, %v2378
    %vm2380 = vweird.f32 %v2163
    %vm2381 = vweird.f32 %v2375
    %vm2382 = vmor %vm2380, %vm2381
    %v2383 = vsel %vm2382, %v2375, %v2379
    %v2384 = vand.u32 2147483647, %v2163
    %vm2385 = vcmp.eq.f32.partialorder %v2384, 8.507059e+37
    %v2386 = vand.u32 %v2163, 2147483648
    %v2387 = vor.u32 1.1754944e-38, %v2386
    %v2388 = vsel %vm2385, %v2387, %v2383
    %v2389 = vmul.f32 %v2147, %v2388
    %v2390 = vrcp.pop %v2164
    %v2391 = vmul.f32 %v2164, %v2390
    %v2392 = vsub.f32 1.0, %v2391
    %v2393 = vmul.f32 %v2390, %v2392
    %v2394 = vadd.f32 %v2390, %v2393
    %vm2395 = vweird.f32 %v2164
    %vm2396 = vweird.f32 %v2390
    %vm2397 = vmor %vm2395, %vm2396
    %v2398 = vsel %vm2397, %v2390, %v2394
    %v2399 = vand.u32 2147483647, %v2164
    %vm2400 = vcmp.eq.f32.partialorder %v2399, 8.507059e+37
    %v2401 = vand.u32 %v2164, 2147483648
    %v2402 = vor.u32 1.1754944e-38, %v2401
    %v2403 = vsel %vm2400, %v2402, %v2398
    %v2404 = vmul.f32 %v2148, %v2403
    %s2405 = sld [smem:[#allocation2]]
    %v2406 = vperm.slane %v313, 0
    %v2407 = vperm.slane %v335, 0
    %v2408 = vperm.slane %v357, 0
    %v2409 = vperm.slane %v379, 0
    %v2410 = vperm.slane %v401, 0
    %v2411 = vperm.slane %v423, 0
    %v2412 = vperm.slane %v445, 0
    %v2413 = vperm.slane %v467, 0
    %v2414 = vmul.f32 %v313, %v2406
    %v2415 = vmul.f32 %v314, %v2406
    %v2416 = vmul.f32 %v335, %v2407
    %v2417 = vmul.f32 %v336, %v2407
    %v2418 = vmul.f32 %v357, %v2408
    %v2419 = vmul.f32 %v358, %v2408
    %v2420 = vmul.f32 %v379, %v2409
    %v2421 = vmul.f32 %v380, %v2409
    %v2422 = vmul.f32 %v401, %v2410
    %v2423 = vmul.f32 %v402, %v2410
    %v2424 = vmul.f32 %v423, %v2411
    %v2425 = vmul.f32 %v424, %v2411
    %v2426 = vmul.f32 %v445, %v2412
    %v2427 = vmul.f32 %v446, %v2412
    %v2428 = vmul.f32 %v467, %v2413
    %v2429 = vmul.f32 %v468, %v2413
    %v2430 = vadd.f32 %v2414, %v2416
    %v2431 = vadd.f32 %v2430, %v2418
    %v2432 = vadd.f32 %v2431, %v2420
    %v2433 = vadd.f32 %v2432, %v2422
    %v2434 = vadd.f32 %v2433, %v2424
    %v2435 = vadd.f32 %v2434, %v2426
    %v2436 = vadd.f32 %v2435, %v2428
    %v2437 = vadd.f32 %v2415, %v2417
    %v2438 = vadd.f32 %v2437, %v2419
    %v2439 = vadd.f32 %v2438, %v2421
    %v2440 = vadd.f32 %v2439, %v2423
    %v2441 = vadd.f32 %v2440, %v2425
    %v2442 = vadd.f32 %v2441, %v2427
    %v2443 = vadd.f32 %v2442, %v2429
    %v2444 = vmax.f32 %v2436, %v2443
    %v2445 = vrot.slane %v2444, 4
    %v2446 = vmax.f32 %v2444, %v2445
    %v2447 = vrot.slane %v2446, 2
    %v2448 = vmax.f32 %v2446, %v2447
    %v2449 = vrot.slane %v2448, 1
    %v2450 = vmax.f32 %v2448, %v2449
    %v2451 = vsub.f32 %v2436, %v2450
    %v2452 = vsub.f32 %v2443, %v2450
    %v2453 = vmul.f32 %v2451, 1.442695
    %v2454 = vpow.pop %v2453
    %v2455 = vmul.f32 %v2452, 1.442695
    %v2456 = vpow.pop %v2455
    %v2457 = vadd.f32 %v2454, %v2456
    %v2458 = vrot.slane %v2457, 4
    %v2459 = vadd.f32 %v2457, %v2458
    %v2460 = vrot.slane %v2459, 2
    %v2461 = vadd.f32 %v2459, %v2460
    %v2462 = vrot.slane %v2461, 1
    %v2463 = vadd.f32 %v2461, %v2462
    %v2464 = vrcp.pop %v2463
    %v2465 = vmul.f32 %v2179, %v2464
    %v2466 = vmul.f32 %v2209, %v2464
    %v2467 = vmul.f32 %v2239, %v2464
    %v2468 = vmul.f32 %v2269, %v2464
    %v2469 = vmul.f32 %v2299, %v2464
    %v2470 = vmul.f32 %v2329, %v2464
    %v2471 = vmul.f32 %v2359, %v2464
    %v2472 = vmul.f32 %v2389, %v2464
    %v2473 = vperm.slane %v2465, 0
    %v2474 = vperm.slane %v2466, 0
    %v2475 = vperm.slane %v2467, 0
    %v2476 = vperm.slane %v2468, 0
    %v2477 = vperm.slane %v2469, 0
    %v2478 = vperm.slane %v2470, 0
    %v2479 = vperm.slane %v2471, 0
    %v2480 = vperm.slane %v2472, 0
    %v2481 = vmul.f32 %v2454, %v2473
    %v2482 = vmul.f32 %v2456, %v2473
    %v2483 = vmul.f32 %v2454, %v2474
    %v2484 = vmul.f32 %v2456, %v2474
    %v2485 = vmul.f32 %v2454, %v2475
    %v2486 = vmul.f32 %v2456, %v2475
    %v2487 = vmul.f32 %v2454, %v2476
    %v2488 = vmul.f32 %v2456, %v2476
    %v2489 = vmul.f32 %v2454, %v2477
    %v2490 = vmul.f32 %v2456, %v2477
    %v2491 = vmul.f32 %v2454, %v2478
    %v2492 = vmul.f32 %v2456, %v2478
    %v2493 = vmul.f32 %v2454, %v2479
    %v2494 = vmul.f32 %v2456, %v2479
    %v2495 = vmul.f32 %v2454, %v2480
    %v2496 = vmul.f32 %v2456, %v2480
    %v2497 = vadd.f32 %v2481, 0.0
    %v2498 = vadd.f32 %v2482, 0.0
    %v2499 = vadd.f32 %v2483, 0.0
    %v2500 = vadd.f32 %v2484, 0.0
    %v2501 = vadd.f32 %v2485, 0.0
    %v2502 = vadd.f32 %v2486, 0.0
    %v2503 = vadd.f32 %v2487, 0.0
    %v2504 = vadd.f32 %v2488, 0.0
    %v2505 = vadd.f32 %v2489, 0.0
    %v2506 = vadd.f32 %v2490, 0.0
    %v2507 = vadd.f32 %v2491, 0.0
    %v2508 = vadd.f32 %v2492, 0.0
    %v2509 = vadd.f32 %v2493, 0.0
    %v2510 = vadd.f32 %v2494, 0.0
    %v2511 = vadd.f32 %v2495, 0.0
    %v2512 = vadd.f32 %v2496, 0.0
    %v2513 = vperm.slane %v313, 1
    %v2514 = vperm.slane %v335, 1
    %v2515 = vperm.slane %v357, 1
    %v2516 = vperm.slane %v379, 1
    %v2517 = vperm.slane %v401, 1
    %v2518 = vperm.slane %v423, 1
    %v2519 = vperm.slane %v445, 1
    %v2520 = vperm.slane %v467, 1
    %v2521 = vmul.f32 %v313, %v2513
    %v2522 = vmul.f32 %v314, %v2513
    %v2523 = vmul.f32 %v335, %v2514
    %v2524 = vmul.f32 %v336, %v2514
    %v2525 = vmul.f32 %v357, %v2515
    %v2526 = vmul.f32 %v358, %v2515
    %v2527 = vmul.f32 %v379, %v2516
    %v2528 = vmul.f32 %v380, %v2516
    %v2529 = vmul.f32 %v401, %v2517
    %v2530 = vmul.f32 %v402, %v2517
    %v2531 = vmul.f32 %v423, %v2518
    %v2532 = vmul.f32 %v424, %v2518
    %v2533 = vmul.f32 %v445, %v2519
    %v2534 = vmul.f32 %v446, %v2519
    %v2535 = vmul.f32 %v467, %v2520
    %v2536 = vmul.f32 %v468, %v2520
    %v2537 = vadd.f32 %v2521, %v2523
    %v2538 = vadd.f32 %v2537, %v2525
    %v2539 = vadd.f32 %v2538, %v2527
    %v2540 = vadd.f32 %v2539, %v2529
    %v2541 = vadd.f32 %v2540, %v2531
    %v2542 = vadd.f32 %v2541, %v2533
    %v2543 = vadd.f32 %v2542, %v2535
    %v2544 = vadd.f32 %v2522, %v2524
    %v2545 = vadd.f32 %v2544, %v2526
    %v2546 = vadd.f32 %v2545, %v2528
    %v2547 = vadd.f32 %v2546, %v2530
    %v2548 = vadd.f32 %v2547, %v2532
    %v2549 = vadd.f32 %v2548, %v2534
    %v2550 = vadd.f32 %v2549, %v2536
    %v2551 = vmax.f32 %v2543, %v2550
    %v2552 = vrot.slane %v2551, 4
    %v2553 = vmax.f32 %v2551, %v2552
    %v2554 = vrot.slane %v2553, 2
    %v2555 = vmax.f32 %v2553, %v2554
    %v2556 = vrot.slane %v2555, 1
    %v2557 = vmax.f32 %v2555, %v2556
    %v2558 = vsub.f32 %v2543, %v2557
    %v2559 = vsub.f32 %v2550, %v2557
    %v2560 = vmul.f32 %v2558, 1.442695
    %v2561 = vpow.pop %v2560
    %v2562 = vmul.f32 %v2559, 1.442695
    %v2563 = vpow.pop %v2562
    %v2564 = vadd.f32 %v2561, %v2563
    %v2565 = vrot.slane %v2564, 4
    %v2566 = vadd.f32 %v2564, %v2565
    %v2567 = vrot.slane %v2566, 2
    %v2568 = vadd.f32 %v2566, %v2567
    %v2569 = vrot.slane %v2568, 1
    %v2570 = vadd.f32 %v2568, %v2569
    %v2571 = vrcp.pop %v2570
    %v2572 = vmul.f32 %v2179, %v2571
    %v2573 = vmul.f32 %v2209, %v2571
    %v2574 = vmul.f32 %v2239, %v2571
    %v2575 = vmul.f32 %v2269, %v2571
    %v2576 = vmul.f32 %v2299, %v2571
    %v2577 = vmul.f32 %v2329, %v2571
    %v2578 = vmul.f32 %v2359, %v2571
    %v2579 = vmul.f32 %v2389, %v2571
    %v2580 = vperm.slane %v2572, 1
    %v2581 = vperm.slane %v2573, 1
    %v2582 = vperm.slane %v2574, 1
    %v2583 = vperm.slane %v2575, 1
    %v2584 = vperm.slane %v2576, 1
    %v2585 = vperm.slane %v2577, 1
    %v2586 = vperm.slane %v2578, 1
    %v2587 = vperm.slane %v2579, 1
    %v2588 = vmul.f32 %v2561, %v2580
    %v2589 = vmul.f32 %v2563, %v2580
    %v2590 = vmul.f32 %v2561, %v2581
    %v2591 = vmul.f32 %v2563, %v2581
    %v2592 = vmul.f32 %v2561, %v2582
    %v2593 = vmul.f32 %v2563, %v2582
    %v2594 = vmul.f32 %v2561, %v2583
    %v2595 = vmul.f32 %v2563, %v2583
    %v2596 = vmul.f32 %v2561, %v2584
    %v2597 = vmul.f32 %v2563, %v2584
    %v2598 = vmul.f32 %v2561, %v2585
    %v2599 = vmul.f32 %v2563, %v2585
    %v2600 = vmul.f32 %v2561, %v2586
    %v2601 = vmul.f32 %v2563, %v2586
    %v2602 = vmul.f32 %v2561, %v2587
    %v2603 = vmul.f32 %v2563, %v2587
    %v2604 = vadd.f32 %v2497, %v2588
    %v2605 = vadd.f32 %v2498, %v2589
    %v2606 = vadd.f32 %v2499, %v2590
    %v2607 = vadd.f32 %v2500, %v2591
    %v2608 = vadd.f32 %v2501, %v2592
    %v2609 = vadd.f32 %v2502, %v2593
    %v2610 = vadd.f32 %v2503, %v2594
    %v2611 = vadd.f32 %v2504, %v2595
    %v2612 = vadd.f32 %v2505, %v2596
    %v2613 = vadd.f32 %v2506, %v2597
    %v2614 = vadd.f32 %v2507, %v2598
    %v2615 = vadd.f32 %v2508, %v2599
    %v2616 = vadd.f32 %v2509, %v2600
    %v2617 = vadd.f32 %v2510, %v2601
    %v2618 = vadd.f32 %v2511, %v2602
    %v2619 = vadd.f32 %v2512, %v2603
    %v2620 = vperm.slane %v313, 2
    %v2621 = vperm.slane %v335, 2
    %v2622 = vperm.slane %v357, 2
    %v2623 = vperm.slane %v379, 2
    %v2624 = vperm.slane %v401, 2
    %v2625 = vperm.slane %v423, 2
    %v2626 = vperm.slane %v445, 2
    %v2627 = vperm.slane %v467, 2
    %v2628 = vmul.f32 %v313, %v2620
    %v2629 = vmul.f32 %v314, %v2620
    %v2630 = vmul.f32 %v335, %v2621
    %v2631 = vmul.f32 %v336, %v2621
    %v2632 = vmul.f32 %v357, %v2622
    %v2633 = vmul.f32 %v358, %v2622
    %v2634 = vmul.f32 %v379, %v2623
    %v2635 = vmul.f32 %v380, %v2623
    %v2636 = vmul.f32 %v401, %v2624
    %v2637 = vmul.f32 %v402, %v2624
    %v2638 = vmul.f32 %v423, %v2625
    %v2639 = vmul.f32 %v424, %v2625
    %v2640 = vmul.f32 %v445, %v2626
    %v2641 = vmul.f32 %v446, %v2626
    %v2642 = vmul.f32 %v467, %v2627
    %v2643 = vmul.f32 %v468, %v2627
    %v2644 = vadd.f32 %v2628, %v2630
    %v2645 = vadd.f32 %v2644, %v2632
    %v2646 = vadd.f32 %v2645, %v2634
    %v2647 = vadd.f32 %v2646, %v2636
    %v2648 = vadd.f32 %v2647, %v2638
    %v2649 = vadd.f32 %v2648, %v2640
    %v2650 = vadd.f32 %v2649, %v2642
    %v2651 = vadd.f32 %v2629, %v2631
    %v2652 = vadd.f32 %v2651, %v2633
    %v2653 = vadd.f32 %v2652, %v2635
    %v2654 = vadd.f32 %v2653, %v2637
    %v2655 = vadd.f32 %v2654, %v2639
    %v2656 = vadd.f32 %v2655, %v2641
    %v2657 = vadd.f32 %v2656, %v2643
    %v2658 = vmax.f32 %v2650, %v2657
    %v2659 = vrot.slane %v2658, 4
    %v2660 = vmax.f32 %v2658, %v2659
    %v2661 = vrot.slane %v2660, 2
    %v2662 = vmax.f32 %v2660, %v2661
    %v2663 = vrot.slane %v2662, 1
    %v2664 = vmax.f32 %v2662, %v2663
    %v2665 = vsub.f32 %v2650, %v2664
    %v2666 = vsub.f32 %v2657, %v2664
    %v2667 = vmul.f32 %v2665, 1.442695
    %v2668 = vpow.pop %v2667
    %v2669 = vmul.f32 %v2666, 1.442695
    %v2670 = vpow.pop %v2669
    %v2671 = vadd.f32 %v2668, %v2670
    %v2672 = vrot.slane %v2671, 4
    %v2673 = vadd.f32 %v2671, %v2672
    %v2674 = vrot.slane %v2673, 2
    %v2675 = vadd.f32 %v2673, %v2674
    %v2676 = vrot.slane %v2675, 1
    %v2677 = vadd.f32 %v2675, %v2676
    %v2678 = vrcp.pop %v2677
    %v2679 = vmul.f32 %v2179, %v2678
    %v2680 = vmul.f32 %v2209, %v2678
    %v2681 = vmul.f32 %v2239, %v2678
    %v2682 = vmul.f32 %v2269, %v2678
    %v2683 = vmul.f32 %v2299, %v2678
    %v2684 = vmul.f32 %v2329, %v2678
    %v2685 = vmul.f32 %v2359, %v2678
    %v2686 = vmul.f32 %v2389, %v2678
    %v2687 = vperm.slane %v2679, 2
    %v2688 = vperm.slane %v2680, 2
    %v2689 = vperm.slane %v2681, 2
    %v2690 = vperm.slane %v2682, 2
    %v2691 = vperm.slane %v2683, 2
    %v2692 = vperm.slane %v2684, 2
    %v2693 = vperm.slane %v2685, 2
    %v2694 = vperm.slane %v2686, 2
    %v2695 = vmul.f32 %v2668, %v2687
    %v2696 = vmul.f32 %v2670, %v2687
    %v2697 = vmul.f32 %v2668, %v2688
    %v2698 = vmul.f32 %v2670, %v2688
    %v2699 = vmul.f32 %v2668, %v2689
    %v2700 = vmul.f32 %v2670, %v2689
    %v2701 = vmul.f32 %v2668, %v2690
    %v2702 = vmul.f32 %v2670, %v2690
    %v2703 = vmul.f32 %v2668, %v2691
    %v2704 = vmul.f32 %v2670, %v2691
    %v2705 = vmul.f32 %v2668, %v2692
    %v2706 = vmul.f32 %v2670, %v2692
    %v2707 = vmul.f32 %v2668, %v2693
    %v2708 = vmul.f32 %v2670, %v2693
    %v2709 = vmul.f32 %v2668, %v2694
    %v2710 = vmul.f32 %v2670, %v2694
    %v2711 = vadd.f32 %v2604, %v2695
    %v2712 = vadd.f32 %v2605, %v2696
    %v2713 = vadd.f32 %v2606, %v2697
    %v2714 = vadd.f32 %v2607, %v2698
    %v2715 = vadd.f32 %v2608, %v2699
    %v2716 = vadd.f32 %v2609, %v2700
    %v2717 = vadd.f32 %v2610, %v2701
    %v2718 = vadd.f32 %v2611, %v2702
    %v2719 = vadd.f32 %v2612, %v2703
    %v2720 = vadd.f32 %v2613, %v2704
    %v2721 = vadd.f32 %v2614, %v2705
    %v2722 = vadd.f32 %v2615, %v2706
    %v2723 = vadd.f32 %v2616, %v2707
    %v2724 = vadd.f32 %v2617, %v2708
    %v2725 = vadd.f32 %v2618, %v2709
    %v2726 = vadd.f32 %v2619, %v2710
    %v2727 = vperm.slane %v313, 3
    %v2728 = vperm.slane %v335, 3
    %v2729 = vperm.slane %v357, 3
    %v2730 = vperm.slane %v379, 3
    %v2731 = vperm.slane %v401, 3
    %v2732 = vperm.slane %v423, 3
    %v2733 = vperm.slane %v445, 3
    %v2734 = vperm.slane %v467, 3
    %v2735 = vmul.f32 %v313, %v2727
    %v2736 = vmul.f32 %v314, %v2727
    %v2737 = vmul.f32 %v335, %v2728
    %v2738 = vmul.f32 %v336, %v2728
    %v2739 = vmul.f32 %v357, %v2729
    %v2740 = vmul.f32 %v358, %v2729
    %v2741 = vmul.f32 %v379, %v2730
    %v2742 = vmul.f32 %v380, %v2730
    %v2743 = vmul.f32 %v401, %v2731
    %v2744 = vmul.f32 %v402, %v2731
    %v2745 = vmul.f32 %v423, %v2732
    %v2746 = vmul.f32 %v424, %v2732
    %v2747 = vmul.f32 %v445, %v2733
    %v2748 = vmul.f32 %v446, %v2733
    %v2749 = vmul.f32 %v467, %v2734
    %v2750 = vmul.f32 %v468, %v2734
    %v2751 = vadd.f32 %v2735, %v2737
    %v2752 = vadd.f32 %v2751, %v2739
    %v2753 = vadd.f32 %v2752, %v2741
    %v2754 = vadd.f32 %v2753, %v2743
    %v2755 = vadd.f32 %v2754, %v2745
    %v2756 = vadd.f32 %v2755, %v2747
    %v2757 = vadd.f32 %v2756, %v2749
    %v2758 = vadd.f32 %v2736, %v2738
    %v2759 = vadd.f32 %v2758, %v2740
    %v2760 = vadd.f32 %v2759, %v2742
    %v2761 = vadd.f32 %v2760, %v2744
    %v2762 = vadd.f32 %v2761, %v2746
    %v2763 = vadd.f32 %v2762, %v2748
    %v2764 = vadd.f32 %v2763, %v2750
    %v2765 = vmax.f32 %v2757, %v2764
    %v2766 = vrot.slane %v2765, 4
    %v2767 = vmax.f32 %v2765, %v2766
    %v2768 = vrot.slane %v2767, 2
    %v2769 = vmax.f32 %v2767, %v2768
    %v2770 = vrot.slane %v2769, 1
    %v2771 = vmax.f32 %v2769, %v2770
    %v2772 = vsub.f32 %v2757, %v2771
    %v2773 = vsub.f32 %v2764, %v2771
    %v2774 = vmul.f32 %v2772, 1.442695
    %v2775 = vpow.pop %v2774
    %v2776 = vmul.f32 %v2773, 1.442695
    %v2777 = vpow.pop %v2776
    %v2778 = vadd.f32 %v2775, %v2777
    %v2779 = vrot.slane %v2778, 4
    %v2780 = vadd.f32 %v2778, %v2779
    %v2781 = vrot.slane %v2780, 2
    %v2782 = vadd.f32 %v2780, %v2781
    %v2783 = vrot.slane %v2782, 1
    %v2784 = vadd.f32 %v2782, %v2783
    %v2785 = vrcp.pop %v2784
    %v2786 = vmul.f32 %v2179, %v2785
    %v2787 = vmul.f32 %v2209, %v2785
    %v2788 = vmul.f32 %v2239, %v2785
    %v2789 = vmul.f32 %v2269, %v2785
    %v2790 = vmul.f32 %v2299, %v2785
    %v2791 = vmul.f32 %v2329, %v2785
    %v2792 = vmul.f32 %v2359, %v2785
    %v2793 = vmul.f32 %v2389, %v2785
    %v2794 = vperm.slane %v2786, 3
    %v2795 = vperm.slane %v2787, 3
    %v2796 = vperm.slane %v2788, 3
    %v2797 = vperm.slane %v2789, 3
    %v2798 = vperm.slane %v2790, 3
    %v2799 = vperm.slane %v2791, 3
    %v2800 = vperm.slane %v2792, 3
    %v2801 = vperm.slane %v2793, 3
    %v2802 = vmul.f32 %v2775, %v2794
    %v2803 = vmul.f32 %v2777, %v2794
    %v2804 = vmul.f32 %v2775, %v2795
    %v2805 = vmul.f32 %v2777, %v2795
    %v2806 = vmul.f32 %v2775, %v2796
    %v2807 = vmul.f32 %v2777, %v2796
    %v2808 = vmul.f32 %v2775, %v2797
    %v2809 = vmul.f32 %v2777, %v2797
    %v2810 = vmul.f32 %v2775, %v2798
    %v2811 = vmul.f32 %v2777, %v2798
    %v2812 = vmul.f32 %v2775, %v2799
    %v2813 = vmul.f32 %v2777, %v2799
    %v2814 = vmul.f32 %v2775, %v2800
    %v2815 = vmul.f32 %v2777, %v2800
    %v2816 = vmul.f32 %v2775, %v2801
    %v2817 = vmul.f32 %v2777, %v2801
    %v2818 = vadd.f32 %v2711, %v2802
    %v2819 = vadd.f32 %v2712, %v2803
    %v2820 = vadd.f32 %v2713, %v2804
    %v2821 = vadd.f32 %v2714, %v2805
    %v2822 = vadd.f32 %v2715, %v2806
    %v2823 = vadd.f32 %v2716, %v2807
    %v2824 = vadd.f32 %v2717, %v2808
    %v2825 = vadd.f32 %v2718, %v2809
    %v2826 = vadd.f32 %v2719, %v2810
    %v2827 = vadd.f32 %v2720, %v2811
    %v2828 = vadd.f32 %v2721, %v2812
    %v2829 = vadd.f32 %v2722, %v2813
    %v2830 = vadd.f32 %v2723, %v2814
    %v2831 = vadd.f32 %v2724, %v2815
    %v2832 = vadd.f32 %v2725, %v2816
    %v2833 = vadd.f32 %v2726, %v2817
    %v2834 = vperm.slane %v313, 4
    %v2835 = vperm.slane %v335, 4
    %v2836 = vperm.slane %v357, 4
    %v2837 = vperm.slane %v379, 4
    %v2838 = vperm.slane %v401, 4
    %v2839 = vperm.slane %v423, 4
    %v2840 = vperm.slane %v445, 4
    %v2841 = vperm.slane %v467, 4
    %v2842 = vmul.f32 %v313, %v2834
    %v2843 = vmul.f32 %v314, %v2834
    %v2844 = vmul.f32 %v335, %v2835
    %v2845 = vmul.f32 %v336, %v2835
    %v2846 = vmul.f32 %v357, %v2836
    %v2847 = vmul.f32 %v358, %v2836
    %v2848 = vmul.f32 %v379, %v2837
    %v2849 = vmul.f32 %v380, %v2837
    %v2850 = vmul.f32 %v401, %v2838
    %v2851 = vmul.f32 %v402, %v2838
    %v2852 = vmul.f32 %v423, %v2839
    %v2853 = vmul.f32 %v424, %v2839
    %v2854 = vmul.f32 %v445, %v2840
    %v2855 = vmul.f32 %v446, %v2840
    %v2856 = vmul.f32 %v467, %v2841
    %v2857 = vmul.f32 %v468, %v2841
    %v2858 = vadd.f32 %v2842, %v2844
    %v2859 = vadd.f32 %v2858, %v2846
    %v2860 = vadd.f32 %v2859, %v2848
    %v2861 = vadd.f32 %v2860, %v2850
    %v2862 = vadd.f32 %v2861, %v2852
    %v2863 = vadd.f32 %v2862, %v2854
    %v2864 = vadd.f32 %v2863, %v2856
    %v2865 = vadd.f32 %v2843, %v2845
    %v2866 = vadd.f32 %v2865, %v2847
    %v2867 = vadd.f32 %v2866, %v2849
    %v2868 = vadd.f32 %v2867, %v2851
    %v2869 = vadd.f32 %v2868, %v2853
    %v2870 = vadd.f32 %v2869, %v2855
    %v2871 = vadd.f32 %v2870, %v2857
    %v2872 = vmax.f32 %v2864, %v2871
    %v2873 = vrot.slane %v2872, 4
    %v2874 = vmax.f32 %v2872, %v2873
    %v2875 = vrot.slane %v2874, 2
    %v2876 = vmax.f32 %v2874, %v2875
    %v2877 = vrot.slane %v2876, 1
    %v2878 = vmax.f32 %v2876, %v2877
    %v2879 = vsub.f32 %v2864, %v2878
    %v2880 = vsub.f32 %v2871, %v2878
    %v2881 = vmul.f32 %v2879, 1.442695
    %v2882 = vpow.pop %v2881
    %v2883 = vmul.f32 %v2880, 1.442695
    %v2884 = vpow.pop %v2883
    %v2885 = vadd.f32 %v2882, %v2884
    %v2886 = vrot.slane %v2885, 4
    %v2887 = vadd.f32 %v2885, %v2886
    %v2888 = vrot.slane %v2887, 2
    %v2889 = vadd.f32 %v2887, %v2888
    %v2890 = vrot.slane %v2889, 1
    %v2891 = vadd.f32 %v2889, %v2890
    %v2892 = vrcp.pop %v2891
    %v2893 = vmul.f32 %v2179, %v2892
    %v2894 = vmul.f32 %v2209, %v2892
    %v2895 = vmul.f32 %v2239, %v2892
    %v2896 = vmul.f32 %v2269, %v2892
    %v2897 = vmul.f32 %v2299, %v2892
    %v2898 = vmul.f32 %v2329, %v2892
    %v2899 = vmul.f32 %v2359, %v2892
    %v2900 = vmul.f32 %v2389, %v2892
    %v2901 = vperm.slane %v2893, 4
    %v2902 = vperm.slane %v2894, 4
    %v2903 = vperm.slane %v2895, 4
    %v2904 = vperm.slane %v2896, 4
    %v2905 = vperm.slane %v2897, 4
    %v2906 = vperm.slane %v2898, 4
    %v2907 = vperm.slane %v2899, 4
    %v2908 = vperm.slane %v2900, 4
    %v2909 = vmul.f32 %v2882, %v2901
    %v2910 = vmul.f32 %v2884, %v2901
    %v2911 = vmul.f32 %v2882, %v2902
    %v2912 = vmul.f32 %v2884, %v2902
    %v2913 = vmul.f32 %v2882, %v2903
    %v2914 = vmul.f32 %v2884, %v2903
    %v2915 = vmul.f32 %v2882, %v2904
    %v2916 = vmul.f32 %v2884, %v2904
    %v2917 = vmul.f32 %v2882, %v2905
    %v2918 = vmul.f32 %v2884, %v2905
    %v2919 = vmul.f32 %v2882, %v2906
    %v2920 = vmul.f32 %v2884, %v2906
    %v2921 = vmul.f32 %v2882, %v2907
    %v2922 = vmul.f32 %v2884, %v2907
    %v2923 = vmul.f32 %v2882, %v2908
    %v2924 = vmul.f32 %v2884, %v2908
    %v2925 = vadd.f32 %v2818, %v2909
    %v2926 = vadd.f32 %v2819, %v2910
    %v2927 = vadd.f32 %v2820, %v2911
    %v2928 = vadd.f32 %v2821, %v2912
    %v2929 = vadd.f32 %v2822, %v2913
    %v2930 = vadd.f32 %v2823, %v2914
    %v2931 = vadd.f32 %v2824, %v2915
    %v2932 = vadd.f32 %v2825, %v2916
    %v2933 = vadd.f32 %v2826, %v2917
    %v2934 = vadd.f32 %v2827, %v2918
    %v2935 = vadd.f32 %v2828, %v2919
    %v2936 = vadd.f32 %v2829, %v2920
    %v2937 = vadd.f32 %v2830, %v2921
    %v2938 = vadd.f32 %v2831, %v2922
    %v2939 = vadd.f32 %v2832, %v2923
    %v2940 = vadd.f32 %v2833, %v2924
    %v2941 = vperm.slane %v313, 5
    %v2942 = vperm.slane %v335, 5
    %v2943 = vperm.slane %v357, 5
    %v2944 = vperm.slane %v379, 5
    %v2945 = vperm.slane %v401, 5
    %v2946 = vperm.slane %v423, 5
    %v2947 = vperm.slane %v445, 5
    %v2948 = vperm.slane %v467, 5
    %v2949 = vmul.f32 %v313, %v2941
    %v2950 = vmul.f32 %v314, %v2941
    %v2951 = vmul.f32 %v335, %v2942
    %v2952 = vmul.f32 %v336, %v2942
    %v2953 = vmul.f32 %v357, %v2943
    %v2954 = vmul.f32 %v358, %v2943
    %v2955 = vmul.f32 %v379, %v2944
    %v2956 = vmul.f32 %v380, %v2944
    %v2957 = vmul.f32 %v401, %v2945
    %v2958 = vmul.f32 %v402, %v2945
    %v2959 = vmul.f32 %v423, %v2946
    %v2960 = vmul.f32 %v424, %v2946
    %v2961 = vmul.f32 %v445, %v2947
    %v2962 = vmul.f32 %v446, %v2947
    %v2963 = vmul.f32 %v467, %v2948
    %v2964 = vmul.f32 %v468, %v2948
    %v2965 = vadd.f32 %v2949, %v2951
    %v2966 = vadd.f32 %v2965, %v2953
    %v2967 = vadd.f32 %v2966, %v2955
    %v2968 = vadd.f32 %v2967, %v2957
    %v2969 = vadd.f32 %v2968, %v2959
    %v2970 = vadd.f32 %v2969, %v2961
    %v2971 = vadd.f32 %v2970, %v2963
    %v2972 = vadd.f32 %v2950, %v2952
    %v2973 = vadd.f32 %v2972, %v2954
    %v2974 = vadd.f32 %v2973, %v2956
    %v2975 = vadd.f32 %v2974, %v2958
    %v2976 = vadd.f32 %v2975, %v2960
    %v2977 = vadd.f32 %v2976, %v2962
    %v2978 = vadd.f32 %v2977, %v2964
    %v2979 = vmax.f32 %v2971, %v2978
    %v2980 = vrot.slane %v2979, 4
    %v2981 = vmax.f32 %v2979, %v2980
    %v2982 = vrot.slane %v2981, 2
    %v2983 = vmax.f32 %v2981, %v2982
    %v2984 = vrot.slane %v2983, 1
    %v2985 = vmax.f32 %v2983, %v2984
    %v2986 = vsub.f32 %v2971, %v2985
    %v2987 = vsub.f32 %v2978, %v2985
    %v2988 = vmul.f32 %v2986, 1.442695
    %v2989 = vpow.pop %v2988
    %v2990 = vmul.f32 %v2987, 1.442695
    %v2991 = vpow.pop %v2990
    %v2992 = vadd.f32 %v2989, %v2991
    %v2993 = vrot.slane %v2992, 4
    %v2994 = vadd.f32 %v2992, %v2993
    %v2995 = vrot.slane %v2994, 2
    %v2996 = vadd.f32 %v2994, %v2995
    %v2997 = vrot.slane %v2996, 1
    %v2998 = vadd.f32 %v2996, %v2997
    %v2999 = vrcp.pop %v2998
    %v3000 = vmul.f32 %v2179, %v2999
    %v3001 = vmul.f32 %v2209, %v2999
    %v3002 = vmul.f32 %v2239, %v2999
    %v3003 = vmul.f32 %v2269, %v2999
    %v3004 = vmul.f32 %v2299, %v2999
    %v3005 = vmul.f32 %v2329, %v2999
    %v3006 = vmul.f32 %v2359, %v2999
    %v3007 = vmul.f32 %v2389, %v2999
    %v3008 = vperm.slane %v3000, 5
    %v3009 = vperm.slane %v3001, 5
    %v3010 = vperm.slane %v3002, 5
    %v3011 = vperm.slane %v3003, 5
    %v3012 = vperm.slane %v3004, 5
    %v3013 = vperm.slane %v3005, 5
    %v3014 = vperm.slane %v3006, 5
    %v3015 = vperm.slane %v3007, 5
    %v3016 = vmul.f32 %v2989, %v3008
    %v3017 = vmul.f32 %v2991, %v3008
    %v3018 = vmul.f32 %v2989, %v3009
    %v3019 = vmul.f32 %v2991, %v3009
    %v3020 = vmul.f32 %v2989, %v3010
    %v3021 = vmul.f32 %v2991, %v3010
    %v3022 = vmul.f32 %v2989, %v3011
    %v3023 = vmul.f32 %v2991, %v3011
    %v3024 = vmul.f32 %v2989, %v3012
    %v3025 = vmul.f32 %v2991, %v3012
    %v3026 = vmul.f32 %v2989, %v3013
    %v3027 = vmul.f32 %v2991, %v3013
    %v3028 = vmul.f32 %v2989, %v3014
    %v3029 = vmul.f32 %v2991, %v3014
    %v3030 = vmul.f32 %v2989, %v3015
    %v3031 = vmul.f32 %v2991, %v3015
    %v3032 = vadd.f32 %v2925, %v3016
    %v3033 = vadd.f32 %v2926, %v3017
    %v3034 = vadd.f32 %v2927, %v3018
    %v3035 = vadd.f32 %v2928, %v3019
    %v3036 = vadd.f32 %v2929, %v3020
    %v3037 = vadd.f32 %v2930, %v3021
    %v3038 = vadd.f32 %v2931, %v3022
    %v3039 = vadd.f32 %v2932, %v3023
    %v3040 = vadd.f32 %v2933, %v3024
    %v3041 = vadd.f32 %v2934, %v3025
    %v3042 = vadd.f32 %v2935, %v3026
    %v3043 = vadd.f32 %v2936, %v3027
    %v3044 = vadd.f32 %v2937, %v3028
    %v3045 = vadd.f32 %v2938, %v3029
    %v3046 = vadd.f32 %v2939, %v3030
    %v3047 = vadd.f32 %v2940, %v3031
    %v3048 = vperm.slane %v313, 6
    %v3049 = vperm.slane %v335, 6
    %v3050 = vperm.slane %v357, 6
    %v3051 = vperm.slane %v379, 6
    %v3052 = vperm.slane %v401, 6
    %v3053 = vperm.slane %v423, 6
    %v3054 = vperm.slane %v445, 6
    %v3055 = vperm.slane %v467, 6
    %v3056 = vmul.f32 %v313, %v3048
    %v3057 = vmul.f32 %v314, %v3048
    %v3058 = vmul.f32 %v335, %v3049
    %v3059 = vmul.f32 %v336, %v3049
    %v3060 = vmul.f32 %v357, %v3050
    %v3061 = vmul.f32 %v358, %v3050
    %v3062 = vmul.f32 %v379, %v3051
    %v3063 = vmul.f32 %v380, %v3051
    %v3064 = vmul.f32 %v401, %v3052
    %v3065 = vmul.f32 %v402, %v3052
    %v3066 = vmul.f32 %v423, %v3053
    %v3067 = vmul.f32 %v424, %v3053
    %v3068 = vmul.f32 %v445, %v3054
    %v3069 = vmul.f32 %v446, %v3054
    %v3070 = vmul.f32 %v467, %v3055
    %v3071 = vmul.f32 %v468, %v3055
    %v3072 = vadd.f32 %v3056, %v3058
    %v3073 = vadd.f32 %v3072, %v3060
    %v3074 = vadd.f32 %v3073, %v3062
    %v3075 = vadd.f32 %v3074, %v3064
    %v3076 = vadd.f32 %v3075, %v3066
    %v3077 = vadd.f32 %v3076, %v3068
    %v3078 = vadd.f32 %v3077, %v3070
    %v3079 = vadd.f32 %v3057, %v3059
    %v3080 = vadd.f32 %v3079, %v3061
    %v3081 = vadd.f32 %v3080, %v3063
    %v3082 = vadd.f32 %v3081, %v3065
    %v3083 = vadd.f32 %v3082, %v3067
    %v3084 = vadd.f32 %v3083, %v3069
    %v3085 = vadd.f32 %v3084, %v3071
    %v3086 = vmax.f32 %v3078, %v3085
    %v3087 = vrot.slane %v3086, 4
    %v3088 = vmax.f32 %v3086, %v3087
    %v3089 = vrot.slane %v3088, 2
    %v3090 = vmax.f32 %v3088, %v3089
    %v3091 = vrot.slane %v3090, 1
    %v3092 = vmax.f32 %v3090, %v3091
    %v3093 = vsub.f32 %v3078, %v3092
    %v3094 = vsub.f32 %v3085, %v3092
    %v3095 = vmul.f32 %v3093, 1.442695
    %v3096 = vpow.pop %v3095
    %v3097 = vmul.f32 %v3094, 1.442695
    %v3098 = vpow.pop %v3097
    %v3099 = vadd.f32 %v3096, %v3098
    %v3100 = vrot.slane %v3099, 4
    %v3101 = vadd.f32 %v3099, %v3100
    %v3102 = vrot.slane %v3101, 2
    %v3103 = vadd.f32 %v3101, %v3102
    %v3104 = vrot.slane %v3103, 1
    %v3105 = vadd.f32 %v3103, %v3104
    %v3106 = vrcp.pop %v3105
    %v3107 = vmul.f32 %v2179, %v3106
    %v3108 = vmul.f32 %v2209, %v3106
    %v3109 = vmul.f32 %v2239, %v3106
    %v3110 = vmul.f32 %v2269, %v3106
    %v3111 = vmul.f32 %v2299, %v3106
    %v3112 = vmul.f32 %v2329, %v3106
    %v3113 = vmul.f32 %v2359, %v3106
    %v3114 = vmul.f32 %v2389, %v3106
    %v3115 = vperm.slane %v3107, 6
    %v3116 = vperm.slane %v3108, 6
    %v3117 = vperm.slane %v3109, 6
    %v3118 = vperm.slane %v3110, 6
    %v3119 = vperm.slane %v3111, 6
    %v3120 = vperm.slane %v3112, 6
    %v3121 = vperm.slane %v3113, 6
    %v3122 = vperm.slane %v3114, 6
    %v3123 = vmul.f32 %v3096, %v3115
    %v3124 = vmul.f32 %v3098, %v3115
    %v3125 = vmul.f32 %v3096, %v3116
    %v3126 = vmul.f32 %v3098, %v3116
    %v3127 = vmul.f32 %v3096, %v3117
    %v3128 = vmul.f32 %v3098, %v3117
    %v3129 = vmul.f32 %v3096, %v3118
    %v3130 = vmul.f32 %v3098, %v3118
    %v3131 = vmul.f32 %v3096, %v3119
    %v3132 = vmul.f32 %v3098, %v3119
    %v3133 = vmul.f32 %v3096, %v3120
    %v3134 = vmul.f32 %v3098, %v3120
    %v3135 = vmul.f32 %v3096, %v3121
    %v3136 = vmul.f32 %v3098, %v3121
    %v3137 = vmul.f32 %v3096, %v3122
    %v3138 = vmul.f32 %v3098, %v3122
    %v3139 = vadd.f32 %v3032, %v3123
    %v3140 = vadd.f32 %v3033, %v3124
    %v3141 = vadd.f32 %v3034, %v3125
    %v3142 = vadd.f32 %v3035, %v3126
    %v3143 = vadd.f32 %v3036, %v3127
    %v3144 = vadd.f32 %v3037, %v3128
    %v3145 = vadd.f32 %v3038, %v3129
    %v3146 = vadd.f32 %v3039, %v3130
    %v3147 = vadd.f32 %v3040, %v3131
    %v3148 = vadd.f32 %v3041, %v3132
    %v3149 = vadd.f32 %v3042, %v3133
    %v3150 = vadd.f32 %v3043, %v3134
    %v3151 = vadd.f32 %v3044, %v3135
    %v3152 = vadd.f32 %v3045, %v3136
    %v3153 = vadd.f32 %v3046, %v3137
    %v3154 = vadd.f32 %v3047, %v3138
    %v3155 = vperm.slane %v313, 7
    %v3156 = vperm.slane %v335, 7
    %v3157 = vperm.slane %v357, 7
    %v3158 = vperm.slane %v379, 7
    %v3159 = vperm.slane %v401, 7
    %v3160 = vperm.slane %v423, 7
    %v3161 = vperm.slane %v445, 7
    %v3162 = vperm.slane %v467, 7
    %v3163 = vmul.f32 %v313, %v3155
    %v3164 = vmul.f32 %v314, %v3155
    %v3165 = vmul.f32 %v335, %v3156
    %v3166 = vmul.f32 %v336, %v3156
    %v3167 = vmul.f32 %v357, %v3157
    %v3168 = vmul.f32 %v358, %v3157
    %v3169 = vmul.f32 %v379, %v3158
    %v3170 = vmul.f32 %v380, %v3158
    %v3171 = vmul.f32 %v401, %v3159
    %v3172 = vmul.f32 %v402, %v3159
    %v3173 = vmul.f32 %v423, %v3160
    %v3174 = vmul.f32 %v424, %v3160
    %v3175 = vmul.f32 %v445, %v3161
    %v3176 = vmul.f32 %v446, %v3161
    %v3177 = vmul.f32 %v467, %v3162
    %v3178 = vmul.f32 %v468, %v3162
    %v3179 = vadd.f32 %v3163, %v3165
    %v3180 = vadd.f32 %v3179, %v3167
    %v3181 = vadd.f32 %v3180, %v3169
    %v3182 = vadd.f32 %v3181, %v3171
    %v3183 = vadd.f32 %v3182, %v3173
    %v3184 = vadd.f32 %v3183, %v3175
    %v3185 = vadd.f32 %v3184, %v3177
    %v3186 = vadd.f32 %v3164, %v3166
    %v3187 = vadd.f32 %v3186, %v3168
    %v3188 = vadd.f32 %v3187, %v3170
    %v3189 = vadd.f32 %v3188, %v3172
    %v3190 = vadd.f32 %v3189, %v3174
    %v3191 = vadd.f32 %v3190, %v3176
    %v3192 = vadd.f32 %v3191, %v3178
    %v3193 = vmax.f32 %v3185, %v3192
    %v3194 = vrot.slane %v3193, 4
    %v3195 = vmax.f32 %v3193, %v3194
    %v3196 = vrot.slane %v3195, 2
    %v3197 = vmax.f32 %v3195, %v3196
    %v3198 = vrot.slane %v3197, 1
    %v3199 = vmax.f32 %v3197, %v3198
    %v3200 = vsub.f32 %v3185, %v3199
    %v3201 = vsub.f32 %v3192, %v3199
    %v3202 = vmul.f32 %v3200, 1.442695
    %v3203 = vpow.pop %v3202
    %v3204 = vmul.f32 %v3201, 1.442695
    %v3205 = vpow.pop %v3204
    %v3206 = vadd.f32 %v3203, %v3205
    %v3207 = vrot.slane %v3206, 4
    %v3208 = vadd.f32 %v3206, %v3207
    %v3209 = vrot.slane %v3208, 2
    %v3210 = vadd.f32 %v3208, %v3209
    %v3211 = vrot.slane %v3210, 1
    %v3212 = vadd.f32 %v3210, %v3211
    %v3213 = vrcp.pop %v3212
    %v3214 = vmul.f32 %v2179, %v3213
    %v3215 = vmul.f32 %v2209, %v3213
    %v3216 = vmul.f32 %v2239, %v3213
    %v3217 = vmul.f32 %v2269, %v3213
    %v3218 = vmul.f32 %v2299, %v3213
    %v3219 = vmul.f32 %v2329, %v3213
    %v3220 = vmul.f32 %v2359, %v3213
    %v3221 = vmul.f32 %v2389, %v3213
    %v3222 = vperm.slane %v3214, 7
    %v3223 = vperm.slane %v3215, 7
    %v3224 = vperm.slane %v3216, 7
    %v3225 = vperm.slane %v3217, 7
    %v3226 = vperm.slane %v3218, 7
    %v3227 = vperm.slane %v3219, 7
    %v3228 = vperm.slane %v3220, 7
    %v3229 = vperm.slane %v3221, 7
    %v3230 = vmul.f32 %v3203, %v3222
    %v3231 = vmul.f32 %v3205, %v3222
    %v3232 = vmul.f32 %v3203, %v3223
    %v3233 = vmul.f32 %v3205, %v3223
    %v3234 = vmul.f32 %v3203, %v3224
    %v3235 = vmul.f32 %v3205, %v3224
    %v3236 = vmul.f32 %v3203, %v3225
    %v3237 = vmul.f32 %v3205, %v3225
    %v3238 = vmul.f32 %v3203, %v3226
    %v3239 = vmul.f32 %v3205, %v3226
    %v3240 = vmul.f32 %v3203, %v3227
    %v3241 = vmul.f32 %v3205, %v3227
    %v3242 = vmul.f32 %v3203, %v3228
    %v3243 = vmul.f32 %v3205, %v3228
    %v3244 = vmul.f32 %v3203, %v3229
    %v3245 = vmul.f32 %v3205, %v3229
    %v3246 = vadd.f32 %v3139, %v3230
    %v3247 = vadd.f32 %v3140, %v3231
    %v3248 = vadd.f32 %v3141, %v3232
    %v3249 = vadd.f32 %v3142, %v3233
    %v3250 = vadd.f32 %v3143, %v3234
    %v3251 = vadd.f32 %v3144, %v3235
    %v3252 = vadd.f32 %v3145, %v3236
    %v3253 = vadd.f32 %v3146, %v3237
    %v3254 = vadd.f32 %v3147, %v3238
    %v3255 = vadd.f32 %v3148, %v3239
    %v3256 = vadd.f32 %v3149, %v3240
    %v3257 = vadd.f32 %v3150, %v3241
    %v3258 = vadd.f32 %v3151, %v3242
    %v3259 = vadd.f32 %v3152, %v3243
    %v3260 = vadd.f32 %v3153, %v3244
    %v3261 = vadd.f32 %v3154, %v3245
    %v3262 = vperm.slane %v314, 0
    %v3263 = vperm.slane %v336, 0
    %v3264 = vperm.slane %v358, 0
    %v3265 = vperm.slane %v380, 0
    %v3266 = vperm.slane %v402, 0
    %v3267 = vperm.slane %v424, 0
    %v3268 = vperm.slane %v446, 0
    %v3269 = vperm.slane %v468, 0
    %v3270 = vmul.f32 %v313, %v3262
    %v3271 = vmul.f32 %v314, %v3262
    %v3272 = vmul.f32 %v335, %v3263
    %v3273 = vmul.f32 %v336, %v3263
    %v3274 = vmul.f32 %v357, %v3264
    %v3275 = vmul.f32 %v358, %v3264
    %v3276 = vmul.f32 %v379, %v3265
    %v3277 = vmul.f32 %v380, %v3265
    %v3278 = vmul.f32 %v401, %v3266
    %v3279 = vmul.f32 %v402, %v3266
    %v3280 = vmul.f32 %v423, %v3267
    %v3281 = vmul.f32 %v424, %v3267
    %v3282 = vmul.f32 %v445, %v3268
    %v3283 = vmul.f32 %v446, %v3268
    %v3284 = vmul.f32 %v467, %v3269
    %v3285 = vmul.f32 %v468, %v3269
    %v3286 = vadd.f32 %v3270, %v3272
    %v3287 = vadd.f32 %v3286, %v3274
    %v3288 = vadd.f32 %v3287, %v3276
    %v3289 = vadd.f32 %v3288, %v3278
    %v3290 = vadd.f32 %v3289, %v3280
    %v3291 = vadd.f32 %v3290, %v3282
    %v3292 = vadd.f32 %v3291, %v3284
    %v3293 = vadd.f32 %v3271, %v3273
    %v3294 = vadd.f32 %v3293, %v3275
    %v3295 = vadd.f32 %v3294, %v3277
    %v3296 = vadd.f32 %v3295, %v3279
    %v3297 = vadd.f32 %v3296, %v3281
    %v3298 = vadd.f32 %v3297, %v3283
    %v3299 = vadd.f32 %v3298, %v3285
    %v3300 = vmax.f32 %v3292, %v3299
    %v3301 = vrot.slane %v3300, 4
    %v3302 = vmax.f32 %v3300, %v3301
    %v3303 = vrot.slane %v3302, 2
    %v3304 = vmax.f32 %v3302, %v3303
    %v3305 = vrot.slane %v3304, 1
    %v3306 = vmax.f32 %v3304, %v3305
    %v3307 = vsub.f32 %v3292, %v3306
    %v3308 = vsub.f32 %v3299, %v3306
    %v3309 = vmul.f32 %v3307, 1.442695
    %v3310 = vpow.pop %v3309
    %v3311 = vmul.f32 %v3308, 1.442695
    %v3312 = vpow.pop %v3311
    %v3313 = vadd.f32 %v3310, %v3312
    %v3314 = vrot.slane %v3313, 4
    %v3315 = vadd.f32 %v3313, %v3314
    %v3316 = vrot.slane %v3315, 2
    %v3317 = vadd.f32 %v3315, %v3316
    %v3318 = vrot.slane %v3317, 1
    %v3319 = vadd.f32 %v3317, %v3318
    %v3320 = vrcp.pop %v3319
    %v3321 = vmul.f32 %v2194, %v3320
    %v3322 = vmul.f32 %v2224, %v3320
    %v3323 = vmul.f32 %v2254, %v3320
    %v3324 = vmul.f32 %v2284, %v3320
    %v3325 = vmul.f32 %v2314, %v3320
    %v3326 = vmul.f32 %v2344, %v3320
    %v3327 = vmul.f32 %v2374, %v3320
    %v3328 = vmul.f32 %v2404, %v3320
    %v3329 = vperm.slane %v3321, 0
    %v3330 = vperm.slane %v3322, 0
    %v3331 = vperm.slane %v3323, 0
    %v3332 = vperm.slane %v3324, 0
    %v3333 = vperm.slane %v3325, 0
    %v3334 = vperm.slane %v3326, 0
    %v3335 = vperm.slane %v3327, 0
    %v3336 = vperm.slane %v3328, 0
    %v3337 = vmul.f32 %v3310, %v3329
    %v3338 = vmul.f32 %v3312, %v3329
    %v3339 = vmul.f32 %v3310, %v3330
    %v3340 = vmul.f32 %v3312, %v3330
    %v3341 = vmul.f32 %v3310, %v3331
    %v3342 = vmul.f32 %v3312, %v3331
    %v3343 = vmul.f32 %v3310, %v3332
    %v3344 = vmul.f32 %v3312, %v3332
    %v3345 = vmul.f32 %v3310, %v3333
    %v3346 = vmul.f32 %v3312, %v3333
    %v3347 = vmul.f32 %v3310, %v3334
    %v3348 = vmul.f32 %v3312, %v3334
    %v3349 = vmul.f32 %v3310, %v3335
    %v3350 = vmul.f32 %v3312, %v3335
    %v3351 = vmul.f32 %v3310, %v3336
    %v3352 = vmul.f32 %v3312, %v3336
    %v3353 = vadd.f32 %v3246, %v3337
    %v3354 = vadd.f32 %v3247, %v3338
    %v3355 = vadd.f32 %v3248, %v3339
    %v3356 = vadd.f32 %v3249, %v3340
    %v3357 = vadd.f32 %v3250, %v3341
    %v3358 = vadd.f32 %v3251, %v3342
    %v3359 = vadd.f32 %v3252, %v3343
    %v3360 = vadd.f32 %v3253, %v3344
    %v3361 = vadd.f32 %v3254, %v3345
    %v3362 = vadd.f32 %v3255, %v3346
    %v3363 = vadd.f32 %v3256, %v3347
    %v3364 = vadd.f32 %v3257, %v3348
    %v3365 = vadd.f32 %v3258, %v3349
    %v3366 = vadd.f32 %v3259, %v3350
    %v3367 = vadd.f32 %v3260, %v3351
    %v3368 = vadd.f32 %v3261, %v3352
    %v3369 = vperm.slane %v314, 1
    %v3370 = vperm.slane %v336, 1
    %v3371 = vperm.slane %v358, 1
    %v3372 = vperm.slane %v380, 1
    %v3373 = vperm.slane %v402, 1
    %v3374 = vperm.slane %v424, 1
    %v3375 = vperm.slane %v446, 1
    %v3376 = vperm.slane %v468, 1
    %v3377 = vmul.f32 %v313, %v3369
    %v3378 = vmul.f32 %v314, %v3369
    %v3379 = vmul.f32 %v335, %v3370
    %v3380 = vmul.f32 %v336, %v3370
    %v3381 = vmul.f32 %v357, %v3371
    %v3382 = vmul.f32 %v358, %v3371
    %v3383 = vmul.f32 %v379, %v3372
    %v3384 = vmul.f32 %v380, %v3372
    %v3385 = vmul.f32 %v401, %v3373
    %v3386 = vmul.f32 %v402, %v3373
    %v3387 = vmul.f32 %v423, %v3374
    %v3388 = vmul.f32 %v424, %v3374
    %v3389 = vmul.f32 %v445, %v3375
    %v3390 = vmul.f32 %v446, %v3375
    %v3391 = vmul.f32 %v467, %v3376
    %v3392 = vmul.f32 %v468, %v3376
    %v3393 = vadd.f32 %v3377, %v3379
    %v3394 = vadd.f32 %v3393, %v3381
    %v3395 = vadd.f32 %v3394, %v3383
    %v3396 = vadd.f32 %v3395, %v3385
    %v3397 = vadd.f32 %v3396, %v3387
    %v3398 = vadd.f32 %v3397, %v3389
    %v3399 = vadd.f32 %v3398, %v3391
    %v3400 = vadd.f32 %v3378, %v3380
    %v3401 = vadd.f32 %v3400, %v3382
    %v3402 = vadd.f32 %v3401, %v3384
    %v3403 = vadd.f32 %v3402, %v3386
    %v3404 = vadd.f32 %v3403, %v3388
    %v3405 = vadd.f32 %v3404, %v3390
    %v3406 = vadd.f32 %v3405, %v3392
    %v3407 = vmax.f32 %v3399, %v3406
    %v3408 = vrot.slane %v3407, 4
    %v3409 = vmax.f32 %v3407, %v3408
    %v3410 = vrot.slane %v3409, 2
    %v3411 = vmax.f32 %v3409, %v3410
    %v3412 = vrot.slane %v3411, 1
    %v3413 = vmax.f32 %v3411, %v3412
    %v3414 = vsub.f32 %v3399, %v3413
    %v3415 = vsub.f32 %v3406, %v3413
    %v3416 = vmul.f32 %v3414, 1.442695
    %v3417 = vpow.pop %v3416
    %v3418 = vmul.f32 %v3415, 1.442695
    %v3419 = vpow.pop %v3418
    %v3420 = vadd.f32 %v3417, %v3419
    %v3421 = vrot.slane %v3420, 4
    %v3422 = vadd.f32 %v3420, %v3421
    %v3423 = vrot.slane %v3422, 2
    %v3424 = vadd.f32 %v3422, %v3423
    %v3425 = vrot.slane %v3424, 1
    %v3426 = vadd.f32 %v3424, %v3425
    %v3427 = vrcp.pop %v3426
    %v3428 = vmul.f32 %v2194, %v3427
    %v3429 = vmul.f32 %v2224, %v3427
    %v3430 = vmul.f32 %v2254, %v3427
    %v3431 = vmul.f32 %v2284, %v3427
    %v3432 = vmul.f32 %v2314, %v3427
    %v3433 = vmul.f32 %v2344, %v3427
    %v3434 = vmul.f32 %v2374, %v3427
    %v3435 = vmul.f32 %v2404, %v3427
    %v3436 = vperm.slane %v3428, 1
    %v3437 = vperm.slane %v3429, 1
    %v3438 = vperm.slane %v3430, 1
    %v3439 = vperm.slane %v3431, 1
    %v3440 = vperm.slane %v3432, 1
    %v3441 = vperm.slane %v3433, 1
    %v3442 = vperm.slane %v3434, 1
    %v3443 = vperm.slane %v3435, 1
    %v3444 = vmul.f32 %v3417, %v3436
    %v3445 = vmul.f32 %v3419, %v3436
    %v3446 = vmul.f32 %v3417, %v3437
    %v3447 = vmul.f32 %v3419, %v3437
    %v3448 = vmul.f32 %v3417, %v3438
    %v3449 = vmul.f32 %v3419, %v3438
    %v3450 = vmul.f32 %v3417, %v3439
    %v3451 = vmul.f32 %v3419, %v3439
    %v3452 = vmul.f32 %v3417, %v3440
    %v3453 = vmul.f32 %v3419, %v3440
    %v3454 = vmul.f32 %v3417, %v3441
    %v3455 = vmul.f32 %v3419, %v3441
    %v3456 = vmul.f32 %v3417, %v3442
    %v3457 = vmul.f32 %v3419, %v3442
    %v3458 = vmul.f32 %v3417, %v3443
    %v3459 = vmul.f32 %v3419, %v3443
    %v3460 = vadd.f32 %v3353, %v3444
    %v3461 = vadd.f32 %v3354, %v3445
    %v3462 = vadd.f32 %v3355, %v3446
    %v3463 = vadd.f32 %v3356, %v3447
    %v3464 = vadd.f32 %v3357, %v3448
    %v3465 = vadd.f32 %v3358, %v3449
    %v3466 = vadd.f32 %v3359, %v3450
    %v3467 = vadd.f32 %v3360, %v3451
    %v3468 = vadd.f32 %v3361, %v3452
    %v3469 = vadd.f32 %v3362, %v3453
    %v3470 = vadd.f32 %v3363, %v3454
    %v3471 = vadd.f32 %v3364, %v3455
    %v3472 = vadd.f32 %v3365, %v3456
    %v3473 = vadd.f32 %v3366, %v3457
    %v3474 = vadd.f32 %v3367, %v3458
    %v3475 = vadd.f32 %v3368, %v3459
    %v3476 = vperm.slane %v314, 2
    %v3477 = vperm.slane %v336, 2
    %v3478 = vperm.slane %v358, 2
    %v3479 = vperm.slane %v380, 2
    %v3480 = vperm.slane %v402, 2
    %v3481 = vperm.slane %v424, 2
    %v3482 = vperm.slane %v446, 2
    %v3483 = vperm.slane %v468, 2
    %v3484 = vmul.f32 %v313, %v3476
    %v3485 = vmul.f32 %v314, %v3476
    %v3486 = vmul.f32 %v335, %v3477
    %v3487 = vmul.f32 %v336, %v3477
    %v3488 = vmul.f32 %v357, %v3478
    %v3489 = vmul.f32 %v358, %v3478
    %v3490 = vmul.f32 %v379, %v3479
    %v3491 = vmul.f32 %v380, %v3479
    %v3492 = vmul.f32 %v401, %v3480
    %v3493 = vmul.f32 %v402, %v3480
    %v3494 = vmul.f32 %v423, %v3481
    %v3495 = vmul.f32 %v424, %v3481
    %v3496 = vmul.f32 %v445, %v3482
    %v3497 = vmul.f32 %v446, %v3482
    %v3498 = vmul.f32 %v467, %v3483
    %v3499 = vmul.f32 %v468, %v3483
    %v3500 = vadd.f32 %v3484, %v3486
    %v3501 = vadd.f32 %v3500, %v3488
    %v3502 = vadd.f32 %v3501, %v3490
    %v3503 = vadd.f32 %v3502, %v3492
    %v3504 = vadd.f32 %v3503, %v3494
    %v3505 = vadd.f32 %v3504, %v3496
    %v3506 = vadd.f32 %v3505, %v3498
    %v3507 = vadd.f32 %v3485, %v3487
    %v3508 = vadd.f32 %v3507, %v3489
    %v3509 = vadd.f32 %v3508, %v3491
    %v3510 = vadd.f32 %v3509, %v3493
    %v3511 = vadd.f32 %v3510, %v3495
    %v3512 = vadd.f32 %v3511, %v3497
    %v3513 = vadd.f32 %v3512, %v3499
    %v3514 = vmax.f32 %v3506, %v3513
    %v3515 = vrot.slane %v3514, 4
    %v3516 = vmax.f32 %v3514, %v3515
    %v3517 = vrot.slane %v3516, 2
    %v3518 = vmax.f32 %v3516, %v3517
    %v3519 = vrot.slane %v3518, 1
    %v3520 = vmax.f32 %v3518, %v3519
    %v3521 = vsub.f32 %v3506, %v3520
    %v3522 = vsub.f32 %v3513, %v3520
    %v3523 = vmul.f32 %v3521, 1.442695
    %v3524 = vpow.pop %v3523
    %v3525 = vmul.f32 %v3522, 1.442695
    %v3526 = vpow.pop %v3525
    %v3527 = vadd.f32 %v3524, %v3526
    %v3528 = vrot.slane %v3527, 4
    %v3529 = vadd.f32 %v3527, %v3528
    %v3530 = vrot.slane %v3529, 2
    %v3531 = vadd.f32 %v3529, %v3530
    %v3532 = vrot.slane %v3531, 1
    %v3533 = vadd.f32 %v3531, %v3532
    %v3534 = vrcp.pop %v3533
    %v3535 = vmul.f32 %v2194, %v3534
    %v3536 = vmul.f32 %v2224, %v3534
    %v3537 = vmul.f32 %v2254, %v3534
    %v3538 = vmul.f32 %v2284, %v3534
    %v3539 = vmul.f32 %v2314, %v3534
    %v3540 = vmul.f32 %v2344, %v3534
    %v3541 = vmul.f32 %v2374, %v3534
    %v3542 = vmul.f32 %v2404, %v3534
    %v3543 = vperm.slane %v3535, 2
    %v3544 = vperm.slane %v3536, 2
    %v3545 = vperm.slane %v3537, 2
    %v3546 = vperm.slane %v3538, 2
    %v3547 = vperm.slane %v3539, 2
    %v3548 = vperm.slane %v3540, 2
    %v3549 = vperm.slane %v3541, 2
    %v3550 = vperm.slane %v3542, 2
    %v3551 = vmul.f32 %v3524, %v3543
    %v3552 = vmul.f32 %v3526, %v3543
    %v3553 = vmul.f32 %v3524, %v3544
    %v3554 = vmul.f32 %v3526, %v3544
    %v3555 = vmul.f32 %v3524, %v3545
    %v3556 = vmul.f32 %v3526, %v3545
    %v3557 = vmul.f32 %v3524, %v3546
    %v3558 = vmul.f32 %v3526, %v3546
    %v3559 = vmul.f32 %v3524, %v3547
    %v3560 = vmul.f32 %v3526, %v3547
    %v3561 = vmul.f32 %v3524, %v3548
    %v3562 = vmul.f32 %v3526, %v3548
    %v3563 = vmul.f32 %v3524, %v3549
    %v3564 = vmul.f32 %v3526, %v3549
    %v3565 = vmul.f32 %v3524, %v3550
    %v3566 = vmul.f32 %v3526, %v3550
    %v3567 = vadd.f32 %v3460, %v3551
    %v3568 = vadd.f32 %v3461, %v3552
    %v3569 = vadd.f32 %v3462, %v3553
    %v3570 = vadd.f32 %v3463, %v3554
    %v3571 = vadd.f32 %v3464, %v3555
    %v3572 = vadd.f32 %v3465, %v3556
    %v3573 = vadd.f32 %v3466, %v3557
    %v3574 = vadd.f32 %v3467, %v3558
    %v3575 = vadd.f32 %v3468, %v3559
    %v3576 = vadd.f32 %v3469, %v3560
    %v3577 = vadd.f32 %v3470, %v3561
    %v3578 = vadd.f32 %v3471, %v3562
    %v3579 = vadd.f32 %v3472, %v3563
    %v3580 = vadd.f32 %v3473, %v3564
    %v3581 = vadd.f32 %v3474, %v3565
    %v3582 = vadd.f32 %v3475, %v3566
    %v3583 = vperm.slane %v314, 3
    %v3584 = vperm.slane %v336, 3
    %v3585 = vperm.slane %v358, 3
    %v3586 = vperm.slane %v380, 3
    %v3587 = vperm.slane %v402, 3
    %v3588 = vperm.slane %v424, 3
    %v3589 = vperm.slane %v446, 3
    %v3590 = vperm.slane %v468, 3
    %v3591 = vmul.f32 %v313, %v3583
    %v3592 = vmul.f32 %v314, %v3583
    %v3593 = vmul.f32 %v335, %v3584
    %v3594 = vmul.f32 %v336, %v3584
    %v3595 = vmul.f32 %v357, %v3585
    %v3596 = vmul.f32 %v358, %v3585
    %v3597 = vmul.f32 %v379, %v3586
    %v3598 = vmul.f32 %v380, %v3586
    %v3599 = vmul.f32 %v401, %v3587
    %v3600 = vmul.f32 %v402, %v3587
    %v3601 = vmul.f32 %v423, %v3588
    %v3602 = vmul.f32 %v424, %v3588
    %v3603 = vmul.f32 %v445, %v3589
    %v3604 = vmul.f32 %v446, %v3589
    %v3605 = vmul.f32 %v467, %v3590
    %v3606 = vmul.f32 %v468, %v3590
    %v3607 = vadd.f32 %v3591, %v3593
    %v3608 = vadd.f32 %v3607, %v3595
    %v3609 = vadd.f32 %v3608, %v3597
    %v3610 = vadd.f32 %v3609, %v3599
    %v3611 = vadd.f32 %v3610, %v3601
    %v3612 = vadd.f32 %v3611, %v3603
    %v3613 = vadd.f32 %v3612, %v3605
    %v3614 = vadd.f32 %v3592, %v3594
    %v3615 = vadd.f32 %v3614, %v3596
    %v3616 = vadd.f32 %v3615, %v3598
    %v3617 = vadd.f32 %v3616, %v3600
    %v3618 = vadd.f32 %v3617, %v3602
    %v3619 = vadd.f32 %v3618, %v3604
    %v3620 = vadd.f32 %v3619, %v3606
    %v3621 = vmax.f32 %v3613, %v3620
    %v3622 = vrot.slane %v3621, 4
    %v3623 = vmax.f32 %v3621, %v3622
    %v3624 = vrot.slane %v3623, 2
    %v3625 = vmax.f32 %v3623, %v3624
    %v3626 = vrot.slane %v3625, 1
    %v3627 = vmax.f32 %v3625, %v3626
    %v3628 = vsub.f32 %v3613, %v3627
    %v3629 = vsub.f32 %v3620, %v3627
    %v3630 = vmul.f32 %v3628, 1.442695
    %v3631 = vpow.pop %v3630
    %v3632 = vmul.f32 %v3629, 1.442695
    %v3633 = vpow.pop %v3632
    %v3634 = vadd.f32 %v3631, %v3633
    %v3635 = vrot.slane %v3634, 4
    %v3636 = vadd.f32 %v3634, %v3635
    %v3637 = vrot.slane %v3636, 2
    %v3638 = vadd.f32 %v3636, %v3637
    %v3639 = vrot.slane %v3638, 1
    %v3640 = vadd.f32 %v3638, %v3639
    %v3641 = vrcp.pop %v3640
    %v3642 = vmul.f32 %v2194, %v3641
    %v3643 = vmul.f32 %v2224, %v3641
    %v3644 = vmul.f32 %v2254, %v3641
    %v3645 = vmul.f32 %v2284, %v3641
    %v3646 = vmul.f32 %v2314, %v3641
    %v3647 = vmul.f32 %v2344, %v3641
    %v3648 = vmul.f32 %v2374, %v3641
    %v3649 = vmul.f32 %v2404, %v3641
    %v3650 = vperm.slane %v3642, 3
    %v3651 = vperm.slane %v3643, 3
    %v3652 = vperm.slane %v3644, 3
    %v3653 = vperm.slane %v3645, 3
    %v3654 = vperm.slane %v3646, 3
    %v3655 = vperm.slane %v3647, 3
    %v3656 = vperm.slane %v3648, 3
    %v3657 = vperm.slane %v3649, 3
    %v3658 = vmul.f32 %v3631, %v3650
    %v3659 = vmul.f32 %v3633, %v3650
    %v3660 = vmul.f32 %v3631, %v3651
    %v3661 = vmul.f32 %v3633, %v3651
    %v3662 = vmul.f32 %v3631, %v3652
    %v3663 = vmul.f32 %v3633, %v3652
    %v3664 = vmul.f32 %v3631, %v3653
    %v3665 = vmul.f32 %v3633, %v3653
    %v3666 = vmul.f32 %v3631, %v3654
    %v3667 = vmul.f32 %v3633, %v3654
    %v3668 = vmul.f32 %v3631, %v3655
    %v3669 = vmul.f32 %v3633, %v3655
    %v3670 = vmul.f32 %v3631, %v3656
    %v3671 = vmul.f32 %v3633, %v3656
    %v3672 = vmul.f32 %v3631, %v3657
    %v3673 = vmul.f32 %v3633, %v3657
    %v3674 = vadd.f32 %v3567, %v3658
    %v3675 = vadd.f32 %v3568, %v3659
    %v3676 = vadd.f32 %v3569, %v3660
    %v3677 = vadd.f32 %v3570, %v3661
    %v3678 = vadd.f32 %v3571, %v3662
    %v3679 = vadd.f32 %v3572, %v3663
    %v3680 = vadd.f32 %v3573, %v3664
    %v3681 = vadd.f32 %v3574, %v3665
    %v3682 = vadd.f32 %v3575, %v3666
    %v3683 = vadd.f32 %v3576, %v3667
    %v3684 = vadd.f32 %v3577, %v3668
    %v3685 = vadd.f32 %v3578, %v3669
    %v3686 = vadd.f32 %v3579, %v3670
    %v3687 = vadd.f32 %v3580, %v3671
    %v3688 = vadd.f32 %v3581, %v3672
    %v3689 = vadd.f32 %v3582, %v3673
    %v3690 = vperm.slane %v314, 4
    %v3691 = vperm.slane %v336, 4
    %v3692 = vperm.slane %v358, 4
    %v3693 = vperm.slane %v380, 4
    %v3694 = vperm.slane %v402, 4
    %v3695 = vperm.slane %v424, 4
    %v3696 = vperm.slane %v446, 4
    %v3697 = vperm.slane %v468, 4
    %v3698 = vmul.f32 %v313, %v3690
    %v3699 = vmul.f32 %v314, %v3690
    %v3700 = vmul.f32 %v335, %v3691
    %v3701 = vmul.f32 %v336, %v3691
    %v3702 = vmul.f32 %v357, %v3692
    %v3703 = vmul.f32 %v358, %v3692
    %v3704 = vmul.f32 %v379, %v3693
    %v3705 = vmul.f32 %v380, %v3693
    %v3706 = vmul.f32 %v401, %v3694
    %v3707 = vmul.f32 %v402, %v3694
    %v3708 = vmul.f32 %v423, %v3695
    %v3709 = vmul.f32 %v424, %v3695
    %v3710 = vmul.f32 %v445, %v3696
    %v3711 = vmul.f32 %v446, %v3696
    %v3712 = vmul.f32 %v467, %v3697
    %v3713 = vmul.f32 %v468, %v3697
    %v3714 = vadd.f32 %v3698, %v3700
    %v3715 = vadd.f32 %v3714, %v3702
    %v3716 = vadd.f32 %v3715, %v3704
    %v3717 = vadd.f32 %v3716, %v3706
    %v3718 = vadd.f32 %v3717, %v3708
    %v3719 = vadd.f32 %v3718, %v3710
    %v3720 = vadd.f32 %v3719, %v3712
    %v3721 = vadd.f32 %v3699, %v3701
    %v3722 = vadd.f32 %v3721, %v3703
    %v3723 = vadd.f32 %v3722, %v3705
    %v3724 = vadd.f32 %v3723, %v3707
    %v3725 = vadd.f32 %v3724, %v3709
    %v3726 = vadd.f32 %v3725, %v3711
    %v3727 = vadd.f32 %v3726, %v3713
    %v3728 = vmax.f32 %v3720, %v3727
    %v3729 = vrot.slane %v3728, 4
    %v3730 = vmax.f32 %v3728, %v3729
    %v3731 = vrot.slane %v3730, 2
    %v3732 = vmax.f32 %v3730, %v3731
    %v3733 = vrot.slane %v3732, 1
    %v3734 = vmax.f32 %v3732, %v3733
    %v3735 = vsub.f32 %v3720, %v3734
    %v3736 = vsub.f32 %v3727, %v3734
    %v3737 = vmul.f32 %v3735, 1.442695
    %v3738 = vpow.pop %v3737
    %v3739 = vmul.f32 %v3736, 1.442695
    %v3740 = vpow.pop %v3739
    %v3741 = vadd.f32 %v3738, %v3740
    %v3742 = vrot.slane %v3741, 4
    %v3743 = vadd.f32 %v3741, %v3742
    %v3744 = vrot.slane %v3743, 2
    %v3745 = vadd.f32 %v3743, %v3744
    %v3746 = vrot.slane %v3745, 1
    %v3747 = vadd.f32 %v3745, %v3746
    %v3748 = vrcp.pop %v3747
    %v3749 = vmul.f32 %v2194, %v3748
    %v3750 = vmul.f32 %v2224, %v3748
    %v3751 = vmul.f32 %v2254, %v3748
    %v3752 = vmul.f32 %v2284, %v3748
    %v3753 = vmul.f32 %v2314, %v3748
    %v3754 = vmul.f32 %v2344, %v3748
    %v3755 = vmul.f32 %v2374, %v3748
    %v3756 = vmul.f32 %v2404, %v3748
    %v3757 = vperm.slane %v3749, 4
    %v3758 = vperm.slane %v3750, 4
    %v3759 = vperm.slane %v3751, 4
    %v3760 = vperm.slane %v3752, 4
    %v3761 = vperm.slane %v3753, 4
    %v3762 = vperm.slane %v3754, 4
    %v3763 = vperm.slane %v3755, 4
    %v3764 = vperm.slane %v3756, 4
    %v3765 = vmul.f32 %v3738, %v3757
    %v3766 = vmul.f32 %v3740, %v3757
    %v3767 = vmul.f32 %v3738, %v3758
    %v3768 = vmul.f32 %v3740, %v3758
    %v3769 = vmul.f32 %v3738, %v3759
    %v3770 = vmul.f32 %v3740, %v3759
    %v3771 = vmul.f32 %v3738, %v3760
    %v3772 = vmul.f32 %v3740, %v3760
    %v3773 = vmul.f32 %v3738, %v3761
    %v3774 = vmul.f32 %v3740, %v3761
    %v3775 = vmul.f32 %v3738, %v3762
    %v3776 = vmul.f32 %v3740, %v3762
    %v3777 = vmul.f32 %v3738, %v3763
    %v3778 = vmul.f32 %v3740, %v3763
    %v3779 = vmul.f32 %v3738, %v3764
    %v3780 = vmul.f32 %v3740, %v3764
    %v3781 = vadd.f32 %v3674, %v3765
    %v3782 = vadd.f32 %v3675, %v3766
    %v3783 = vadd.f32 %v3676, %v3767
    %v3784 = vadd.f32 %v3677, %v3768
    %v3785 = vadd.f32 %v3678, %v3769
    %v3786 = vadd.f32 %v3679, %v3770
    %v3787 = vadd.f32 %v3680, %v3771
    %v3788 = vadd.f32 %v3681, %v3772
    %v3789 = vadd.f32 %v3682, %v3773
    %v3790 = vadd.f32 %v3683, %v3774
    %v3791 = vadd.f32 %v3684, %v3775
    %v3792 = vadd.f32 %v3685, %v3776
    %v3793 = vadd.f32 %v3686, %v3777
    %v3794 = vadd.f32 %v3687, %v3778
    %v3795 = vadd.f32 %v3688, %v3779
    %v3796 = vadd.f32 %v3689, %v3780
    %v3797 = vperm.slane %v314, 5
    %v3798 = vperm.slane %v336, 5
    %v3799 = vperm.slane %v358, 5
    %v3800 = vperm.slane %v380, 5
    %v3801 = vperm.slane %v402, 5
    %v3802 = vperm.slane %v424, 5
    %v3803 = vperm.slane %v446, 5
    %v3804 = vperm.slane %v468, 5
    %v3805 = vmul.f32 %v313, %v3797
    %v3806 = vmul.f32 %v314, %v3797
    %v3807 = vmul.f32 %v335, %v3798
    %v3808 = vmul.f32 %v336, %v3798
    %v3809 = vmul.f32 %v357, %v3799
    %v3810 = vmul.f32 %v358, %v3799
    %v3811 = vmul.f32 %v379, %v3800
    %v3812 = vmul.f32 %v380, %v3800
    %v3813 = vmul.f32 %v401, %v3801
    %v3814 = vmul.f32 %v402, %v3801
    %v3815 = vmul.f32 %v423, %v3802
    %v3816 = vmul.f32 %v424, %v3802
    %v3817 = vmul.f32 %v445, %v3803
    %v3818 = vmul.f32 %v446, %v3803
    %v3819 = vmul.f32 %v467, %v3804
    %v3820 = vmul.f32 %v468, %v3804
    %v3821 = vadd.f32 %v3805, %v3807
    %v3822 = vadd.f32 %v3821, %v3809
    %v3823 = vadd.f32 %v3822, %v3811
    %v3824 = vadd.f32 %v3823, %v3813
    %v3825 = vadd.f32 %v3824, %v3815
    %v3826 = vadd.f32 %v3825, %v3817
    %v3827 = vadd.f32 %v3826, %v3819
    %v3828 = vadd.f32 %v3806, %v3808
    %v3829 = vadd.f32 %v3828, %v3810
    %v3830 = vadd.f32 %v3829, %v3812
    %v3831 = vadd.f32 %v3830, %v3814
    %v3832 = vadd.f32 %v3831, %v3816
    %v3833 = vadd.f32 %v3832, %v3818
    %v3834 = vadd.f32 %v3833, %v3820
    %v3835 = vmax.f32 %v3827, %v3834
    %v3836 = vrot.slane %v3835, 4
    %v3837 = vmax.f32 %v3835, %v3836
    %v3838 = vrot.slane %v3837, 2
    %v3839 = vmax.f32 %v3837, %v3838
    %v3840 = vrot.slane %v3839, 1
    %v3841 = vmax.f32 %v3839, %v3840
    %v3842 = vsub.f32 %v3827, %v3841
    %v3843 = vsub.f32 %v3834, %v3841
    %v3844 = vmul.f32 %v3842, 1.442695
    %v3845 = vpow.pop %v3844
    %v3846 = vmul.f32 %v3843, 1.442695
    %v3847 = vpow.pop %v3846
    %v3848 = vadd.f32 %v3845, %v3847
    %v3849 = vrot.slane %v3848, 4
    %v3850 = vadd.f32 %v3848, %v3849
    %v3851 = vrot.slane %v3850, 2
    %v3852 = vadd.f32 %v3850, %v3851
    %v3853 = vrot.slane %v3852, 1
    %v3854 = vadd.f32 %v3852, %v3853
    %v3855 = vrcp.pop %v3854
    %v3856 = vmul.f32 %v2194, %v3855
    %v3857 = vmul.f32 %v2224, %v3855
    %v3858 = vmul.f32 %v2254, %v3855
    %v3859 = vmul.f32 %v2284, %v3855
    %v3860 = vmul.f32 %v2314, %v3855
    %v3861 = vmul.f32 %v2344, %v3855
    %v3862 = vmul.f32 %v2374, %v3855
    %v3863 = vmul.f32 %v2404, %v3855
    %v3864 = vperm.slane %v3856, 5
    %v3865 = vperm.slane %v3857, 5
    %v3866 = vperm.slane %v3858, 5
    %v3867 = vperm.slane %v3859, 5
    %v3868 = vperm.slane %v3860, 5
    %v3869 = vperm.slane %v3861, 5
    %v3870 = vperm.slane %v3862, 5
    %v3871 = vperm.slane %v3863, 5
    %v3872 = vmul.f32 %v3845, %v3864
    %v3873 = vmul.f32 %v3847, %v3864
    %v3874 = vmul.f32 %v3845, %v3865
    %v3875 = vmul.f32 %v3847, %v3865
    %v3876 = vmul.f32 %v3845, %v3866
    %v3877 = vmul.f32 %v3847, %v3866
    %v3878 = vmul.f32 %v3845, %v3867
    %v3879 = vmul.f32 %v3847, %v3867
    %v3880 = vmul.f32 %v3845, %v3868
    %v3881 = vmul.f32 %v3847, %v3868
    %v3882 = vmul.f32 %v3845, %v3869
    %v3883 = vmul.f32 %v3847, %v3869
    %v3884 = vmul.f32 %v3845, %v3870
    %v3885 = vmul.f32 %v3847, %v3870
    %v3886 = vmul.f32 %v3845, %v3871
    %v3887 = vmul.f32 %v3847, %v3871
    %v3888 = vadd.f32 %v3781, %v3872
    %v3889 = vadd.f32 %v3782, %v3873
    %v3890 = vadd.f32 %v3783, %v3874
    %v3891 = vadd.f32 %v3784, %v3875
    %v3892 = vadd.f32 %v3785, %v3876
    %v3893 = vadd.f32 %v3786, %v3877
    %v3894 = vadd.f32 %v3787, %v3878
    %v3895 = vadd.f32 %v3788, %v3879
    %v3896 = vadd.f32 %v3789, %v3880
    %v3897 = vadd.f32 %v3790, %v3881
    %v3898 = vadd.f32 %v3791, %v3882
    %v3899 = vadd.f32 %v3792, %v3883
    %v3900 = vadd.f32 %v3793, %v3884
    %v3901 = vadd.f32 %v3794, %v3885
    %v3902 = vadd.f32 %v3795, %v3886
    %v3903 = vadd.f32 %v3796, %v3887
    %v3904 = vperm.slane %v314, 6
    %v3905 = vperm.slane %v336, 6
    %v3906 = vperm.slane %v358, 6
    %v3907 = vperm.slane %v380, 6
    %v3908 = vperm.slane %v402, 6
    %v3909 = vperm.slane %v424, 6
    %v3910 = vperm.slane %v446, 6
    %v3911 = vperm.slane %v468, 6
    %v3912 = vmul.f32 %v313, %v3904
    %v3913 = vmul.f32 %v314, %v3904
    %v3914 = vmul.f32 %v335, %v3905
    %v3915 = vmul.f32 %v336, %v3905
    %v3916 = vmul.f32 %v357, %v3906
    %v3917 = vmul.f32 %v358, %v3906
    %v3918 = vmul.f32 %v379, %v3907
    %v3919 = vmul.f32 %v380, %v3907
    %v3920 = vmul.f32 %v401, %v3908
    %v3921 = vmul.f32 %v402, %v3908
    %v3922 = vmul.f32 %v423, %v3909
    %v3923 = vmul.f32 %v424, %v3909
    %v3924 = vmul.f32 %v445, %v3910
    %v3925 = vmul.f32 %v446, %v3910
    %v3926 = vmul.f32 %v467, %v3911
    %v3927 = vmul.f32 %v468, %v3911
    %v3928 = vadd.f32 %v3912, %v3914
    %v3929 = vadd.f32 %v3928, %v3916
    %v3930 = vadd.f32 %v3929, %v3918
    %v3931 = vadd.f32 %v3930, %v3920
    %v3932 = vadd.f32 %v3931, %v3922
    %v3933 = vadd.f32 %v3932, %v3924
    %v3934 = vadd.f32 %v3933, %v3926
    %v3935 = vadd.f32 %v3913, %v3915
    %v3936 = vadd.f32 %v3935, %v3917
    %v3937 = vadd.f32 %v3936, %v3919
    %v3938 = vadd.f32 %v3937, %v3921
    %v3939 = vadd.f32 %v3938, %v3923
    %v3940 = vadd.f32 %v3939, %v3925
    %v3941 = vadd.f32 %v3940, %v3927
    %v3942 = vmax.f32 %v3934, %v3941
    %v3943 = vrot.slane %v3942, 4
    %v3944 = vmax.f32 %v3942, %v3943
    %v3945 = vrot.slane %v3944, 2
    %v3946 = vmax.f32 %v3944, %v3945
    %v3947 = vrot.slane %v3946, 1
    %v3948 = vmax.f32 %v3946, %v3947
    %v3949 = vsub.f32 %v3934, %v3948
    %v3950 = vsub.f32 %v3941, %v3948
    %v3951 = vmul.f32 %v3949, 1.442695
    %v3952 = vpow.pop %v3951
    %v3953 = vmul.f32 %v3950, 1.442695
    %v3954 = vpow.pop %v3953
    %v3955 = vadd.f32 %v3952, %v3954
    %v3956 = vrot.slane %v3955, 4
    %v3957 = vadd.f32 %v3955, %v3956
    %v3958 = vrot.slane %v3957, 2
    %v3959 = vadd.f32 %v3957, %v3958
    %v3960 = vrot.slane %v3959, 1
    %v3961 = vadd.f32 %v3959, %v3960
    %v3962 = vrcp.pop %v3961
    %v3963 = vmul.f32 %v2194, %v3962
    %v3964 = vmul.f32 %v2224, %v3962
    %v3965 = vmul.f32 %v2254, %v3962
    %v3966 = vmul.f32 %v2284, %v3962
    %v3967 = vmul.f32 %v2314, %v3962
    %v3968 = vmul.f32 %v2344, %v3962
    %v3969 = vmul.f32 %v2374, %v3962
    %v3970 = vmul.f32 %v2404, %v3962
    %v3971 = vperm.slane %v3963, 6
    %v3972 = vperm.slane %v3964, 6
    %v3973 = vperm.slane %v3965, 6
    %v3974 = vperm.slane %v3966, 6
    %v3975 = vperm.slane %v3967, 6
    %v3976 = vperm.slane %v3968, 6
    %v3977 = vperm.slane %v3969, 6
    %v3978 = vperm.slane %v3970, 6
    %v3979 = vmul.f32 %v3952, %v3971
    %v3980 = vmul.f32 %v3954, %v3971
    %v3981 = vmul.f32 %v3952, %v3972
    %v3982 = vmul.f32 %v3954, %v3972
    %v3983 = vmul.f32 %v3952, %v3973
    %v3984 = vmul.f32 %v3954, %v3973
    %v3985 = vmul.f32 %v3952, %v3974
    %v3986 = vmul.f32 %v3954, %v3974
    %v3987 = vmul.f32 %v3952, %v3975
    %v3988 = vmul.f32 %v3954, %v3975
    %v3989 = vmul.f32 %v3952, %v3976
    %v3990 = vmul.f32 %v3954, %v3976
    %v3991 = vmul.f32 %v3952, %v3977
    %v3992 = vmul.f32 %v3954, %v3977
    %v3993 = vmul.f32 %v3952, %v3978
    %v3994 = vmul.f32 %v3954, %v3978
    %v3995 = vadd.f32 %v3888, %v3979
    %v3996 = vadd.f32 %v3889, %v3980
    %v3997 = vadd.f32 %v3890, %v3981
    %v3998 = vadd.f32 %v3891, %v3982
    %v3999 = vadd.f32 %v3892, %v3983
    %v4000 = vadd.f32 %v3893, %v3984
    %v4001 = vadd.f32 %v3894, %v3985
    %v4002 = vadd.f32 %v3895, %v3986
    %v4003 = vadd.f32 %v3896, %v3987
    %v4004 = vadd.f32 %v3897, %v3988
    %v4005 = vadd.f32 %v3898, %v3989
    %v4006 = vadd.f32 %v3899, %v3990
    %v4007 = vadd.f32 %v3900, %v3991
    %v4008 = vadd.f32 %v3901, %v3992
    %v4009 = vadd.f32 %v3902, %v3993
    %v4010 = vadd.f32 %v3903, %v3994
    %v4011 = vperm.slane %v314, 7
    %v4012 = vperm.slane %v336, 7
    %v4013 = vperm.slane %v358, 7
    %v4014 = vperm.slane %v380, 7
    %v4015 = vperm.slane %v402, 7
    %v4016 = vperm.slane %v424, 7
    %v4017 = vperm.slane %v446, 7
    %v4018 = vperm.slane %v468, 7
    %v4019 = vmul.f32 %v313, %v4011
    %v4020 = vmul.f32 %v314, %v4011
    %v4021 = vmul.f32 %v335, %v4012
    %v4022 = vmul.f32 %v336, %v4012
    %v4023 = vmul.f32 %v357, %v4013
    %v4024 = vmul.f32 %v358, %v4013
    %v4025 = vmul.f32 %v379, %v4014
    %v4026 = vmul.f32 %v380, %v4014
    %v4027 = vmul.f32 %v401, %v4015
    %v4028 = vmul.f32 %v402, %v4015
    %v4029 = vmul.f32 %v423, %v4016
    %v4030 = vmul.f32 %v424, %v4016
    %v4031 = vmul.f32 %v445, %v4017
    %v4032 = vmul.f32 %v446, %v4017
    %v4033 = vmul.f32 %v467, %v4018
    %v4034 = vmul.f32 %v468, %v4018
    %v4035 = vadd.f32 %v4019, %v4021
    %v4036 = vadd.f32 %v4035, %v4023
    %v4037 = vadd.f32 %v4036, %v4025
    %v4038 = vadd.f32 %v4037, %v4027
    %v4039 = vadd.f32 %v4038, %v4029
    %v4040 = vadd.f32 %v4039, %v4031
    %v4041 = vadd.f32 %v4040, %v4033
    %v4042 = vadd.f32 %v4020, %v4022
    %v4043 = vadd.f32 %v4042, %v4024
    %v4044 = vadd.f32 %v4043, %v4026
    %v4045 = vadd.f32 %v4044, %v4028
    %v4046 = vadd.f32 %v4045, %v4030
    %v4047 = vadd.f32 %v4046, %v4032
    %v4048 = vadd.f32 %v4047, %v4034
    %v4049 = vmax.f32 %v4041, %v4048
    %v4050 = vrot.slane %v4049, 4
    %v4051 = vmax.f32 %v4049, %v4050
    %v4052 = vrot.slane %v4051, 2
    %v4053 = vmax.f32 %v4051, %v4052
    %v4054 = vrot.slane %v4053, 1
    %v4055 = vmax.f32 %v4053, %v4054
    %v4056 = vsub.f32 %v4041, %v4055
    %v4057 = vsub.f32 %v4048, %v4055
    %v4058 = vmul.f32 %v4056, 1.442695
    %v4059 = vpow.pop %v4058
    %v4060 = vmul.f32 %v4057, 1.442695
    %v4061 = vpow.pop %v4060
    %v4062 = vadd.f32 %v4059, %v4061
    %v4063 = vrot.slane %v4062, 4
    %v4064 = vadd.f32 %v4062, %v4063
    %v4065 = vrot.slane %v4064, 2
    %v4066 = vadd.f32 %v4064, %v4065
    %v4067 = vrot.slane %v4066, 1
    %v4068 = vadd.f32 %v4066, %v4067
    %v4069 = vrcp.pop %v4068
    %v4070 = vmul.f32 %v2194, %v4069
    %v4071 = vmul.f32 %v2224, %v4069
    %v4072 = vmul.f32 %v2254, %v4069
    %v4073 = vmul.f32 %v2284, %v4069
    %v4074 = vmul.f32 %v2314, %v4069
    %v4075 = vmul.f32 %v2344, %v4069
    %v4076 = vmul.f32 %v2374, %v4069
    %v4077 = vmul.f32 %v2404, %v4069
    %v4078 = vperm.slane %v4070, 7
    %v4079 = vperm.slane %v4071, 7
    %v4080 = vperm.slane %v4072, 7
    %v4081 = vperm.slane %v4073, 7
    %v4082 = vperm.slane %v4074, 7
    %v4083 = vperm.slane %v4075, 7
    %v4084 = vperm.slane %v4076, 7
    %v4085 = vperm.slane %v4077, 7
    %v4086 = vmul.f32 %v4059, %v4078
    %v4087 = vmul.f32 %v4061, %v4078
    %v4088 = vmul.f32 %v4059, %v4079
    %v4089 = vmul.f32 %v4061, %v4079
    %v4090 = vmul.f32 %v4059, %v4080
    %v4091 = vmul.f32 %v4061, %v4080
    %v4092 = vmul.f32 %v4059, %v4081
    %v4093 = vmul.f32 %v4061, %v4081
    %v4094 = vmul.f32 %v4059, %v4082
    %v4095 = vmul.f32 %v4061, %v4082
    %v4096 = vmul.f32 %v4059, %v4083
    %v4097 = vmul.f32 %v4061, %v4083
    %v4098 = vmul.f32 %v4059, %v4084
    %v4099 = vmul.f32 %v4061, %v4084
    %v4100 = vmul.f32 %v4059, %v4085
    %v4101 = vmul.f32 %v4061, %v4085
    %v4102 = vadd.f32 %v3995, %v4086
    %v4103 = vadd.f32 %v3996, %v4087
    %v4104 = vadd.f32 %v3997, %v4088
    %v4105 = vadd.f32 %v3998, %v4089
    %v4106 = vadd.f32 %v3999, %v4090
    %v4107 = vadd.f32 %v4000, %v4091
    %v4108 = vadd.f32 %v4001, %v4092
    %v4109 = vadd.f32 %v4002, %v4093
    %v4110 = vadd.f32 %v4003, %v4094
    %v4111 = vadd.f32 %v4004, %v4095
    %v4112 = vadd.f32 %v4005, %v4096
    %v4113 = vadd.f32 %v4006, %v4097
    %v4114 = vadd.f32 %v4007, %v4098
    %v4115 = vadd.f32 %v4008, %v4099
    %v4116 = vadd.f32 %v4009, %v4100
    %v4117 = vadd.f32 %v4010, %v4101
    %v4118 = vstv %s2405
    %v4119 = vmul.f32 %v4118, %v4102
    %v4120 = vmul.f32 %v4118, %v4103
    %v4121 = vmul.f32 %v4118, %v4104
    %v4122 = vmul.f32 %v4118, %v4105
    %v4123 = vmul.f32 %v4118, %v4106
    %v4124 = vmul.f32 %v4118, %v4107
    %v4125 = vmul.f32 %v4118, %v4108
    %v4126 = vmul.f32 %v4118, %v4109
    %v4127 = vmul.f32 %v4118, %v4110
    %v4128 = vmul.f32 %v4118, %v4111
    %v4129 = vmul.f32 %v4118, %v4112
    %v4130 = vmul.f32 %v4118, %v4113
    %v4131 = vmul.f32 %v4118, %v4114
    %v4132 = vmul.f32 %v4118, %v4115
    %v4133 = vmul.f32 %v4118, %v4116
    %v4134 = vmul.f32 %v4118, %v4117
    %v4135 = vadd.f32 %v4119, %v2179
    %v4136 = vadd.f32 %v4120, %v2194
    %v4137 = vadd.f32 %v4121, %v2209
    %v4138 = vadd.f32 %v4122, %v2224
    %v4139 = vadd.f32 %v4123, %v2239
    %v4140 = vadd.f32 %v4124, %v2254
    %v4141 = vadd.f32 %v4125, %v2269
    %v4142 = vadd.f32 %v4126, %v2284
    %v4143 = vadd.f32 %v4127, %v2299
    %v4144 = vadd.f32 %v4128, %v2314
    %v4145 = vadd.f32 %v4129, %v2329
    %v4146 = vadd.f32 %v4130, %v2344
    %v4147 = vadd.f32 %v4131, %v2359
    %v4148 = vadd.f32 %v4132, %v2374
    %v4149 = vadd.f32 %v4133, %v2389
    %v4150 = vadd.f32 %v4134, %v2404
    %4151 = vst [vmem:[%s8] sm:$0xff] %v4135
    %4152 = vst [vmem:[%s8 + $0x8] sm:$0xff] %v4136
    %4153 = vst [vmem:[%s8 + $0x10] sm:$0xff] %v4137
    %4154 = vst [vmem:[%s8 + $0x18] sm:$0xff] %v4138
    %4155 = vst [vmem:[%s8 + $0x20] sm:$0xff] %v4139
    %4156 = vst [vmem:[%s8 + $0x28] sm:$0xff] %v4140
    %4157 = vst [vmem:[%s8 + $0x30] sm:$0xff] %v4141
    %4158 = vst [vmem:[%s8 + $0x38] sm:$0xff] %v4142
    %4159 = vst [vmem:[%s8 + $0x40] sm:$0xff] %v4143
    %4160 = vst [vmem:[%s8 + $0x48] sm:$0xff] %v4144
    %4161 = vst [vmem:[%s8 + $0x50] sm:$0xff] %v4145
    %4162 = vst [vmem:[%s8 + $0x58] sm:$0xff] %v4146
    %4163 = vst [vmem:[%s8 + $0x60] sm:$0xff] %v4147
    %4164 = vst [vmem:[%s8 + $0x68] sm:$0xff] %v4148
    %4165 = vst [vmem:[%s8 + $0x70] sm:$0xff] %v4149
    %4166 = vst [vmem:[%s8 + $0x78] sm:$0xff] %v4150
    // Predicated region
    $region58: #{self_attn_forward.1} parent=1 // pred_check
      _
    $region59: #{self_attn_forward.1} parent=1 // pred_check_branch
      %4168 = sbr.rel (0) target = $region61
    $region60: #{self_attn_forward.1} parent=1 // pred_region
      _
    $region61: #{self_attn_forward.1} parent=1 // pred_fallthru
      _
    // Predicated region
    $region62: #{self_attn_forward.1} parent=1 // pred_check
      _
    $region63: #{self_attn_forward.1} parent=1 // pred_check_branch
      %4170 = sbr.rel (0) target = $region65
    $region64: #{self_attn_forward.1} parent=1 // pred_region
      _
    $region65: #{self_attn_forward.1} parent=1 // pred_fallthru
      _
    %4171 = vsyncpa [#allocation4], 1
    %4172 = vsyncpa [#allocation6], 1
    %4173 = vsyncpa [#allocation9], 1
    %4174 = vsyncpa [#allocation12], 1

</llo_original>
